<compile_context>
chip_gen: v7x
topology: tpu7x:2x2x1
jax: 0.10.0
libtpu: 0.0.40
codegen_flags: <defaults>
</compile_context>

<pallas_src>
import functools

import jax
import jax.numpy as jnp
from jax import lax
from jax.experimental import pallas as pl
from jax.experimental.pallas import tpu as pltpu


def _round_up(v, m):
    return ((v + m - 1) // m) * m


# ----------------------------- Pallas kernels -----------------------------

def _conv3x3_single_dot_stats(x, w_ref, b_ref, m_ref, h_ref, s_ref, q_ref,
                              offsets, out_len):
    """Shared body: one K=9*Cin dot + bias + masked BN sum/sumsq.

    x:      (Lin, Cin) VMEM value (flattened, zero-padded, with halo margin)
    w_ref:  (9*Cin, Cout) weights, tap-major (dy,dx) row-major
    b_ref:  (1, Cout) f32 bias
    m_ref:  (1, out_len, 1) f32 interior mask (for the BN statistics)
    h_ref:  (1, out_len, Cout) conv output (finite garbage at non-interior rows)
    s_ref, q_ref: (1, 1, Cout) f32 masked sum / sum-of-squares
    """
    # 9 static sublane-window slices concatenated along lanes -> (out_len, 9*Cin)
    taps = jnp.concatenate([x[o:o + out_len, :] for o in offsets], axis=1)
    acc = jnp.dot(taps, w_ref[...], preferred_element_type=jnp.float32)
    acc = acc + b_ref[...]                      # f32 accumulator throughout
    h_ref[0] = acc.astype(h_ref.dtype)
    am = acc * m_ref[0]                         # (out_len, Cout) masked
    s_ref[0] = jnp.sum(am, axis=0, keepdims=True)
    q_ref[0] = jnp.sum(acc * am, axis=0, keepdims=True)


def _conv1_stats_kernel(x_ref, w_ref, b_ref, m_ref, h_ref, s_ref, q_ref,
                        *, offsets, out_len):
    """conv1(3x3)+bias on the flattened/padded input + masked BN1 stats."""
    _conv3x3_single_dot_stats(x_ref[0], w_ref, b_ref, m_ref,
                              h_ref, s_ref, q_ref, offsets, out_len)


def _bnrelu_conv2_stats_kernel(h1_ref, sc_ref, sh_ref, m1_ref, w_ref, b_ref,
                               mc_ref, h2_ref, s_ref, q_ref,
                               *, offsets, out_len):
    """BN1+ReLU prologue (zero outside interior) -> conv2(3x3)+bias -> BN2 stats.

    NOTE: the *m1 multiply is what neutralizes the garbage halo rows of h1 and
    restores SAME-padding semantics for conv2 — do not drop or reorder it.
    """
    y1 = jnp.maximum(h1_ref[0].astype(jnp.float32) * sc_ref[...] + sh_ref[...],
                     0.0) * m1_ref[0]
    _conv3x3_single_dot_stats(y1.astype(w_ref.dtype), w_ref, b_ref, mc_ref,
                              h2_ref, s_ref, q_ref, offsets, out_len)


# ----------------------------- wrappers -----------------------------------

def _bn_affine_from_sums(s_nc, q_nc, gamma, beta, count, eps=1e-5):
    """Fold per-image masked sums into per-channel scale/shift (train-mode BN).

    Single-pass E[x^2]-E[x]^2 in f32 (clamped at 0): fine for well-centered
    activations; switch to mean-shifted accumulation if that changes.
    """
    s = jnp.sum(s_nc, axis=(0, 1))
    q = jnp.sum(q_nc, axis=(0, 1))
    mean = s / count
    var = jnp.maximum(q / count - mean * mean, 0.0)   # biased (PyTorch train)
    scale = gamma * lax.rsqrt(var + eps)
    shift = beta - mean * scale
    return scale.reshape(1, -1), shift.reshape(1, -1)


def double_conv_pallas(x_nhwc, params, acts_dtype=jnp.float32, eps=1e-5):
    """(Conv3x3 -> BN(train) -> ReLU) x 2; NHWC input, NCHW output."""
    n, h, w, cin = x_nhwc.shape
    c1 = params["w1"].shape[-1]
    c2 = params["w2"].shape[-1]

    wp = _round_up(w + 2, 8)       # row pitch, multiple of 8 -> dy*wp aligned
    lp = (h + 2) * wp              # canonical flattened (padded) length
    halo = wp + 1                  # per-conv shift so h2 lands back in canonical
    l1 = lp + 2 * halo             # conv1 output length (carries conv2's halo)
    l0 = lp + 4 * halo             # conv1 input length
    offsets = tuple(dy * wp + dx for dy in range(3) for dx in range(3))

    # flattened zero-padded input with a 2*halo zero margin on each side
    xp = jnp.pad(x_nhwc, ((0, 0), (1, 1), (1, wp - 1 - w), (0, 0)))
    xp = xp.reshape(n, lp, cin)
    x0 = jnp.pad(xp, ((0, 0), (2 * halo, 2 * halo), (0, 0))).astype(acts_dtype)

    # interior-pixel masks (f32, lane-width 1) for the BN statistics / prologue
    rows = jnp.arange(h + 2)
    cols = jnp.arange(wp)
    interior = (((rows >= 1) & (rows <= h))[:, None]
                & ((cols >= 1) & (cols <= w))[None, :])
    mask_c = interior.reshape(1, lp, 1).astype(jnp.float32)     # canonical frame
    mask_1 = jnp.pad(mask_c, ((0, 0), (halo, halo), (0, 0)))    # h1 frame

    w1 = params["w1"].reshape(9 * cin, c1).astype(acts_dtype)   # tap-major rows
    b1 = params["b1"].reshape(1, c1).astype(jnp.float32)
    w2 = params["w2"].reshape(9 * c1, c2).astype(acts_dtype)
    b2 = params["b2"].reshape(1, c2).astype(jnp.float32)

    cparams = pltpu.CompilerParams(dimension_semantics=("parallel",),
                                   vmem_limit_bytes=32 * 1024 * 1024)

    # ---- kernel A: conv1 + bias + BN1 stats --------------------------------
    h1, s1, q1 = pl.pallas_call(
        functools.partial(_conv1_stats_kernel, offsets=offsets, out_len=l1),
        out_shape=(jax.ShapeDtypeStruct((n, l1, c1), acts_dtype),
                   jax.ShapeDtypeStruct((n, 1, c1), jnp.float32),
                   jax.ShapeDtypeStruct((n, 1, c1), jnp.float32)),
        grid=(n,),
        in_specs=[
            pl.BlockSpec((1, l0, cin), lambda i: (i, 0, 0)),
            pl.BlockSpec((9 * cin, c1), lambda i: (0, 0)),
            pl.BlockSpec((1, c1), lambda i: (0, 0)),
            pl.BlockSpec((1, l1, 1), lambda i: (0, 0, 0)),
        ],
        out_specs=(
            pl.BlockSpec((1, l1, c1), lambda i: (i, 0, 0)),
            pl.BlockSpec((1, 1, c1), lambda i: (i, 0, 0)),
            pl.BlockSpec((1, 1, c1), lambda i: (i, 0, 0)),
        ),
        compiler_params=cparams,
    )(x0, w1, b1, mask_1)

    scale1, shift1 = _bn_affine_from_sums(s1, q1, params["g1"], params["beta1"],
                                          n * h * w, eps)

    # ---- kernel B: BN1+ReLU prologue + conv2 + bias + BN2 stats ------------
    h2, s2, q2 = pl.pallas_call(
        functools.partial(_bnrelu_conv2_stats_kernel, offsets=offsets,
                          out_len=lp),
        out_shape=(jax.ShapeDtypeStruct((n, lp, c2), acts_dtype),
                   jax.ShapeDtypeStruct((n, 1, c2), jnp.float32),
                   jax.ShapeDtypeStruct((n, 1, c2), jnp.float32)),
        grid=(n,),
        in_specs=[
            pl.BlockSpec((1, l1, c1), lambda i: (i, 0, 0)),
            pl.BlockSpec((1, c1), lambda i: (0, 0)),
            pl.BlockSpec((1, c1), lambda i: (0, 0)),
            pl.BlockSpec((1, l1, 1), lambda i: (0, 0, 0)),
            pl.BlockSpec((9 * c1, c2), lambda i: (0, 0)),
            pl.BlockSpec((1, c2), lambda i: (0, 0)),
            pl.BlockSpec((1, lp, 1), lambda i: (0, 0, 0)),
        ],
        out_specs=(
            pl.BlockSpec((1, lp, c2), lambda i: (i, 0, 0)),
            pl.BlockSpec((1, 1, c2), lambda i: (i, 0, 0)),
            pl.BlockSpec((1, 1, c2), lambda i: (i, 0, 0)),
        ),
        compiler_params=cparams,
    )(h1, scale1, shift1, mask_1, w2, b2, mask_c)

    scale2, shift2 = _bn_affine_from_sums(s2, q2, params["g2"], params["beta2"],
                                          n * h * w, eps)

    # ---- epilogue: BN2 + ReLU + crop + NCHW transpose in ONE XLA fusion ----
    y = jnp.maximum(h2.astype(jnp.float32) * scale2[:, None, :]
                    + shift2[:, None, :], 0.0)
    y = y.reshape(n, h + 2, wp, c2)[:, 1:h + 1, 1:w + 1, :]
    return jnp.transpose(y, (0, 3, 1, 2))        # -> NCHW, f32


def upsample_bilinear_x2_align_corners(x_nhwc):
    """scale_factor=2 bilinear upsample with align_corners=True (NHWC)."""
    n, h, w, c = x_nhwc.shape
    ho, wo = 2 * h, 2 * w
    sy = (h - 1) / (ho - 1) if ho > 1 else 0.0
    sx = (w - 1) / (wo - 1) if wo > 1 else 0.0
    ys = jnp.arange(ho, dtype=jnp.float32) * sy
    xs = jnp.arange(wo, dtype=jnp.float32) * sx
    y0 = jnp.floor(ys).astype(jnp.int32)
    x0 = jnp.floor(xs).astype(jnp.int32)
    y1 = jnp.minimum(y0 + 1, h - 1)
    x1 = jnp.minimum(x0 + 1, w - 1)
    wy = (ys - y0.astype(jnp.float32))[None, :, None, None]
    wx = (xs - x0.astype(jnp.float32))[None, None, :, None]
    top = x_nhwc[:, y0, :, :]
    bot = x_nhwc[:, y1, :, :]
    v = top * (1.0 - wy) + bot * wy
    left = v[:, :, x0, :]
    right = v[:, :, x1, :]
    return left * (1.0 - wx) + right * wx


def up_forward(params, x1_nchw, x2_nchw, acts_dtype=jnp.float32):
    """Up.forward(x1, x2) — inputs NCHW like PyTorch, output NCHW f32."""
    x1 = jnp.transpose(x1_nchw, (0, 2, 3, 1))    # -> NHWC
    x2 = jnp.transpose(x2_nchw, (0, 2, 3, 1))

    # TODO(synk): fuse upsample+pad+concat into kernel A's prologue for
    # production shapes; at these sizes it is a small XLA prologue.
    x1 = upsample_bilinear_x2_align_corners(x1)
    diff_y = x2.shape[1] - x1.shape[1]
    diff_x = x2.shape[2] - x1.shape[2]
    x1 = jnp.pad(x1, ((0, 0),
                      (diff_y // 2, diff_y - diff_y // 2),
                      (diff_x // 2, diff_x - diff_x // 2),
                      (0, 0)))
    x = jnp.concatenate([x2, x1], axis=-1)       # channel concat (NHWC)
    return double_conv_pallas(x, params, acts_dtype=acts_dtype)


# ----------------------------- pure-JAX reference --------------------------

def _conv3x3_ref(x_nhwc, w_hwio, bias):
    y = lax.conv_general_dilated(
        x_nhwc, w_hwio, window_strides=(1, 1), padding=((1, 1), (1, 1)),
        dimension_numbers=("NHWC", "HWIO", "NHWC"))
    return y + bias


def _bn_relu_ref(x, gamma, beta, eps=1e-5):
    mean = jnp.mean(x, axis=(0, 1, 2))
    var = jnp.mean((x - mean) ** 2, axis=(0, 1, 2))
    y = (x - mean) / jnp.sqrt(var + eps) * gamma + beta
    return jnp.maximum(y, 0.0)


def up_forward_ref(params, x1_nchw, x2_nchw):
    x1 = jnp.transpose(x1_nchw, (0, 2, 3, 1))
    x2 = jnp.transpose(x2_nchw, (0, 2, 3, 1))
    x1 = upsample_bilinear_x2_align_corners(x1)
    dy = x2.shape[1] - x1.shape[1]
    dx = x2.shape[2] - x1.shape[2]
    x1 = jnp.pad(x1, ((0, 0), (dy // 2, dy - dy // 2),
                      (dx // 2, dx - dx // 2), (0, 0)))
    x = jnp.concatenate([x2, x1], axis=-1)
    h = _bn_relu_ref(_conv3x3_ref(x, params["w1"], params["b1"]),
                     params["g1"], params["beta1"])
    h = _bn_relu_ref(_conv3x3_ref(h, params["w2"], params["b2"]),
                     params["g2"], params["beta2"])
    return jnp.transpose(h, (0, 3, 1, 2))


# ----------------------------- main ----------------------------------------

if __name__ == "__main__":
    # Up(in_channels=8, out_channels=4, bilinear=True)
    # x1: decoder feature (coarse), x2: skip connection (fine).
    N, C1, H1, W1 = 2, 4, 8, 8
    C2, H2, W2 = 4, 16, 16
    in_ch = C1 + C2          # 8
    out_ch = 4

    key = jax.random.PRNGKey(0)
    kx1, kx2, kw1, kb1, kw2, kb2 = jax.random.split(key, 6)

    x1 = jax.random.normal(kx1, (N, C1, H1, W1), dtype=jnp.float32)
    x2 = jax.random.normal(kx2, (N, C2, H2, W2), dtype=jnp.float32)

    params = {
        # conv weights stored HWIO (3,3,Cin,Cout)
        "w1": jax.random.normal(kw1, (3, 3, in_ch, out_ch), jnp.float32) * 0.1,
        "b1": jax.random.normal(kb1, (out_ch,), jnp.float32) * 0.1,
        "g1": jnp.ones((out_ch,), jnp.float32),     # BatchNorm default init
        "beta1": jnp.zeros((out_ch,), jnp.float32),
        "w2": jax.random.normal(kw2, (3, 3, out_ch, out_ch), jnp.float32) * 0.1,
        "b2": jax.random.normal(kb2, (out_ch,), jnp.float32) * 0.1,
        "g2": jnp.ones((out_ch,), jnp.float32),
        "beta2": jnp.zeros((out_ch,), jnp.float32),
    }

    ref = jax.block_until_ready(up_forward_ref(params, x1, x2))

    # f32 path (tight check)
    up_f32 = jax.jit(functools.partial(up_forward, acts_dtype=jnp.float32))
    out_f32 = jax.block_until_ready(up_f32(params, x1, x2))
    assert out_f32.shape == (N, out_ch, H2, W2), out_f32.shape
    assert jnp.allclose(out_f32, ref, atol=2e-3, rtol=2e-3), (
        float(jnp.max(jnp.abs(out_f32 - ref))))

    # bf16 activations/weights, f32 accumulation + f32 BN stats (loose check)
    up_bf16 = jax.jit(functools.partial(up_forward, acts_dtype=jnp.bfloat16))
    out_bf16 = jax.block_until_ready(up_bf16(params, x1, x2))
    assert out_bf16.shape == (N, out_ch, H2, W2), out_bf16.shape
    assert jnp.allclose(out_bf16, ref, atol=8e-2, rtol=8e-2), (
        float(jnp.max(jnp.abs(out_bf16 - ref))))

    print("KERNEL_OK")
</pallas_src>

<mosaic_0001>
module attributes {stable_mosaic.version = 11 : i64} {
  func.func @_bnrelu_conv2_stats_kernel(%arg0: i32, %arg1: memref<1x482x4xf32, #tpu.memory_space<vmem>>, %arg2: memref<1x4xf32, #tpu.memory_space<vmem>>, %arg3: memref<1x4xf32, #tpu.memory_space<vmem>>, %arg4: memref<1x482x1xf32, #tpu.memory_space<vmem>>, %arg5: memref<36x4xf32, #tpu.memory_space<vmem>>, %arg6: memref<1x4xf32, #tpu.memory_space<vmem>>, %arg7: memref<1x432x1xf32, #tpu.memory_space<vmem>>, %arg8: memref<1x432x4xf32, #tpu.memory_space<vmem>>, %arg9: memref<1x1x4xf32, #tpu.memory_space<vmem>>, %arg10: memref<1x1x4xf32, #tpu.memory_space<vmem>>) attributes {dimension_semantics = [#tpu.dimension_semantics<parallel>], iteration_bounds = array<i64: 2>, scalar_prefetch = 0 : i64, scratch_operands = 0 : i64, tpu.core_type = #tpu.core_type<tc>, window_params = [{transform_indices = @transform_0, window_bounds = array<i64: 1, 482, 4>}, {pipeline_mode = #tpu.pipeline_mode<synchronous>, transform_indices = @transform_1, window_bounds = array<i64: 1, 4>}, {pipeline_mode = #tpu.pipeline_mode<synchronous>, transform_indices = @transform_2, window_bounds = array<i64: 1, 4>}, {pipeline_mode = #tpu.pipeline_mode<synchronous>, transform_indices = @transform_3, window_bounds = array<i64: 1, 482, 1>}, {pipeline_mode = #tpu.pipeline_mode<synchronous>, transform_indices = @transform_4, window_bounds = array<i64: 36, 4>}, {pipeline_mode = #tpu.pipeline_mode<synchronous>, transform_indices = @transform_5, window_bounds = array<i64: 1, 4>}, {pipeline_mode = #tpu.pipeline_mode<synchronous>, transform_indices = @transform_6, window_bounds = array<i64: 1, 432, 1>}, {transform_indices = @transform_7, window_bounds = array<i64: 1, 432, 4>}, {transform_indices = @transform_8, window_bounds = array<i64: 1, 1, 4>}, {transform_indices = @transform_9, window_bounds = array<i64: 1, 1, 4>}]} {
    %c0 = arith.constant 0 : index
    %c0_0 = arith.constant 0 : index
    %c0_1 = arith.constant 0 : index
    %0 = vector.load %arg1[%c0, %c0_0, %c0_1] : memref<1x482x4xf32, #tpu.memory_space<vmem>>, vector<1x482x4xf32>
    %1 = vector.shape_cast %0 : vector<1x482x4xf32> to vector<482x4xf32>
    %c0_2 = arith.constant 0 : index
    %c0_3 = arith.constant 0 : index
    %2 = vector.load %arg2[%c0_2, %c0_3] : memref<1x4xf32, #tpu.memory_space<vmem>>, vector<1x4xf32>
    %3 = vector.broadcast %2 : vector<1x4xf32> to vector<482x4xf32>
    %4 = arith.mulf %1, %3 : vector<482x4xf32>
    %c0_4 = arith.constant 0 : index
    %c0_5 = arith.constant 0 : index
    %5 = vector.load %arg3[%c0_4, %c0_5] : memref<1x4xf32, #tpu.memory_space<vmem>>, vector<1x4xf32>
    %6 = vector.broadcast %5 : vector<1x4xf32> to vector<482x4xf32>
    %7 = arith.addf %4, %6 : vector<482x4xf32>
    %cst = arith.constant 0.000000e+00 : f32
    %8 = vector.broadcast %cst : f32 to vector<482x4xf32>
    %9 = arith.maximumf %7, %8 : vector<482x4xf32>
    %c0_6 = arith.constant 0 : index
    %c0_7 = arith.constant 0 : index
    %c0_8 = arith.constant 0 : index
    %10 = vector.load %arg4[%c0_6, %c0_7, %c0_8] : memref<1x482x1xf32, #tpu.memory_space<vmem>>, vector<1x482x1xf32>
    %11 = vector.shape_cast %10 : vector<1x482x1xf32> to vector<482x1xf32>
    %12 = vector.broadcast %11 : vector<482x1xf32> to vector<482x4xf32>
    %13 = arith.mulf %9, %12 : vector<482x4xf32>
    %14 = vector.extract_strided_slice %13 {offsets = [0, 0], sizes = [432, 4], strides = [1, 1]} : vector<482x4xf32> to vector<432x4xf32>
    %15 = vector.extract_strided_slice %13 {offsets = [1, 0], sizes = [432, 4], strides = [1, 1]} : vector<482x4xf32> to vector<432x4xf32>
    %16 = vector.extract_strided_slice %13 {offsets = [2, 0], sizes = [432, 4], strides = [1, 1]} : vector<482x4xf32> to vector<432x4xf32>
    %17 = vector.extract_strided_slice %13 {offsets = [24, 0], sizes = [432, 4], strides = [1, 1]} : vector<482x4xf32> to vector<432x4xf32>
    %18 = vector.extract_strided_slice %13 {offsets = [25, 0], sizes = [432, 4], strides = [1, 1]} : vector<482x4xf32> to vector<432x4xf32>
    %19 = vector.extract_strided_slice %13 {offsets = [26, 0], sizes = [432, 4], strides = [1, 1]} : vector<482x4xf32> to vector<432x4xf32>
    %20 = vector.extract_strided_slice %13 {offsets = [48, 0], sizes = [432, 4], strides = [1, 1]} : vector<482x4xf32> to vector<432x4xf32>
    %21 = vector.extract_strided_slice %13 {offsets = [49, 0], sizes = [432, 4], strides = [1, 1]} : vector<482x4xf32> to vector<432x4xf32>
    %22 = vector.extract_strided_slice %13 {offsets = [50, 0], sizes = [432, 4], strides = [1, 1]} : vector<482x4xf32> to vector<432x4xf32>
    %23 = tpu.concatenate %14, %15, %16, %17, %18, %19, %20, %21, %22 in 1 : vector<432x4xf32>, vector<432x4xf32>, vector<432x4xf32>, vector<432x4xf32>, vector<432x4xf32>, vector<432x4xf32>, vector<432x4xf32>, vector<432x4xf32>, vector<432x4xf32> -> vector<432x36xf32>
    %c0_9 = arith.constant 0 : index
    %c0_10 = arith.constant 0 : index
    %24 = vector.load %arg5[%c0_9, %c0_10] : memref<36x4xf32, #tpu.memory_space<vmem>>, vector<36x4xf32>
    %cst_11 = arith.constant dense<0.000000e+00> : vector<432x4xf32>
    %25 = tpu.matmul %23, %24, %cst_11 {dimension_numbers = #tpu.dot_dimension_numbers<[1], [0], [0], [1], [0, 0, 1, 1], [], []>} : vector<432x36xf32>, vector<36x4xf32>, vector<432x4xf32> -> vector<432x4xf32>
    %c0_12 = arith.constant 0 : index
    %c0_13 = arith.constant 0 : index
    %26 = vector.load %arg6[%c0_12, %c0_13] : memref<1x4xf32, #tpu.memory_space<vmem>>, vector<1x4xf32>
    %27 = vector.broadcast %26 : vector<1x4xf32> to vector<432x4xf32>
    %28 = arith.addf %25, %27 : vector<432x4xf32>
    %c0_14 = arith.constant 0 : index
    %c0_15 = arith.constant 0 : index
    %c0_16 = arith.constant 0 : index
    %29 = vector.load %arg8[%c0_14, %c0_15, %c0_16] : memref<1x432x4xf32, #tpu.memory_space<vmem>>, vector<1x432x4xf32>
    %30 = vector.shape_cast %29 : vector<1x432x4xf32> to vector<432x4xf32>
    %31 = vector.shape_cast %28 : vector<432x4xf32> to vector<1x432x4xf32>
    tpu.vector_store %arg8[%c0_14, %c0_15, %c0_16], %31 {strides = array<i32>} : memref<1x432x4xf32, #tpu.memory_space<vmem>>, vector<1x432x4xf32>,
    %c0_17 = arith.constant 0 : index
    %c0_18 = arith.constant 0 : index
    %c0_19 = arith.constant 0 : index
    %32 = vector.load %arg7[%c0_17, %c0_18, %c0_19] : memref<1x432x1xf32, #tpu.memory_space<vmem>>, vector<1x432x1xf32>
    %33 = vector.shape_cast %32 : vector<1x432x1xf32> to vector<432x1xf32>
    %34 = vector.broadcast %33 : vector<432x1xf32> to vector<432x4xf32>
    %35 = arith.mulf %28, %34 : vector<432x4xf32>
    %cst_20 = arith.constant dense<0.000000e+00> : vector<4xf32>
    %36 = vector.multi_reduction <add>, %35, %cst_20 [0] : vector<432x4xf32> to vector<4xf32>
    %37 = vector.shape_cast %36 : vector<4xf32> to vector<1x4xf32>
    %c0_21 = arith.constant 0 : index
    %c0_22 = arith.constant 0 : index
    %c0_23 = arith.constant 0 : index
    %38 = vector.load %arg9[%c0_21, %c0_22, %c0_23] : memref<1x1x4xf32, #tpu.memory_space<vmem>>, vector<1x1x4xf32>
    %39 = vector.shape_cast %38 : vector<1x1x4xf32> to vector<1x4xf32>
    %40 = vector.shape_cast %37 : vector<1x4xf32> to vector<1x1x4xf32>
    tpu.vector_store %arg9[%c0_21, %c0_22, %c0_23], %40 {strides = array<i32>} : memref<1x1x4xf32, #tpu.memory_space<vmem>>, vector<1x1x4xf32>,
    %41 = arith.mulf %28, %35 : vector<432x4xf32>
    %cst_24 = arith.constant dense<0.000000e+00> : vector<4xf32>
    %42 = vector.multi_reduction <add>, %41, %cst_24 [0] : vector<432x4xf32> to vector<4xf32>
    %43 = vector.shape_cast %42 : vector<4xf32> to vector<1x4xf32>
    %c0_25 = arith.constant 0 : index
    %c0_26 = arith.constant 0 : index
    %c0_27 = arith.constant 0 : index
    %44 = vector.load %arg10[%c0_25, %c0_26, %c0_27] : memref<1x1x4xf32, #tpu.memory_space<vmem>>, vector<1x1x4xf32>
    %45 = vector.shape_cast %44 : vector<1x1x4xf32> to vector<1x4xf32>
    %46 = vector.shape_cast %43 : vector<1x4xf32> to vector<1x1x4xf32>
    tpu.vector_store %arg10[%c0_25, %c0_26, %c0_27], %46 {strides = array<i32>} : memref<1x1x4xf32, #tpu.memory_space<vmem>>, vector<1x1x4xf32>,
    return
  }
  func.func @transform_0(%arg0: i32) -> (i32, i32, i32) {
    %c0_i32 = arith.constant 0 : i32
    %c0_i32_0 = arith.constant 0 : i32
    %c0_i32_1 = arith.constant 0 : i32
    return %arg0, %c0_i32, %c0_i32_0 : i32, i32, i32
  }
  func.func @transform_1(%arg0: i32) -> (i32, i32) {
    %c0_i32 = arith.constant 0 : i32
    %c0_i32_0 = arith.constant 0 : i32
    %c0_i32_1 = arith.constant 0 : i32
    return %c0_i32, %c0_i32_0 : i32, i32
  }
  func.func @transform_2(%arg0: i32) -> (i32, i32) {
    %c0_i32 = arith.constant 0 : i32
    %c0_i32_0 = arith.constant 0 : i32
    %c0_i32_1 = arith.constant 0 : i32
    return %c0_i32, %c0_i32_0 : i32, i32
  }
  func.func @transform_3(%arg0: i32) -> (i32, i32, i32) {
    %c0_i32 = arith.constant 0 : i32
    %c0_i32_0 = arith.constant 0 : i32
    %c0_i32_1 = arith.constant 0 : i32
    %c0_i32_2 = arith.constant 0 : i32
    return %c0_i32, %c0_i32_0, %c0_i32_1 : i32, i32, i32
  }
  func.func @transform_4(%arg0: i32) -> (i32, i32) {
    %c0_i32 = arith.constant 0 : i32
    %c0_i32_0 = arith.constant 0 : i32
    %c0_i32_1 = arith.constant 0 : i32
    return %c0_i32, %c0_i32_0 : i32, i32
  }
  func.func @transform_5(%arg0: i32) -> (i32, i32) {
    %c0_i32 = arith.constant 0 : i32
    %c0_i32_0 = arith.constant 0 : i32
    %c0_i32_1 = arith.constant 0 : i32
    return %c0_i32, %c0_i32_0 : i32, i32
  }
  func.func @transform_6(%arg0: i32) -> (i32, i32, i32) {
    %c0_i32 = arith.constant 0 : i32
    %c0_i32_0 = arith.constant 0 : i32
    %c0_i32_1 = arith.constant 0 : i32
    %c0_i32_2 = arith.constant 0 : i32
    return %c0_i32, %c0_i32_0, %c0_i32_1 : i32, i32, i32
  }
  func.func @transform_7(%arg0: i32) -> (i32, i32, i32) {
    %c0_i32 = arith.constant 0 : i32
    %c0_i32_0 = arith.constant 0 : i32
    %c0_i32_1 = arith.constant 0 : i32
    return %arg0, %c0_i32, %c0_i32_0 : i32, i32, i32
  }
  func.func @transform_8(%arg0: i32) -> (i32, i32, i32) {
    %c0_i32 = arith.constant 0 : i32
    %c0_i32_0 = arith.constant 0 : i32
    %c0_i32_1 = arith.constant 0 : i32
    return %arg0, %c0_i32, %c0_i32_0 : i32, i32, i32
  }
  func.func @transform_9(%arg0: i32) -> (i32, i32, i32) {
    %c0_i32 = arith.constant 0 : i32
    %c0_i32_0 = arith.constant 0 : i32
    %c0_i32_1 = arith.constant 0 : i32
    return %arg0, %c0_i32, %c0_i32_0 : i32, i32, i32
  }
}

module attributes {stable_mosaic.version = 11 : i64} {
  func.func @_conv1_stats_kernel(%arg0: i32, %arg1: memref<1x532x8xf32, #tpu.memory_space<vmem>>, %arg2: memref<72x4xf32, #tpu.memory_space<vmem>>, %arg3: memref<1x4xf32, #tpu.memory_space<vmem>>, %arg4: memref<1x482x1xf32, #tpu.memory_space<vmem>>, %arg5: memref<1x482x4xf32, #tpu.memory_space<vmem>>, %arg6: memref<1x1x4xf32, #tpu.memory_space<vmem>>, %arg7: memref<1x1x4xf32, #tpu.memory_space<vmem>>) attributes {dimension_semantics = [#tpu.dimension_semantics<parallel>], iteration_bounds = array<i64: 2>, scalar_prefetch = 0 : i64, scratch_operands = 0 : i64, tpu.core_type = #tpu.core_type<tc>, window_params = [{transform_indices = @transform_0, window_bounds = array<i64: 1, 532, 8>}, {pipeline_mode = #tpu.pipeline_mode<synchronous>, transform_indices = @transform_1, window_bounds = array<i64: 72, 4>}, {pipeline_mode = #tpu.pipeline_mode<synchronous>, transform_indices = @transform_2, window_bounds = array<i64: 1, 4>}, {pipeline_mode = #tpu.pipeline_mode<synchronous>, transform_indices = @transform_3, window_bounds = array<i64: 1, 482, 1>}, {transform_indices = @transform_4, window_bounds = array<i64: 1, 482, 4>}, {transform_indices = @transform_5, window_bounds = array<i64: 1, 1, 4>}, {transform_indices = @transform_6, window_bounds = array<i64: 1, 1, 4>}]} {
    %c0 = arith.constant 0 : index
    %c0_0 = arith.constant 0 : index
    %c0_1 = arith.constant 0 : index
    %0 = vector.load %arg1[%c0, %c0_0, %c0_1] : memref<1x532x8xf32, #tpu.memory_space<vmem>>, vector<1x532x8xf32>
    %1 = vector.shape_cast %0 : vector<1x532x8xf32> to vector<532x8xf32>
    %2 = vector.extract_strided_slice %1 {offsets = [0, 0], sizes = [482, 8], strides = [1, 1]} : vector<532x8xf32> to vector<482x8xf32>
    %3 = vector.extract_strided_slice %1 {offsets = [1, 0], sizes = [482, 8], strides = [1, 1]} : vector<532x8xf32> to vector<482x8xf32>
    %4 = vector.extract_strided_slice %1 {offsets = [2, 0], sizes = [482, 8], strides = [1, 1]} : vector<532x8xf32> to vector<482x8xf32>
    %5 = vector.extract_strided_slice %1 {offsets = [24, 0], sizes = [482, 8], strides = [1, 1]} : vector<532x8xf32> to vector<482x8xf32>
    %6 = vector.extract_strided_slice %1 {offsets = [25, 0], sizes = [482, 8], strides = [1, 1]} : vector<532x8xf32> to vector<482x8xf32>
    %7 = vector.extract_strided_slice %1 {offsets = [26, 0], sizes = [482, 8], strides = [1, 1]} : vector<532x8xf32> to vector<482x8xf32>
    %8 = vector.extract_strided_slice %1 {offsets = [48, 0], sizes = [482, 8], strides = [1, 1]} : vector<532x8xf32> to vector<482x8xf32>
    %9 = vector.extract_strided_slice %1 {offsets = [49, 0], sizes = [482, 8], strides = [1, 1]} : vector<532x8xf32> to vector<482x8xf32>
    %10 = vector.extract_strided_slice %1 {offsets = [50, 0], sizes = [482, 8], strides = [1, 1]} : vector<532x8xf32> to vector<482x8xf32>
    %11 = tpu.concatenate %2, %3, %4, %5, %6, %7, %8, %9, %10 in 1 : vector<482x8xf32>, vector<482x8xf32>, vector<482x8xf32>, vector<482x8xf32>, vector<482x8xf32>, vector<482x8xf32>, vector<482x8xf32>, vector<482x8xf32>, vector<482x8xf32> -> vector<482x72xf32>
    %c0_2 = arith.constant 0 : index
    %c0_3 = arith.constant 0 : index
    %12 = vector.load %arg2[%c0_2, %c0_3] : memref<72x4xf32, #tpu.memory_space<vmem>>, vector<72x4xf32>
    %cst = arith.constant dense<0.000000e+00> : vector<482x4xf32>
    %13 = tpu.matmul %11, %12, %cst {dimension_numbers = #tpu.dot_dimension_numbers<[1], [0], [0], [1], [0, 0, 1, 1], [], []>} : vector<482x72xf32>, vector<72x4xf32>, vector<482x4xf32> -> vector<482x4xf32>
    %c0_4 = arith.constant 0 : index
    %c0_5 = arith.constant 0 : index
    %14 = vector.load %arg3[%c0_4, %c0_5] : memref<1x4xf32, #tpu.memory_space<vmem>>, vector<1x4xf32>
    %15 = vector.broadcast %14 : vector<1x4xf32> to vector<482x4xf32>
    %16 = arith.addf %13, %15 : vector<482x4xf32>
    %c0_6 = arith.constant 0 : index
    %c0_7 = arith.constant 0 : index
    %c0_8 = arith.constant 0 : index
    %17 = vector.load %arg5[%c0_6, %c0_7, %c0_8] : memref<1x482x4xf32, #tpu.memory_space<vmem>>, vector<1x482x4xf32>
    %18 = vector.shape_cast %17 : vector<1x482x4xf32> to vector<482x4xf32>
    %19 = vector.shape_cast %16 : vector<482x4xf32> to vector<1x482x4xf32>
    tpu.vector_store %arg5[%c0_6, %c0_7, %c0_8], %19 {strides = array<i32>} : memref<1x482x4xf32, #tpu.memory_space<vmem>>, vector<1x482x4xf32>,
    %c0_9 = arith.constant 0 : index
    %c0_10 = arith.constant 0 : index
    %c0_11 = arith.constant 0 : index
    %20 = vector.load %arg4[%c0_9, %c0_10, %c0_11] : memref<1x482x1xf32, #tpu.memory_space<vmem>>, vector<1x482x1xf32>
    %21 = vector.shape_cast %20 : vector<1x482x1xf32> to vector<482x1xf32>
    %22 = vector.broadcast %21 : vector<482x1xf32> to vector<482x4xf32>
    %23 = arith.mulf %16, %22 : vector<482x4xf32>
    %cst_12 = arith.constant dense<0.000000e+00> : vector<4xf32>
    %24 = vector.multi_reduction <add>, %23, %cst_12 [0] : vector<482x4xf32> to vector<4xf32>
    %25 = vector.shape_cast %24 : vector<4xf32> to vector<1x4xf32>
    %c0_13 = arith.constant 0 : index
    %c0_14 = arith.constant 0 : index
    %c0_15 = arith.constant 0 : index
    %26 = vector.load %arg6[%c0_13, %c0_14, %c0_15] : memref<1x1x4xf32, #tpu.memory_space<vmem>>, vector<1x1x4xf32>
    %27 = vector.shape_cast %26 : vector<1x1x4xf32> to vector<1x4xf32>
    %28 = vector.shape_cast %25 : vector<1x4xf32> to vector<1x1x4xf32>
    tpu.vector_store %arg6[%c0_13, %c0_14, %c0_15], %28 {strides = array<i32>} : memref<1x1x4xf32, #tpu.memory_space<vmem>>, vector<1x1x4xf32>,
    %29 = arith.mulf %16, %23 : vector<482x4xf32>
    %cst_16 = arith.constant dense<0.000000e+00> : vector<4xf32>
    %30 = vector.multi_reduction <add>, %29, %cst_16 [0] : vector<482x4xf32> to vector<4xf32>
    %31 = vector.shape_cast %30 : vector<4xf32> to vector<1x4xf32>
    %c0_17 = arith.constant 0 : index
    %c0_18 = arith.constant 0 : index
    %c0_19 = arith.constant 0 : index
    %32 = vector.load %arg7[%c0_17, %c0_18, %c0_19] : memref<1x1x4xf32, #tpu.memory_space<vmem>>, vector<1x1x4xf32>
    %33 = vector.shape_cast %32 : vector<1x1x4xf32> to vector<1x4xf32>
    %34 = vector.shape_cast %31 : vector<1x4xf32> to vector<1x1x4xf32>
    tpu.vector_store %arg7[%c0_17, %c0_18, %c0_19], %34 {strides = array<i32>} : memref<1x1x4xf32, #tpu.memory_space<vmem>>, vector<1x1x4xf32>,
    return
  }
  func.func @transform_0(%arg0: i32) -> (i32, i32, i32) {
    %c0_i32 = arith.constant 0 : i32
    %c0_i32_0 = arith.constant 0 : i32
    %c0_i32_1 = arith.constant 0 : i32
    return %arg0, %c0_i32, %c0_i32_0 : i32, i32, i32
  }
  func.func @transform_1(%arg0: i32) -> (i32, i32) {
    %c0_i32 = arith.constant 0 : i32
    %c0_i32_0 = arith.constant 0 : i32
    %c0_i32_1 = arith.constant 0 : i32
    return %c0_i32, %c0_i32_0 : i32, i32
  }
  func.func @transform_2(%arg0: i32) -> (i32, i32) {
    %c0_i32 = arith.constant 0 : i32
    %c0_i32_0 = arith.constant 0 : i32
    %c0_i32_1 = arith.constant 0 : i32
    return %c0_i32, %c0_i32_0 : i32, i32
  }
  func.func @transform_3(%arg0: i32) -> (i32, i32, i32) {
    %c0_i32 = arith.constant 0 : i32
    %c0_i32_0 = arith.constant 0 : i32
    %c0_i32_1 = arith.constant 0 : i32
    %c0_i32_2 = arith.constant 0 : i32
    return %c0_i32, %c0_i32_0, %c0_i32_1 : i32, i32, i32
  }
  func.func @transform_4(%arg0: i32) -> (i32, i32, i32) {
    %c0_i32 = arith.constant 0 : i32
    %c0_i32_0 = arith.constant 0 : i32
    %c0_i32_1 = arith.constant 0 : i32
    return %arg0, %c0_i32, %c0_i32_0 : i32, i32, i32
  }
  func.func @transform_5(%arg0: i32) -> (i32, i32, i32) {
    %c0_i32 = arith.constant 0 : i32
    %c0_i32_0 = arith.constant 0 : i32
    %c0_i32_1 = arith.constant 0 : i32
    return %arg0, %c0_i32, %c0_i32_0 : i32, i32, i32
  }
  func.func @transform_6(%arg0: i32) -> (i32, i32, i32) {
    %c0_i32 = arith.constant 0 : i32
    %c0_i32_0 = arith.constant 0 : i32
    %c0_i32_1 = arith.constant 0 : i32
    return %arg0, %c0_i32, %c0_i32_0 : i32, i32, i32
  }
}

</mosaic_0001>

<llo_original>
// kernel: up_forward.2
$region0: #{up_forward.2}
  #allocation0 [shape = 'u32[]', space=smem, size = 0x4, offset = 0x4, fixed_abs, tag = 'smem constant byte address 0x4 - core index']
  #allocation1 [shape = 'u32[144,128]{1,0:T(1,128)}', space=vmem, size = 0x12000, scoped, tag = 'internal scratch']
  %s0 = inlined_call_operand.vmem [shape: f32[2,532,8], index: 0, kind: input, shape index: {}]
  %s1 = inlined_call_operand.vmem [shape: f32[72,4], index: 1, kind: input, shape index: {}]
  %s2 = inlined_call_operand.vmem [shape: f32[1,4], index: 2, kind: input, shape index: {}]
  %s3 = inlined_call_operand.vmem [shape: f32[1,482,1], index: 3, kind: input, shape index: {}]
  %s4 = inlined_call_operand.vmem [shape: f32[2,482,4], index: 4, kind: output, shape index: {0}]
  %s5 = inlined_call_operand.vmem [shape: f32[2,1,4], index: 5, kind: output, shape index: {1}]
  %s6 = inlined_call_operand.vmem [shape: f32[2,1,4], index: 6, kind: output, shape index: {2}]
  %7 = xla_tuple %s4, %s5, %s6
  %s8 = sld [smem:[#allocation0]]
  $region65: #{up_forward.2} parent=0
    _
  %s10 = ssub.s32 1, %s8
  %s11 = scalar_select 0, %s10, %s8
  loop: start=0, step=1, limit=4
  $region2: #{up_forward.2} parent=0 // loop_pre_header
    _
  $region3: #{up_forward.2} parent=0 // loop_header
    %s13 = sphi 0, %s17
    %p14 = scmp.ge.s32.totalorder %s13, 4
    %s23 = sphi 0, %s25
    %s26 = sphi 0, %s23
    %s27 = sphi 0, %s26
    %s43 = sphi 0, %s27
    %s47 = sphi 0, %s47
    %s49 = sphi 0, %s47
    %s50 = sphi 0, %s49
    %s64 = sphi 0, %s50
    %s68 = sphi 0, %s68
    %s70 = sphi 0, %s68
    %s71 = sphi 0, %s70
    %s85 = sphi 0, %s71
    %s89 = sphi 0, %s89
    %s91 = sphi 0, %s89
    %s92 = sphi 0, %s91
    %s106 = sphi 0, %s92
    %s112 = sphi 0, %s114
    %s115 = sphi 0, %s112
    %s116 = sphi 0, %s115
    %s132 = sphi 0, %s116
    %s138 = sphi 0, %s140
    %s141 = sphi 0, %s138
    %s142 = sphi 0, %s141
    %s158 = sphi 0, %s142
    %s164 = sphi 0, %s166
    %s167 = sphi 0, %s164
    %s168 = sphi 0, %s167
    %s184 = sphi 0, %s168
  $region4: #{up_forward.2} parent=0 // loop_header_branch
    %16 = sbr.rel (%p14) target = $region8
  $region5: #{up_forward.2} parent=0 // loop_body
    %s18 = ssub.s32 %s13, 1
    %s19 = ssub.s32 %s13, 2
    %s20 = sadd.s32 %s13, 1
    %s21 = ssub.s32 %s13, %s20
    %p22 = scmp.eq.s32.totalorder %s21, 0
    %s24 = sadd.s32 %s23, 1
    %s25 = scalar_select %p22, %s23, %s24
    %p28 = pneg %p22
    %p29 = scmp.eq.s32.totalorder %s13, 1
    %p30 = por %p28, %p29
    %p31 = scmp.ne.s32.totalorder %s23, %s26
    %p32 = scmp.eq.s32.totalorder %s13, 0
    %p33 = por %p31, %p32
    %p34 = scmp.ne.s32.totalorder %s23, %s26
    %p35 = scmp.eq.s32.totalorder %s18, 1
    %p36 = por %p34, %p35
    %p37 = scmp.ne.s32.totalorder %s26, %s27
    %p38 = scmp.eq.s32.totalorder %s18, 0
    %p39 = por %p37, %p38
    %p40 = scmp.ne.s32.totalorder %s26, %s27
    %p41 = scmp.eq.s32.totalorder %s19, 1
    %p42 = por %p40, %p41
    %p44 = scmp.ne.s32.totalorder %s27, %s43
    %p45 = scmp.eq.s32.totalorder %s19, 0
    %p46 = por %p44, %p45
    %s48 = sadd.s32 %s47, 1
    %p51 = scmp.eq.s32.totalorder %s13, 1
    %p52 = scmp.ne.s32.totalorder %s47, %s49
    %p53 = scmp.eq.s32.totalorder %s13, 0
    %p54 = por %p52, %p53
    %p55 = scmp.ne.s32.totalorder %s47, %s49
    %p56 = scmp.eq.s32.totalorder %s18, 1
    %p57 = por %p55, %p56
    %p58 = scmp.ne.s32.totalorder %s49, %s50
    %p59 = scmp.eq.s32.totalorder %s18, 0
    %p60 = por %p58, %p59
    %p61 = scmp.ne.s32.totalorder %s49, %s50
    %p62 = scmp.eq.s32.totalorder %s19, 1
    %p63 = por %p61, %p62
    %p65 = scmp.ne.s32.totalorder %s50, %s64
    %p66 = scmp.eq.s32.totalorder %s19, 0
    %p67 = por %p65, %p66
    %s69 = sadd.s32 %s68, 1
    %p72 = scmp.eq.s32.totalorder %s13, 1
    %p73 = scmp.ne.s32.totalorder %s68, %s70
    %p74 = scmp.eq.s32.totalorder %s13, 0
    %p75 = por %p73, %p74
    %p76 = scmp.ne.s32.totalorder %s68, %s70
    %p77 = scmp.eq.s32.totalorder %s18, 1
    %p78 = por %p76, %p77
    %p79 = scmp.ne.s32.totalorder %s70, %s71
    %p80 = scmp.eq.s32.totalorder %s18, 0
    %p81 = por %p79, %p80
    %p82 = scmp.ne.s32.totalorder %s70, %s71
    %p83 = scmp.eq.s32.totalorder %s19, 1
    %p84 = por %p82, %p83
    %p86 = scmp.ne.s32.totalorder %s71, %s85
    %p87 = scmp.eq.s32.totalorder %s19, 0
    %p88 = por %p86, %p87
    %s90 = sadd.s32 %s89, 1
    %p93 = scmp.eq.s32.totalorder %s13, 1
    %p94 = scmp.ne.s32.totalorder %s89, %s91
    %p95 = scmp.eq.s32.totalorder %s13, 0
    %p96 = por %p94, %p95
    %p97 = scmp.ne.s32.totalorder %s89, %s91
    %p98 = scmp.eq.s32.totalorder %s18, 1
    %p99 = por %p97, %p98
    %p100 = scmp.ne.s32.totalorder %s91, %s92
    %p101 = scmp.eq.s32.totalorder %s18, 0
    %p102 = por %p100, %p101
    %p103 = scmp.ne.s32.totalorder %s91, %s92
    %p104 = scmp.eq.s32.totalorder %s19, 1
    %p105 = por %p103, %p104
    %p107 = scmp.ne.s32.totalorder %s92, %s106
    %p108 = scmp.eq.s32.totalorder %s19, 0
    %p109 = por %p107, %p108
    %s110 = ssub.s32 %s13, %s20
    %p111 = scmp.eq.s32.totalorder %s110, 0
    %s113 = sadd.s32 %s112, 1
    %s114 = scalar_select %p111, %s112, %s113
    %p117 = pneg %p111
    %p118 = scmp.eq.s32.totalorder %s13, 1
    %p119 = por %p117, %p118
    %p120 = scmp.ne.s32.totalorder %s112, %s115
    %p121 = scmp.eq.s32.totalorder %s13, 0
    %p122 = por %p120, %p121
    %p123 = scmp.ne.s32.totalorder %s112, %s115
    %p124 = scmp.eq.s32.totalorder %s18, 1
    %p125 = por %p123, %p124
    %p126 = scmp.ne.s32.totalorder %s115, %s116
    %p127 = scmp.eq.s32.totalorder %s18, 0
    %p128 = por %p126, %p127
    %p129 = scmp.ne.s32.totalorder %s115, %s116
    %p130 = scmp.eq.s32.totalorder %s19, 1
    %p131 = por %p129, %p130
    %p133 = scmp.ne.s32.totalorder %s116, %s132
    %p134 = scmp.eq.s32.totalorder %s19, 0
    %p135 = por %p133, %p134
    %s136 = ssub.s32 %s13, %s20
    %p137 = scmp.eq.s32.totalorder %s136, 0
    %s139 = sadd.s32 %s138, 1
    %s140 = scalar_select %p137, %s138, %s139
    %p143 = pneg %p137
    %p144 = scmp.eq.s32.totalorder %s13, 1
    %p145 = por %p143, %p144
    %p146 = scmp.ne.s32.totalorder %s138, %s141
    %p147 = scmp.eq.s32.totalorder %s13, 0
    %p148 = por %p146, %p147
    %p149 = scmp.ne.s32.totalorder %s138, %s141
    %p150 = scmp.eq.s32.totalorder %s18, 1
    %p151 = por %p149, %p150
    %p152 = scmp.ne.s32.totalorder %s141, %s142
    %p153 = scmp.eq.s32.totalorder %s18, 0
    %p154 = por %p152, %p153
    %p155 = scmp.ne.s32.totalorder %s141, %s142
    %p156 = scmp.eq.s32.totalorder %s19, 1
    %p157 = por %p155, %p156
    %p159 = scmp.ne.s32.totalorder %s142, %s158
    %p160 = scmp.eq.s32.totalorder %s19, 0
    %p161 = por %p159, %p160
    %s162 = ssub.s32 %s13, %s20
    %p163 = scmp.eq.s32.totalorder %s162, 0
    %s165 = sadd.s32 %s164, 1
    %s166 = scalar_select %p163, %s164, %s165
    %p169 = pneg %p163
    %p170 = scmp.eq.s32.totalorder %s13, 1
    %p171 = por %p169, %p170
    %p172 = scmp.ne.s32.totalorder %s164, %s167
    %p173 = scmp.eq.s32.totalorder %s13, 0
    %p174 = por %p172, %p173
    %p175 = scmp.ne.s32.totalorder %s164, %s167
    %p176 = scmp.eq.s32.totalorder %s18, 1
    %p177 = por %p175, %p176
    %p178 = scmp.ne.s32.totalorder %s167, %s168
    %p179 = scmp.eq.s32.totalorder %s18, 0
    %p180 = por %p178, %p179
    %p181 = scmp.ne.s32.totalorder %s167, %s168
    %p182 = scmp.eq.s32.totalorder %s19, 1
    %p183 = por %p181, %p182
    %p185 = scmp.ne.s32.totalorder %s168, %s184
    %p186 = scmp.eq.s32.totalorder %s19, 0
    %p187 = por %p185, %p186
    %p188 = scmp.le.s32.totalorder 1, %s13
    %p189 = scmp.lt.s32.totalorder %s13, 3
    %p190 = pnand %p188, %p189
    %p191 = pneg %p190
    // Predicated region
    $region9: #{up_forward.2} parent=5 // pred_check
      _
    $region10: #{up_forward.2} parent=5 // pred_check_branch
      %193 = sbr.rel (%p190) target = $region12
    $region11: #{up_forward.2} parent=5 // pred_region
      %s194 = ssub.s32 %s13, 1
      // Predicated region
      $region13: #{up_forward.2} parent=11 // pred_check
        %p195 = pneg %p60
      $region14: #{up_forward.2} parent=11 // pred_check_branch
        %197 = sbr.rel (%p195) target = $region16
      $region15: #{up_forward.2} parent=11 // pred_region
        _
      $region16: #{up_forward.2} parent=11 // pred_fallthru
        _
      // Predicated region
      $region17: #{up_forward.2} parent=11 // pred_check
        %p198 = pneg %p81
      $region18: #{up_forward.2} parent=11 // pred_check_branch
        %200 = sbr.rel (%p198) target = $region20
      $region19: #{up_forward.2} parent=11 // pred_region
        _
      $region20: #{up_forward.2} parent=11 // pred_fallthru
        _
      // Predicated region
      $region21: #{up_forward.2} parent=11 // pred_check
        %p201 = pneg %p102
      $region22: #{up_forward.2} parent=11 // pred_check_branch
        %203 = sbr.rel (%p201) target = $region24
      $region23: #{up_forward.2} parent=11 // pred_region
        _
      $region24: #{up_forward.2} parent=11 // pred_fallthru
        _
    $region12: #{up_forward.2} parent=5 // pred_fallthru
      _
    %p204 = scmp.lt.s32.totalorder %s13, 2
    // Predicated region
    $region25: #{up_forward.2} parent=5 // pred_check
      %p205 = pneg %p204
    $region26: #{up_forward.2} parent=5 // pred_check_branch
      %207 = sbr.rel (%p205) target = $region28
    $region27: #{up_forward.2} parent=5 // pred_region
      // Predicated region
      $region29: #{up_forward.2} parent=27 // pred_check
        %p208 = pneg %p33
      $region30: #{up_forward.2} parent=27 // pred_check_branch
        %210 = sbr.rel (%p208) target = $region32
      $region31: #{up_forward.2} parent=27 // pred_region
        %p211 = scmp.lt.s32.totalorder %s13, 1
        %s212 = scalar_select %p211, %s13, 1
        %s213 = smul.addr %s212, 67
        %s214 = smul.addr %s213, 8
        %s215 = scalar_lea.vmem %s0, %s214
      $region32: #{up_forward.2} parent=27 // pred_fallthru
        _
    $region28: #{up_forward.2} parent=5 // pred_fallthru
      _
    %p216 = scmp.le.s32.totalorder 1, %s13
    %p217 = scmp.lt.s32.totalorder %s13, 3
    %p218 = pnand %p216, %p217
    %p219 = pneg %p218
    // Predicated region
    $region33: #{up_forward.2} parent=5 // pred_check
      _
    $region34: #{up_forward.2} parent=5 // pred_check_branch
      %221 = sbr.rel (%p218) target = $region36
    $region35: #{up_forward.2} parent=5 // pred_region
      %s222 = ssub.s32 %s13, 1
      %p223 = scmp.lt.s32.totalorder %s18, 1
      %s224 = scalar_select %p223, %s18, 1
      %s225 = smul.addr %s224, 67
      %s226 = smul.addr %s225, 8
      %s227 = scalar_lea.vmem %s0, %s226
      %p228 = pneg %p39
      %p229 = pneg %p36
      %p230 = pneg %p60
      %p231 = pneg %p57
      %p232 = pneg %p81
      %p233 = pneg %p78
      %p234 = pneg %p102
      %p235 = pneg %p99
      %p236 = pneg %p128
      %p237 = pneg %p125
      %p238 = scmp.lt.s32.totalorder %s18, 1
      %s239 = scalar_select %p238, %s18, 1
      %s240 = smul.addr %s239, 61
      %s241 = smul.addr %s240, 8
      %s242 = scalar_lea.vmem %s4, %s241
      %p243 = pneg %p154
      %p244 = pneg %p151
      %p245 = scmp.lt.s32.totalorder %s18, 1
      %s246 = scalar_select %p245, %s18, 1
      %s247 = scalar_lea.vmem %s5, %s246
      %p248 = pneg %p180
      %p249 = pneg %p177
      %p250 = scmp.lt.s32.totalorder %s18, 1
      %s251 = scalar_select %p250, %s18, 1
      %s252 = scalar_lea.vmem %s6, %s251
      %p253 = scmp.lt.s32.totalorder %s18, 1
      %s254 = scalar_select %p253, %s18, 1
      %s255 = smul.addr %s254, 67
      %s256 = smul.addr %s255, 8
      %s257 = scalar_lea.vmem %s0, %s256
      %p258 = scmp.lt.s32.totalorder %s18, 1
      %s259 = scalar_select %p258, %s18, 1
      %s260 = smul.addr %s259, 61
      %s261 = smul.addr %s260, 8
      %s262 = scalar_lea.vmem %s4, %s261
      %p263 = scmp.lt.s32.totalorder %s18, 1
      %s264 = scalar_select %p263, %s18, 1
      %s265 = scalar_lea.vmem %s5, %s264
      %p266 = scmp.lt.s32.totalorder %s18, 1
      %s267 = scalar_select %p266, %s18, 1
      %s268 = scalar_lea.vmem %s6, %s267
      %v269 = vld [vmem:[%s257] sm:$0xff]
      %v270 = vld [vmem:[%s257 + $0x8] sm:$0xff]
      %v271 = vld [vmem:[%s257 + $0x10] sm:$0xff]
      %v272 = vld [vmem:[%s257 + $0x18] sm:$0xff]
      %v273 = vld [vmem:[%s257 + $0x20] sm:$0xff]
      %v274 = vld [vmem:[%s257 + $0x28] sm:$0xff]
      %v275 = vld [vmem:[%s257 + $0x30] sm:$0xff]
      %v276 = vld [vmem:[%s257 + $0x38] sm:$0xff]
      %v277 = vld [vmem:[%s257 + $0x40] sm:$0xff]
      %v278 = vld [vmem:[%s257 + $0x48] sm:$0xff]
      %v279 = vld [vmem:[%s257 + $0x50] sm:$0xff]
      %v280 = vld [vmem:[%s257 + $0x58] sm:$0xff]
      %v281 = vld [vmem:[%s257 + $0x60] sm:$0xff]
      %v282 = vld [vmem:[%s257 + $0x68] sm:$0xff]
      %v283 = vld [vmem:[%s257 + $0x70] sm:$0xff]
      %v284 = vld [vmem:[%s257 + $0x78] sm:$0xff]
      %v285 = vld [vmem:[%s257 + $0x80] sm:$0xff]
      %v286 = vld [vmem:[%s257 + $0x88] sm:$0xff]
      %v287 = vld [vmem:[%s257 + $0x90] sm:$0xff]
      %v288 = vld [vmem:[%s257 + $0x98] sm:$0xff]
      %v289 = vld [vmem:[%s257 + $0xa0] sm:$0xff]
      %v290 = vld [vmem:[%s257 + $0xa8] sm:$0xff]
      %v291 = vld [vmem:[%s257 + $0xb0] sm:$0xff]
      %v292 = vld [vmem:[%s257 + $0xb8] sm:$0xff]
      %v293 = vld [vmem:[%s257 + $0xc0] sm:$0xff]
      %v294 = vld [vmem:[%s257 + $0xc8] sm:$0xff]
      %v295 = vld [vmem:[%s257 + $0xd0] sm:$0xff]
      %v296 = vld [vmem:[%s257 + $0xd8] sm:$0xff]
      %v297 = vld [vmem:[%s257 + $0xe0] sm:$0xff]
      %v298 = vld [vmem:[%s257 + $0xe8] sm:$0xff]
      %v299 = vld [vmem:[%s257 + $0xf0] sm:$0xff]
      %v300 = vld [vmem:[%s257 + $0xf8] sm:$0xff]
      %v301 = vld [vmem:[%s257 + $0x100] sm:$0xff]
      %v302 = vld [vmem:[%s257 + $0x108] sm:$0xff]
      %v303 = vld [vmem:[%s257 + $0x110] sm:$0xff]
      %v304 = vld [vmem:[%s257 + $0x118] sm:$0xff]
      %v305 = vld [vmem:[%s257 + $0x120] sm:$0xff]
      %v306 = vld [vmem:[%s257 + $0x128] sm:$0xff]
      %v307 = vld [vmem:[%s257 + $0x130] sm:$0xff]
      %v308 = vld [vmem:[%s257 + $0x138] sm:$0xff]
      %v309 = vld [vmem:[%s257 + $0x140] sm:$0xff]
      %v310 = vld [vmem:[%s257 + $0x148] sm:$0xff]
      %v311 = vld [vmem:[%s257 + $0x150] sm:$0xff]
      %v312 = vld [vmem:[%s257 + $0x158] sm:$0xff]
      %v313 = vld [vmem:[%s257 + $0x160] sm:$0xff]
      %v314 = vld [vmem:[%s257 + $0x168] sm:$0xff]
      %v315 = vld [vmem:[%s257 + $0x170] sm:$0xff]
      %v316 = vld [vmem:[%s257 + $0x178] sm:$0xff]
      %v317 = vld [vmem:[%s257 + $0x180] sm:$0xff]
      %v318 = vld [vmem:[%s257 + $0x188] sm:$0xff]
      %v319 = vld [vmem:[%s257 + $0x190] sm:$0xff]
      %v320 = vld [vmem:[%s257 + $0x198] sm:$0xff]
      %v321 = vld [vmem:[%s257 + $0x1a0] sm:$0xff]
      %v322 = vld [vmem:[%s257 + $0x1a8] sm:$0xff]
      %v323 = vld [vmem:[%s257 + $0x1b0] sm:$0xff]
      %v324 = vld [vmem:[%s257 + $0x1b8] sm:$0xff]
      %v325 = vld [vmem:[%s257 + $0x1c0] sm:$0xff]
      %v326 = vld [vmem:[%s257 + $0x1c8] sm:$0xff]
      %v327 = vld [vmem:[%s257 + $0x1d0] sm:$0xff]
      %v328 = vld [vmem:[%s257 + $0x1d8] sm:$0xff]
      %v329 = vld [vmem:[%s257 + $0x1e0] sm:$0xff]
      %v330 = vld [vmem:[%s257 + $0x1e8] sm:$0xff]
      %v331 = vld [vmem:[%s257 + $0x1f0] sm:$0xff]
      %v332 = vld [vmem:[%s257 + $0x1f8] sm:$0xff]
      %v333 = vld [vmem:[%s257 + $0x200] sm:$0xff]
      %v334 = vld [vmem:[%s257 + $0x208] sm:$0xff]
      %v335 = vld [vmem:[%s257 + $0x210] sm:$0xf]
      %vm397 = vcmask 1046528
      %v398 = vrot.slane %v269, 1
      %v399 = vrot.slane %v270, 1
      %v400 = vsel %vm397, %v398, %v399
      %v401 = vrot.slane %v271, 1
      %v402 = vsel %vm397, %v399, %v401
      %v403 = vrot.slane %v272, 1
      %v404 = vsel %vm397, %v401, %v403
      %v405 = vrot.slane %v273, 1
      %v406 = vsel %vm397, %v403, %v405
      %v407 = vrot.slane %v274, 1
      %v408 = vsel %vm397, %v405, %v407
      %v409 = vrot.slane %v275, 1
      %v410 = vsel %vm397, %v407, %v409
      %v411 = vrot.slane %v276, 1
      %v412 = vsel %vm397, %v409, %v411
      %v413 = vrot.slane %v277, 1
      %v414 = vsel %vm397, %v411, %v413
      %v415 = vrot.slane %v278, 1
      %v416 = vsel %vm397, %v413, %v415
      %v417 = vrot.slane %v279, 1
      %v418 = vsel %vm397, %v415, %v417
      %v419 = vrot.slane %v280, 1
      %v420 = vsel %vm397, %v417, %v419
      %v421 = vrot.slane %v281, 1
      %v422 = vsel %vm397, %v419, %v421
      %v423 = vrot.slane %v282, 1
      %v424 = vsel %vm397, %v421, %v423
      %v425 = vrot.slane %v283, 1
      %v426 = vsel %vm397, %v423, %v425
      %v427 = vrot.slane %v284, 1
      %v428 = vsel %vm397, %v425, %v427
      %v429 = vrot.slane %v285, 1
      %v430 = vsel %vm397, %v427, %v429
      %v431 = vrot.slane %v286, 1
      %v432 = vsel %vm397, %v429, %v431
      %v433 = vrot.slane %v287, 1
      %v434 = vsel %vm397, %v431, %v433
      %v435 = vrot.slane %v288, 1
      %v436 = vsel %vm397, %v433, %v435
      %v437 = vrot.slane %v289, 1
      %v438 = vsel %vm397, %v435, %v437
      %v439 = vrot.slane %v290, 1
      %v440 = vsel %vm397, %v437, %v439
      %v441 = vrot.slane %v291, 1
      %v442 = vsel %vm397, %v439, %v441
      %v443 = vrot.slane %v292, 1
      %v444 = vsel %vm397, %v441, %v443
      %v445 = vrot.slane %v293, 1
      %v446 = vsel %vm397, %v443, %v445
      %v447 = vrot.slane %v294, 1
      %v448 = vsel %vm397, %v445, %v447
      %v449 = vrot.slane %v295, 1
      %v450 = vsel %vm397, %v447, %v449
      %v451 = vrot.slane %v296, 1
      %v452 = vsel %vm397, %v449, %v451
      %v453 = vrot.slane %v297, 1
      %v454 = vsel %vm397, %v451, %v453
      %v455 = vrot.slane %v298, 1
      %v456 = vsel %vm397, %v453, %v455
      %v457 = vrot.slane %v299, 1
      %v458 = vsel %vm397, %v455, %v457
      %v459 = vrot.slane %v300, 1
      %v460 = vsel %vm397, %v457, %v459
      %v461 = vrot.slane %v301, 1
      %v462 = vsel %vm397, %v459, %v461
      %v463 = vrot.slane %v302, 1
      %v464 = vsel %vm397, %v461, %v463
      %v465 = vrot.slane %v303, 1
      %v466 = vsel %vm397, %v463, %v465
      %v467 = vrot.slane %v304, 1
      %v468 = vsel %vm397, %v465, %v467
      %v469 = vrot.slane %v305, 1
      %v470 = vsel %vm397, %v467, %v469
      %v471 = vrot.slane %v306, 1
      %v472 = vsel %vm397, %v469, %v471
      %v473 = vrot.slane %v307, 1
      %v474 = vsel %vm397, %v471, %v473
      %v475 = vrot.slane %v308, 1
      %v476 = vsel %vm397, %v473, %v475
      %v477 = vrot.slane %v309, 1
      %v478 = vsel %vm397, %v475, %v477
      %v479 = vrot.slane %v310, 1
      %v480 = vsel %vm397, %v477, %v479
      %v481 = vrot.slane %v311, 1
      %v482 = vsel %vm397, %v479, %v481
      %v483 = vrot.slane %v312, 1
      %v484 = vsel %vm397, %v481, %v483
      %v485 = vrot.slane %v313, 1
      %v486 = vsel %vm397, %v483, %v485
      %v487 = vrot.slane %v314, 1
      %v488 = vsel %vm397, %v485, %v487
      %v489 = vrot.slane %v315, 1
      %v490 = vsel %vm397, %v487, %v489
      %v491 = vrot.slane %v316, 1
      %v492 = vsel %vm397, %v489, %v491
      %v493 = vrot.slane %v317, 1
      %v494 = vsel %vm397, %v491, %v493
      %v495 = vrot.slane %v318, 1
      %v496 = vsel %vm397, %v493, %v495
      %v497 = vrot.slane %v319, 1
      %v498 = vsel %vm397, %v495, %v497
      %v499 = vrot.slane %v320, 1
      %v500 = vsel %vm397, %v497, %v499
      %v501 = vrot.slane %v321, 1
      %v502 = vsel %vm397, %v499, %v501
      %v503 = vrot.slane %v322, 1
      %v504 = vsel %vm397, %v501, %v503
      %v505 = vrot.slane %v323, 1
      %v506 = vsel %vm397, %v503, %v505
      %v507 = vrot.slane %v324, 1
      %v508 = vsel %vm397, %v505, %v507
      %v509 = vrot.slane %v325, 1
      %v510 = vsel %vm397, %v507, %v509
      %v511 = vrot.slane %v326, 1
      %v512 = vsel %vm397, %v509, %v511
      %v513 = vrot.slane %v327, 1
      %v514 = vsel %vm397, %v511, %v513
      %v515 = vrot.slane %v328, 1
      %v516 = vsel %vm397, %v513, %v515
      %v517 = vrot.slane %v329, 1
      %v518 = vsel %vm397, %v515, %v517
      %519 = vrot.lane.b32.xlu0 %v400, 8
      %v520 = vpop.permute.xlu0 %519
      %521 = vrot.lane.b32.xlu0 %v402, 8
      %v522 = vpop.permute.xlu0 %521
      %523 = vrot.lane.b32.xlu0 %v404, 8
      %v524 = vpop.permute.xlu0 %523
      %525 = vrot.lane.b32.xlu0 %v406, 8
      %v526 = vpop.permute.xlu0 %525
      %527 = vrot.lane.b32.xlu0 %v408, 8
      %v528 = vpop.permute.xlu0 %527
      %529 = vrot.lane.b32.xlu0 %v410, 8
      %v530 = vpop.permute.xlu0 %529
      %531 = vrot.lane.b32.xlu0 %v412, 8
      %v532 = vpop.permute.xlu0 %531
      %533 = vrot.lane.b32.xlu0 %v414, 8
      %v534 = vpop.permute.xlu0 %533
      %535 = vrot.lane.b32.xlu0 %v416, 8
      %v536 = vpop.permute.xlu0 %535
      %537 = vrot.lane.b32.xlu0 %v418, 8
      %v538 = vpop.permute.xlu0 %537
      %539 = vrot.lane.b32.xlu0 %v420, 8
      %v540 = vpop.permute.xlu0 %539
      %541 = vrot.lane.b32.xlu0 %v422, 8
      %v542 = vpop.permute.xlu0 %541
      %543 = vrot.lane.b32.xlu0 %v424, 8
      %v544 = vpop.permute.xlu0 %543
      %545 = vrot.lane.b32.xlu0 %v426, 8
      %v546 = vpop.permute.xlu0 %545
      %547 = vrot.lane.b32.xlu0 %v428, 8
      %v548 = vpop.permute.xlu0 %547
      %549 = vrot.lane.b32.xlu0 %v430, 8
      %v550 = vpop.permute.xlu0 %549
      %551 = vrot.lane.b32.xlu0 %v432, 8
      %v552 = vpop.permute.xlu0 %551
      %553 = vrot.lane.b32.xlu0 %v434, 8
      %v554 = vpop.permute.xlu0 %553
      %555 = vrot.lane.b32.xlu0 %v436, 8
      %v556 = vpop.permute.xlu0 %555
      %557 = vrot.lane.b32.xlu0 %v438, 8
      %v558 = vpop.permute.xlu0 %557
      %559 = vrot.lane.b32.xlu0 %v440, 8
      %v560 = vpop.permute.xlu0 %559
      %561 = vrot.lane.b32.xlu0 %v442, 8
      %v562 = vpop.permute.xlu0 %561
      %563 = vrot.lane.b32.xlu0 %v444, 8
      %v564 = vpop.permute.xlu0 %563
      %565 = vrot.lane.b32.xlu0 %v446, 8
      %v566 = vpop.permute.xlu0 %565
      %567 = vrot.lane.b32.xlu0 %v448, 8
      %v568 = vpop.permute.xlu0 %567
      %569 = vrot.lane.b32.xlu0 %v450, 8
      %v570 = vpop.permute.xlu0 %569
      %571 = vrot.lane.b32.xlu0 %v452, 8
      %v572 = vpop.permute.xlu0 %571
      %573 = vrot.lane.b32.xlu0 %v454, 8
      %v574 = vpop.permute.xlu0 %573
      %575 = vrot.lane.b32.xlu0 %v456, 8
      %v576 = vpop.permute.xlu0 %575
      %577 = vrot.lane.b32.xlu0 %v458, 8
      %v578 = vpop.permute.xlu0 %577
      %579 = vrot.lane.b32.xlu0 %v460, 8
      %v580 = vpop.permute.xlu0 %579
      %581 = vrot.lane.b32.xlu0 %v462, 8
      %v582 = vpop.permute.xlu0 %581
      %583 = vrot.lane.b32.xlu0 %v464, 8
      %v584 = vpop.permute.xlu0 %583
      %585 = vrot.lane.b32.xlu0 %v466, 8
      %v586 = vpop.permute.xlu0 %585
      %587 = vrot.lane.b32.xlu0 %v468, 8
      %v588 = vpop.permute.xlu0 %587
      %589 = vrot.lane.b32.xlu0 %v470, 8
      %v590 = vpop.permute.xlu0 %589
      %591 = vrot.lane.b32.xlu0 %v472, 8
      %v592 = vpop.permute.xlu0 %591
      %593 = vrot.lane.b32.xlu0 %v474, 8
      %v594 = vpop.permute.xlu0 %593
      %595 = vrot.lane.b32.xlu0 %v476, 8
      %v596 = vpop.permute.xlu0 %595
      %597 = vrot.lane.b32.xlu0 %v478, 8
      %v598 = vpop.permute.xlu0 %597
      %599 = vrot.lane.b32.xlu0 %v480, 8
      %v600 = vpop.permute.xlu0 %599
      %601 = vrot.lane.b32.xlu0 %v482, 8
      %v602 = vpop.permute.xlu0 %601
      %603 = vrot.lane.b32.xlu0 %v484, 8
      %v604 = vpop.permute.xlu0 %603
      %605 = vrot.lane.b32.xlu0 %v486, 8
      %v606 = vpop.permute.xlu0 %605
      %607 = vrot.lane.b32.xlu0 %v488, 8
      %v608 = vpop.permute.xlu0 %607
      %609 = vrot.lane.b32.xlu0 %v490, 8
      %v610 = vpop.permute.xlu0 %609
      %611 = vrot.lane.b32.xlu0 %v492, 8
      %v612 = vpop.permute.xlu0 %611
      %613 = vrot.lane.b32.xlu0 %v494, 8
      %v614 = vpop.permute.xlu0 %613
      %615 = vrot.lane.b32.xlu0 %v496, 8
      %v616 = vpop.permute.xlu0 %615
      %617 = vrot.lane.b32.xlu0 %v498, 8
      %v618 = vpop.permute.xlu0 %617
      %619 = vrot.lane.b32.xlu0 %v500, 8
      %v620 = vpop.permute.xlu0 %619
      %621 = vrot.lane.b32.xlu0 %v502, 8
      %v622 = vpop.permute.xlu0 %621
      %623 = vrot.lane.b32.xlu0 %v504, 8
      %v624 = vpop.permute.xlu0 %623
      %625 = vrot.lane.b32.xlu0 %v506, 8
      %v626 = vpop.permute.xlu0 %625
      %627 = vrot.lane.b32.xlu0 %v508, 8
      %v628 = vpop.permute.xlu0 %627
      %629 = vrot.lane.b32.xlu0 %v510, 8
      %v630 = vpop.permute.xlu0 %629
      %631 = vrot.lane.b32.xlu0 %v512, 8
      %v632 = vpop.permute.xlu0 %631
      %633 = vrot.lane.b32.xlu0 %v514, 8
      %v634 = vpop.permute.xlu0 %633
      %635 = vrot.lane.b32.xlu0 %v516, 8
      %v636 = vpop.permute.xlu0 %635
      %637 = vrot.lane.b32.xlu0 %v518, 8
      %v638 = vpop.permute.xlu0 %637
      %639 = vrot.lane.b32.xlu0 %v517, 8
      %v640 = vpop.permute.xlu0 %639
      %vm702 = vcmask 1045504
      %v703 = vrot.slane %v269, 2
      %v704 = vrot.slane %v270, 2
      %v705 = vsel %vm702, %v703, %v704
      %v706 = vrot.slane %v271, 2
      %v707 = vsel %vm702, %v704, %v706
      %v708 = vrot.slane %v272, 2
      %v709 = vsel %vm702, %v706, %v708
      %v710 = vrot.slane %v273, 2
      %v711 = vsel %vm702, %v708, %v710
      %v712 = vrot.slane %v274, 2
      %v713 = vsel %vm702, %v710, %v712
      %v714 = vrot.slane %v275, 2
      %v715 = vsel %vm702, %v712, %v714
      %v716 = vrot.slane %v276, 2
      %v717 = vsel %vm702, %v714, %v716
      %v718 = vrot.slane %v277, 2
      %v719 = vsel %vm702, %v716, %v718
      %v720 = vrot.slane %v278, 2
      %v721 = vsel %vm702, %v718, %v720
      %v722 = vrot.slane %v279, 2
      %v723 = vsel %vm702, %v720, %v722
      %v724 = vrot.slane %v280, 2
      %v725 = vsel %vm702, %v722, %v724
      %v726 = vrot.slane %v281, 2
      %v727 = vsel %vm702, %v724, %v726
      %v728 = vrot.slane %v282, 2
      %v729 = vsel %vm702, %v726, %v728
      %v730 = vrot.slane %v283, 2
      %v731 = vsel %vm702, %v728, %v730
      %v732 = vrot.slane %v284, 2
      %v733 = vsel %vm702, %v730, %v732
      %v734 = vrot.slane %v285, 2
      %v735 = vsel %vm702, %v732, %v734
      %v736 = vrot.slane %v286, 2
      %v737 = vsel %vm702, %v734, %v736
      %v738 = vrot.slane %v287, 2
      %v739 = vsel %vm702, %v736, %v738
      %v740 = vrot.slane %v288, 2
      %v741 = vsel %vm702, %v738, %v740
      %v742 = vrot.slane %v289, 2
      %v743 = vsel %vm702, %v740, %v742
      %v744 = vrot.slane %v290, 2
      %v745 = vsel %vm702, %v742, %v744
      %v746 = vrot.slane %v291, 2
      %v747 = vsel %vm702, %v744, %v746
      %v748 = vrot.slane %v292, 2
      %v749 = vsel %vm702, %v746, %v748
      %v750 = vrot.slane %v293, 2
      %v751 = vsel %vm702, %v748, %v750
      %v752 = vrot.slane %v294, 2
      %v753 = vsel %vm702, %v750, %v752
      %v754 = vrot.slane %v295, 2
      %v755 = vsel %vm702, %v752, %v754
      %v756 = vrot.slane %v296, 2
      %v757 = vsel %vm702, %v754, %v756
      %v758 = vrot.slane %v297, 2
      %v759 = vsel %vm702, %v756, %v758
      %v760 = vrot.slane %v298, 2
      %v761 = vsel %vm702, %v758, %v760
      %v762 = vrot.slane %v299, 2
      %v763 = vsel %vm702, %v760, %v762
      %v764 = vrot.slane %v300, 2
      %v765 = vsel %vm702, %v762, %v764
      %v766 = vrot.slane %v301, 2
      %v767 = vsel %vm702, %v764, %v766
      %v768 = vrot.slane %v302, 2
      %v769 = vsel %vm702, %v766, %v768
      %v770 = vrot.slane %v303, 2
      %v771 = vsel %vm702, %v768, %v770
      %v772 = vrot.slane %v304, 2
      %v773 = vsel %vm702, %v770, %v772
      %v774 = vrot.slane %v305, 2
      %v775 = vsel %vm702, %v772, %v774
      %v776 = vrot.slane %v306, 2
      %v777 = vsel %vm702, %v774, %v776
      %v778 = vrot.slane %v307, 2
      %v779 = vsel %vm702, %v776, %v778
      %v780 = vrot.slane %v308, 2
      %v781 = vsel %vm702, %v778, %v780
      %v782 = vrot.slane %v309, 2
      %v783 = vsel %vm702, %v780, %v782
      %v784 = vrot.slane %v310, 2
      %v785 = vsel %vm702, %v782, %v784
      %v786 = vrot.slane %v311, 2
      %v787 = vsel %vm702, %v784, %v786
      %v788 = vrot.slane %v312, 2
      %v789 = vsel %vm702, %v786, %v788
      %v790 = vrot.slane %v313, 2
      %v791 = vsel %vm702, %v788, %v790
      %v792 = vrot.slane %v314, 2
      %v793 = vsel %vm702, %v790, %v792
      %v794 = vrot.slane %v315, 2
      %v795 = vsel %vm702, %v792, %v794
      %v796 = vrot.slane %v316, 2
      %v797 = vsel %vm702, %v794, %v796
      %v798 = vrot.slane %v317, 2
      %v799 = vsel %vm702, %v796, %v798
      %v800 = vrot.slane %v318, 2
      %v801 = vsel %vm702, %v798, %v800
      %v802 = vrot.slane %v319, 2
      %v803 = vsel %vm702, %v800, %v802
      %v804 = vrot.slane %v320, 2
      %v805 = vsel %vm702, %v802, %v804
      %v806 = vrot.slane %v321, 2
      %v807 = vsel %vm702, %v804, %v806
      %v808 = vrot.slane %v322, 2
      %v809 = vsel %vm702, %v806, %v808
      %v810 = vrot.slane %v323, 2
      %v811 = vsel %vm702, %v808, %v810
      %v812 = vrot.slane %v324, 2
      %v813 = vsel %vm702, %v810, %v812
      %v814 = vrot.slane %v325, 2
      %v815 = vsel %vm702, %v812, %v814
      %v816 = vrot.slane %v326, 2
      %v817 = vsel %vm702, %v814, %v816
      %v818 = vrot.slane %v327, 2
      %v819 = vsel %vm702, %v816, %v818
      %v820 = vrot.slane %v328, 2
      %v821 = vsel %vm702, %v818, %v820
      %v822 = vrot.slane %v329, 2
      %v823 = vsel %vm702, %v820, %v822
      %824 = vrot.lane.b32.xlu0 %v705, 16
      %v825 = vpop.permute.xlu0 %824
      %826 = vrot.lane.b32.xlu0 %v707, 16
      %v827 = vpop.permute.xlu0 %826
      %828 = vrot.lane.b32.xlu0 %v709, 16
      %v829 = vpop.permute.xlu0 %828
      %830 = vrot.lane.b32.xlu0 %v711, 16
      %v831 = vpop.permute.xlu0 %830
      %832 = vrot.lane.b32.xlu0 %v713, 16
      %v833 = vpop.permute.xlu0 %832
      %834 = vrot.lane.b32.xlu0 %v715, 16
      %v835 = vpop.permute.xlu0 %834
      %836 = vrot.lane.b32.xlu0 %v717, 16
      %v837 = vpop.permute.xlu0 %836
      %838 = vrot.lane.b32.xlu0 %v719, 16
      %v839 = vpop.permute.xlu0 %838
      %840 = vrot.lane.b32.xlu0 %v721, 16
      %v841 = vpop.permute.xlu0 %840
      %842 = vrot.lane.b32.xlu0 %v723, 16
      %v843 = vpop.permute.xlu0 %842
      %844 = vrot.lane.b32.xlu0 %v725, 16
      %v845 = vpop.permute.xlu0 %844
      %846 = vrot.lane.b32.xlu0 %v727, 16
      %v847 = vpop.permute.xlu0 %846
      %848 = vrot.lane.b32.xlu0 %v729, 16
      %v849 = vpop.permute.xlu0 %848
      %850 = vrot.lane.b32.xlu0 %v731, 16
      %v851 = vpop.permute.xlu0 %850
      %852 = vrot.lane.b32.xlu0 %v733, 16
      %v853 = vpop.permute.xlu0 %852
      %854 = vrot.lane.b32.xlu0 %v735, 16
      %v855 = vpop.permute.xlu0 %854
      %856 = vrot.lane.b32.xlu0 %v737, 16
      %v857 = vpop.permute.xlu0 %856
      %858 = vrot.lane.b32.xlu0 %v739, 16
      %v859 = vpop.permute.xlu0 %858
      %860 = vrot.lane.b32.xlu0 %v741, 16
      %v861 = vpop.permute.xlu0 %860
      %862 = vrot.lane.b32.xlu0 %v743, 16
      %v863 = vpop.permute.xlu0 %862
      %864 = vrot.lane.b32.xlu0 %v745, 16
      %v865 = vpop.permute.xlu0 %864
      %866 = vrot.lane.b32.xlu0 %v747, 16
      %v867 = vpop.permute.xlu0 %866
      %868 = vrot.lane.b32.xlu0 %v749, 16
      %v869 = vpop.permute.xlu0 %868
      %870 = vrot.lane.b32.xlu0 %v751, 16
      %v871 = vpop.permute.xlu0 %870
      %872 = vrot.lane.b32.xlu0 %v753, 16
      %v873 = vpop.permute.xlu0 %872
      %874 = vrot.lane.b32.xlu0 %v755, 16
      %v875 = vpop.permute.xlu0 %874
      %876 = vrot.lane.b32.xlu0 %v757, 16
      %v877 = vpop.permute.xlu0 %876
      %878 = vrot.lane.b32.xlu0 %v759, 16
      %v879 = vpop.permute.xlu0 %878
      %880 = vrot.lane.b32.xlu0 %v761, 16
      %v881 = vpop.permute.xlu0 %880
      %882 = vrot.lane.b32.xlu0 %v763, 16
      %v883 = vpop.permute.xlu0 %882
      %884 = vrot.lane.b32.xlu0 %v765, 16
      %v885 = vpop.permute.xlu0 %884
      %886 = vrot.lane.b32.xlu0 %v767, 16
      %v887 = vpop.permute.xlu0 %886
      %888 = vrot.lane.b32.xlu0 %v769, 16
      %v889 = vpop.permute.xlu0 %888
      %890 = vrot.lane.b32.xlu0 %v771, 16
      %v891 = vpop.permute.xlu0 %890
      %892 = vrot.lane.b32.xlu0 %v773, 16
      %v893 = vpop.permute.xlu0 %892
      %894 = vrot.lane.b32.xlu0 %v775, 16
      %v895 = vpop.permute.xlu0 %894
      %896 = vrot.lane.b32.xlu0 %v777, 16
      %v897 = vpop.permute.xlu0 %896
      %898 = vrot.lane.b32.xlu0 %v779, 16
      %v899 = vpop.permute.xlu0 %898
      %900 = vrot.lane.b32.xlu0 %v781, 16
      %v901 = vpop.permute.xlu0 %900
      %902 = vrot.lane.b32.xlu0 %v783, 16
      %v903 = vpop.permute.xlu0 %902
      %904 = vrot.lane.b32.xlu0 %v785, 16
      %v905 = vpop.permute.xlu0 %904
      %906 = vrot.lane.b32.xlu0 %v787, 16
      %v907 = vpop.permute.xlu0 %906
      %908 = vrot.lane.b32.xlu0 %v789, 16
      %v909 = vpop.permute.xlu0 %908
      %910 = vrot.lane.b32.xlu0 %v791, 16
      %v911 = vpop.permute.xlu0 %910
      %912 = vrot.lane.b32.xlu0 %v793, 16
      %v913 = vpop.permute.xlu0 %912
      %914 = vrot.lane.b32.xlu0 %v795, 16
      %v915 = vpop.permute.xlu0 %914
      %916 = vrot.lane.b32.xlu0 %v797, 16
      %v917 = vpop.permute.xlu0 %916
      %918 = vrot.lane.b32.xlu0 %v799, 16
      %v919 = vpop.permute.xlu0 %918
      %920 = vrot.lane.b32.xlu0 %v801, 16
      %v921 = vpop.permute.xlu0 %920
      %922 = vrot.lane.b32.xlu0 %v803, 16
      %v923 = vpop.permute.xlu0 %922
      %924 = vrot.lane.b32.xlu0 %v805, 16
      %v925 = vpop.permute.xlu0 %924
      %926 = vrot.lane.b32.xlu0 %v807, 16
      %v927 = vpop.permute.xlu0 %926
      %928 = vrot.lane.b32.xlu0 %v809, 16
      %v929 = vpop.permute.xlu0 %928
      %930 = vrot.lane.b32.xlu0 %v811, 16
      %v931 = vpop.permute.xlu0 %930
      %932 = vrot.lane.b32.xlu0 %v813, 16
      %v933 = vpop.permute.xlu0 %932
      %934 = vrot.lane.b32.xlu0 %v815, 16
      %v935 = vpop.permute.xlu0 %934
      %936 = vrot.lane.b32.xlu0 %v817, 16
      %v937 = vpop.permute.xlu0 %936
      %938 = vrot.lane.b32.xlu0 %v819, 16
      %v939 = vpop.permute.xlu0 %938
      %940 = vrot.lane.b32.xlu0 %v821, 16
      %v941 = vpop.permute.xlu0 %940
      %942 = vrot.lane.b32.xlu0 %v823, 16
      %v943 = vpop.permute.xlu0 %942
      %944 = vrot.lane.b32.xlu0 %v822, 16
      %v945 = vpop.permute.xlu0 %944
      %1010 = vrot.lane.b32.xlu0 %v272, 24
      %v1011 = vpop.permute.xlu0 %1010
      %1012 = vrot.lane.b32.xlu0 %v273, 24
      %v1013 = vpop.permute.xlu0 %1012
      %1014 = vrot.lane.b32.xlu0 %v274, 24
      %v1015 = vpop.permute.xlu0 %1014
      %1016 = vrot.lane.b32.xlu0 %v275, 24
      %v1017 = vpop.permute.xlu0 %1016
      %1018 = vrot.lane.b32.xlu0 %v276, 24
      %v1019 = vpop.permute.xlu0 %1018
      %1020 = vrot.lane.b32.xlu0 %v277, 24
      %v1021 = vpop.permute.xlu0 %1020
      %1022 = vrot.lane.b32.xlu0 %v278, 24
      %v1023 = vpop.permute.xlu0 %1022
      %1024 = vrot.lane.b32.xlu0 %v279, 24
      %v1025 = vpop.permute.xlu0 %1024
      %1026 = vrot.lane.b32.xlu0 %v280, 24
      %v1027 = vpop.permute.xlu0 %1026
      %1028 = vrot.lane.b32.xlu0 %v281, 24
      %v1029 = vpop.permute.xlu0 %1028
      %1030 = vrot.lane.b32.xlu0 %v282, 24
      %v1031 = vpop.permute.xlu0 %1030
      %1032 = vrot.lane.b32.xlu0 %v283, 24
      %v1033 = vpop.permute.xlu0 %1032
      %1034 = vrot.lane.b32.xlu0 %v284, 24
      %v1035 = vpop.permute.xlu0 %1034
      %1036 = vrot.lane.b32.xlu0 %v285, 24
      %v1037 = vpop.permute.xlu0 %1036
      %1038 = vrot.lane.b32.xlu0 %v286, 24
      %v1039 = vpop.permute.xlu0 %1038
      %1040 = vrot.lane.b32.xlu0 %v287, 24
      %v1041 = vpop.permute.xlu0 %1040
      %1042 = vrot.lane.b32.xlu0 %v288, 24
      %v1043 = vpop.permute.xlu0 %1042
      %1044 = vrot.lane.b32.xlu0 %v289, 24
      %v1045 = vpop.permute.xlu0 %1044
      %1046 = vrot.lane.b32.xlu0 %v290, 24
      %v1047 = vpop.permute.xlu0 %1046
      %1048 = vrot.lane.b32.xlu0 %v291, 24
      %v1049 = vpop.permute.xlu0 %1048
      %1050 = vrot.lane.b32.xlu0 %v292, 24
      %v1051 = vpop.permute.xlu0 %1050
      %1052 = vrot.lane.b32.xlu0 %v293, 24
      %v1053 = vpop.permute.xlu0 %1052
      %1054 = vrot.lane.b32.xlu0 %v294, 24
      %v1055 = vpop.permute.xlu0 %1054
      %1056 = vrot.lane.b32.xlu0 %v295, 24
      %v1057 = vpop.permute.xlu0 %1056
      %1058 = vrot.lane.b32.xlu0 %v296, 24
      %v1059 = vpop.permute.xlu0 %1058
      %1060 = vrot.lane.b32.xlu0 %v297, 24
      %v1061 = vpop.permute.xlu0 %1060
      %1062 = vrot.lane.b32.xlu0 %v298, 24
      %v1063 = vpop.permute.xlu0 %1062
      %1064 = vrot.lane.b32.xlu0 %v299, 24
      %v1065 = vpop.permute.xlu0 %1064
      %1066 = vrot.lane.b32.xlu0 %v300, 24
      %v1067 = vpop.permute.xlu0 %1066
      %1068 = vrot.lane.b32.xlu0 %v301, 24
      %v1069 = vpop.permute.xlu0 %1068
      %1070 = vrot.lane.b32.xlu0 %v302, 24
      %v1071 = vpop.permute.xlu0 %1070
      %1072 = vrot.lane.b32.xlu0 %v303, 24
      %v1073 = vpop.permute.xlu0 %1072
      %1074 = vrot.lane.b32.xlu0 %v304, 24
      %v1075 = vpop.permute.xlu0 %1074
      %1076 = vrot.lane.b32.xlu0 %v305, 24
      %v1077 = vpop.permute.xlu0 %1076
      %1078 = vrot.lane.b32.xlu0 %v306, 24
      %v1079 = vpop.permute.xlu0 %1078
      %1080 = vrot.lane.b32.xlu0 %v307, 24
      %v1081 = vpop.permute.xlu0 %1080
      %1082 = vrot.lane.b32.xlu0 %v308, 24
      %v1083 = vpop.permute.xlu0 %1082
      %1084 = vrot.lane.b32.xlu0 %v309, 24
      %v1085 = vpop.permute.xlu0 %1084
      %1086 = vrot.lane.b32.xlu0 %v310, 24
      %v1087 = vpop.permute.xlu0 %1086
      %1088 = vrot.lane.b32.xlu0 %v311, 24
      %v1089 = vpop.permute.xlu0 %1088
      %1090 = vrot.lane.b32.xlu0 %v312, 24
      %v1091 = vpop.permute.xlu0 %1090
      %1092 = vrot.lane.b32.xlu0 %v313, 24
      %v1093 = vpop.permute.xlu0 %1092
      %1094 = vrot.lane.b32.xlu0 %v314, 24
      %v1095 = vpop.permute.xlu0 %1094
      %1096 = vrot.lane.b32.xlu0 %v315, 24
      %v1097 = vpop.permute.xlu0 %1096
      %1098 = vrot.lane.b32.xlu0 %v316, 24
      %v1099 = vpop.permute.xlu0 %1098
      %1100 = vrot.lane.b32.xlu0 %v317, 24
      %v1101 = vpop.permute.xlu0 %1100
      %1102 = vrot.lane.b32.xlu0 %v318, 24
      %v1103 = vpop.permute.xlu0 %1102
      %1104 = vrot.lane.b32.xlu0 %v319, 24
      %v1105 = vpop.permute.xlu0 %1104
      %1106 = vrot.lane.b32.xlu0 %v320, 24
      %v1107 = vpop.permute.xlu0 %1106
      %1108 = vrot.lane.b32.xlu0 %v321, 24
      %v1109 = vpop.permute.xlu0 %1108
      %1110 = vrot.lane.b32.xlu0 %v322, 24
      %v1111 = vpop.permute.xlu0 %1110
      %1112 = vrot.lane.b32.xlu0 %v323, 24
      %v1113 = vpop.permute.xlu0 %1112
      %1114 = vrot.lane.b32.xlu0 %v324, 24
      %v1115 = vpop.permute.xlu0 %1114
      %1116 = vrot.lane.b32.xlu0 %v325, 24
      %v1117 = vpop.permute.xlu0 %1116
      %1118 = vrot.lane.b32.xlu0 %v326, 24
      %v1119 = vpop.permute.xlu0 %1118
      %1120 = vrot.lane.b32.xlu0 %v327, 24
      %v1121 = vpop.permute.xlu0 %1120
      %1122 = vrot.lane.b32.xlu0 %v328, 24
      %v1123 = vpop.permute.xlu0 %1122
      %1124 = vrot.lane.b32.xlu0 %v329, 24
      %v1125 = vpop.permute.xlu0 %1124
      %1126 = vrot.lane.b32.xlu0 %v330, 24
      %v1127 = vpop.permute.xlu0 %1126
      %1128 = vrot.lane.b32.xlu0 %v331, 24
      %v1129 = vpop.permute.xlu0 %1128
      %1130 = vrot.lane.b32.xlu0 %v332, 24
      %v1131 = vpop.permute.xlu0 %1130
      %v1193 = vrot.slane %v330, 1
      %v1194 = vsel %vm397, %v517, %v1193
      %v1195 = vrot.slane %v331, 1
      %v1196 = vsel %vm397, %v1193, %v1195
      %v1197 = vrot.slane %v332, 1
      %v1198 = vsel %vm397, %v1195, %v1197
      %1199 = vrot.lane.b32.xlu0 %v406, 32
      %v1200 = vpop.permute.xlu0 %1199
      %1201 = vrot.lane.b32.xlu0 %v408, 32
      %v1202 = vpop.permute.xlu0 %1201
      %1203 = vrot.lane.b32.xlu0 %v410, 32
      %v1204 = vpop.permute.xlu0 %1203
      %1205 = vrot.lane.b32.xlu0 %v412, 32
      %v1206 = vpop.permute.xlu0 %1205
      %1207 = vrot.lane.b32.xlu0 %v414, 32
      %v1208 = vpop.permute.xlu0 %1207
      %1209 = vrot.lane.b32.xlu0 %v416, 32
      %v1210 = vpop.permute.xlu0 %1209
      %1211 = vrot.lane.b32.xlu0 %v418, 32
      %v1212 = vpop.permute.xlu0 %1211
      %1213 = vrot.lane.b32.xlu0 %v420, 32
      %v1214 = vpop.permute.xlu0 %1213
      %1215 = vrot.lane.b32.xlu0 %v422, 32
      %v1216 = vpop.permute.xlu0 %1215
      %1217 = vrot.lane.b32.xlu0 %v424, 32
      %v1218 = vpop.permute.xlu0 %1217
      %1219 = vrot.lane.b32.xlu0 %v426, 32
      %v1220 = vpop.permute.xlu0 %1219
      %1221 = vrot.lane.b32.xlu0 %v428, 32
      %v1222 = vpop.permute.xlu0 %1221
      %1223 = vrot.lane.b32.xlu0 %v430, 32
      %v1224 = vpop.permute.xlu0 %1223
      %1225 = vrot.lane.b32.xlu0 %v432, 32
      %v1226 = vpop.permute.xlu0 %1225
      %1227 = vrot.lane.b32.xlu0 %v434, 32
      %v1228 = vpop.permute.xlu0 %1227
      %1229 = vrot.lane.b32.xlu0 %v436, 32
      %v1230 = vpop.permute.xlu0 %1229
      %1231 = vrot.lane.b32.xlu0 %v438, 32
      %v1232 = vpop.permute.xlu0 %1231
      %1233 = vrot.lane.b32.xlu0 %v440, 32
      %v1234 = vpop.permute.xlu0 %1233
      %1235 = vrot.lane.b32.xlu0 %v442, 32
      %v1236 = vpop.permute.xlu0 %1235
      %1237 = vrot.lane.b32.xlu0 %v444, 32
      %v1238 = vpop.permute.xlu0 %1237
      %1239 = vrot.lane.b32.xlu0 %v446, 32
      %v1240 = vpop.permute.xlu0 %1239
      %1241 = vrot.lane.b32.xlu0 %v448, 32
      %v1242 = vpop.permute.xlu0 %1241
      %1243 = vrot.lane.b32.xlu0 %v450, 32
      %v1244 = vpop.permute.xlu0 %1243
      %1245 = vrot.lane.b32.xlu0 %v452, 32
      %v1246 = vpop.permute.xlu0 %1245
      %1247 = vrot.lane.b32.xlu0 %v454, 32
      %v1248 = vpop.permute.xlu0 %1247
      %1249 = vrot.lane.b32.xlu0 %v456, 32
      %v1250 = vpop.permute.xlu0 %1249
      %1251 = vrot.lane.b32.xlu0 %v458, 32
      %v1252 = vpop.permute.xlu0 %1251
      %1253 = vrot.lane.b32.xlu0 %v460, 32
      %v1254 = vpop.permute.xlu0 %1253
      %1255 = vrot.lane.b32.xlu0 %v462, 32
      %v1256 = vpop.permute.xlu0 %1255
      %1257 = vrot.lane.b32.xlu0 %v464, 32
      %v1258 = vpop.permute.xlu0 %1257
      %1259 = vrot.lane.b32.xlu0 %v466, 32
      %v1260 = vpop.permute.xlu0 %1259
      %1261 = vrot.lane.b32.xlu0 %v468, 32
      %v1262 = vpop.permute.xlu0 %1261
      %1263 = vrot.lane.b32.xlu0 %v470, 32
      %v1264 = vpop.permute.xlu0 %1263
      %1265 = vrot.lane.b32.xlu0 %v472, 32
      %v1266 = vpop.permute.xlu0 %1265
      %1267 = vrot.lane.b32.xlu0 %v474, 32
      %v1268 = vpop.permute.xlu0 %1267
      %1269 = vrot.lane.b32.xlu0 %v476, 32
      %v1270 = vpop.permute.xlu0 %1269
      %1271 = vrot.lane.b32.xlu0 %v478, 32
      %v1272 = vpop.permute.xlu0 %1271
      %1273 = vrot.lane.b32.xlu0 %v480, 32
      %v1274 = vpop.permute.xlu0 %1273
      %1275 = vrot.lane.b32.xlu0 %v482, 32
      %v1276 = vpop.permute.xlu0 %1275
      %1277 = vrot.lane.b32.xlu0 %v484, 32
      %v1278 = vpop.permute.xlu0 %1277
      %1279 = vrot.lane.b32.xlu0 %v486, 32
      %v1280 = vpop.permute.xlu0 %1279
      %1281 = vrot.lane.b32.xlu0 %v488, 32
      %v1282 = vpop.permute.xlu0 %1281
      %1283 = vrot.lane.b32.xlu0 %v490, 32
      %v1284 = vpop.permute.xlu0 %1283
      %1285 = vrot.lane.b32.xlu0 %v492, 32
      %v1286 = vpop.permute.xlu0 %1285
      %1287 = vrot.lane.b32.xlu0 %v494, 32
      %v1288 = vpop.permute.xlu0 %1287
      %1289 = vrot.lane.b32.xlu0 %v496, 32
      %v1290 = vpop.permute.xlu0 %1289
      %1291 = vrot.lane.b32.xlu0 %v498, 32
      %v1292 = vpop.permute.xlu0 %1291
      %1293 = vrot.lane.b32.xlu0 %v500, 32
      %v1294 = vpop.permute.xlu0 %1293
      %1295 = vrot.lane.b32.xlu0 %v502, 32
      %v1296 = vpop.permute.xlu0 %1295
      %1297 = vrot.lane.b32.xlu0 %v504, 32
      %v1298 = vpop.permute.xlu0 %1297
      %1299 = vrot.lane.b32.xlu0 %v506, 32
      %v1300 = vpop.permute.xlu0 %1299
      %1301 = vrot.lane.b32.xlu0 %v508, 32
      %v1302 = vpop.permute.xlu0 %1301
      %1303 = vrot.lane.b32.xlu0 %v510, 32
      %v1304 = vpop.permute.xlu0 %1303
      %1305 = vrot.lane.b32.xlu0 %v512, 32
      %v1306 = vpop.permute.xlu0 %1305
      %1307 = vrot.lane.b32.xlu0 %v514, 32
      %v1308 = vpop.permute.xlu0 %1307
      %1309 = vrot.lane.b32.xlu0 %v516, 32
      %v1310 = vpop.permute.xlu0 %1309
      %1311 = vrot.lane.b32.xlu0 %v518, 32
      %v1312 = vpop.permute.xlu0 %1311
      %1313 = vrot.lane.b32.xlu0 %v1194, 32
      %v1314 = vpop.permute.xlu0 %1313
      %1315 = vrot.lane.b32.xlu0 %v1196, 32
      %v1316 = vpop.permute.xlu0 %1315
      %1317 = vrot.lane.b32.xlu0 %v1198, 32
      %v1318 = vpop.permute.xlu0 %1317
      %1319 = vrot.lane.b32.xlu0 %v1197, 32
      %v1320 = vpop.permute.xlu0 %1319
      %v1382 = vrot.slane %v330, 2
      %v1383 = vsel %vm702, %v822, %v1382
      %v1384 = vrot.slane %v331, 2
      %v1385 = vsel %vm702, %v1382, %v1384
      %v1386 = vrot.slane %v332, 2
      %v1387 = vsel %vm702, %v1384, %v1386
      %1388 = vrot.lane.b32.xlu0 %v711, 40
      %v1389 = vpop.permute.xlu0 %1388
      %1390 = vrot.lane.b32.xlu0 %v713, 40
      %v1391 = vpop.permute.xlu0 %1390
      %1392 = vrot.lane.b32.xlu0 %v715, 40
      %v1393 = vpop.permute.xlu0 %1392
      %1394 = vrot.lane.b32.xlu0 %v717, 40
      %v1395 = vpop.permute.xlu0 %1394
      %1396 = vrot.lane.b32.xlu0 %v719, 40
      %v1397 = vpop.permute.xlu0 %1396
      %1398 = vrot.lane.b32.xlu0 %v721, 40
      %v1399 = vpop.permute.xlu0 %1398
      %1400 = vrot.lane.b32.xlu0 %v723, 40
      %v1401 = vpop.permute.xlu0 %1400
      %1402 = vrot.lane.b32.xlu0 %v725, 40
      %v1403 = vpop.permute.xlu0 %1402
      %1404 = vrot.lane.b32.xlu0 %v727, 40
      %v1405 = vpop.permute.xlu0 %1404
      %1406 = vrot.lane.b32.xlu0 %v729, 40
      %v1407 = vpop.permute.xlu0 %1406
      %1408 = vrot.lane.b32.xlu0 %v731, 40
      %v1409 = vpop.permute.xlu0 %1408
      %1410 = vrot.lane.b32.xlu0 %v733, 40
      %v1411 = vpop.permute.xlu0 %1410
      %1412 = vrot.lane.b32.xlu0 %v735, 40
      %v1413 = vpop.permute.xlu0 %1412
      %1414 = vrot.lane.b32.xlu0 %v737, 40
      %v1415 = vpop.permute.xlu0 %1414
      %1416 = vrot.lane.b32.xlu0 %v739, 40
      %v1417 = vpop.permute.xlu0 %1416
      %1418 = vrot.lane.b32.xlu0 %v741, 40
      %v1419 = vpop.permute.xlu0 %1418
      %1420 = vrot.lane.b32.xlu0 %v743, 40
      %v1421 = vpop.permute.xlu0 %1420
      %1422 = vrot.lane.b32.xlu0 %v745, 40
      %v1423 = vpop.permute.xlu0 %1422
      %1424 = vrot.lane.b32.xlu0 %v747, 40
      %v1425 = vpop.permute.xlu0 %1424
      %1426 = vrot.lane.b32.xlu0 %v749, 40
      %v1427 = vpop.permute.xlu0 %1426
      %1428 = vrot.lane.b32.xlu0 %v751, 40
      %v1429 = vpop.permute.xlu0 %1428
      %1430 = vrot.lane.b32.xlu0 %v753, 40
      %v1431 = vpop.permute.xlu0 %1430
      %1432 = vrot.lane.b32.xlu0 %v755, 40
      %v1433 = vpop.permute.xlu0 %1432
      %1434 = vrot.lane.b32.xlu0 %v757, 40
      %v1435 = vpop.permute.xlu0 %1434
      %1436 = vrot.lane.b32.xlu0 %v759, 40
      %v1437 = vpop.permute.xlu0 %1436
      %1438 = vrot.lane.b32.xlu0 %v761, 40
      %v1439 = vpop.permute.xlu0 %1438
      %1440 = vrot.lane.b32.xlu0 %v763, 40
      %v1441 = vpop.permute.xlu0 %1440
      %1442 = vrot.lane.b32.xlu0 %v765, 40
      %v1443 = vpop.permute.xlu0 %1442
      %1444 = vrot.lane.b32.xlu0 %v767, 40
      %v1445 = vpop.permute.xlu0 %1444
      %1446 = vrot.lane.b32.xlu0 %v769, 40
      %v1447 = vpop.permute.xlu0 %1446
      %1448 = vrot.lane.b32.xlu0 %v771, 40
      %v1449 = vpop.permute.xlu0 %1448
      %1450 = vrot.lane.b32.xlu0 %v773, 40
      %v1451 = vpop.permute.xlu0 %1450
      %1452 = vrot.lane.b32.xlu0 %v775, 40
      %v1453 = vpop.permute.xlu0 %1452
      %1454 = vrot.lane.b32.xlu0 %v777, 40
      %v1455 = vpop.permute.xlu0 %1454
      %1456 = vrot.lane.b32.xlu0 %v779, 40
      %v1457 = vpop.permute.xlu0 %1456
      %1458 = vrot.lane.b32.xlu0 %v781, 40
      %v1459 = vpop.permute.xlu0 %1458
      %1460 = vrot.lane.b32.xlu0 %v783, 40
      %v1461 = vpop.permute.xlu0 %1460
      %1462 = vrot.lane.b32.xlu0 %v785, 40
      %v1463 = vpop.permute.xlu0 %1462
      %1464 = vrot.lane.b32.xlu0 %v787, 40
      %v1465 = vpop.permute.xlu0 %1464
      %1466 = vrot.lane.b32.xlu0 %v789, 40
      %v1467 = vpop.permute.xlu0 %1466
      %1468 = vrot.lane.b32.xlu0 %v791, 40
      %v1469 = vpop.permute.xlu0 %1468
      %1470 = vrot.lane.b32.xlu0 %v793, 40
      %v1471 = vpop.permute.xlu0 %1470
      %1472 = vrot.lane.b32.xlu0 %v795, 40
      %v1473 = vpop.permute.xlu0 %1472
      %1474 = vrot.lane.b32.xlu0 %v797, 40
      %v1475 = vpop.permute.xlu0 %1474
      %1476 = vrot.lane.b32.xlu0 %v799, 40
      %v1477 = vpop.permute.xlu0 %1476
      %1478 = vrot.lane.b32.xlu0 %v801, 40
      %v1479 = vpop.permute.xlu0 %1478
      %1480 = vrot.lane.b32.xlu0 %v803, 40
      %v1481 = vpop.permute.xlu0 %1480
      %1482 = vrot.lane.b32.xlu0 %v805, 40
      %v1483 = vpop.permute.xlu0 %1482
      %1484 = vrot.lane.b32.xlu0 %v807, 40
      %v1485 = vpop.permute.xlu0 %1484
      %1486 = vrot.lane.b32.xlu0 %v809, 40
      %v1487 = vpop.permute.xlu0 %1486
      %1488 = vrot.lane.b32.xlu0 %v811, 40
      %v1489 = vpop.permute.xlu0 %1488
      %1490 = vrot.lane.b32.xlu0 %v813, 40
      %v1491 = vpop.permute.xlu0 %1490
      %1492 = vrot.lane.b32.xlu0 %v815, 40
      %v1493 = vpop.permute.xlu0 %1492
      %1494 = vrot.lane.b32.xlu0 %v817, 40
      %v1495 = vpop.permute.xlu0 %1494
      %1496 = vrot.lane.b32.xlu0 %v819, 40
      %v1497 = vpop.permute.xlu0 %1496
      %1498 = vrot.lane.b32.xlu0 %v821, 40
      %v1499 = vpop.permute.xlu0 %1498
      %1500 = vrot.lane.b32.xlu0 %v823, 40
      %v1501 = vpop.permute.xlu0 %1500
      %1502 = vrot.lane.b32.xlu0 %v1383, 40
      %v1503 = vpop.permute.xlu0 %1502
      %1504 = vrot.lane.b32.xlu0 %v1385, 40
      %v1505 = vpop.permute.xlu0 %1504
      %1506 = vrot.lane.b32.xlu0 %v1387, 40
      %v1507 = vpop.permute.xlu0 %1506
      %1508 = vrot.lane.b32.xlu0 %v1386, 40
      %v1509 = vpop.permute.xlu0 %1508
      %1574 = vrot.lane.b32.xlu0 %v275, 48
      %v1575 = vpop.permute.xlu0 %1574
      %1576 = vrot.lane.b32.xlu0 %v276, 48
      %v1577 = vpop.permute.xlu0 %1576
      %1578 = vrot.lane.b32.xlu0 %v277, 48
      %v1579 = vpop.permute.xlu0 %1578
      %1580 = vrot.lane.b32.xlu0 %v278, 48
      %v1581 = vpop.permute.xlu0 %1580
      %1582 = vrot.lane.b32.xlu0 %v279, 48
      %v1583 = vpop.permute.xlu0 %1582
      %1584 = vrot.lane.b32.xlu0 %v280, 48
      %v1585 = vpop.permute.xlu0 %1584
      %1586 = vrot.lane.b32.xlu0 %v281, 48
      %v1587 = vpop.permute.xlu0 %1586
      %1588 = vrot.lane.b32.xlu0 %v282, 48
      %v1589 = vpop.permute.xlu0 %1588
      %1590 = vrot.lane.b32.xlu0 %v283, 48
      %v1591 = vpop.permute.xlu0 %1590
      %1592 = vrot.lane.b32.xlu0 %v284, 48
      %v1593 = vpop.permute.xlu0 %1592
      %1594 = vrot.lane.b32.xlu0 %v285, 48
      %v1595 = vpop.permute.xlu0 %1594
      %1596 = vrot.lane.b32.xlu0 %v286, 48
      %v1597 = vpop.permute.xlu0 %1596
      %1598 = vrot.lane.b32.xlu0 %v287, 48
      %v1599 = vpop.permute.xlu0 %1598
      %1600 = vrot.lane.b32.xlu0 %v288, 48
      %v1601 = vpop.permute.xlu0 %1600
      %1602 = vrot.lane.b32.xlu0 %v289, 48
      %v1603 = vpop.permute.xlu0 %1602
      %1604 = vrot.lane.b32.xlu0 %v290, 48
      %v1605 = vpop.permute.xlu0 %1604
      %1606 = vrot.lane.b32.xlu0 %v291, 48
      %v1607 = vpop.permute.xlu0 %1606
      %1608 = vrot.lane.b32.xlu0 %v292, 48
      %v1609 = vpop.permute.xlu0 %1608
      %1610 = vrot.lane.b32.xlu0 %v293, 48
      %v1611 = vpop.permute.xlu0 %1610
      %1612 = vrot.lane.b32.xlu0 %v294, 48
      %v1613 = vpop.permute.xlu0 %1612
      %1614 = vrot.lane.b32.xlu0 %v295, 48
      %v1615 = vpop.permute.xlu0 %1614
      %1616 = vrot.lane.b32.xlu0 %v296, 48
      %v1617 = vpop.permute.xlu0 %1616
      %1618 = vrot.lane.b32.xlu0 %v297, 48
      %v1619 = vpop.permute.xlu0 %1618
      %1620 = vrot.lane.b32.xlu0 %v298, 48
      %v1621 = vpop.permute.xlu0 %1620
      %1622 = vrot.lane.b32.xlu0 %v299, 48
      %v1623 = vpop.permute.xlu0 %1622
      %1624 = vrot.lane.b32.xlu0 %v300, 48
      %v1625 = vpop.permute.xlu0 %1624
      %1626 = vrot.lane.b32.xlu0 %v301, 48
      %v1627 = vpop.permute.xlu0 %1626
      %1628 = vrot.lane.b32.xlu0 %v302, 48
      %v1629 = vpop.permute.xlu0 %1628
      %1630 = vrot.lane.b32.xlu0 %v303, 48
      %v1631 = vpop.permute.xlu0 %1630
      %1632 = vrot.lane.b32.xlu0 %v304, 48
      %v1633 = vpop.permute.xlu0 %1632
      %1634 = vrot.lane.b32.xlu0 %v305, 48
      %v1635 = vpop.permute.xlu0 %1634
      %1636 = vrot.lane.b32.xlu0 %v306, 48
      %v1637 = vpop.permute.xlu0 %1636
      %1638 = vrot.lane.b32.xlu0 %v307, 48
      %v1639 = vpop.permute.xlu0 %1638
      %1640 = vrot.lane.b32.xlu0 %v308, 48
      %v1641 = vpop.permute.xlu0 %1640
      %1642 = vrot.lane.b32.xlu0 %v309, 48
      %v1643 = vpop.permute.xlu0 %1642
      %1644 = vrot.lane.b32.xlu0 %v310, 48
      %v1645 = vpop.permute.xlu0 %1644
      %1646 = vrot.lane.b32.xlu0 %v311, 48
      %v1647 = vpop.permute.xlu0 %1646
      %1648 = vrot.lane.b32.xlu0 %v312, 48
      %v1649 = vpop.permute.xlu0 %1648
      %1650 = vrot.lane.b32.xlu0 %v313, 48
      %v1651 = vpop.permute.xlu0 %1650
      %1652 = vrot.lane.b32.xlu0 %v314, 48
      %v1653 = vpop.permute.xlu0 %1652
      %1654 = vrot.lane.b32.xlu0 %v315, 48
      %v1655 = vpop.permute.xlu0 %1654
      %1656 = vrot.lane.b32.xlu0 %v316, 48
      %v1657 = vpop.permute.xlu0 %1656
      %1658 = vrot.lane.b32.xlu0 %v317, 48
      %v1659 = vpop.permute.xlu0 %1658
      %1660 = vrot.lane.b32.xlu0 %v318, 48
      %v1661 = vpop.permute.xlu0 %1660
      %1662 = vrot.lane.b32.xlu0 %v319, 48
      %v1663 = vpop.permute.xlu0 %1662
      %1664 = vrot.lane.b32.xlu0 %v320, 48
      %v1665 = vpop.permute.xlu0 %1664
      %1666 = vrot.lane.b32.xlu0 %v321, 48
      %v1667 = vpop.permute.xlu0 %1666
      %1668 = vrot.lane.b32.xlu0 %v322, 48
      %v1669 = vpop.permute.xlu0 %1668
      %1670 = vrot.lane.b32.xlu0 %v323, 48
      %v1671 = vpop.permute.xlu0 %1670
      %1672 = vrot.lane.b32.xlu0 %v324, 48
      %v1673 = vpop.permute.xlu0 %1672
      %1674 = vrot.lane.b32.xlu0 %v325, 48
      %v1675 = vpop.permute.xlu0 %1674
      %1676 = vrot.lane.b32.xlu0 %v326, 48
      %v1677 = vpop.permute.xlu0 %1676
      %1678 = vrot.lane.b32.xlu0 %v327, 48
      %v1679 = vpop.permute.xlu0 %1678
      %1680 = vrot.lane.b32.xlu0 %v328, 48
      %v1681 = vpop.permute.xlu0 %1680
      %1682 = vrot.lane.b32.xlu0 %v329, 48
      %v1683 = vpop.permute.xlu0 %1682
      %1684 = vrot.lane.b32.xlu0 %v330, 48
      %v1685 = vpop.permute.xlu0 %1684
      %1686 = vrot.lane.b32.xlu0 %v331, 48
      %v1687 = vpop.permute.xlu0 %1686
      %1688 = vrot.lane.b32.xlu0 %v332, 48
      %v1689 = vpop.permute.xlu0 %1688
      %1690 = vrot.lane.b32.xlu0 %v333, 48
      %v1691 = vpop.permute.xlu0 %1690
      %1692 = vrot.lane.b32.xlu0 %v334, 48
      %v1693 = vpop.permute.xlu0 %1692
      %1694 = vrot.lane.b32.xlu0 %v335, 48
      %v1695 = vpop.permute.xlu0 %1694
      %v1757 = vrot.slane %v333, 1
      %v1758 = vsel %vm397, %v1197, %v1757
      %v1759 = vrot.slane %v334, 1
      %v1760 = vsel %vm397, %v1757, %v1759
      %v1761 = vrot.slane %v335, 1
      %v1762 = vsel %vm397, %v1759, %v1761
      %1763 = vrot.lane.b32.xlu0 %v412, 56
      %v1764 = vpop.permute.xlu0 %1763
      %1765 = vrot.lane.b32.xlu0 %v414, 56
      %v1766 = vpop.permute.xlu0 %1765
      %1767 = vrot.lane.b32.xlu0 %v416, 56
      %v1768 = vpop.permute.xlu0 %1767
      %1769 = vrot.lane.b32.xlu0 %v418, 56
      %v1770 = vpop.permute.xlu0 %1769
      %1771 = vrot.lane.b32.xlu0 %v420, 56
      %v1772 = vpop.permute.xlu0 %1771
      %1773 = vrot.lane.b32.xlu0 %v422, 56
      %v1774 = vpop.permute.xlu0 %1773
      %1775 = vrot.lane.b32.xlu0 %v424, 56
      %v1776 = vpop.permute.xlu0 %1775
      %1777 = vrot.lane.b32.xlu0 %v426, 56
      %v1778 = vpop.permute.xlu0 %1777
      %1779 = vrot.lane.b32.xlu0 %v428, 56
      %v1780 = vpop.permute.xlu0 %1779
      %1781 = vrot.lane.b32.xlu0 %v430, 56
      %v1782 = vpop.permute.xlu0 %1781
      %1783 = vrot.lane.b32.xlu0 %v432, 56
      %v1784 = vpop.permute.xlu0 %1783
      %1785 = vrot.lane.b32.xlu0 %v434, 56
      %v1786 = vpop.permute.xlu0 %1785
      %1787 = vrot.lane.b32.xlu0 %v436, 56
      %v1788 = vpop.permute.xlu0 %1787
      %1789 = vrot.lane.b32.xlu0 %v438, 56
      %v1790 = vpop.permute.xlu0 %1789
      %1791 = vrot.lane.b32.xlu0 %v440, 56
      %v1792 = vpop.permute.xlu0 %1791
      %1793 = vrot.lane.b32.xlu0 %v442, 56
      %v1794 = vpop.permute.xlu0 %1793
      %1795 = vrot.lane.b32.xlu0 %v444, 56
      %v1796 = vpop.permute.xlu0 %1795
      %1797 = vrot.lane.b32.xlu0 %v446, 56
      %v1798 = vpop.permute.xlu0 %1797
      %1799 = vrot.lane.b32.xlu0 %v448, 56
      %v1800 = vpop.permute.xlu0 %1799
      %1801 = vrot.lane.b32.xlu0 %v450, 56
      %v1802 = vpop.permute.xlu0 %1801
      %1803 = vrot.lane.b32.xlu0 %v452, 56
      %v1804 = vpop.permute.xlu0 %1803
      %1805 = vrot.lane.b32.xlu0 %v454, 56
      %v1806 = vpop.permute.xlu0 %1805
      %1807 = vrot.lane.b32.xlu0 %v456, 56
      %v1808 = vpop.permute.xlu0 %1807
      %1809 = vrot.lane.b32.xlu0 %v458, 56
      %v1810 = vpop.permute.xlu0 %1809
      %1811 = vrot.lane.b32.xlu0 %v460, 56
      %v1812 = vpop.permute.xlu0 %1811
      %1813 = vrot.lane.b32.xlu0 %v462, 56
      %v1814 = vpop.permute.xlu0 %1813
      %1815 = vrot.lane.b32.xlu0 %v464, 56
      %v1816 = vpop.permute.xlu0 %1815
      %1817 = vrot.lane.b32.xlu0 %v466, 56
      %v1818 = vpop.permute.xlu0 %1817
      %1819 = vrot.lane.b32.xlu0 %v468, 56
      %v1820 = vpop.permute.xlu0 %1819
      %1821 = vrot.lane.b32.xlu0 %v470, 56
      %v1822 = vpop.permute.xlu0 %1821
      %1823 = vrot.lane.b32.xlu0 %v472, 56
      %v1824 = vpop.permute.xlu0 %1823
      %1825 = vrot.lane.b32.xlu0 %v474, 56
      %v1826 = vpop.permute.xlu0 %1825
      %1827 = vrot.lane.b32.xlu0 %v476, 56
      %v1828 = vpop.permute.xlu0 %1827
      %1829 = vrot.lane.b32.xlu0 %v478, 56
      %v1830 = vpop.permute.xlu0 %1829
      %1831 = vrot.lane.b32.xlu0 %v480, 56
      %v1832 = vpop.permute.xlu0 %1831
      %1833 = vrot.lane.b32.xlu0 %v482, 56
      %v1834 = vpop.permute.xlu0 %1833
      %1835 = vrot.lane.b32.xlu0 %v484, 56
      %v1836 = vpop.permute.xlu0 %1835
      %1837 = vrot.lane.b32.xlu0 %v486, 56
      %v1838 = vpop.permute.xlu0 %1837
      %1839 = vrot.lane.b32.xlu0 %v488, 56
      %v1840 = vpop.permute.xlu0 %1839
      %1841 = vrot.lane.b32.xlu0 %v490, 56
      %v1842 = vpop.permute.xlu0 %1841
      %1843 = vrot.lane.b32.xlu0 %v492, 56
      %v1844 = vpop.permute.xlu0 %1843
      %1845 = vrot.lane.b32.xlu0 %v494, 56
      %v1846 = vpop.permute.xlu0 %1845
      %1847 = vrot.lane.b32.xlu0 %v496, 56
      %v1848 = vpop.permute.xlu0 %1847
      %1849 = vrot.lane.b32.xlu0 %v498, 56
      %v1850 = vpop.permute.xlu0 %1849
      %1851 = vrot.lane.b32.xlu0 %v500, 56
      %v1852 = vpop.permute.xlu0 %1851
      %1853 = vrot.lane.b32.xlu0 %v502, 56
      %v1854 = vpop.permute.xlu0 %1853
      %1855 = vrot.lane.b32.xlu0 %v504, 56
      %v1856 = vpop.permute.xlu0 %1855
      %1857 = vrot.lane.b32.xlu0 %v506, 56
      %v1858 = vpop.permute.xlu0 %1857
      %1859 = vrot.lane.b32.xlu0 %v508, 56
      %v1860 = vpop.permute.xlu0 %1859
      %1861 = vrot.lane.b32.xlu0 %v510, 56
      %v1862 = vpop.permute.xlu0 %1861
      %1863 = vrot.lane.b32.xlu0 %v512, 56
      %v1864 = vpop.permute.xlu0 %1863
      %1865 = vrot.lane.b32.xlu0 %v514, 56
      %v1866 = vpop.permute.xlu0 %1865
      %1867 = vrot.lane.b32.xlu0 %v516, 56
      %v1868 = vpop.permute.xlu0 %1867
      %1869 = vrot.lane.b32.xlu0 %v518, 56
      %v1870 = vpop.permute.xlu0 %1869
      %1871 = vrot.lane.b32.xlu0 %v1194, 56
      %v1872 = vpop.permute.xlu0 %1871
      %1873 = vrot.lane.b32.xlu0 %v1196, 56
      %v1874 = vpop.permute.xlu0 %1873
      %1875 = vrot.lane.b32.xlu0 %v1198, 56
      %v1876 = vpop.permute.xlu0 %1875
      %1877 = vrot.lane.b32.xlu0 %v1758, 56
      %v1878 = vpop.permute.xlu0 %1877
      %1879 = vrot.lane.b32.xlu0 %v1760, 56
      %v1880 = vpop.permute.xlu0 %1879
      %1881 = vrot.lane.b32.xlu0 %v1762, 56
      %v1882 = vpop.permute.xlu0 %1881
      %1883 = vrot.lane.b32.xlu0 %v1761, 56
      %v1884 = vpop.permute.xlu0 %1883
      %v1946 = vrot.slane %v333, 2
      %v1947 = vsel %vm702, %v1386, %v1946
      %v1948 = vrot.slane %v334, 2
      %v1949 = vsel %vm702, %v1946, %v1948
      %v1950 = vrot.slane %v335, 2
      %v1951 = vsel %vm702, %v1948, %v1950
      %1952 = vrot.lane.b32.xlu0 %v717, 64
      %v1953 = vpop.permute.xlu0 %1952
      %1954 = vrot.lane.b32.xlu0 %v719, 64
      %v1955 = vpop.permute.xlu0 %1954
      %1956 = vrot.lane.b32.xlu0 %v721, 64
      %v1957 = vpop.permute.xlu0 %1956
      %1958 = vrot.lane.b32.xlu0 %v723, 64
      %v1959 = vpop.permute.xlu0 %1958
      %1960 = vrot.lane.b32.xlu0 %v725, 64
      %v1961 = vpop.permute.xlu0 %1960
      %1962 = vrot.lane.b32.xlu0 %v727, 64
      %v1963 = vpop.permute.xlu0 %1962
      %1964 = vrot.lane.b32.xlu0 %v729, 64
      %v1965 = vpop.permute.xlu0 %1964
      %1966 = vrot.lane.b32.xlu0 %v731, 64
      %v1967 = vpop.permute.xlu0 %1966
      %1968 = vrot.lane.b32.xlu0 %v733, 64
      %v1969 = vpop.permute.xlu0 %1968
      %1970 = vrot.lane.b32.xlu0 %v735, 64
      %v1971 = vpop.permute.xlu0 %1970
      %1972 = vrot.lane.b32.xlu0 %v737, 64
      %v1973 = vpop.permute.xlu0 %1972
      %1974 = vrot.lane.b32.xlu0 %v739, 64
      %v1975 = vpop.permute.xlu0 %1974
      %1976 = vrot.lane.b32.xlu0 %v741, 64
      %v1977 = vpop.permute.xlu0 %1976
      %1978 = vrot.lane.b32.xlu0 %v743, 64
      %v1979 = vpop.permute.xlu0 %1978
      %1980 = vrot.lane.b32.xlu0 %v745, 64
      %v1981 = vpop.permute.xlu0 %1980
      %1982 = vrot.lane.b32.xlu0 %v747, 64
      %v1983 = vpop.permute.xlu0 %1982
      %1984 = vrot.lane.b32.xlu0 %v749, 64
      %v1985 = vpop.permute.xlu0 %1984
      %1986 = vrot.lane.b32.xlu0 %v751, 64
      %v1987 = vpop.permute.xlu0 %1986
      %1988 = vrot.lane.b32.xlu0 %v753, 64
      %v1989 = vpop.permute.xlu0 %1988
      %1990 = vrot.lane.b32.xlu0 %v755, 64
      %v1991 = vpop.permute.xlu0 %1990
      %1992 = vrot.lane.b32.xlu0 %v757, 64
      %v1993 = vpop.permute.xlu0 %1992
      %1994 = vrot.lane.b32.xlu0 %v759, 64
      %v1995 = vpop.permute.xlu0 %1994
      %1996 = vrot.lane.b32.xlu0 %v761, 64
      %v1997 = vpop.permute.xlu0 %1996
      %1998 = vrot.lane.b32.xlu0 %v763, 64
      %v1999 = vpop.permute.xlu0 %1998
      %2000 = vrot.lane.b32.xlu0 %v765, 64
      %v2001 = vpop.permute.xlu0 %2000
      %2002 = vrot.lane.b32.xlu0 %v767, 64
      %v2003 = vpop.permute.xlu0 %2002
      %2004 = vrot.lane.b32.xlu0 %v769, 64
      %v2005 = vpop.permute.xlu0 %2004
      %2006 = vrot.lane.b32.xlu0 %v771, 64
      %v2007 = vpop.permute.xlu0 %2006
      %2008 = vrot.lane.b32.xlu0 %v773, 64
      %v2009 = vpop.permute.xlu0 %2008
      %2010 = vrot.lane.b32.xlu0 %v775, 64
      %v2011 = vpop.permute.xlu0 %2010
      %2012 = vrot.lane.b32.xlu0 %v777, 64
      %v2013 = vpop.permute.xlu0 %2012
      %2014 = vrot.lane.b32.xlu0 %v779, 64
      %v2015 = vpop.permute.xlu0 %2014
      %2016 = vrot.lane.b32.xlu0 %v781, 64
      %v2017 = vpop.permute.xlu0 %2016
      %2018 = vrot.lane.b32.xlu0 %v783, 64
      %v2019 = vpop.permute.xlu0 %2018
      %2020 = vrot.lane.b32.xlu0 %v785, 64
      %v2021 = vpop.permute.xlu0 %2020
      %2022 = vrot.lane.b32.xlu0 %v787, 64
      %v2023 = vpop.permute.xlu0 %2022
      %2024 = vrot.lane.b32.xlu0 %v789, 64
      %v2025 = vpop.permute.xlu0 %2024
      %2026 = vrot.lane.b32.xlu0 %v791, 64
      %v2027 = vpop.permute.xlu0 %2026
      %2028 = vrot.lane.b32.xlu0 %v793, 64
      %v2029 = vpop.permute.xlu0 %2028
      %2030 = vrot.lane.b32.xlu0 %v795, 64
      %v2031 = vpop.permute.xlu0 %2030
      %2032 = vrot.lane.b32.xlu0 %v797, 64
      %v2033 = vpop.permute.xlu0 %2032
      %2034 = vrot.lane.b32.xlu0 %v799, 64
      %v2035 = vpop.permute.xlu0 %2034
      %2036 = vrot.lane.b32.xlu0 %v801, 64
      %v2037 = vpop.permute.xlu0 %2036
      %2038 = vrot.lane.b32.xlu0 %v803, 64
      %v2039 = vpop.permute.xlu0 %2038
      %2040 = vrot.lane.b32.xlu0 %v805, 64
      %v2041 = vpop.permute.xlu0 %2040
      %2042 = vrot.lane.b32.xlu0 %v807, 64
      %v2043 = vpop.permute.xlu0 %2042
      %2044 = vrot.lane.b32.xlu0 %v809, 64
      %v2045 = vpop.permute.xlu0 %2044
      %2046 = vrot.lane.b32.xlu0 %v811, 64
      %v2047 = vpop.permute.xlu0 %2046
      %2048 = vrot.lane.b32.xlu0 %v813, 64
      %v2049 = vpop.permute.xlu0 %2048
      %2050 = vrot.lane.b32.xlu0 %v815, 64
      %v2051 = vpop.permute.xlu0 %2050
      %2052 = vrot.lane.b32.xlu0 %v817, 64
      %v2053 = vpop.permute.xlu0 %2052
      %2054 = vrot.lane.b32.xlu0 %v819, 64
      %v2055 = vpop.permute.xlu0 %2054
      %2056 = vrot.lane.b32.xlu0 %v821, 64
      %v2057 = vpop.permute.xlu0 %2056
      %2058 = vrot.lane.b32.xlu0 %v823, 64
      %v2059 = vpop.permute.xlu0 %2058
      %2060 = vrot.lane.b32.xlu0 %v1383, 64
      %v2061 = vpop.permute.xlu0 %2060
      %2062 = vrot.lane.b32.xlu0 %v1385, 64
      %v2063 = vpop.permute.xlu0 %2062
      %2064 = vrot.lane.b32.xlu0 %v1387, 64
      %v2065 = vpop.permute.xlu0 %2064
      %2066 = vrot.lane.b32.xlu0 %v1947, 64
      %v2067 = vpop.permute.xlu0 %2066
      %2068 = vrot.lane.b32.xlu0 %v1949, 64
      %v2069 = vpop.permute.xlu0 %2068
      %2070 = vrot.lane.b32.xlu0 %v1951, 64
      %v2071 = vpop.permute.xlu0 %2070
      %2072 = vrot.lane.b32.xlu0 %v1950, 64
      %v2073 = vpop.permute.xlu0 %2072
      %vm2135 = vcmask 64512
      %v2136 = vsel %vm2135, %v269, %v520
      %v2137 = vsel %vm2135, %v270, %v522
      %v2138 = vsel %vm2135, %v271, %v524
      %v2139 = vsel %vm2135, %v272, %v526
      %v2140 = vsel %vm2135, %v273, %v528
      %v2141 = vsel %vm2135, %v274, %v530
      %v2142 = vsel %vm2135, %v275, %v532
      %v2143 = vsel %vm2135, %v276, %v534
      %v2144 = vsel %vm2135, %v277, %v536
      %v2145 = vsel %vm2135, %v278, %v538
      %v2146 = vsel %vm2135, %v279, %v540
      %v2147 = vsel %vm2135, %v280, %v542
      %v2148 = vsel %vm2135, %v281, %v544
      %v2149 = vsel %vm2135, %v282, %v546
      %v2150 = vsel %vm2135, %v283, %v548
      %v2151 = vsel %vm2135, %v284, %v550
      %v2152 = vsel %vm2135, %v285, %v552
      %v2153 = vsel %vm2135, %v286, %v554
      %v2154 = vsel %vm2135, %v287, %v556
      %v2155 = vsel %vm2135, %v288, %v558
      %v2156 = vsel %vm2135, %v289, %v560
      %v2157 = vsel %vm2135, %v290, %v562
      %v2158 = vsel %vm2135, %v291, %v564
      %v2159 = vsel %vm2135, %v292, %v566
      %v2160 = vsel %vm2135, %v293, %v568
      %v2161 = vsel %vm2135, %v294, %v570
      %v2162 = vsel %vm2135, %v295, %v572
      %v2163 = vsel %vm2135, %v296, %v574
      %v2164 = vsel %vm2135, %v297, %v576
      %v2165 = vsel %vm2135, %v298, %v578
      %v2166 = vsel %vm2135, %v299, %v580
      %v2167 = vsel %vm2135, %v300, %v582
      %v2168 = vsel %vm2135, %v301, %v584
      %v2169 = vsel %vm2135, %v302, %v586
      %v2170 = vsel %vm2135, %v303, %v588
      %v2171 = vsel %vm2135, %v304, %v590
      %v2172 = vsel %vm2135, %v305, %v592
      %v2173 = vsel %vm2135, %v306, %v594
      %v2174 = vsel %vm2135, %v307, %v596
      %v2175 = vsel %vm2135, %v308, %v598
      %v2176 = vsel %vm2135, %v309, %v600
      %v2177 = vsel %vm2135, %v310, %v602
      %v2178 = vsel %vm2135, %v311, %v604
      %v2179 = vsel %vm2135, %v312, %v606
      %v2180 = vsel %vm2135, %v313, %v608
      %v2181 = vsel %vm2135, %v314, %v610
      %v2182 = vsel %vm2135, %v315, %v612
      %v2183 = vsel %vm2135, %v316, %v614
      %v2184 = vsel %vm2135, %v317, %v616
      %v2185 = vsel %vm2135, %v318, %v618
      %v2186 = vsel %vm2135, %v319, %v620
      %v2187 = vsel %vm2135, %v320, %v622
      %v2188 = vsel %vm2135, %v321, %v624
      %v2189 = vsel %vm2135, %v322, %v626
      %v2190 = vsel %vm2135, %v323, %v628
      %v2191 = vsel %vm2135, %v324, %v630
      %v2192 = vsel %vm2135, %v325, %v632
      %v2193 = vsel %vm2135, %v326, %v634
      %v2194 = vsel %vm2135, %v327, %v636
      %v2195 = vsel %vm2135, %v328, %v638
      %v2196 = vsel %vm2135, %v329, %v640
      %vm2197 = vcmask 130048
      %v2198 = vsel %vm2197, %v2136, %v825
      %v2199 = vsel %vm2197, %v2137, %v827
      %v2200 = vsel %vm2197, %v2138, %v829
      %v2201 = vsel %vm2197, %v2139, %v831
      %v2202 = vsel %vm2197, %v2140, %v833
      %v2203 = vsel %vm2197, %v2141, %v835
      %v2204 = vsel %vm2197, %v2142, %v837
      %v2205 = vsel %vm2197, %v2143, %v839
      %v2206 = vsel %vm2197, %v2144, %v841
      %v2207 = vsel %vm2197, %v2145, %v843
      %v2208 = vsel %vm2197, %v2146, %v845
      %v2209 = vsel %vm2197, %v2147, %v847
      %v2210 = vsel %vm2197, %v2148, %v849
      %v2211 = vsel %vm2197, %v2149, %v851
      %v2212 = vsel %vm2197, %v2150, %v853
      %v2213 = vsel %vm2197, %v2151, %v855
      %v2214 = vsel %vm2197, %v2152, %v857
      %v2215 = vsel %vm2197, %v2153, %v859
      %v2216 = vsel %vm2197, %v2154, %v861
      %v2217 = vsel %vm2197, %v2155, %v863
      %v2218 = vsel %vm2197, %v2156, %v865
      %v2219 = vsel %vm2197, %v2157, %v867
      %v2220 = vsel %vm2197, %v2158, %v869
      %v2221 = vsel %vm2197, %v2159, %v871
      %v2222 = vsel %vm2197, %v2160, %v873
      %v2223 = vsel %vm2197, %v2161, %v875
      %v2224 = vsel %vm2197, %v2162, %v877
      %v2225 = vsel %vm2197, %v2163, %v879
      %v2226 = vsel %vm2197, %v2164, %v881
      %v2227 = vsel %vm2197, %v2165, %v883
      %v2228 = vsel %vm2197, %v2166, %v885
      %v2229 = vsel %vm2197, %v2167, %v887
      %v2230 = vsel %vm2197, %v2168, %v889
      %v2231 = vsel %vm2197, %v2169, %v891
      %v2232 = vsel %vm2197, %v2170, %v893
      %v2233 = vsel %vm2197, %v2171, %v895
      %v2234 = vsel %vm2197, %v2172, %v897
      %v2235 = vsel %vm2197, %v2173, %v899
      %v2236 = vsel %vm2197, %v2174, %v901
      %v2237 = vsel %vm2197, %v2175, %v903
      %v2238 = vsel %vm2197, %v2176, %v905
      %v2239 = vsel %vm2197, %v2177, %v907
      %v2240 = vsel %vm2197, %v2178, %v909
      %v2241 = vsel %vm2197, %v2179, %v911
      %v2242 = vsel %vm2197, %v2180, %v913
      %v2243 = vsel %vm2197, %v2181, %v915
      %v2244 = vsel %vm2197, %v2182, %v917
      %v2245 = vsel %vm2197, %v2183, %v919
      %v2246 = vsel %vm2197, %v2184, %v921
      %v2247 = vsel %vm2197, %v2185, %v923
      %v2248 = vsel %vm2197, %v2186, %v925
      %v2249 = vsel %vm2197, %v2187, %v927
      %v2250 = vsel %vm2197, %v2188, %v929
      %v2251 = vsel %vm2197, %v2189, %v931
      %v2252 = vsel %vm2197, %v2190, %v933
      %v2253 = vsel %vm2197, %v2191, %v935
      %v2254 = vsel %vm2197, %v2192, %v937
      %v2255 = vsel %vm2197, %v2193, %v939
      %v2256 = vsel %vm2197, %v2194, %v941
      %v2257 = vsel %vm2197, %v2195, %v943
      %v2258 = vsel %vm2197, %v2196, %v945
      %vm2259 = vcmask 195584
      %v2260 = vsel %vm2259, %v2198, %v1011
      %v2261 = vsel %vm2259, %v2199, %v1013
      %v2262 = vsel %vm2259, %v2200, %v1015
      %v2263 = vsel %vm2259, %v2201, %v1017
      %v2264 = vsel %vm2259, %v2202, %v1019
      %v2265 = vsel %vm2259, %v2203, %v1021
      %v2266 = vsel %vm2259, %v2204, %v1023
      %v2267 = vsel %vm2259, %v2205, %v1025
      %v2268 = vsel %vm2259, %v2206, %v1027
      %v2269 = vsel %vm2259, %v2207, %v1029
      %v2270 = vsel %vm2259, %v2208, %v1031
      %v2271 = vsel %vm2259, %v2209, %v1033
      %v2272 = vsel %vm2259, %v2210, %v1035
      %v2273 = vsel %vm2259, %v2211, %v1037
      %v2274 = vsel %vm2259, %v2212, %v1039
      %v2275 = vsel %vm2259, %v2213, %v1041
      %v2276 = vsel %vm2259, %v2214, %v1043
      %v2277 = vsel %vm2259, %v2215, %v1045
      %v2278 = vsel %vm2259, %v2216, %v1047
      %v2279 = vsel %vm2259, %v2217, %v1049
      %v2280 = vsel %vm2259, %v2218, %v1051
      %v2281 = vsel %vm2259, %v2219, %v1053
      %v2282 = vsel %vm2259, %v2220, %v1055
      %v2283 = vsel %vm2259, %v2221, %v1057
      %v2284 = vsel %vm2259, %v2222, %v1059
      %v2285 = vsel %vm2259, %v2223, %v1061
      %v2286 = vsel %vm2259, %v2224, %v1063
      %v2287 = vsel %vm2259, %v2225, %v1065
      %v2288 = vsel %vm2259, %v2226, %v1067
      %v2289 = vsel %vm2259, %v2227, %v1069
      %v2290 = vsel %vm2259, %v2228, %v1071
      %v2291 = vsel %vm2259, %v2229, %v1073
      %v2292 = vsel %vm2259, %v2230, %v1075
      %v2293 = vsel %vm2259, %v2231, %v1077
      %v2294 = vsel %vm2259, %v2232, %v1079
      %v2295 = vsel %vm2259, %v2233, %v1081
      %v2296 = vsel %vm2259, %v2234, %v1083
      %v2297 = vsel %vm2259, %v2235, %v1085
      %v2298 = vsel %vm2259, %v2236, %v1087
      %v2299 = vsel %vm2259, %v2237, %v1089
      %v2300 = vsel %vm2259, %v2238, %v1091
      %v2301 = vsel %vm2259, %v2239, %v1093
      %v2302 = vsel %vm2259, %v2240, %v1095
      %v2303 = vsel %vm2259, %v2241, %v1097
      %v2304 = vsel %vm2259, %v2242, %v1099
      %v2305 = vsel %vm2259, %v2243, %v1101
      %v2306 = vsel %vm2259, %v2244, %v1103
      %v2307 = vsel %vm2259, %v2245, %v1105
      %v2308 = vsel %vm2259, %v2246, %v1107
      %v2309 = vsel %vm2259, %v2247, %v1109
      %v2310 = vsel %vm2259, %v2248, %v1111
      %v2311 = vsel %vm2259, %v2249, %v1113
      %v2312 = vsel %vm2259, %v2250, %v1115
      %v2313 = vsel %vm2259, %v2251, %v1117
      %v2314 = vsel %vm2259, %v2252, %v1119
      %v2315 = vsel %vm2259, %v2253, %v1121
      %v2316 = vsel %vm2259, %v2254, %v1123
      %v2317 = vsel %vm2259, %v2255, %v1125
      %v2318 = vsel %vm2259, %v2256, %v1127
      %v2319 = vsel %vm2259, %v2257, %v1129
      %v2320 = vsel %vm2259, %v2258, %v1131
      %vm2321 = vcmask 261120
      %v2322 = vsel %vm2321, %v2260, %v1200
      %v2323 = vsel %vm2321, %v2261, %v1202
      %v2324 = vsel %vm2321, %v2262, %v1204
      %v2325 = vsel %vm2321, %v2263, %v1206
      %v2326 = vsel %vm2321, %v2264, %v1208
      %v2327 = vsel %vm2321, %v2265, %v1210
      %v2328 = vsel %vm2321, %v2266, %v1212
      %v2329 = vsel %vm2321, %v2267, %v1214
      %v2330 = vsel %vm2321, %v2268, %v1216
      %v2331 = vsel %vm2321, %v2269, %v1218
      %v2332 = vsel %vm2321, %v2270, %v1220
      %v2333 = vsel %vm2321, %v2271, %v1222
      %v2334 = vsel %vm2321, %v2272, %v1224
      %v2335 = vsel %vm2321, %v2273, %v1226
      %v2336 = vsel %vm2321, %v2274, %v1228
      %v2337 = vsel %vm2321, %v2275, %v1230
      %v2338 = vsel %vm2321, %v2276, %v1232
      %v2339 = vsel %vm2321, %v2277, %v1234
      %v2340 = vsel %vm2321, %v2278, %v1236
      %v2341 = vsel %vm2321, %v2279, %v1238
      %v2342 = vsel %vm2321, %v2280, %v1240
      %v2343 = vsel %vm2321, %v2281, %v1242
      %v2344 = vsel %vm2321, %v2282, %v1244
      %v2345 = vsel %vm2321, %v2283, %v1246
      %v2346 = vsel %vm2321, %v2284, %v1248
      %v2347 = vsel %vm2321, %v2285, %v1250
      %v2348 = vsel %vm2321, %v2286, %v1252
      %v2349 = vsel %vm2321, %v2287, %v1254
      %v2350 = vsel %vm2321, %v2288, %v1256
      %v2351 = vsel %vm2321, %v2289, %v1258
      %v2352 = vsel %vm2321, %v2290, %v1260
      %v2353 = vsel %vm2321, %v2291, %v1262
      %v2354 = vsel %vm2321, %v2292, %v1264
      %v2355 = vsel %vm2321, %v2293, %v1266
      %v2356 = vsel %vm2321, %v2294, %v1268
      %v2357 = vsel %vm2321, %v2295, %v1270
      %v2358 = vsel %vm2321, %v2296, %v1272
      %v2359 = vsel %vm2321, %v2297, %v1274
      %v2360 = vsel %vm2321, %v2298, %v1276
      %v2361 = vsel %vm2321, %v2299, %v1278
      %v2362 = vsel %vm2321, %v2300, %v1280
      %v2363 = vsel %vm2321, %v2301, %v1282
      %v2364 = vsel %vm2321, %v2302, %v1284
      %v2365 = vsel %vm2321, %v2303, %v1286
      %v2366 = vsel %vm2321, %v2304, %v1288
      %v2367 = vsel %vm2321, %v2305, %v1290
      %v2368 = vsel %vm2321, %v2306, %v1292
      %v2369 = vsel %vm2321, %v2307, %v1294
      %v2370 = vsel %vm2321, %v2308, %v1296
      %v2371 = vsel %vm2321, %v2309, %v1298
      %v2372 = vsel %vm2321, %v2310, %v1300
      %v2373 = vsel %vm2321, %v2311, %v1302
      %v2374 = vsel %vm2321, %v2312, %v1304
      %v2375 = vsel %vm2321, %v2313, %v1306
      %v2376 = vsel %vm2321, %v2314, %v1308
      %v2377 = vsel %vm2321, %v2315, %v1310
      %v2378 = vsel %vm2321, %v2316, %v1312
      %v2379 = vsel %vm2321, %v2317, %v1314
      %v2380 = vsel %vm2321, %v2318, %v1316
      %v2381 = vsel %vm2321, %v2319, %v1318
      %v2382 = vsel %vm2321, %v2320, %v1320
      %vm2383 = vcmask 326656
      %v2384 = vsel %vm2383, %v2322, %v1389
      %v2385 = vsel %vm2383, %v2323, %v1391
      %v2386 = vsel %vm2383, %v2324, %v1393
      %v2387 = vsel %vm2383, %v2325, %v1395
      %v2388 = vsel %vm2383, %v2326, %v1397
      %v2389 = vsel %vm2383, %v2327, %v1399
      %v2390 = vsel %vm2383, %v2328, %v1401
      %v2391 = vsel %vm2383, %v2329, %v1403
      %v2392 = vsel %vm2383, %v2330, %v1405
      %v2393 = vsel %vm2383, %v2331, %v1407
      %v2394 = vsel %vm2383, %v2332, %v1409
      %v2395 = vsel %vm2383, %v2333, %v1411
      %v2396 = vsel %vm2383, %v2334, %v1413
      %v2397 = vsel %vm2383, %v2335, %v1415
      %v2398 = vsel %vm2383, %v2336, %v1417
      %v2399 = vsel %vm2383, %v2337, %v1419
      %v2400 = vsel %vm2383, %v2338, %v1421
      %v2401 = vsel %vm2383, %v2339, %v1423
      %v2402 = vsel %vm2383, %v2340, %v1425
      %v2403 = vsel %vm2383, %v2341, %v1427
      %v2404 = vsel %vm2383, %v2342, %v1429
      %v2405 = vsel %vm2383, %v2343, %v1431
      %v2406 = vsel %vm2383, %v2344, %v1433
      %v2407 = vsel %vm2383, %v2345, %v1435
      %v2408 = vsel %vm2383, %v2346, %v1437
      %v2409 = vsel %vm2383, %v2347, %v1439
      %v2410 = vsel %vm2383, %v2348, %v1441
      %v2411 = vsel %vm2383, %v2349, %v1443
      %v2412 = vsel %vm2383, %v2350, %v1445
      %v2413 = vsel %vm2383, %v2351, %v1447
      %v2414 = vsel %vm2383, %v2352, %v1449
      %v2415 = vsel %vm2383, %v2353, %v1451
      %v2416 = vsel %vm2383, %v2354, %v1453
      %v2417 = vsel %vm2383, %v2355, %v1455
      %v2418 = vsel %vm2383, %v2356, %v1457
      %v2419 = vsel %vm2383, %v2357, %v1459
      %v2420 = vsel %vm2383, %v2358, %v1461
      %v2421 = vsel %vm2383, %v2359, %v1463
      %v2422 = vsel %vm2383, %v2360, %v1465
      %v2423 = vsel %vm2383, %v2361, %v1467
      %v2424 = vsel %vm2383, %v2362, %v1469
      %v2425 = vsel %vm2383, %v2363, %v1471
      %v2426 = vsel %vm2383, %v2364, %v1473
      %v2427 = vsel %vm2383, %v2365, %v1475
      %v2428 = vsel %vm2383, %v2366, %v1477
      %v2429 = vsel %vm2383, %v2367, %v1479
      %v2430 = vsel %vm2383, %v2368, %v1481
      %v2431 = vsel %vm2383, %v2369, %v1483
      %v2432 = vsel %vm2383, %v2370, %v1485
      %v2433 = vsel %vm2383, %v2371, %v1487
      %v2434 = vsel %vm2383, %v2372, %v1489
      %v2435 = vsel %vm2383, %v2373, %v1491
      %v2436 = vsel %vm2383, %v2374, %v1493
      %v2437 = vsel %vm2383, %v2375, %v1495
      %v2438 = vsel %vm2383, %v2376, %v1497
      %v2439 = vsel %vm2383, %v2377, %v1499
      %v2440 = vsel %vm2383, %v2378, %v1501
      %v2441 = vsel %vm2383, %v2379, %v1503
      %v2442 = vsel %vm2383, %v2380, %v1505
      %v2443 = vsel %vm2383, %v2381, %v1507
      %v2444 = vsel %vm2383, %v2382, %v1509
      %vm2445 = vcmask 392192
      %v2446 = vsel %vm2445, %v2384, %v1575
      %v2447 = vsel %vm2445, %v2385, %v1577
      %v2448 = vsel %vm2445, %v2386, %v1579
      %v2449 = vsel %vm2445, %v2387, %v1581
      %v2450 = vsel %vm2445, %v2388, %v1583
      %v2451 = vsel %vm2445, %v2389, %v1585
      %v2452 = vsel %vm2445, %v2390, %v1587
      %v2453 = vsel %vm2445, %v2391, %v1589
      %v2454 = vsel %vm2445, %v2392, %v1591
      %v2455 = vsel %vm2445, %v2393, %v1593
      %v2456 = vsel %vm2445, %v2394, %v1595
      %v2457 = vsel %vm2445, %v2395, %v1597
      %v2458 = vsel %vm2445, %v2396, %v1599
      %v2459 = vsel %vm2445, %v2397, %v1601
      %v2460 = vsel %vm2445, %v2398, %v1603
      %v2461 = vsel %vm2445, %v2399, %v1605
      %v2462 = vsel %vm2445, %v2400, %v1607
      %v2463 = vsel %vm2445, %v2401, %v1609
      %v2464 = vsel %vm2445, %v2402, %v1611
      %v2465 = vsel %vm2445, %v2403, %v1613
      %v2466 = vsel %vm2445, %v2404, %v1615
      %v2467 = vsel %vm2445, %v2405, %v1617
      %v2468 = vsel %vm2445, %v2406, %v1619
      %v2469 = vsel %vm2445, %v2407, %v1621
      %v2470 = vsel %vm2445, %v2408, %v1623
      %v2471 = vsel %vm2445, %v2409, %v1625
      %v2472 = vsel %vm2445, %v2410, %v1627
      %v2473 = vsel %vm2445, %v2411, %v1629
      %v2474 = vsel %vm2445, %v2412, %v1631
      %v2475 = vsel %vm2445, %v2413, %v1633
      %v2476 = vsel %vm2445, %v2414, %v1635
      %v2477 = vsel %vm2445, %v2415, %v1637
      %v2478 = vsel %vm2445, %v2416, %v1639
      %v2479 = vsel %vm2445, %v2417, %v1641
      %v2480 = vsel %vm2445, %v2418, %v1643
      %v2481 = vsel %vm2445, %v2419, %v1645
      %v2482 = vsel %vm2445, %v2420, %v1647
      %v2483 = vsel %vm2445, %v2421, %v1649
      %v2484 = vsel %vm2445, %v2422, %v1651
      %v2485 = vsel %vm2445, %v2423, %v1653
      %v2486 = vsel %vm2445, %v2424, %v1655
      %v2487 = vsel %vm2445, %v2425, %v1657
      %v2488 = vsel %vm2445, %v2426, %v1659
      %v2489 = vsel %vm2445, %v2427, %v1661
      %v2490 = vsel %vm2445, %v2428, %v1663
      %v2491 = vsel %vm2445, %v2429, %v1665
      %v2492 = vsel %vm2445, %v2430, %v1667
      %v2493 = vsel %vm2445, %v2431, %v1669
      %v2494 = vsel %vm2445, %v2432, %v1671
      %v2495 = vsel %vm2445, %v2433, %v1673
      %v2496 = vsel %vm2445, %v2434, %v1675
      %v2497 = vsel %vm2445, %v2435, %v1677
      %v2498 = vsel %vm2445, %v2436, %v1679
      %v2499 = vsel %vm2445, %v2437, %v1681
      %v2500 = vsel %vm2445, %v2438, %v1683
      %v2501 = vsel %vm2445, %v2439, %v1685
      %v2502 = vsel %vm2445, %v2440, %v1687
      %v2503 = vsel %vm2445, %v2441, %v1689
      %v2504 = vsel %vm2445, %v2442, %v1691
      %v2505 = vsel %vm2445, %v2443, %v1693
      %v2506 = vsel %vm2445, %v2444, %v1695
      %vm2507 = vcmask 457728
      %v2508 = vsel %vm2507, %v2446, %v1764
      %v2509 = vsel %vm2507, %v2447, %v1766
      %v2510 = vsel %vm2507, %v2448, %v1768
      %v2511 = vsel %vm2507, %v2449, %v1770
      %v2512 = vsel %vm2507, %v2450, %v1772
      %v2513 = vsel %vm2507, %v2451, %v1774
      %v2514 = vsel %vm2507, %v2452, %v1776
      %v2515 = vsel %vm2507, %v2453, %v1778
      %v2516 = vsel %vm2507, %v2454, %v1780
      %v2517 = vsel %vm2507, %v2455, %v1782
      %v2518 = vsel %vm2507, %v2456, %v1784
      %v2519 = vsel %vm2507, %v2457, %v1786
      %v2520 = vsel %vm2507, %v2458, %v1788
      %v2521 = vsel %vm2507, %v2459, %v1790
      %v2522 = vsel %vm2507, %v2460, %v1792
      %v2523 = vsel %vm2507, %v2461, %v1794
      %v2524 = vsel %vm2507, %v2462, %v1796
      %v2525 = vsel %vm2507, %v2463, %v1798
      %v2526 = vsel %vm2507, %v2464, %v1800
      %v2527 = vsel %vm2507, %v2465, %v1802
      %v2528 = vsel %vm2507, %v2466, %v1804
      %v2529 = vsel %vm2507, %v2467, %v1806
      %v2530 = vsel %vm2507, %v2468, %v1808
      %v2531 = vsel %vm2507, %v2469, %v1810
      %v2532 = vsel %vm2507, %v2470, %v1812
      %v2533 = vsel %vm2507, %v2471, %v1814
      %v2534 = vsel %vm2507, %v2472, %v1816
      %v2535 = vsel %vm2507, %v2473, %v1818
      %v2536 = vsel %vm2507, %v2474, %v1820
      %v2537 = vsel %vm2507, %v2475, %v1822
      %v2538 = vsel %vm2507, %v2476, %v1824
      %v2539 = vsel %vm2507, %v2477, %v1826
      %v2540 = vsel %vm2507, %v2478, %v1828
      %v2541 = vsel %vm2507, %v2479, %v1830
      %v2542 = vsel %vm2507, %v2480, %v1832
      %v2543 = vsel %vm2507, %v2481, %v1834
      %v2544 = vsel %vm2507, %v2482, %v1836
      %v2545 = vsel %vm2507, %v2483, %v1838
      %v2546 = vsel %vm2507, %v2484, %v1840
      %v2547 = vsel %vm2507, %v2485, %v1842
      %v2548 = vsel %vm2507, %v2486, %v1844
      %v2549 = vsel %vm2507, %v2487, %v1846
      %v2550 = vsel %vm2507, %v2488, %v1848
      %v2551 = vsel %vm2507, %v2489, %v1850
      %v2552 = vsel %vm2507, %v2490, %v1852
      %v2553 = vsel %vm2507, %v2491, %v1854
      %v2554 = vsel %vm2507, %v2492, %v1856
      %v2555 = vsel %vm2507, %v2493, %v1858
      %v2556 = vsel %vm2507, %v2494, %v1860
      %v2557 = vsel %vm2507, %v2495, %v1862
      %v2558 = vsel %vm2507, %v2496, %v1864
      %v2559 = vsel %vm2507, %v2497, %v1866
      %v2560 = vsel %vm2507, %v2498, %v1868
      %v2561 = vsel %vm2507, %v2499, %v1870
      %v2562 = vsel %vm2507, %v2500, %v1872
      %v2563 = vsel %vm2507, %v2501, %v1874
      %v2564 = vsel %vm2507, %v2502, %v1876
      %v2565 = vsel %vm2507, %v2503, %v1878
      %v2566 = vsel %vm2507, %v2504, %v1880
      %v2567 = vsel %vm2507, %v2505, %v1882
      %v2568 = vsel %vm2507, %v2506, %v1884
      %vm2569 = vcmask 523264
      %v2570 = vsel %vm2569, %v2508, %v1953
      %v2571 = vsel %vm2569, %v2509, %v1955
      %v2572 = vsel %vm2569, %v2510, %v1957
      %v2573 = vsel %vm2569, %v2511, %v1959
      %v2574 = vsel %vm2569, %v2512, %v1961
      %v2575 = vsel %vm2569, %v2513, %v1963
      %v2576 = vsel %vm2569, %v2514, %v1965
      %v2577 = vsel %vm2569, %v2515, %v1967
      %v2578 = vsel %vm2569, %v2516, %v1969
      %v2579 = vsel %vm2569, %v2517, %v1971
      %v2580 = vsel %vm2569, %v2518, %v1973
      %v2581 = vsel %vm2569, %v2519, %v1975
      %v2582 = vsel %vm2569, %v2520, %v1977
      %v2583 = vsel %vm2569, %v2521, %v1979
      %v2584 = vsel %vm2569, %v2522, %v1981
      %v2585 = vsel %vm2569, %v2523, %v1983
      %v2586 = vsel %vm2569, %v2524, %v1985
      %v2587 = vsel %vm2569, %v2525, %v1987
      %v2588 = vsel %vm2569, %v2526, %v1989
      %v2589 = vsel %vm2569, %v2527, %v1991
      %v2590 = vsel %vm2569, %v2528, %v1993
      %v2591 = vsel %vm2569, %v2529, %v1995
      %v2592 = vsel %vm2569, %v2530, %v1997
      %v2593 = vsel %vm2569, %v2531, %v1999
      %v2594 = vsel %vm2569, %v2532, %v2001
      %v2595 = vsel %vm2569, %v2533, %v2003
      %v2596 = vsel %vm2569, %v2534, %v2005
      %v2597 = vsel %vm2569, %v2535, %v2007
      %v2598 = vsel %vm2569, %v2536, %v2009
      %v2599 = vsel %vm2569, %v2537, %v2011
      %v2600 = vsel %vm2569, %v2538, %v2013
      %v2601 = vsel %vm2569, %v2539, %v2015
      %v2602 = vsel %vm2569, %v2540, %v2017
      %v2603 = vsel %vm2569, %v2541, %v2019
      %v2604 = vsel %vm2569, %v2542, %v2021
      %v2605 = vsel %vm2569, %v2543, %v2023
      %v2606 = vsel %vm2569, %v2544, %v2025
      %v2607 = vsel %vm2569, %v2545, %v2027
      %v2608 = vsel %vm2569, %v2546, %v2029
      %v2609 = vsel %vm2569, %v2547, %v2031
      %v2610 = vsel %vm2569, %v2548, %v2033
      %v2611 = vsel %vm2569, %v2549, %v2035
      %v2612 = vsel %vm2569, %v2550, %v2037
      %v2613 = vsel %vm2569, %v2551, %v2039
      %v2614 = vsel %vm2569, %v2552, %v2041
      %v2615 = vsel %vm2569, %v2553, %v2043
      %v2616 = vsel %vm2569, %v2554, %v2045
      %v2617 = vsel %vm2569, %v2555, %v2047
      %v2618 = vsel %vm2569, %v2556, %v2049
      %v2619 = vsel %vm2569, %v2557, %v2051
      %v2620 = vsel %vm2569, %v2558, %v2053
      %v2621 = vsel %vm2569, %v2559, %v2055
      %v2622 = vsel %vm2569, %v2560, %v2057
      %v2623 = vsel %vm2569, %v2561, %v2059
      %v2624 = vsel %vm2569, %v2562, %v2061
      %v2625 = vsel %vm2569, %v2563, %v2063
      %v2626 = vsel %vm2569, %v2564, %v2065
      %v2627 = vsel %vm2569, %v2565, %v2067
      %v2628 = vsel %vm2569, %v2566, %v2069
      %v2629 = vsel %vm2569, %v2567, %v2071
      %v2630 = vsel %vm2569, %v2568, %v2073
      %v2631 = vld [vmem:[%s1] sm:$0xff]
      %v2632 = vld [vmem:[%s1 + $0x8] sm:$0xff]
      %v2633 = vld [vmem:[%s1 + $0x10] sm:$0xff]
      %v2634 = vld [vmem:[%s1 + $0x18] sm:$0xff]
      %v2635 = vld [vmem:[%s1 + $0x20] sm:$0xff]
      %v2636 = vld [vmem:[%s1 + $0x28] sm:$0xff]
      %v2637 = vld [vmem:[%s1 + $0x30] sm:$0xff]
      %v2638 = vld [vmem:[%s1 + $0x38] sm:$0xff]
      %v2639 = vld [vmem:[%s1 + $0x40] sm:$0xff]
      %v2640 = vld [vmem:[%s2] sm:$0x1]
      %v2642 = vlaneseq
      %v2643 = vshrl.u32 %v2642, 7
      %v2644 = vsub.s32 0, %v2643
      %v2645 = vrot.slane %v2640, %v2644
      %vm2647 = vcmask 588800
      %v2649 = vsel %vm2647, %v2570, 0
      %v2652 = vsel %vm2647, %v2571, 0
      %v2655 = vsel %vm2647, %v2572, 0
      %v2658 = vsel %vm2647, %v2573, 0
      %v2661 = vsel %vm2647, %v2574, 0
      %v2664 = vsel %vm2647, %v2575, 0
      %v2667 = vsel %vm2647, %v2576, 0
      %v2670 = vsel %vm2647, %v2577, 0
      %v2673 = vsel %vm2647, %v2578, 0
      %v2676 = vsel %vm2647, %v2579, 0
      %v2679 = vsel %vm2647, %v2580, 0
      %v2682 = vsel %vm2647, %v2581, 0
      %v2685 = vsel %vm2647, %v2582, 0
      %v2688 = vsel %vm2647, %v2583, 0
      %v2691 = vsel %vm2647, %v2584, 0
      %v2694 = vsel %vm2647, %v2585, 0
      %v2697 = vsel %vm2647, %v2586, 0
      %v2700 = vsel %vm2647, %v2587, 0
      %v2703 = vsel %vm2647, %v2588, 0
      %v2706 = vsel %vm2647, %v2589, 0
      %v2709 = vsel %vm2647, %v2590, 0
      %v2712 = vsel %vm2647, %v2591, 0
      %v2715 = vsel %vm2647, %v2592, 0
      %v2718 = vsel %vm2647, %v2593, 0
      %v2721 = vsel %vm2647, %v2594, 0
      %v2724 = vsel %vm2647, %v2595, 0
      %v2727 = vsel %vm2647, %v2596, 0
      %v2730 = vsel %vm2647, %v2597, 0
      %v2733 = vsel %vm2647, %v2598, 0
      %v2736 = vsel %vm2647, %v2599, 0
      %v2739 = vsel %vm2647, %v2600, 0
      %v2742 = vsel %vm2647, %v2601, 0
      %v2745 = vsel %vm2647, %v2602, 0
      %v2748 = vsel %vm2647, %v2603, 0
      %v2751 = vsel %vm2647, %v2604, 0
      %v2754 = vsel %vm2647, %v2605, 0
      %v2757 = vsel %vm2647, %v2606, 0
      %v2760 = vsel %vm2647, %v2607, 0
      %v2763 = vsel %vm2647, %v2608, 0
      %v2766 = vsel %vm2647, %v2609, 0
      %v2769 = vsel %vm2647, %v2610, 0
      %v2772 = vsel %vm2647, %v2611, 0
      %v2775 = vsel %vm2647, %v2612, 0
      %v2778 = vsel %vm2647, %v2613, 0
      %v2781 = vsel %vm2647, %v2614, 0
      %v2784 = vsel %vm2647, %v2615, 0
      %v2787 = vsel %vm2647, %v2616, 0
      %v2790 = vsel %vm2647, %v2617, 0
      %v2793 = vsel %vm2647, %v2618, 0
      %v2796 = vsel %vm2647, %v2619, 0
      %v2799 = vsel %vm2647, %v2620, 0
      %v2802 = vsel %vm2647, %v2621, 0
      %v2805 = vsel %vm2647, %v2622, 0
      %v2808 = vsel %vm2647, %v2623, 0
      %v2811 = vsel %vm2647, %v2624, 0
      %v2814 = vsel %vm2647, %v2625, 0
      %v2817 = vsel %vm2647, %v2626, 0
      %v2820 = vsel %vm2647, %v2627, 0
      %v2823 = vsel %vm2647, %v2628, 0
      %v2826 = vsel %vm2647, %v2629, 0
      %v2829 = vsel %vm2647, %v2630, 0
      %2831 = vmatprep.subr.mxu0 0.0
      %2832 = vmatpush1.msra.mxu0 %v2631
      %2833 = vmatprep.subr.mxu0 0.0
      %2834 = vmatpush1.msra.mxu0 %v2632
      %2835 = vmatprep.subr.mxu0 0.0
      %2836 = vmatpush1.msra.mxu0 %v2633
      %2837 = vmatprep.subr.mxu0 0.0
      %2838 = vmatpush1.msra.mxu0 %v2634
      %2839 = vmatprep.subr.mxu0 0.0
      %2840 = vmatpush1.msra.mxu0 %v2635
      %2841 = vmatprep.subr.mxu0 0.0
      %2842 = vmatpush1.msra.mxu0 %v2636
      %2843 = vmatprep.subr.mxu0 0.0
      %2844 = vmatpush1.msra.mxu0 %v2637
      %2845 = vmatprep.subr.mxu0 0.0
      %2846 = vmatpush1.msra.mxu0 %v2638
      %2847 = vmatprep.subr.mxu0 0.0
      %2848 = vmatpush1.msra.mxu0 %v2639
      %2849 = vmatprep.subr.mxu0 0.0
      %2850 = vmatpush1.msra.mxu0 0.0
      %2851 = vmatprep.subr.mxu0 0.0
      %2852 = vmatpush1.msra.mxu0 0.0
      %2853 = vmatprep.subr.mxu0 0.0
      %2854 = vmatpush1.msra.mxu0 0.0
      %2855 = vmatprep.subr.mxu0 0.0
      %2856 = vmatpush1.msra.mxu0 0.0
      %2857 = vmatprep.subr.mxu0 0.0
      %2858 = vmatpush1.msra.mxu0 0.0
      %2859 = vmatprep.subr.mxu0 0.0
      %2860 = vmatpush1.msra.mxu0 0.0
      %2861 = vmatprep.subr.mxu0 0.0
      %2862 = vmatpush1.msra.mxu0 0.0
      %2863 = vmatprep.subr.mxu0 0.0
      %2864 = vmatpush1.msra.mxu0 0.0
      %2865 = vmatprep.subr.mxu0 0.0
      %2866 = vmatpush1.msra.mxu0 0.0
      %2867 = vmatprep.subr.mxu0 0.0
      %2868 = vmatpush1.msra.mxu0 0.0
      %2869 = vmatprep.subr.mxu0 0.0
      %2870 = vmatpush1.msra.mxu0 0.0
      %2871 = vmatprep.subr.mxu0 0.0
      %2872 = vmatpush1.msra.mxu0 0.0
      %2873 = vmatprep.subr.mxu0 0.0
      %2874 = vmatpush1.msra.mxu0 0.0
      %2875 = vmatprep.subr.mxu0 0.0
      %2876 = vmatpush1.msra.mxu0 0.0
      %2877 = vmatprep.subr.mxu0 0.0
      %2878 = vmatpush1.msra.mxu0 0.0
      %2879 = vmatprep.subr.mxu0 0.0
      %2880 = vmatpush1.msra.mxu0 0.0
      %2881 = vmatprep.subr.mxu0 0.0
      %2882 = vmatpush1.msra.mxu0 0.0
      %2883 = vmatprep.subr.mxu0 0.0
      %2884 = vmatpush1.msra.mxu0 0.0
      %2885 = vmatprep.subr.mxu0 0.0
      %2886 = vmatpush1.msra.mxu0 0.0
      %2887 = vmatprep.subr.mxu0 0.0
      %2888 = vmatpush1.msra.mxu0 0.0
      %2889 = vmatprep.subr.mxu0 0.0
      %2890 = vmatpush1.msra.mxu0 0.0
      %2891 = vmatprep.subr.mxu0 0.0
      %2892 = vmatpush1.msra.mxu0 0.0
      %2893 = vmatprep.subr.mxu0 0.0
      %2894 = vmatpush1.msra.mxu0 0.0
      %2895 = vmatprep.mubr.f32.mxu0 0.0
      %2896 = vmatmul.mubr.f32.gmra.mrb[0].mxu0 %v2649
      %v2897 = vpop.f32.mrb[0].mxu0
      %v2898 = vadd.f32 %v2645, %v2897
      %v2899 = vpop.f32.mrb[0].mxu0
      %2900 = vmatprep.mubr.f32.mxu0 0.0
      %2901 = vmatmul.mubr.f32.gmra.mrb[0].mxu0 %v2652
      %v2902 = vpop.f32.mrb[0].mxu0
      %v2903 = vadd.f32 %v2645, %v2902
      %v2904 = vpop.f32.mrb[0].mxu0
      %2905 = vmatprep.mubr.f32.mxu0 0.0
      %2906 = vmatmul.mubr.f32.gmra.mrb[0].mxu0 %v2655
      %v2907 = vpop.f32.mrb[0].mxu0
      %v2908 = vadd.f32 %v2645, %v2907
      %v2909 = vpop.f32.mrb[0].mxu0
      %2910 = vmatprep.mubr.f32.mxu0 0.0
      %2911 = vmatmul.mubr.f32.gmra.mrb[0].mxu0 %v2658
      %v2912 = vpop.f32.mrb[0].mxu0
      %v2913 = vadd.f32 %v2645, %v2912
      %v2914 = vpop.f32.mrb[0].mxu0
      %2915 = vmatprep.mubr.f32.mxu0 0.0
      %2916 = vmatmul.mubr.f32.gmra.mrb[0].mxu0 %v2661
      %v2917 = vpop.f32.mrb[0].mxu0
      %v2918 = vadd.f32 %v2645, %v2917
      %v2919 = vpop.f32.mrb[0].mxu0
      %2920 = vmatprep.mubr.f32.mxu0 0.0
      %2921 = vmatmul.mubr.f32.gmra.mrb[0].mxu0 %v2664
      %v2922 = vpop.f32.mrb[0].mxu0
      %v2923 = vadd.f32 %v2645, %v2922
      %v2924 = vpop.f32.mrb[0].mxu0
      %2925 = vmatprep.mubr.f32.mxu0 0.0
      %2926 = vmatmul.mubr.f32.gmra.mrb[0].mxu0 %v2667
      %v2927 = vpop.f32.mrb[0].mxu0
      %v2928 = vadd.f32 %v2645, %v2927
      %v2929 = vpop.f32.mrb[0].mxu0
      %2930 = vmatprep.mubr.f32.mxu0 0.0
      %2931 = vmatmul.mubr.f32.gmra.mrb[0].mxu0 %v2670
      %v2932 = vpop.f32.mrb[0].mxu0
      %v2933 = vadd.f32 %v2645, %v2932
      %v2934 = vpop.f32.mrb[0].mxu0
      %2935 = vmatprep.mubr.f32.mxu0 0.0
      %2936 = vmatmul.mubr.f32.gmra.mrb[0].mxu0 %v2673
      %v2937 = vpop.f32.mrb[0].mxu0
      %v2938 = vadd.f32 %v2645, %v2937
      %v2939 = vpop.f32.mrb[0].mxu0
      %2940 = vmatprep.mubr.f32.mxu0 0.0
      %2941 = vmatmul.mubr.f32.gmra.mrb[0].mxu0 %v2676
      %v2942 = vpop.f32.mrb[0].mxu0
      %v2943 = vadd.f32 %v2645, %v2942
      %v2944 = vpop.f32.mrb[0].mxu0
      %2945 = vmatprep.mubr.f32.mxu0 0.0
      %2946 = vmatmul.mubr.f32.gmra.mrb[0].mxu0 %v2679
      %v2947 = vpop.f32.mrb[0].mxu0
      %v2948 = vadd.f32 %v2645, %v2947
      %v2949 = vpop.f32.mrb[0].mxu0
      %2950 = vmatprep.mubr.f32.mxu0 0.0
      %2951 = vmatmul.mubr.f32.gmra.mrb[0].mxu0 %v2682
      %v2952 = vpop.f32.mrb[0].mxu0
      %v2953 = vadd.f32 %v2645, %v2952
      %v2954 = vpop.f32.mrb[0].mxu0
      %2955 = vmatprep.mubr.f32.mxu0 0.0
      %2956 = vmatmul.mubr.f32.gmra.mrb[0].mxu0 %v2685
      %v2957 = vpop.f32.mrb[0].mxu0
      %v2958 = vadd.f32 %v2645, %v2957
      %v2959 = vpop.f32.mrb[0].mxu0
      %2960 = vmatprep.mubr.f32.mxu0 0.0
      %2961 = vmatmul.mubr.f32.gmra.mrb[0].mxu0 %v2688
      %v2962 = vpop.f32.mrb[0].mxu0
      %v2963 = vadd.f32 %v2645, %v2962
      %v2964 = vpop.f32.mrb[0].mxu0
      %2965 = vmatprep.mubr.f32.mxu0 0.0
      %2966 = vmatmul.mubr.f32.gmra.mrb[0].mxu0 %v2691
      %v2967 = vpop.f32.mrb[0].mxu0
      %v2968 = vadd.f32 %v2645, %v2967
      %v2969 = vpop.f32.mrb[0].mxu0
      %2970 = vmatprep.mubr.f32.mxu0 0.0
      %2971 = vmatmul.mubr.f32.gmra.mrb[0].mxu0 %v2694
      %v2972 = vpop.f32.mrb[0].mxu0
      %v2973 = vadd.f32 %v2645, %v2972
      %v2974 = vpop.f32.mrb[0].mxu0
      %2975 = vmatprep.mubr.f32.mxu0 0.0
      %2976 = vmatmul.mubr.f32.gmra.mrb[0].mxu0 %v2697
      %v2977 = vpop.f32.mrb[0].mxu0
      %v2978 = vadd.f32 %v2645, %v2977
      %v2979 = vpop.f32.mrb[0].mxu0
      %2980 = vmatprep.mubr.f32.mxu0 0.0
      %2981 = vmatmul.mubr.f32.gmra.mrb[0].mxu0 %v2700
      %v2982 = vpop.f32.mrb[0].mxu0
      %v2983 = vadd.f32 %v2645, %v2982
      %v2984 = vpop.f32.mrb[0].mxu0
      %2985 = vmatprep.mubr.f32.mxu0 0.0
      %2986 = vmatmul.mubr.f32.gmra.mrb[0].mxu0 %v2703
      %v2987 = vpop.f32.mrb[0].mxu0
      %v2988 = vadd.f32 %v2645, %v2987
      %v2989 = vpop.f32.mrb[0].mxu0
      %2990 = vmatprep.mubr.f32.mxu0 0.0
      %2991 = vmatmul.mubr.f32.gmra.mrb[0].mxu0 %v2706
      %v2992 = vpop.f32.mrb[0].mxu0
      %v2993 = vadd.f32 %v2645, %v2992
      %v2994 = vpop.f32.mrb[0].mxu0
      %2995 = vmatprep.mubr.f32.mxu0 0.0
      %2996 = vmatmul.mubr.f32.gmra.mrb[0].mxu0 %v2709
      %v2997 = vpop.f32.mrb[0].mxu0
      %v2998 = vadd.f32 %v2645, %v2997
      %v2999 = vpop.f32.mrb[0].mxu0
      %3000 = vmatprep.mubr.f32.mxu0 0.0
      %3001 = vmatmul.mubr.f32.gmra.mrb[0].mxu0 %v2712
      %v3002 = vpop.f32.mrb[0].mxu0
      %v3003 = vadd.f32 %v2645, %v3002
      %v3004 = vpop.f32.mrb[0].mxu0
      %3005 = vmatprep.mubr.f32.mxu0 0.0
      %3006 = vmatmul.mubr.f32.gmra.mrb[0].mxu0 %v2715
      %v3007 = vpop.f32.mrb[0].mxu0
      %v3008 = vadd.f32 %v2645, %v3007
      %v3009 = vpop.f32.mrb[0].mxu0
      %3010 = vmatprep.mubr.f32.mxu0 0.0
      %3011 = vmatmul.mubr.f32.gmra.mrb[0].mxu0 %v2718
      %v3012 = vpop.f32.mrb[0].mxu0
      %v3013 = vadd.f32 %v2645, %v3012
      %v3014 = vpop.f32.mrb[0].mxu0
      %3015 = vmatprep.mubr.f32.mxu0 0.0
      %3016 = vmatmul.mubr.f32.gmra.mrb[0].mxu0 %v2721
      %v3017 = vpop.f32.mrb[0].mxu0
      %v3018 = vadd.f32 %v2645, %v3017
      %v3019 = vpop.f32.mrb[0].mxu0
      %3020 = vmatprep.mubr.f32.mxu0 0.0
      %3021 = vmatmul.mubr.f32.gmra.mrb[0].mxu0 %v2724
      %v3022 = vpop.f32.mrb[0].mxu0
      %v3023 = vadd.f32 %v2645, %v3022
      %v3024 = vpop.f32.mrb[0].mxu0
      %3025 = vmatprep.mubr.f32.mxu0 0.0
      %3026 = vmatmul.mubr.f32.gmra.mrb[0].mxu0 %v2727
      %v3027 = vpop.f32.mrb[0].mxu0
      %v3028 = vadd.f32 %v2645, %v3027
      %v3029 = vpop.f32.mrb[0].mxu0
      %3030 = vmatprep.mubr.f32.mxu0 0.0
      %3031 = vmatmul.mubr.f32.gmra.mrb[0].mxu0 %v2730
      %v3032 = vpop.f32.mrb[0].mxu0
      %v3033 = vadd.f32 %v2645, %v3032
      %v3034 = vpop.f32.mrb[0].mxu0
      %3035 = vmatprep.mubr.f32.mxu0 0.0
      %3036 = vmatmul.mubr.f32.gmra.mrb[0].mxu0 %v2733
      %v3037 = vpop.f32.mrb[0].mxu0
      %v3038 = vadd.f32 %v2645, %v3037
      %v3039 = vpop.f32.mrb[0].mxu0
      %3040 = vmatprep.mubr.f32.mxu0 0.0
      %3041 = vmatmul.mubr.f32.gmra.mrb[0].mxu0 %v2736
      %v3042 = vpop.f32.mrb[0].mxu0
      %v3043 = vadd.f32 %v2645, %v3042
      %v3044 = vpop.f32.mrb[0].mxu0
      %3045 = vmatprep.mubr.f32.mxu0 0.0
      %3046 = vmatmul.mubr.f32.gmra.mrb[0].mxu0 %v2739
      %v3047 = vpop.f32.mrb[0].mxu0
      %v3048 = vadd.f32 %v2645, %v3047
      %v3049 = vpop.f32.mrb[0].mxu0
      %3050 = vmatprep.mubr.f32.mxu0 0.0
      %3051 = vmatmul.mubr.f32.gmra.mrb[0].mxu0 %v2742
      %v3052 = vpop.f32.mrb[0].mxu0
      %v3053 = vadd.f32 %v2645, %v3052
      %v3054 = vpop.f32.mrb[0].mxu0
      %3055 = vmatprep.mubr.f32.mxu0 0.0
      %3056 = vmatmul.mubr.f32.gmra.mrb[0].mxu0 %v2745
      %v3057 = vpop.f32.mrb[0].mxu0
      %v3058 = vadd.f32 %v2645, %v3057
      %v3059 = vpop.f32.mrb[0].mxu0
      %3060 = vmatprep.mubr.f32.mxu0 0.0
      %3061 = vmatmul.mubr.f32.gmra.mrb[0].mxu0 %v2748
      %v3062 = vpop.f32.mrb[0].mxu0
      %v3063 = vadd.f32 %v2645, %v3062
      %v3064 = vpop.f32.mrb[0].mxu0
      %3065 = vmatprep.mubr.f32.mxu0 0.0
      %3066 = vmatmul.mubr.f32.gmra.mrb[0].mxu0 %v2751
      %v3067 = vpop.f32.mrb[0].mxu0
      %v3068 = vadd.f32 %v2645, %v3067
      %v3069 = vpop.f32.mrb[0].mxu0
      %3070 = vmatprep.mubr.f32.mxu0 0.0
      %3071 = vmatmul.mubr.f32.gmra.mrb[0].mxu0 %v2754
      %v3072 = vpop.f32.mrb[0].mxu0
      %v3073 = vadd.f32 %v2645, %v3072
      %v3074 = vpop.f32.mrb[0].mxu0
      %3075 = vmatprep.mubr.f32.mxu0 0.0
      %3076 = vmatmul.mubr.f32.gmra.mrb[0].mxu0 %v2757
      %v3077 = vpop.f32.mrb[0].mxu0
      %v3078 = vadd.f32 %v2645, %v3077
      %v3079 = vpop.f32.mrb[0].mxu0
      %3080 = vmatprep.mubr.f32.mxu0 0.0
      %3081 = vmatmul.mubr.f32.gmra.mrb[0].mxu0 %v2760
      %v3082 = vpop.f32.mrb[0].mxu0
      %v3083 = vadd.f32 %v2645, %v3082
      %v3084 = vpop.f32.mrb[0].mxu0
      %3085 = vmatprep.mubr.f32.mxu0 0.0
      %3086 = vmatmul.mubr.f32.gmra.mrb[0].mxu0 %v2763
      %v3087 = vpop.f32.mrb[0].mxu0
      %v3088 = vadd.f32 %v2645, %v3087
      %v3089 = vpop.f32.mrb[0].mxu0
      %3090 = vmatprep.mubr.f32.mxu0 0.0
      %3091 = vmatmul.mubr.f32.gmra.mrb[0].mxu0 %v2766
      %v3092 = vpop.f32.mrb[0].mxu0
      %v3093 = vadd.f32 %v2645, %v3092
      %v3094 = vpop.f32.mrb[0].mxu0
      %3095 = vmatprep.mubr.f32.mxu0 0.0
      %3096 = vmatmul.mubr.f32.gmra.mrb[0].mxu0 %v2769
      %v3097 = vpop.f32.mrb[0].mxu0
      %v3098 = vadd.f32 %v2645, %v3097
      %v3099 = vpop.f32.mrb[0].mxu0
      %3100 = vmatprep.mubr.f32.mxu0 0.0
      %3101 = vmatmul.mubr.f32.gmra.mrb[0].mxu0 %v2772
      %v3102 = vpop.f32.mrb[0].mxu0
      %v3103 = vadd.f32 %v2645, %v3102
      %v3104 = vpop.f32.mrb[0].mxu0
      %3105 = vmatprep.mubr.f32.mxu0 0.0
      %3106 = vmatmul.mubr.f32.gmra.mrb[0].mxu0 %v2775
      %v3107 = vpop.f32.mrb[0].mxu0
      %v3108 = vadd.f32 %v2645, %v3107
      %v3109 = vpop.f32.mrb[0].mxu0
      %3110 = vmatprep.mubr.f32.mxu0 0.0
      %3111 = vmatmul.mubr.f32.gmra.mrb[0].mxu0 %v2778
      %v3112 = vpop.f32.mrb[0].mxu0
      %v3113 = vadd.f32 %v2645, %v3112
      %v3114 = vpop.f32.mrb[0].mxu0
      %3115 = vmatprep.mubr.f32.mxu0 0.0
      %3116 = vmatmul.mubr.f32.gmra.mrb[0].mxu0 %v2781
      %v3117 = vpop.f32.mrb[0].mxu0
      %v3118 = vadd.f32 %v2645, %v3117
      %v3119 = vpop.f32.mrb[0].mxu0
      %3120 = vmatprep.mubr.f32.mxu0 0.0
      %3121 = vmatmul.mubr.f32.gmra.mrb[0].mxu0 %v2784
      %v3122 = vpop.f32.mrb[0].mxu0
      %v3123 = vadd.f32 %v2645, %v3122
      %v3124 = vpop.f32.mrb[0].mxu0
      %3125 = vmatprep.mubr.f32.mxu0 0.0
      %3126 = vmatmul.mubr.f32.gmra.mrb[0].mxu0 %v2787
      %v3127 = vpop.f32.mrb[0].mxu0
      %v3128 = vadd.f32 %v2645, %v3127
      %v3129 = vpop.f32.mrb[0].mxu0
      %3130 = vmatprep.mubr.f32.mxu0 0.0
      %3131 = vmatmul.mubr.f32.gmra.mrb[0].mxu0 %v2790
      %v3132 = vpop.f32.mrb[0].mxu0
      %v3133 = vadd.f32 %v2645, %v3132
      %v3134 = vpop.f32.mrb[0].mxu0
      %3135 = vmatprep.mubr.f32.mxu0 0.0
      %3136 = vmatmul.mubr.f32.gmra.mrb[0].mxu0 %v2793
      %v3137 = vpop.f32.mrb[0].mxu0
      %v3138 = vadd.f32 %v2645, %v3137
      %v3139 = vpop.f32.mrb[0].mxu0
      %3140 = vmatprep.mubr.f32.mxu0 0.0
      %3141 = vmatmul.mubr.f32.gmra.mrb[0].mxu0 %v2796
      %v3142 = vpop.f32.mrb[0].mxu0
      %v3143 = vadd.f32 %v2645, %v3142
      %v3144 = vpop.f32.mrb[0].mxu0
      %3145 = vmatprep.mubr.f32.mxu0 0.0
      %3146 = vmatmul.mubr.f32.gmra.mrb[0].mxu0 %v2799
      %v3147 = vpop.f32.mrb[0].mxu0
      %v3148 = vadd.f32 %v2645, %v3147
      %v3149 = vpop.f32.mrb[0].mxu0
      %3150 = vmatprep.mubr.f32.mxu0 0.0
      %3151 = vmatmul.mubr.f32.gmra.mrb[0].mxu0 %v2802
      %v3152 = vpop.f32.mrb[0].mxu0
      %v3153 = vadd.f32 %v2645, %v3152
      %v3154 = vpop.f32.mrb[0].mxu0
      %3155 = vmatprep.mubr.f32.mxu0 0.0
      %3156 = vmatmul.mubr.f32.gmra.mrb[0].mxu0 %v2805
      %v3157 = vpop.f32.mrb[0].mxu0
      %v3158 = vadd.f32 %v2645, %v3157
      %v3159 = vpop.f32.mrb[0].mxu0
      %3160 = vmatprep.mubr.f32.mxu0 0.0
      %3161 = vmatmul.mubr.f32.gmra.mrb[0].mxu0 %v2808
      %v3162 = vpop.f32.mrb[0].mxu0
      %v3163 = vadd.f32 %v2645, %v3162
      %v3164 = vpop.f32.mrb[0].mxu0
      %3165 = vmatprep.mubr.f32.mxu0 0.0
      %3166 = vmatmul.mubr.f32.gmra.mrb[0].mxu0 %v2811
      %v3167 = vpop.f32.mrb[0].mxu0
      %v3168 = vadd.f32 %v2645, %v3167
      %v3169 = vpop.f32.mrb[0].mxu0
      %3170 = vmatprep.mubr.f32.mxu0 0.0
      %3171 = vmatmul.mubr.f32.gmra.mrb[0].mxu0 %v2814
      %v3172 = vpop.f32.mrb[0].mxu0
      %v3173 = vadd.f32 %v2645, %v3172
      %v3174 = vpop.f32.mrb[0].mxu0
      %3175 = vmatprep.mubr.f32.mxu0 0.0
      %3176 = vmatmul.mubr.f32.gmra.mrb[0].mxu0 %v2817
      %v3177 = vpop.f32.mrb[0].mxu0
      %v3178 = vadd.f32 %v2645, %v3177
      %v3179 = vpop.f32.mrb[0].mxu0
      %3180 = vmatprep.mubr.f32.mxu0 0.0
      %3181 = vmatmul.mubr.f32.gmra.mrb[0].mxu0 %v2820
      %v3182 = vpop.f32.mrb[0].mxu0
      %v3183 = vadd.f32 %v2645, %v3182
      %v3184 = vpop.f32.mrb[0].mxu0
      %3185 = vmatprep.mubr.f32.mxu0 0.0
      %3186 = vmatmul.mubr.f32.gmra.mrb[0].mxu0 %v2823
      %v3187 = vpop.f32.mrb[0].mxu0
      %v3188 = vadd.f32 %v2645, %v3187
      %v3189 = vpop.f32.mrb[0].mxu0
      %3190 = vmatprep.mubr.f32.mxu0 0.0
      %3191 = vmatmul.mubr.f32.gmra.mrb[0].mxu0 %v2826
      %v3192 = vpop.f32.mrb[0].mxu0
      %v3193 = vadd.f32 %v2645, %v3192
      %v3194 = vpop.f32.mrb[0].mxu0
      %3195 = vmatprep.mubr.f32.mxu0 0.0
      %3196 = vmatmul.mubr.f32.gmra.mrb[0].mxu0 %v2829
      %v3197 = vpop.f32.mrb[0].mxu0
      %v3198 = vadd.f32 %v2645, %v3197
      %v3199 = vpop.f32.mrb[0].mxu0
      %3200 = vdwg.mxu0
      %vm3201 = vcmask 31744
      %3202 = vst.msk [vmem:[%s262] sm:$0xff] %vm3201, %v2898
      %3203 = vst.msk [vmem:[%s262 + $0x8] sm:$0xff] %vm3201, %v2903
      %3204 = vst.msk [vmem:[%s262 + $0x10] sm:$0xff] %vm3201, %v2908
      %3205 = vst.msk [vmem:[%s262 + $0x18] sm:$0xff] %vm3201, %v2913
      %3206 = vst.msk [vmem:[%s262 + $0x20] sm:$0xff] %vm3201, %v2918
      %3207 = vst.msk [vmem:[%s262 + $0x28] sm:$0xff] %vm3201, %v2923
      %3208 = vst.msk [vmem:[%s262 + $0x30] sm:$0xff] %vm3201, %v2928
      %3209 = vst.msk [vmem:[%s262 + $0x38] sm:$0xff] %vm3201, %v2933
      %3210 = vst.msk [vmem:[%s262 + $0x40] sm:$0xff] %vm3201, %v2938
      %3211 = vst.msk [vmem:[%s262 + $0x48] sm:$0xff] %vm3201, %v2943
      %3212 = vst.msk [vmem:[%s262 + $0x50] sm:$0xff] %vm3201, %v2948
      %3213 = vst.msk [vmem:[%s262 + $0x58] sm:$0xff] %vm3201, %v2953
      %3214 = vst.msk [vmem:[%s262 + $0x60] sm:$0xff] %vm3201, %v2958
      %3215 = vst.msk [vmem:[%s262 + $0x68] sm:$0xff] %vm3201, %v2963
      %3216 = vst.msk [vmem:[%s262 + $0x70] sm:$0xff] %vm3201, %v2968
      %3217 = vst.msk [vmem:[%s262 + $0x78] sm:$0xff] %vm3201, %v2973
      %3218 = vst.msk [vmem:[%s262 + $0x80] sm:$0xff] %vm3201, %v2978
      %3219 = vst.msk [vmem:[%s262 + $0x88] sm:$0xff] %vm3201, %v2983
      %3220 = vst.msk [vmem:[%s262 + $0x90] sm:$0xff] %vm3201, %v2988
      %3221 = vst.msk [vmem:[%s262 + $0x98] sm:$0xff] %vm3201, %v2993
      %3222 = vst.msk [vmem:[%s262 + $0xa0] sm:$0xff] %vm3201, %v2998
      %3223 = vst.msk [vmem:[%s262 + $0xa8] sm:$0xff] %vm3201, %v3003
      %3224 = vst.msk [vmem:[%s262 + $0xb0] sm:$0xff] %vm3201, %v3008
      %3225 = vst.msk [vmem:[%s262 + $0xb8] sm:$0xff] %vm3201, %v3013
      %3226 = vst.msk [vmem:[%s262 + $0xc0] sm:$0xff] %vm3201, %v3018
      %3227 = vst.msk [vmem:[%s262 + $0xc8] sm:$0xff] %vm3201, %v3023
      %3228 = vst.msk [vmem:[%s262 + $0xd0] sm:$0xff] %vm3201, %v3028
      %3229 = vst.msk [vmem:[%s262 + $0xd8] sm:$0xff] %vm3201, %v3033
      %3230 = vst.msk [vmem:[%s262 + $0xe0] sm:$0xff] %vm3201, %v3038
      %3231 = vst.msk [vmem:[%s262 + $0xe8] sm:$0xff] %vm3201, %v3043
      %3232 = vst.msk [vmem:[%s262 + $0xf0] sm:$0xff] %vm3201, %v3048
      %3233 = vst.msk [vmem:[%s262 + $0xf8] sm:$0xff] %vm3201, %v3053
      %3234 = vst.msk [vmem:[%s262 + $0x100] sm:$0xff] %vm3201, %v3058
      %3235 = vst.msk [vmem:[%s262 + $0x108] sm:$0xff] %vm3201, %v3063
      %3236 = vst.msk [vmem:[%s262 + $0x110] sm:$0xff] %vm3201, %v3068
      %3237 = vst.msk [vmem:[%s262 + $0x118] sm:$0xff] %vm3201, %v3073
      %3238 = vst.msk [vmem:[%s262 + $0x120] sm:$0xff] %vm3201, %v3078
      %3239 = vst.msk [vmem:[%s262 + $0x128] sm:$0xff] %vm3201, %v3083
      %3240 = vst.msk [vmem:[%s262 + $0x130] sm:$0xff] %vm3201, %v3088
      %3241 = vst.msk [vmem:[%s262 + $0x138] sm:$0xff] %vm3201, %v3093
      %3242 = vst.msk [vmem:[%s262 + $0x140] sm:$0xff] %vm3201, %v3098
      %3243 = vst.msk [vmem:[%s262 + $0x148] sm:$0xff] %vm3201, %v3103
      %3244 = vst.msk [vmem:[%s262 + $0x150] sm:$0xff] %vm3201, %v3108
      %3245 = vst.msk [vmem:[%s262 + $0x158] sm:$0xff] %vm3201, %v3113
      %3246 = vst.msk [vmem:[%s262 + $0x160] sm:$0xff] %vm3201, %v3118
      %3247 = vst.msk [vmem:[%s262 + $0x168] sm:$0xff] %vm3201, %v3123
      %3248 = vst.msk [vmem:[%s262 + $0x170] sm:$0xff] %vm3201, %v3128
      %3249 = vst.msk [vmem:[%s262 + $0x178] sm:$0xff] %vm3201, %v3133
      %3250 = vst.msk [vmem:[%s262 + $0x180] sm:$0xff] %vm3201, %v3138
      %3251 = vst.msk [vmem:[%s262 + $0x188] sm:$0xff] %vm3201, %v3143
      %3252 = vst.msk [vmem:[%s262 + $0x190] sm:$0xff] %vm3201, %v3148
      %3253 = vst.msk [vmem:[%s262 + $0x198] sm:$0xff] %vm3201, %v3153
      %3254 = vst.msk [vmem:[%s262 + $0x1a0] sm:$0xff] %vm3201, %v3158
      %3255 = vst.msk [vmem:[%s262 + $0x1a8] sm:$0xff] %vm3201, %v3163
      %3256 = vst.msk [vmem:[%s262 + $0x1b0] sm:$0xff] %vm3201, %v3168
      %3257 = vst.msk [vmem:[%s262 + $0x1b8] sm:$0xff] %vm3201, %v3173
      %3258 = vst.msk [vmem:[%s262 + $0x1c0] sm:$0xff] %vm3201, %v3178
      %3259 = vst.msk [vmem:[%s262 + $0x1c8] sm:$0xff] %vm3201, %v3183
      %3260 = vst.msk [vmem:[%s262 + $0x1d0] sm:$0xff] %vm3201, %v3188
      %3261 = vst.msk [vmem:[%s262 + $0x1d8] sm:$0xff] %vm3201, %v3193
      %vm3262 = vcmask 25600
      %3263 = vst.msk [vmem:[%s262 + $0x1e0] sm:$0x3] %vm3262, %v3198
      %v3264 = vld [vmem:[%s3] sm:$0xff]
      %v3265 = vld [vmem:[%s3 + $0x8] sm:$0xff]
      %v3266 = vld [vmem:[%s3 + $0x10] sm:$0xff]
      %v3267 = vld [vmem:[%s3 + $0x18] sm:$0xff]
      %v3268 = vld [vmem:[%s3 + $0x20] sm:$0xff]
      %v3269 = vld [vmem:[%s3 + $0x28] sm:$0xff]
      %v3270 = vld [vmem:[%s3 + $0x30] sm:$0xff]
      %v3271 = vld [vmem:[%s3 + $0x38] sm:$0xff]
      %v3272 = vld [vmem:[%s3 + $0x40] sm:$0xff]
      %v3273 = vld [vmem:[%s3 + $0x48] sm:$0xff]
      %v3274 = vld [vmem:[%s3 + $0x50] sm:$0xff]
      %v3275 = vld [vmem:[%s3 + $0x58] sm:$0xff]
      %v3276 = vld [vmem:[%s3 + $0x60] sm:$0xff]
      %v3277 = vld [vmem:[%s3 + $0x68] sm:$0xff]
      %v3278 = vld [vmem:[%s3 + $0x70] sm:$0xff]
      %v3279 = vld [vmem:[%s3 + $0x78] sm:$0xff]
      %v3280 = vld [vmem:[%s3 + $0x80] sm:$0xff]
      %v3281 = vld [vmem:[%s3 + $0x88] sm:$0xff]
      %v3282 = vld [vmem:[%s3 + $0x90] sm:$0xff]
      %v3283 = vld [vmem:[%s3 + $0x98] sm:$0xff]
      %v3284 = vld [vmem:[%s3 + $0xa0] sm:$0xff]
      %v3285 = vld [vmem:[%s3 + $0xa8] sm:$0xff]
      %v3286 = vld [vmem:[%s3 + $0xb0] sm:$0xff]
      %v3287 = vld [vmem:[%s3 + $0xb8] sm:$0xff]
      %v3288 = vld [vmem:[%s3 + $0xc0] sm:$0xff]
      %v3289 = vld [vmem:[%s3 + $0xc8] sm:$0xff]
      %v3290 = vld [vmem:[%s3 + $0xd0] sm:$0xff]
      %v3291 = vld [vmem:[%s3 + $0xd8] sm:$0xff]
      %v3292 = vld [vmem:[%s3 + $0xe0] sm:$0xff]
      %v3293 = vld [vmem:[%s3 + $0xe8] sm:$0xff]
      %v3294 = vld [vmem:[%s3 + $0xf0] sm:$0xff]
      %v3295 = vld [vmem:[%s3 + $0xf8] sm:$0xff]
      %v3296 = vld [vmem:[%s3 + $0x100] sm:$0xff]
      %v3297 = vld [vmem:[%s3 + $0x108] sm:$0xff]
      %v3298 = vld [vmem:[%s3 + $0x110] sm:$0xff]
      %v3299 = vld [vmem:[%s3 + $0x118] sm:$0xff]
      %v3300 = vld [vmem:[%s3 + $0x120] sm:$0xff]
      %v3301 = vld [vmem:[%s3 + $0x128] sm:$0xff]
      %v3302 = vld [vmem:[%s3 + $0x130] sm:$0xff]
      %v3303 = vld [vmem:[%s3 + $0x138] sm:$0xff]
      %v3304 = vld [vmem:[%s3 + $0x140] sm:$0xff]
      %v3305 = vld [vmem:[%s3 + $0x148] sm:$0xff]
      %v3306 = vld [vmem:[%s3 + $0x150] sm:$0xff]
      %v3307 = vld [vmem:[%s3 + $0x158] sm:$0xff]
      %v3308 = vld [vmem:[%s3 + $0x160] sm:$0xff]
      %v3309 = vld [vmem:[%s3 + $0x168] sm:$0xff]
      %v3310 = vld [vmem:[%s3 + $0x170] sm:$0xff]
      %v3311 = vld [vmem:[%s3 + $0x178] sm:$0xff]
      %v3312 = vld [vmem:[%s3 + $0x180] sm:$0xff]
      %v3313 = vld [vmem:[%s3 + $0x188] sm:$0xff]
      %v3314 = vld [vmem:[%s3 + $0x190] sm:$0xff]
      %v3315 = vld [vmem:[%s3 + $0x198] sm:$0xff]
      %v3316 = vld [vmem:[%s3 + $0x1a0] sm:$0xff]
      %v3317 = vld [vmem:[%s3 + $0x1a8] sm:$0xff]
      %v3318 = vld [vmem:[%s3 + $0x1b0] sm:$0xff]
      %v3319 = vld [vmem:[%s3 + $0x1b8] sm:$0xff]
      %v3320 = vld [vmem:[%s3 + $0x1c0] sm:$0xff]
      %v3321 = vld [vmem:[%s3 + $0x1c8] sm:$0xff]
      %v3322 = vld [vmem:[%s3 + $0x1d0] sm:$0xff]
      %v3323 = vld [vmem:[%s3 + $0x1d8] sm:$0xff]
      %v3324 = vld [vmem:[%s3 + $0x1e0] sm:$0x3]
      %3326 = vset.pattern.permute.xlu0 0
      %3327 = vperm.xlu0 %3326, %v3264
      %v3328 = vpop.permute.xlu0 %3327
      %3331 = vset.pattern.permute.xlu0 0
      %3332 = vperm.xlu0 %3331, %v3265
      %v3333 = vpop.permute.xlu0 %3332
      %3336 = vset.pattern.permute.xlu0 0
      %3337 = vperm.xlu0 %3336, %v3266
      %v3338 = vpop.permute.xlu0 %3337
      %3341 = vset.pattern.permute.xlu0 0
      %3342 = vperm.xlu0 %3341, %v3267
      %v3343 = vpop.permute.xlu0 %3342
      %3346 = vset.pattern.permute.xlu0 0
      %3347 = vperm.xlu0 %3346, %v3268
      %v3348 = vpop.permute.xlu0 %3347
      %3351 = vset.pattern.permute.xlu0 0
      %3352 = vperm.xlu0 %3351, %v3269
      %v3353 = vpop.permute.xlu0 %3352
      %3356 = vset.pattern.permute.xlu0 0
      %3357 = vperm.xlu0 %3356, %v3270
      %v3358 = vpop.permute.xlu0 %3357
      %3361 = vset.pattern.permute.xlu0 0
      %3362 = vperm.xlu0 %3361, %v3271
      %v3363 = vpop.permute.xlu0 %3362
      %3366 = vset.pattern.permute.xlu0 0
      %3367 = vperm.xlu0 %3366, %v3272
      %v3368 = vpop.permute.xlu0 %3367
      %3371 = vset.pattern.permute.xlu0 0
      %3372 = vperm.xlu0 %3371, %v3273
      %v3373 = vpop.permute.xlu0 %3372
      %3376 = vset.pattern.permute.xlu0 0
      %3377 = vperm.xlu0 %3376, %v3274
      %v3378 = vpop.permute.xlu0 %3377
      %3381 = vset.pattern.permute.xlu0 0
      %3382 = vperm.xlu0 %3381, %v3275
      %v3383 = vpop.permute.xlu0 %3382
      %3386 = vset.pattern.permute.xlu0 0
      %3387 = vperm.xlu0 %3386, %v3276
      %v3388 = vpop.permute.xlu0 %3387
      %3391 = vset.pattern.permute.xlu0 0
      %3392 = vperm.xlu0 %3391, %v3277
      %v3393 = vpop.permute.xlu0 %3392
      %3396 = vset.pattern.permute.xlu0 0
      %3397 = vperm.xlu0 %3396, %v3278
      %v3398 = vpop.permute.xlu0 %3397
      %3401 = vset.pattern.permute.xlu0 0
      %3402 = vperm.xlu0 %3401, %v3279
      %v3403 = vpop.permute.xlu0 %3402
      %3406 = vset.pattern.permute.xlu0 0
      %3407 = vperm.xlu0 %3406, %v3280
      %v3408 = vpop.permute.xlu0 %3407
      %3411 = vset.pattern.permute.xlu0 0
      %3412 = vperm.xlu0 %3411, %v3281
      %v3413 = vpop.permute.xlu0 %3412
      %3416 = vset.pattern.permute.xlu0 0
      %3417 = vperm.xlu0 %3416, %v3282
      %v3418 = vpop.permute.xlu0 %3417
      %3421 = vset.pattern.permute.xlu0 0
      %3422 = vperm.xlu0 %3421, %v3283
      %v3423 = vpop.permute.xlu0 %3422
      %3426 = vset.pattern.permute.xlu0 0
      %3427 = vperm.xlu0 %3426, %v3284
      %v3428 = vpop.permute.xlu0 %3427
      %3431 = vset.pattern.permute.xlu0 0
      %3432 = vperm.xlu0 %3431, %v3285
      %v3433 = vpop.permute.xlu0 %3432
      %3436 = vset.pattern.permute.xlu0 0
      %3437 = vperm.xlu0 %3436, %v3286
      %v3438 = vpop.permute.xlu0 %3437
      %3441 = vset.pattern.permute.xlu0 0
      %3442 = vperm.xlu0 %3441, %v3287
      %v3443 = vpop.permute.xlu0 %3442
      %3446 = vset.pattern.permute.xlu0 0
      %3447 = vperm.xlu0 %3446, %v3288
      %v3448 = vpop.permute.xlu0 %3447
      %3451 = vset.pattern.permute.xlu0 0
      %3452 = vperm.xlu0 %3451, %v3289
      %v3453 = vpop.permute.xlu0 %3452
      %3456 = vset.pattern.permute.xlu0 0
      %3457 = vperm.xlu0 %3456, %v3290
      %v3458 = vpop.permute.xlu0 %3457
      %3461 = vset.pattern.permute.xlu0 0
      %3462 = vperm.xlu0 %3461, %v3291
      %v3463 = vpop.permute.xlu0 %3462
      %3466 = vset.pattern.permute.xlu0 0
      %3467 = vperm.xlu0 %3466, %v3292
      %v3468 = vpop.permute.xlu0 %3467
      %3471 = vset.pattern.permute.xlu0 0
      %3472 = vperm.xlu0 %3471, %v3293
      %v3473 = vpop.permute.xlu0 %3472
      %3476 = vset.pattern.permute.xlu0 0
      %3477 = vperm.xlu0 %3476, %v3294
      %v3478 = vpop.permute.xlu0 %3477
      %3481 = vset.pattern.permute.xlu0 0
      %3482 = vperm.xlu0 %3481, %v3295
      %v3483 = vpop.permute.xlu0 %3482
      %3486 = vset.pattern.permute.xlu0 0
      %3487 = vperm.xlu0 %3486, %v3296
      %v3488 = vpop.permute.xlu0 %3487
      %3491 = vset.pattern.permute.xlu0 0
      %3492 = vperm.xlu0 %3491, %v3297
      %v3493 = vpop.permute.xlu0 %3492
      %3496 = vset.pattern.permute.xlu0 0
      %3497 = vperm.xlu0 %3496, %v3298
      %v3498 = vpop.permute.xlu0 %3497
      %3501 = vset.pattern.permute.xlu0 0
      %3502 = vperm.xlu0 %3501, %v3299
      %v3503 = vpop.permute.xlu0 %3502
      %3506 = vset.pattern.permute.xlu0 0
      %3507 = vperm.xlu0 %3506, %v3300
      %v3508 = vpop.permute.xlu0 %3507
      %3511 = vset.pattern.permute.xlu0 0
      %3512 = vperm.xlu0 %3511, %v3301
      %v3513 = vpop.permute.xlu0 %3512
      %3516 = vset.pattern.permute.xlu0 0
      %3517 = vperm.xlu0 %3516, %v3302
      %v3518 = vpop.permute.xlu0 %3517
      %3521 = vset.pattern.permute.xlu0 0
      %3522 = vperm.xlu0 %3521, %v3303
      %v3523 = vpop.permute.xlu0 %3522
      %3526 = vset.pattern.permute.xlu0 0
      %3527 = vperm.xlu0 %3526, %v3304
      %v3528 = vpop.permute.xlu0 %3527
      %3531 = vset.pattern.permute.xlu0 0
      %3532 = vperm.xlu0 %3531, %v3305
      %v3533 = vpop.permute.xlu0 %3532
      %3536 = vset.pattern.permute.xlu0 0
      %3537 = vperm.xlu0 %3536, %v3306
      %v3538 = vpop.permute.xlu0 %3537
      %3541 = vset.pattern.permute.xlu0 0
      %3542 = vperm.xlu0 %3541, %v3307
      %v3543 = vpop.permute.xlu0 %3542
      %3546 = vset.pattern.permute.xlu0 0
      %3547 = vperm.xlu0 %3546, %v3308
      %v3548 = vpop.permute.xlu0 %3547
      %3551 = vset.pattern.permute.xlu0 0
      %3552 = vperm.xlu0 %3551, %v3309
      %v3553 = vpop.permute.xlu0 %3552
      %3556 = vset.pattern.permute.xlu0 0
      %3557 = vperm.xlu0 %3556, %v3310
      %v3558 = vpop.permute.xlu0 %3557
      %3561 = vset.pattern.permute.xlu0 0
      %3562 = vperm.xlu0 %3561, %v3311
      %v3563 = vpop.permute.xlu0 %3562
      %3566 = vset.pattern.permute.xlu0 0
      %3567 = vperm.xlu0 %3566, %v3312
      %v3568 = vpop.permute.xlu0 %3567
      %3571 = vset.pattern.permute.xlu0 0
      %3572 = vperm.xlu0 %3571, %v3313
      %v3573 = vpop.permute.xlu0 %3572
      %3576 = vset.pattern.permute.xlu0 0
      %3577 = vperm.xlu0 %3576, %v3314
      %v3578 = vpop.permute.xlu0 %3577
      %3581 = vset.pattern.permute.xlu0 0
      %3582 = vperm.xlu0 %3581, %v3315
      %v3583 = vpop.permute.xlu0 %3582
      %3586 = vset.pattern.permute.xlu0 0
      %3587 = vperm.xlu0 %3586, %v3316
      %v3588 = vpop.permute.xlu0 %3587
      %3591 = vset.pattern.permute.xlu0 0
      %3592 = vperm.xlu0 %3591, %v3317
      %v3593 = vpop.permute.xlu0 %3592
      %3596 = vset.pattern.permute.xlu0 0
      %3597 = vperm.xlu0 %3596, %v3318
      %v3598 = vpop.permute.xlu0 %3597
      %3601 = vset.pattern.permute.xlu0 0
      %3602 = vperm.xlu0 %3601, %v3319
      %v3603 = vpop.permute.xlu0 %3602
      %3606 = vset.pattern.permute.xlu0 0
      %3607 = vperm.xlu0 %3606, %v3320
      %v3608 = vpop.permute.xlu0 %3607
      %3611 = vset.pattern.permute.xlu0 0
      %3612 = vperm.xlu0 %3611, %v3321
      %v3613 = vpop.permute.xlu0 %3612
      %3616 = vset.pattern.permute.xlu0 0
      %3617 = vperm.xlu0 %3616, %v3322
      %v3618 = vpop.permute.xlu0 %3617
      %3621 = vset.pattern.permute.xlu0 0
      %3622 = vperm.xlu0 %3621, %v3323
      %v3623 = vpop.permute.xlu0 %3622
      %3626 = vset.pattern.permute.xlu0 0
      %3627 = vperm.xlu0 %3626, %v3324
      %v3628 = vpop.permute.xlu0 %3627
      %v3630 = vmul.f32 %v2898, %v3328
      %v3631 = vmul.f32 %v2903, %v3333
      %v3632 = vmul.f32 %v2908, %v3338
      %v3633 = vmul.f32 %v2913, %v3343
      %v3634 = vmul.f32 %v2918, %v3348
      %v3635 = vmul.f32 %v2923, %v3353
      %v3636 = vmul.f32 %v2928, %v3358
      %v3637 = vmul.f32 %v2933, %v3363
      %v3638 = vmul.f32 %v2938, %v3368
      %v3639 = vmul.f32 %v2943, %v3373
      %v3640 = vmul.f32 %v2948, %v3378
      %v3641 = vmul.f32 %v2953, %v3383
      %v3642 = vmul.f32 %v2958, %v3388
      %v3643 = vmul.f32 %v2963, %v3393
      %v3644 = vmul.f32 %v2968, %v3398
      %v3645 = vmul.f32 %v2973, %v3403
      %v3646 = vmul.f32 %v2978, %v3408
      %v3647 = vmul.f32 %v2983, %v3413
      %v3648 = vmul.f32 %v2988, %v3418
      %v3649 = vmul.f32 %v2993, %v3423
      %v3650 = vmul.f32 %v2998, %v3428
      %v3651 = vmul.f32 %v3003, %v3433
      %v3652 = vmul.f32 %v3008, %v3438
      %v3653 = vmul.f32 %v3013, %v3443
      %v3654 = vmul.f32 %v3018, %v3448
      %v3655 = vmul.f32 %v3023, %v3453
      %v3656 = vmul.f32 %v3028, %v3458
      %v3657 = vmul.f32 %v3033, %v3463
      %v3658 = vmul.f32 %v3038, %v3468
      %v3659 = vmul.f32 %v3043, %v3473
      %v3660 = vmul.f32 %v3048, %v3478
      %v3661 = vmul.f32 %v3053, %v3483
      %v3662 = vmul.f32 %v3058, %v3488
      %v3663 = vmul.f32 %v3063, %v3493
      %v3664 = vmul.f32 %v3068, %v3498
      %v3665 = vmul.f32 %v3073, %v3503
      %v3666 = vmul.f32 %v3078, %v3508
      %v3667 = vmul.f32 %v3083, %v3513
      %v3668 = vmul.f32 %v3088, %v3518
      %v3669 = vmul.f32 %v3093, %v3523
      %v3670 = vmul.f32 %v3098, %v3528
      %v3671 = vmul.f32 %v3103, %v3533
      %v3672 = vmul.f32 %v3108, %v3538
      %v3673 = vmul.f32 %v3113, %v3543
      %v3674 = vmul.f32 %v3118, %v3548
      %v3675 = vmul.f32 %v3123, %v3553
      %v3676 = vmul.f32 %v3128, %v3558
      %v3677 = vmul.f32 %v3133, %v3563
      %v3678 = vmul.f32 %v3138, %v3568
      %v3679 = vmul.f32 %v3143, %v3573
      %v3680 = vmul.f32 %v3148, %v3578
      %v3681 = vmul.f32 %v3153, %v3583
      %v3682 = vmul.f32 %v3158, %v3588
      %v3683 = vmul.f32 %v3163, %v3593
      %v3684 = vmul.f32 %v3168, %v3598
      %v3685 = vmul.f32 %v3173, %v3603
      %v3686 = vmul.f32 %v3178, %v3608
      %v3687 = vmul.f32 %v3183, %v3613
      %v3688 = vmul.f32 %v3188, %v3618
      %v3689 = vmul.f32 %v3193, %v3623
      %v3690 = vmul.f32 %v3198, %v3628
      %v3691 = vsel %vm3201, %v3630, 0.0
      %v3692 = vsel %vm3201, %v3631, 0.0
      %v3693 = vadd.f32 %v3691, %v3692
      %v3694 = vsel %vm3201, %v3632, 0.0
      %v3695 = vadd.f32 %v3693, %v3694
      %v3696 = vsel %vm3201, %v3633, 0.0
      %v3697 = vadd.f32 %v3695, %v3696
      %v3698 = vsel %vm3201, %v3634, 0.0
      %v3699 = vadd.f32 %v3697, %v3698
      %v3700 = vsel %vm3201, %v3635, 0.0
      %v3701 = vadd.f32 %v3699, %v3700
      %v3702 = vsel %vm3201, %v3636, 0.0
      %v3703 = vadd.f32 %v3701, %v3702
      %v3704 = vsel %vm3201, %v3637, 0.0
      %v3705 = vadd.f32 %v3703, %v3704
      %v3706 = vsel %vm3201, %v3638, 0.0
      %v3707 = vadd.f32 %v3705, %v3706
      %v3708 = vsel %vm3201, %v3639, 0.0
      %v3709 = vadd.f32 %v3707, %v3708
      %v3710 = vsel %vm3201, %v3640, 0.0
      %v3711 = vadd.f32 %v3709, %v3710
      %v3712 = vsel %vm3201, %v3641, 0.0
      %v3713 = vadd.f32 %v3711, %v3712
      %v3714 = vsel %vm3201, %v3642, 0.0
      %v3715 = vadd.f32 %v3713, %v3714
      %v3716 = vsel %vm3201, %v3643, 0.0
      %v3717 = vadd.f32 %v3715, %v3716
      %v3718 = vsel %vm3201, %v3644, 0.0
      %v3719 = vadd.f32 %v3717, %v3718
      %v3720 = vsel %vm3201, %v3645, 0.0
      %v3721 = vadd.f32 %v3719, %v3720
      %v3722 = vsel %vm3201, %v3646, 0.0
      %v3723 = vadd.f32 %v3721, %v3722
      %v3724 = vsel %vm3201, %v3647, 0.0
      %v3725 = vadd.f32 %v3723, %v3724
      %v3726 = vsel %vm3201, %v3648, 0.0
      %v3727 = vadd.f32 %v3725, %v3726
      %v3728 = vsel %vm3201, %v3649, 0.0
      %v3729 = vadd.f32 %v3727, %v3728
      %v3730 = vsel %vm3201, %v3650, 0.0
      %v3731 = vadd.f32 %v3729, %v3730
      %v3732 = vsel %vm3201, %v3651, 0.0
      %v3733 = vadd.f32 %v3731, %v3732
      %v3734 = vsel %vm3201, %v3652, 0.0
      %v3735 = vadd.f32 %v3733, %v3734
      %v3736 = vsel %vm3201, %v3653, 0.0
      %v3737 = vadd.f32 %v3735, %v3736
      %v3738 = vsel %vm3201, %v3654, 0.0
      %v3739 = vadd.f32 %v3737, %v3738
      %v3740 = vsel %vm3201, %v3655, 0.0
      %v3741 = vadd.f32 %v3739, %v3740
      %v3742 = vsel %vm3201, %v3656, 0.0
      %v3743 = vadd.f32 %v3741, %v3742
      %v3744 = vsel %vm3201, %v3657, 0.0
      %v3745 = vadd.f32 %v3743, %v3744
      %v3746 = vsel %vm3201, %v3658, 0.0
      %v3747 = vadd.f32 %v3745, %v3746
      %v3748 = vsel %vm3201, %v3659, 0.0
      %v3749 = vadd.f32 %v3747, %v3748
      %v3750 = vsel %vm3201, %v3660, 0.0
      %v3751 = vadd.f32 %v3749, %v3750
      %v3752 = vsel %vm3201, %v3661, 0.0
      %v3753 = vadd.f32 %v3751, %v3752
      %v3754 = vsel %vm3201, %v3662, 0.0
      %v3755 = vadd.f32 %v3753, %v3754
      %v3756 = vsel %vm3201, %v3663, 0.0
      %v3757 = vadd.f32 %v3755, %v3756
      %v3758 = vsel %vm3201, %v3664, 0.0
      %v3759 = vadd.f32 %v3757, %v3758
      %v3760 = vsel %vm3201, %v3665, 0.0
      %v3761 = vadd.f32 %v3759, %v3760
      %v3762 = vsel %vm3201, %v3666, 0.0
      %v3763 = vadd.f32 %v3761, %v3762
      %v3764 = vsel %vm3201, %v3667, 0.0
      %v3765 = vadd.f32 %v3763, %v3764
      %v3766 = vsel %vm3201, %v3668, 0.0
      %v3767 = vadd.f32 %v3765, %v3766
      %v3768 = vsel %vm3201, %v3669, 0.0
      %v3769 = vadd.f32 %v3767, %v3768
      %v3770 = vsel %vm3201, %v3670, 0.0
      %v3771 = vadd.f32 %v3769, %v3770
      %v3772 = vsel %vm3201, %v3671, 0.0
      %v3773 = vadd.f32 %v3771, %v3772
      %v3774 = vsel %vm3201, %v3672, 0.0
      %v3775 = vadd.f32 %v3773, %v3774
      %v3776 = vsel %vm3201, %v3673, 0.0
      %v3777 = vadd.f32 %v3775, %v3776
      %v3778 = vsel %vm3201, %v3674, 0.0
      %v3779 = vadd.f32 %v3777, %v3778
      %v3780 = vsel %vm3201, %v3675, 0.0
      %v3781 = vadd.f32 %v3779, %v3780
      %v3782 = vsel %vm3201, %v3676, 0.0
      %v3783 = vadd.f32 %v3781, %v3782
      %v3784 = vsel %vm3201, %v3677, 0.0
      %v3785 = vadd.f32 %v3783, %v3784
      %v3786 = vsel %vm3201, %v3678, 0.0
      %v3787 = vadd.f32 %v3785, %v3786
      %v3788 = vsel %vm3201, %v3679, 0.0
      %v3789 = vadd.f32 %v3787, %v3788
      %v3790 = vsel %vm3201, %v3680, 0.0
      %v3791 = vadd.f32 %v3789, %v3790
      %v3792 = vsel %vm3201, %v3681, 0.0
      %v3793 = vadd.f32 %v3791, %v3792
      %v3794 = vsel %vm3201, %v3682, 0.0
      %v3795 = vadd.f32 %v3793, %v3794
      %v3796 = vsel %vm3201, %v3683, 0.0
      %v3797 = vadd.f32 %v3795, %v3796
      %v3798 = vsel %vm3201, %v3684, 0.0
      %v3799 = vadd.f32 %v3797, %v3798
      %v3800 = vsel %vm3201, %v3685, 0.0
      %v3801 = vadd.f32 %v3799, %v3800
      %v3802 = vsel %vm3201, %v3686, 0.0
      %v3803 = vadd.f32 %v3801, %v3802
      %v3804 = vsel %vm3201, %v3687, 0.0
      %v3805 = vadd.f32 %v3803, %v3804
      %v3806 = vsel %vm3201, %v3688, 0.0
      %v3807 = vadd.f32 %v3805, %v3806
      %v3808 = vsel %vm3201, %v3689, 0.0
      %v3809 = vadd.f32 %v3807, %v3808
      %v3810 = vsel %vm3262, %v3690, 0.0
      %v3811 = vadd.f32 %v3809, %v3810
      %v3812 = vrot.slane %v3811, 4
      %v3813 = vadd.f32 %v3811, %v3812
      %v3814 = vrot.slane %v3813, 2
      %v3815 = vadd.f32 %v3813, %v3814
      %v3816 = vrot.slane %v3815, 1
      %v3817 = vadd.f32 %v3815, %v3816
      %vm3818 = vcmask 24576
      %3819 = vst.msk [vmem:[%s265] sm:$0x1] %vm3818, %v3817
      %v3820 = vmul.f32 %v2898, %v3630
      %v3821 = vmul.f32 %v2903, %v3631
      %v3822 = vmul.f32 %v2908, %v3632
      %v3823 = vmul.f32 %v2913, %v3633
      %v3824 = vmul.f32 %v2918, %v3634
      %v3825 = vmul.f32 %v2923, %v3635
      %v3826 = vmul.f32 %v2928, %v3636
      %v3827 = vmul.f32 %v2933, %v3637
      %v3828 = vmul.f32 %v2938, %v3638
      %v3829 = vmul.f32 %v2943, %v3639
      %v3830 = vmul.f32 %v2948, %v3640
      %v3831 = vmul.f32 %v2953, %v3641
      %v3832 = vmul.f32 %v2958, %v3642
      %v3833 = vmul.f32 %v2963, %v3643
      %v3834 = vmul.f32 %v2968, %v3644
      %v3835 = vmul.f32 %v2973, %v3645
      %v3836 = vmul.f32 %v2978, %v3646
      %v3837 = vmul.f32 %v2983, %v3647
      %v3838 = vmul.f32 %v2988, %v3648
      %v3839 = vmul.f32 %v2993, %v3649
      %v3840 = vmul.f32 %v2998, %v3650
      %v3841 = vmul.f32 %v3003, %v3651
      %v3842 = vmul.f32 %v3008, %v3652
      %v3843 = vmul.f32 %v3013, %v3653
      %v3844 = vmul.f32 %v3018, %v3654
      %v3845 = vmul.f32 %v3023, %v3655
      %v3846 = vmul.f32 %v3028, %v3656
      %v3847 = vmul.f32 %v3033, %v3657
      %v3848 = vmul.f32 %v3038, %v3658
      %v3849 = vmul.f32 %v3043, %v3659
      %v3850 = vmul.f32 %v3048, %v3660
      %v3851 = vmul.f32 %v3053, %v3661
      %v3852 = vmul.f32 %v3058, %v3662
      %v3853 = vmul.f32 %v3063, %v3663
      %v3854 = vmul.f32 %v3068, %v3664
      %v3855 = vmul.f32 %v3073, %v3665
      %v3856 = vmul.f32 %v3078, %v3666
      %v3857 = vmul.f32 %v3083, %v3667
      %v3858 = vmul.f32 %v3088, %v3668
      %v3859 = vmul.f32 %v3093, %v3669
      %v3860 = vmul.f32 %v3098, %v3670
      %v3861 = vmul.f32 %v3103, %v3671
      %v3862 = vmul.f32 %v3108, %v3672
      %v3863 = vmul.f32 %v3113, %v3673
      %v3864 = vmul.f32 %v3118, %v3674
      %v3865 = vmul.f32 %v3123, %v3675
      %v3866 = vmul.f32 %v3128, %v3676
      %v3867 = vmul.f32 %v3133, %v3677
      %v3868 = vmul.f32 %v3138, %v3678
      %v3869 = vmul.f32 %v3143, %v3679
      %v3870 = vmul.f32 %v3148, %v3680
      %v3871 = vmul.f32 %v3153, %v3681
      %v3872 = vmul.f32 %v3158, %v3682
      %v3873 = vmul.f32 %v3163, %v3683
      %v3874 = vmul.f32 %v3168, %v3684
      %v3875 = vmul.f32 %v3173, %v3685
      %v3876 = vmul.f32 %v3178, %v3686
      %v3877 = vmul.f32 %v3183, %v3687
      %v3878 = vmul.f32 %v3188, %v3688
      %v3879 = vmul.f32 %v3193, %v3689
      %v3880 = vmul.f32 %v3198, %v3690
      %v3881 = vsel %vm3201, %v3820, 0.0
      %v3882 = vsel %vm3201, %v3821, 0.0
      %v3883 = vadd.f32 %v3881, %v3882
      %v3884 = vsel %vm3201, %v3822, 0.0
      %v3885 = vadd.f32 %v3883, %v3884
      %v3886 = vsel %vm3201, %v3823, 0.0
      %v3887 = vadd.f32 %v3885, %v3886
      %v3888 = vsel %vm3201, %v3824, 0.0
      %v3889 = vadd.f32 %v3887, %v3888
      %v3890 = vsel %vm3201, %v3825, 0.0
      %v3891 = vadd.f32 %v3889, %v3890
      %v3892 = vsel %vm3201, %v3826, 0.0
      %v3893 = vadd.f32 %v3891, %v3892
      %v3894 = vsel %vm3201, %v3827, 0.0
      %v3895 = vadd.f32 %v3893, %v3894
      %v3896 = vsel %vm3201, %v3828, 0.0
      %v3897 = vadd.f32 %v3895, %v3896
      %v3898 = vsel %vm3201, %v3829, 0.0
      %v3899 = vadd.f32 %v3897, %v3898
      %v3900 = vsel %vm3201, %v3830, 0.0
      %v3901 = vadd.f32 %v3899, %v3900
      %v3902 = vsel %vm3201, %v3831, 0.0
      %v3903 = vadd.f32 %v3901, %v3902
      %v3904 = vsel %vm3201, %v3832, 0.0
      %v3905 = vadd.f32 %v3903, %v3904
      %v3906 = vsel %vm3201, %v3833, 0.0
      %v3907 = vadd.f32 %v3905, %v3906
      %v3908 = vsel %vm3201, %v3834, 0.0
      %v3909 = vadd.f32 %v3907, %v3908
      %v3910 = vsel %vm3201, %v3835, 0.0
      %v3911 = vadd.f32 %v3909, %v3910
      %v3912 = vsel %vm3201, %v3836, 0.0
      %v3913 = vadd.f32 %v3911, %v3912
      %v3914 = vsel %vm3201, %v3837, 0.0
      %v3915 = vadd.f32 %v3913, %v3914
      %v3916 = vsel %vm3201, %v3838, 0.0
      %v3917 = vadd.f32 %v3915, %v3916
      %v3918 = vsel %vm3201, %v3839, 0.0
      %v3919 = vadd.f32 %v3917, %v3918
      %v3920 = vsel %vm3201, %v3840, 0.0
      %v3921 = vadd.f32 %v3919, %v3920
      %v3922 = vsel %vm3201, %v3841, 0.0
      %v3923 = vadd.f32 %v3921, %v3922
      %v3924 = vsel %vm3201, %v3842, 0.0
      %v3925 = vadd.f32 %v3923, %v3924
      %v3926 = vsel %vm3201, %v3843, 0.0
      %v3927 = vadd.f32 %v3925, %v3926
      %v3928 = vsel %vm3201, %v3844, 0.0
      %v3929 = vadd.f32 %v3927, %v3928
      %v3930 = vsel %vm3201, %v3845, 0.0
      %v3931 = vadd.f32 %v3929, %v3930
      %v3932 = vsel %vm3201, %v3846, 0.0
      %v3933 = vadd.f32 %v3931, %v3932
      %v3934 = vsel %vm3201, %v3847, 0.0
      %v3935 = vadd.f32 %v3933, %v3934
      %v3936 = vsel %vm3201, %v3848, 0.0
      %v3937 = vadd.f32 %v3935, %v3936
      %v3938 = vsel %vm3201, %v3849, 0.0
      %v3939 = vadd.f32 %v3937, %v3938
      %v3940 = vsel %vm3201, %v3850, 0.0
      %v3941 = vadd.f32 %v3939, %v3940
      %v3942 = vsel %vm3201, %v3851, 0.0
      %v3943 = vadd.f32 %v3941, %v3942
      %v3944 = vsel %vm3201, %v3852, 0.0
      %v3945 = vadd.f32 %v3943, %v3944
      %v3946 = vsel %vm3201, %v3853, 0.0
      %v3947 = vadd.f32 %v3945, %v3946
      %v3948 = vsel %vm3201, %v3854, 0.0
      %v3949 = vadd.f32 %v3947, %v3948
      %v3950 = vsel %vm3201, %v3855, 0.0
      %v3951 = vadd.f32 %v3949, %v3950
      %v3952 = vsel %vm3201, %v3856, 0.0
      %v3953 = vadd.f32 %v3951, %v3952
      %v3954 = vsel %vm3201, %v3857, 0.0
      %v3955 = vadd.f32 %v3953, %v3954
      %v3956 = vsel %vm3201, %v3858, 0.0
      %v3957 = vadd.f32 %v3955, %v3956
      %v3958 = vsel %vm3201, %v3859, 0.0
      %v3959 = vadd.f32 %v3957, %v3958
      %v3960 = vsel %vm3201, %v3860, 0.0
      %v3961 = vadd.f32 %v3959, %v3960
      %v3962 = vsel %vm3201, %v3861, 0.0
      %v3963 = vadd.f32 %v3961, %v3962
      %v3964 = vsel %vm3201, %v3862, 0.0
      %v3965 = vadd.f32 %v3963, %v3964
      %v3966 = vsel %vm3201, %v3863, 0.0
      %v3967 = vadd.f32 %v3965, %v3966
      %v3968 = vsel %vm3201, %v3864, 0.0
      %v3969 = vadd.f32 %v3967, %v3968
      %v3970 = vsel %vm3201, %v3865, 0.0
      %v3971 = vadd.f32 %v3969, %v3970
      %v3972 = vsel %vm3201, %v3866, 0.0
      %v3973 = vadd.f32 %v3971, %v3972
      %v3974 = vsel %vm3201, %v3867, 0.0
      %v3975 = vadd.f32 %v3973, %v3974
      %v3976 = vsel %vm3201, %v3868, 0.0
      %v3977 = vadd.f32 %v3975, %v3976
      %v3978 = vsel %vm3201, %v3869, 0.0
      %v3979 = vadd.f32 %v3977, %v3978
      %v3980 = vsel %vm3201, %v3870, 0.0
      %v3981 = vadd.f32 %v3979, %v3980
      %v3982 = vsel %vm3201, %v3871, 0.0
      %v3983 = vadd.f32 %v3981, %v3982
      %v3984 = vsel %vm3201, %v3872, 0.0
      %v3985 = vadd.f32 %v3983, %v3984
      %v3986 = vsel %vm3201, %v3873, 0.0
      %v3987 = vadd.f32 %v3985, %v3986
      %v3988 = vsel %vm3201, %v3874, 0.0
      %v3989 = vadd.f32 %v3987, %v3988
      %v3990 = vsel %vm3201, %v3875, 0.0
      %v3991 = vadd.f32 %v3989, %v3990
      %v3992 = vsel %vm3201, %v3876, 0.0
      %v3993 = vadd.f32 %v3991, %v3992
      %v3994 = vsel %vm3201, %v3877, 0.0
      %v3995 = vadd.f32 %v3993, %v3994
      %v3996 = vsel %vm3201, %v3878, 0.0
      %v3997 = vadd.f32 %v3995, %v3996
      %v3998 = vsel %vm3201, %v3879, 0.0
      %v3999 = vadd.f32 %v3997, %v3998
      %v4000 = vsel %vm3262, %v3880, 0.0
      %v4001 = vadd.f32 %v3999, %v4000
      %v4002 = vrot.slane %v4001, 4
      %v4003 = vadd.f32 %v4001, %v4002
      %v4004 = vrot.slane %v4003, 2
      %v4005 = vadd.f32 %v4003, %v4004
      %v4006 = vrot.slane %v4005, 1
      %v4007 = vadd.f32 %v4005, %v4006
      %4008 = vst.msk [vmem:[%s268] sm:$0x1] %vm3818, %v4007
      %p4009 = scmp.lt.s32.totalorder %s18, 1
      %s4010 = scalar_select %p4009, %s18, 1
      %s4011 = smul.addr %s4010, 61
      %s4012 = smul.addr %s4011, 8
      %s4013 = scalar_lea.vmem %s4, %s4012
      %p4014 = scmp.lt.s32.totalorder %s18, 1
      %s4015 = scalar_select %p4014, %s18, 1
      %s4016 = scalar_lea.vmem %s5, %s4015
      %p4017 = scmp.lt.s32.totalorder %s18, 1
      %s4018 = scalar_select %p4017, %s18, 1
      %s4019 = scalar_lea.vmem %s6, %s4018
      // Predicated region
      $region37: #{up_forward.2} parent=35 // pred_check
        %p4020 = pneg %p125
      $region38: #{up_forward.2} parent=35 // pred_check_branch
        %4022 = sbr.rel (%p4020) target = $region40
      $region39: #{up_forward.2} parent=35 // pred_region
        _
      $region40: #{up_forward.2} parent=35 // pred_fallthru
        _
      // Predicated region
      $region41: #{up_forward.2} parent=35 // pred_check
        %p4023 = pneg %p151
      $region42: #{up_forward.2} parent=35 // pred_check_branch
        %4025 = sbr.rel (%p4023) target = $region44
      $region43: #{up_forward.2} parent=35 // pred_region
        _
      $region44: #{up_forward.2} parent=35 // pred_fallthru
        _
      // Predicated region
      $region45: #{up_forward.2} parent=35 // pred_check
        %p4026 = pneg %p177
      $region46: #{up_forward.2} parent=35 // pred_check_branch
        %4028 = sbr.rel (%p4026) target = $region48
      $region47: #{up_forward.2} parent=35 // pred_region
        _
      $region48: #{up_forward.2} parent=35 // pred_fallthru
        _
    $region36: #{up_forward.2} parent=5 // pred_fallthru
      _
    %p4029 = scmp.le.s32.totalorder 2, %s13
    // Predicated region
    $region49: #{up_forward.2} parent=5 // pred_check
      %p4030 = pneg %p4029
    $region50: #{up_forward.2} parent=5 // pred_check_branch
      %4032 = sbr.rel (%p4030) target = $region52
    $region51: #{up_forward.2} parent=5 // pred_region
      %s4033 = ssub.s32 %s13, 2
      // Predicated region
      $region53: #{up_forward.2} parent=51 // pred_check
        %p4034 = pneg %p131
      $region54: #{up_forward.2} parent=51 // pred_check_branch
        %4036 = sbr.rel (%p4034) target = $region56
      $region55: #{up_forward.2} parent=51 // pred_region
        %p4037 = scmp.lt.s32.totalorder %s19, 1
        %s4038 = scalar_select %p4037, %s19, 1
        %s4039 = smul.addr %s4038, 61
        %s4040 = smul.addr %s4039, 8
        %s4041 = scalar_lea.vmem %s4, %s4040
      $region56: #{up_forward.2} parent=51 // pred_fallthru
        _
      // Predicated region
      $region57: #{up_forward.2} parent=51 // pred_check
        %p4042 = pneg %p157
      $region58: #{up_forward.2} parent=51 // pred_check_branch
        %4044 = sbr.rel (%p4042) target = $region60
      $region59: #{up_forward.2} parent=51 // pred_region
        %p4045 = scmp.lt.s32.totalorder %s19, 1
        %s4046 = scalar_select %p4045, %s19, 1
        %s4047 = scalar_lea.vmem %s5, %s4046
      $region60: #{up_forward.2} parent=51 // pred_fallthru
        _
      // Predicated region
      $region61: #{up_forward.2} parent=51 // pred_check
        %p4048 = pneg %p183
      $region62: #{up_forward.2} parent=51 // pred_check_branch
        %4050 = sbr.rel (%p4048) target = $region64
      $region63: #{up_forward.2} parent=51 // pred_region
        %p4051 = scmp.lt.s32.totalorder %s19, 1
        %s4052 = scalar_select %p4051, %s19, 1
        %s4053 = scalar_lea.vmem %s6, %s4052
      $region64: #{up_forward.2} parent=51 // pred_fallthru
        _
    $region52: #{up_forward.2} parent=5 // pred_fallthru
      _
  $region6: #{up_forward.2} parent=0 // loop_footer
    %s17 = sadd.s32 1, %s13
  $region7: #{up_forward.2} parent=0 // loop_footer_branch
    %12 = sbr.rel target = $region3
  $region8: #{up_forward.2} parent=0 // loop_exit
    _

// kernel: up_forward.3
$region0: #{up_forward.3}
  #allocation0 [shape = 'u32[]', space=smem, size = 0x4, offset = 0x4, fixed_abs, tag = 'smem constant byte address 0x4 - core index']
  #allocation1 [shape = 'u32[144,128]{1,0:T(1,128)}', space=vmem, size = 0x12000, scoped, tag = 'internal scratch']
  %s0 = inlined_call_operand.vmem [shape: f32[2,482,4], index: 0, kind: input, shape index: {}]
  %s1 = inlined_call_operand.vmem [shape: f32[1,4], index: 1, kind: input, shape index: {}]
  %s2 = inlined_call_operand.vmem [shape: f32[1,4], index: 2, kind: input, shape index: {}]
  %s3 = inlined_call_operand.vmem [shape: f32[1,482,1], index: 3, kind: input, shape index: {}]
  %s4 = inlined_call_operand.vmem [shape: f32[36,4], index: 4, kind: input, shape index: {}]
  %s5 = inlined_call_operand.vmem [shape: f32[1,4], index: 5, kind: input, shape index: {}]
  %s6 = inlined_call_operand.vmem [shape: f32[1,432,1], index: 6, kind: input, shape index: {}]
  %s7 = inlined_call_operand.vmem [shape: f32[2,432,4], index: 7, kind: output, shape index: {0}]
  %s8 = inlined_call_operand.vmem [shape: f32[2,1,4], index: 8, kind: output, shape index: {1}]
  %s9 = inlined_call_operand.vmem [shape: f32[2,1,4], index: 9, kind: output, shape index: {2}]
  %10 = xla_tuple %s7, %s8, %s9
  %s11 = sld [smem:[#allocation0]]
  $region77: #{up_forward.3} parent=0
    _
  %s13 = ssub.s32 1, %s11
  %s14 = scalar_select 0, %s13, %s11
  loop: start=0, step=1, limit=4
  $region2: #{up_forward.3} parent=0 // loop_pre_header
    _
  $region3: #{up_forward.3} parent=0 // loop_header
    %s16 = sphi 0, %s20
    %p17 = scmp.ge.s32.totalorder %s16, 4
    %s26 = sphi 0, %s28
    %s29 = sphi 0, %s26
    %s30 = sphi 0, %s29
    %s46 = sphi 0, %s30
    %s50 = sphi 0, %s50
    %s52 = sphi 0, %s50
    %s53 = sphi 0, %s52
    %s67 = sphi 0, %s53
    %s71 = sphi 0, %s71
    %s73 = sphi 0, %s71
    %s74 = sphi 0, %s73
    %s88 = sphi 0, %s74
    %s92 = sphi 0, %s92
    %s94 = sphi 0, %s92
    %s95 = sphi 0, %s94
    %s109 = sphi 0, %s95
    %s113 = sphi 0, %s113
    %s115 = sphi 0, %s113
    %s116 = sphi 0, %s115
    %s130 = sphi 0, %s116
    %s134 = sphi 0, %s134
    %s136 = sphi 0, %s134
    %s137 = sphi 0, %s136
    %s151 = sphi 0, %s137
    %s155 = sphi 0, %s155
    %s157 = sphi 0, %s155
    %s158 = sphi 0, %s157
    %s172 = sphi 0, %s158
    %s178 = sphi 0, %s180
    %s181 = sphi 0, %s178
    %s182 = sphi 0, %s181
    %s198 = sphi 0, %s182
    %s204 = sphi 0, %s206
    %s207 = sphi 0, %s204
    %s208 = sphi 0, %s207
    %s224 = sphi 0, %s208
    %s230 = sphi 0, %s232
    %s233 = sphi 0, %s230
    %s234 = sphi 0, %s233
    %s250 = sphi 0, %s234
  $region4: #{up_forward.3} parent=0 // loop_header_branch
    %19 = sbr.rel (%p17) target = $region8
  $region5: #{up_forward.3} parent=0 // loop_body
    %s21 = ssub.s32 %s16, 1
    %s22 = ssub.s32 %s16, 2
    %s23 = sadd.s32 %s16, 1
    %s24 = ssub.s32 %s16, %s23
    %p25 = scmp.eq.s32.totalorder %s24, 0
    %s27 = sadd.s32 %s26, 1
    %s28 = scalar_select %p25, %s26, %s27
    %p31 = pneg %p25
    %p32 = scmp.eq.s32.totalorder %s16, 1
    %p33 = por %p31, %p32
    %p34 = scmp.ne.s32.totalorder %s26, %s29
    %p35 = scmp.eq.s32.totalorder %s16, 0
    %p36 = por %p34, %p35
    %p37 = scmp.ne.s32.totalorder %s26, %s29
    %p38 = scmp.eq.s32.totalorder %s21, 1
    %p39 = por %p37, %p38
    %p40 = scmp.ne.s32.totalorder %s29, %s30
    %p41 = scmp.eq.s32.totalorder %s21, 0
    %p42 = por %p40, %p41
    %p43 = scmp.ne.s32.totalorder %s29, %s30
    %p44 = scmp.eq.s32.totalorder %s22, 1
    %p45 = por %p43, %p44
    %p47 = scmp.ne.s32.totalorder %s30, %s46
    %p48 = scmp.eq.s32.totalorder %s22, 0
    %p49 = por %p47, %p48
    %s51 = sadd.s32 %s50, 1
    %p54 = scmp.eq.s32.totalorder %s16, 1
    %p55 = scmp.ne.s32.totalorder %s50, %s52
    %p56 = scmp.eq.s32.totalorder %s16, 0
    %p57 = por %p55, %p56
    %p58 = scmp.ne.s32.totalorder %s50, %s52
    %p59 = scmp.eq.s32.totalorder %s21, 1
    %p60 = por %p58, %p59
    %p61 = scmp.ne.s32.totalorder %s52, %s53
    %p62 = scmp.eq.s32.totalorder %s21, 0
    %p63 = por %p61, %p62
    %p64 = scmp.ne.s32.totalorder %s52, %s53
    %p65 = scmp.eq.s32.totalorder %s22, 1
    %p66 = por %p64, %p65
    %p68 = scmp.ne.s32.totalorder %s53, %s67
    %p69 = scmp.eq.s32.totalorder %s22, 0
    %p70 = por %p68, %p69
    %s72 = sadd.s32 %s71, 1
    %p75 = scmp.eq.s32.totalorder %s16, 1
    %p76 = scmp.ne.s32.totalorder %s71, %s73
    %p77 = scmp.eq.s32.totalorder %s16, 0
    %p78 = por %p76, %p77
    %p79 = scmp.ne.s32.totalorder %s71, %s73
    %p80 = scmp.eq.s32.totalorder %s21, 1
    %p81 = por %p79, %p80
    %p82 = scmp.ne.s32.totalorder %s73, %s74
    %p83 = scmp.eq.s32.totalorder %s21, 0
    %p84 = por %p82, %p83
    %p85 = scmp.ne.s32.totalorder %s73, %s74
    %p86 = scmp.eq.s32.totalorder %s22, 1
    %p87 = por %p85, %p86
    %p89 = scmp.ne.s32.totalorder %s74, %s88
    %p90 = scmp.eq.s32.totalorder %s22, 0
    %p91 = por %p89, %p90
    %s93 = sadd.s32 %s92, 1
    %p96 = scmp.eq.s32.totalorder %s16, 1
    %p97 = scmp.ne.s32.totalorder %s92, %s94
    %p98 = scmp.eq.s32.totalorder %s16, 0
    %p99 = por %p97, %p98
    %p100 = scmp.ne.s32.totalorder %s92, %s94
    %p101 = scmp.eq.s32.totalorder %s21, 1
    %p102 = por %p100, %p101
    %p103 = scmp.ne.s32.totalorder %s94, %s95
    %p104 = scmp.eq.s32.totalorder %s21, 0
    %p105 = por %p103, %p104
    %p106 = scmp.ne.s32.totalorder %s94, %s95
    %p107 = scmp.eq.s32.totalorder %s22, 1
    %p108 = por %p106, %p107
    %p110 = scmp.ne.s32.totalorder %s95, %s109
    %p111 = scmp.eq.s32.totalorder %s22, 0
    %p112 = por %p110, %p111
    %s114 = sadd.s32 %s113, 1
    %p117 = scmp.eq.s32.totalorder %s16, 1
    %p118 = scmp.ne.s32.totalorder %s113, %s115
    %p119 = scmp.eq.s32.totalorder %s16, 0
    %p120 = por %p118, %p119
    %p121 = scmp.ne.s32.totalorder %s113, %s115
    %p122 = scmp.eq.s32.totalorder %s21, 1
    %p123 = por %p121, %p122
    %p124 = scmp.ne.s32.totalorder %s115, %s116
    %p125 = scmp.eq.s32.totalorder %s21, 0
    %p126 = por %p124, %p125
    %p127 = scmp.ne.s32.totalorder %s115, %s116
    %p128 = scmp.eq.s32.totalorder %s22, 1
    %p129 = por %p127, %p128
    %p131 = scmp.ne.s32.totalorder %s116, %s130
    %p132 = scmp.eq.s32.totalorder %s22, 0
    %p133 = por %p131, %p132
    %s135 = sadd.s32 %s134, 1
    %p138 = scmp.eq.s32.totalorder %s16, 1
    %p139 = scmp.ne.s32.totalorder %s134, %s136
    %p140 = scmp.eq.s32.totalorder %s16, 0
    %p141 = por %p139, %p140
    %p142 = scmp.ne.s32.totalorder %s134, %s136
    %p143 = scmp.eq.s32.totalorder %s21, 1
    %p144 = por %p142, %p143
    %p145 = scmp.ne.s32.totalorder %s136, %s137
    %p146 = scmp.eq.s32.totalorder %s21, 0
    %p147 = por %p145, %p146
    %p148 = scmp.ne.s32.totalorder %s136, %s137
    %p149 = scmp.eq.s32.totalorder %s22, 1
    %p150 = por %p148, %p149
    %p152 = scmp.ne.s32.totalorder %s137, %s151
    %p153 = scmp.eq.s32.totalorder %s22, 0
    %p154 = por %p152, %p153
    %s156 = sadd.s32 %s155, 1
    %p159 = scmp.eq.s32.totalorder %s16, 1
    %p160 = scmp.ne.s32.totalorder %s155, %s157
    %p161 = scmp.eq.s32.totalorder %s16, 0
    %p162 = por %p160, %p161
    %p163 = scmp.ne.s32.totalorder %s155, %s157
    %p164 = scmp.eq.s32.totalorder %s21, 1
    %p165 = por %p163, %p164
    %p166 = scmp.ne.s32.totalorder %s157, %s158
    %p167 = scmp.eq.s32.totalorder %s21, 0
    %p168 = por %p166, %p167
    %p169 = scmp.ne.s32.totalorder %s157, %s158
    %p170 = scmp.eq.s32.totalorder %s22, 1
    %p171 = por %p169, %p170
    %p173 = scmp.ne.s32.totalorder %s158, %s172
    %p174 = scmp.eq.s32.totalorder %s22, 0
    %p175 = por %p173, %p174
    %s176 = ssub.s32 %s16, %s23
    %p177 = scmp.eq.s32.totalorder %s176, 0
    %s179 = sadd.s32 %s178, 1
    %s180 = scalar_select %p177, %s178, %s179
    %p183 = pneg %p177
    %p184 = scmp.eq.s32.totalorder %s16, 1
    %p185 = por %p183, %p184
    %p186 = scmp.ne.s32.totalorder %s178, %s181
    %p187 = scmp.eq.s32.totalorder %s16, 0
    %p188 = por %p186, %p187
    %p189 = scmp.ne.s32.totalorder %s178, %s181
    %p190 = scmp.eq.s32.totalorder %s21, 1
    %p191 = por %p189, %p190
    %p192 = scmp.ne.s32.totalorder %s181, %s182
    %p193 = scmp.eq.s32.totalorder %s21, 0
    %p194 = por %p192, %p193
    %p195 = scmp.ne.s32.totalorder %s181, %s182
    %p196 = scmp.eq.s32.totalorder %s22, 1
    %p197 = por %p195, %p196
    %p199 = scmp.ne.s32.totalorder %s182, %s198
    %p200 = scmp.eq.s32.totalorder %s22, 0
    %p201 = por %p199, %p200
    %s202 = ssub.s32 %s16, %s23
    %p203 = scmp.eq.s32.totalorder %s202, 0
    %s205 = sadd.s32 %s204, 1
    %s206 = scalar_select %p203, %s204, %s205
    %p209 = pneg %p203
    %p210 = scmp.eq.s32.totalorder %s16, 1
    %p211 = por %p209, %p210
    %p212 = scmp.ne.s32.totalorder %s204, %s207
    %p213 = scmp.eq.s32.totalorder %s16, 0
    %p214 = por %p212, %p213
    %p215 = scmp.ne.s32.totalorder %s204, %s207
    %p216 = scmp.eq.s32.totalorder %s21, 1
    %p217 = por %p215, %p216
    %p218 = scmp.ne.s32.totalorder %s207, %s208
    %p219 = scmp.eq.s32.totalorder %s21, 0
    %p220 = por %p218, %p219
    %p221 = scmp.ne.s32.totalorder %s207, %s208
    %p222 = scmp.eq.s32.totalorder %s22, 1
    %p223 = por %p221, %p222
    %p225 = scmp.ne.s32.totalorder %s208, %s224
    %p226 = scmp.eq.s32.totalorder %s22, 0
    %p227 = por %p225, %p226
    %s228 = ssub.s32 %s16, %s23
    %p229 = scmp.eq.s32.totalorder %s228, 0
    %s231 = sadd.s32 %s230, 1
    %s232 = scalar_select %p229, %s230, %s231
    %p235 = pneg %p229
    %p236 = scmp.eq.s32.totalorder %s16, 1
    %p237 = por %p235, %p236
    %p238 = scmp.ne.s32.totalorder %s230, %s233
    %p239 = scmp.eq.s32.totalorder %s16, 0
    %p240 = por %p238, %p239
    %p241 = scmp.ne.s32.totalorder %s230, %s233
    %p242 = scmp.eq.s32.totalorder %s21, 1
    %p243 = por %p241, %p242
    %p244 = scmp.ne.s32.totalorder %s233, %s234
    %p245 = scmp.eq.s32.totalorder %s21, 0
    %p246 = por %p244, %p245
    %p247 = scmp.ne.s32.totalorder %s233, %s234
    %p248 = scmp.eq.s32.totalorder %s22, 1
    %p249 = por %p247, %p248
    %p251 = scmp.ne.s32.totalorder %s234, %s250
    %p252 = scmp.eq.s32.totalorder %s22, 0
    %p253 = por %p251, %p252
    %p254 = scmp.le.s32.totalorder 1, %s16
    %p255 = scmp.lt.s32.totalorder %s16, 3
    %p256 = pnand %p254, %p255
    %p257 = pneg %p256
    // Predicated region
    $region9: #{up_forward.3} parent=5 // pred_check
      _
    $region10: #{up_forward.3} parent=5 // pred_check_branch
      %259 = sbr.rel (%p256) target = $region12
    $region11: #{up_forward.3} parent=5 // pred_region
      %s260 = ssub.s32 %s16, 1
      // Predicated region
      $region13: #{up_forward.3} parent=11 // pred_check
        %p261 = pneg %p63
      $region14: #{up_forward.3} parent=11 // pred_check_branch
        %263 = sbr.rel (%p261) target = $region16
      $region15: #{up_forward.3} parent=11 // pred_region
        _
      $region16: #{up_forward.3} parent=11 // pred_fallthru
        _
      // Predicated region
      $region17: #{up_forward.3} parent=11 // pred_check
        %p264 = pneg %p84
      $region18: #{up_forward.3} parent=11 // pred_check_branch
        %266 = sbr.rel (%p264) target = $region20
      $region19: #{up_forward.3} parent=11 // pred_region
        _
      $region20: #{up_forward.3} parent=11 // pred_fallthru
        _
      // Predicated region
      $region21: #{up_forward.3} parent=11 // pred_check
        %p267 = pneg %p105
      $region22: #{up_forward.3} parent=11 // pred_check_branch
        %269 = sbr.rel (%p267) target = $region24
      $region23: #{up_forward.3} parent=11 // pred_region
        _
      $region24: #{up_forward.3} parent=11 // pred_fallthru
        _
      // Predicated region
      $region25: #{up_forward.3} parent=11 // pred_check
        %p270 = pneg %p126
      $region26: #{up_forward.3} parent=11 // pred_check_branch
        %272 = sbr.rel (%p270) target = $region28
      $region27: #{up_forward.3} parent=11 // pred_region
        _
      $region28: #{up_forward.3} parent=11 // pred_fallthru
        _
      // Predicated region
      $region29: #{up_forward.3} parent=11 // pred_check
        %p273 = pneg %p147
      $region30: #{up_forward.3} parent=11 // pred_check_branch
        %275 = sbr.rel (%p273) target = $region32
      $region31: #{up_forward.3} parent=11 // pred_region
        _
      $region32: #{up_forward.3} parent=11 // pred_fallthru
        _
      // Predicated region
      $region33: #{up_forward.3} parent=11 // pred_check
        %p276 = pneg %p168
      $region34: #{up_forward.3} parent=11 // pred_check_branch
        %278 = sbr.rel (%p276) target = $region36
      $region35: #{up_forward.3} parent=11 // pred_region
        _
      $region36: #{up_forward.3} parent=11 // pred_fallthru
        _
    $region12: #{up_forward.3} parent=5 // pred_fallthru
      _
    %p279 = scmp.lt.s32.totalorder %s16, 2
    // Predicated region
    $region37: #{up_forward.3} parent=5 // pred_check
      %p280 = pneg %p279
    $region38: #{up_forward.3} parent=5 // pred_check_branch
      %282 = sbr.rel (%p280) target = $region40
    $region39: #{up_forward.3} parent=5 // pred_region
      // Predicated region
      $region41: #{up_forward.3} parent=39 // pred_check
        %p283 = pneg %p36
      $region42: #{up_forward.3} parent=39 // pred_check_branch
        %285 = sbr.rel (%p283) target = $region44
      $region43: #{up_forward.3} parent=39 // pred_region
        %p286 = scmp.lt.s32.totalorder %s16, 1
        %s287 = scalar_select %p286, %s16, 1
        %s288 = smul.addr %s287, 61
        %s289 = smul.addr %s288, 8
        %s290 = scalar_lea.vmem %s0, %s289
      $region44: #{up_forward.3} parent=39 // pred_fallthru
        _
    $region40: #{up_forward.3} parent=5 // pred_fallthru
      _
    %p291 = scmp.le.s32.totalorder 1, %s16
    %p292 = scmp.lt.s32.totalorder %s16, 3
    %p293 = pnand %p291, %p292
    %p294 = pneg %p293
    // Predicated region
    $region45: #{up_forward.3} parent=5 // pred_check
      _
    $region46: #{up_forward.3} parent=5 // pred_check_branch
      %296 = sbr.rel (%p293) target = $region48
    $region47: #{up_forward.3} parent=5 // pred_region
      %s297 = ssub.s32 %s16, 1
      %p298 = scmp.lt.s32.totalorder %s21, 1
      %s299 = scalar_select %p298, %s21, 1
      %s300 = smul.addr %s299, 61
      %s301 = smul.addr %s300, 8
      %s302 = scalar_lea.vmem %s0, %s301
      %p303 = pneg %p42
      %p304 = pneg %p39
      %p305 = pneg %p63
      %p306 = pneg %p60
      %p307 = pneg %p84
      %p308 = pneg %p81
      %p309 = pneg %p105
      %p310 = pneg %p102
      %p311 = pneg %p126
      %p312 = pneg %p123
      %p313 = pneg %p147
      %p314 = pneg %p144
      %p315 = pneg %p168
      %p316 = pneg %p165
      %p317 = pneg %p194
      %p318 = pneg %p191
      %p319 = scmp.lt.s32.totalorder %s21, 1
      %s320 = scalar_select %p319, %s21, 1
      %s321 = smul.addr %s320, 54
      %s322 = smul.addr %s321, 8
      %s323 = scalar_lea.vmem %s7, %s322
      %p324 = pneg %p220
      %p325 = pneg %p217
      %p326 = scmp.lt.s32.totalorder %s21, 1
      %s327 = scalar_select %p326, %s21, 1
      %s328 = scalar_lea.vmem %s8, %s327
      %p329 = pneg %p246
      %p330 = pneg %p243
      %p331 = scmp.lt.s32.totalorder %s21, 1
      %s332 = scalar_select %p331, %s21, 1
      %s333 = scalar_lea.vmem %s9, %s332
      %p334 = scmp.lt.s32.totalorder %s21, 1
      %s335 = scalar_select %p334, %s21, 1
      %s336 = smul.addr %s335, 61
      %s337 = smul.addr %s336, 8
      %s338 = scalar_lea.vmem %s0, %s337
      %p339 = scmp.lt.s32.totalorder %s21, 1
      %s340 = scalar_select %p339, %s21, 1
      %s341 = smul.addr %s340, 54
      %s342 = smul.addr %s341, 8
      %s343 = scalar_lea.vmem %s7, %s342
      %p344 = scmp.lt.s32.totalorder %s21, 1
      %s345 = scalar_select %p344, %s21, 1
      %s346 = scalar_lea.vmem %s8, %s345
      %p347 = scmp.lt.s32.totalorder %s21, 1
      %s348 = scalar_select %p347, %s21, 1
      %s349 = scalar_lea.vmem %s9, %s348
      %v350 = vld [vmem:[%s338] sm:$0xff]
      %v351 = vld [vmem:[%s338 + $0x8] sm:$0xff]
      %v352 = vld [vmem:[%s338 + $0x10] sm:$0xff]
      %v353 = vld [vmem:[%s338 + $0x18] sm:$0xff]
      %v354 = vld [vmem:[%s338 + $0x20] sm:$0xff]
      %v355 = vld [vmem:[%s338 + $0x28] sm:$0xff]
      %v356 = vld [vmem:[%s338 + $0x30] sm:$0xff]
      %v357 = vld [vmem:[%s338 + $0x38] sm:$0xff]
      %v358 = vld [vmem:[%s338 + $0x40] sm:$0xff]
      %v359 = vld [vmem:[%s338 + $0x48] sm:$0xff]
      %v360 = vld [vmem:[%s338 + $0x50] sm:$0xff]
      %v361 = vld [vmem:[%s338 + $0x58] sm:$0xff]
      %v362 = vld [vmem:[%s338 + $0x60] sm:$0xff]
      %v363 = vld [vmem:[%s338 + $0x68] sm:$0xff]
      %v364 = vld [vmem:[%s338 + $0x70] sm:$0xff]
      %v365 = vld [vmem:[%s338 + $0x78] sm:$0xff]
      %v366 = vld [vmem:[%s338 + $0x80] sm:$0xff]
      %v367 = vld [vmem:[%s338 + $0x88] sm:$0xff]
      %v368 = vld [vmem:[%s338 + $0x90] sm:$0xff]
      %v369 = vld [vmem:[%s338 + $0x98] sm:$0xff]
      %v370 = vld [vmem:[%s338 + $0xa0] sm:$0xff]
      %v371 = vld [vmem:[%s338 + $0xa8] sm:$0xff]
      %v372 = vld [vmem:[%s338 + $0xb0] sm:$0xff]
      %v373 = vld [vmem:[%s338 + $0xb8] sm:$0xff]
      %v374 = vld [vmem:[%s338 + $0xc0] sm:$0xff]
      %v375 = vld [vmem:[%s338 + $0xc8] sm:$0xff]
      %v376 = vld [vmem:[%s338 + $0xd0] sm:$0xff]
      %v377 = vld [vmem:[%s338 + $0xd8] sm:$0xff]
      %v378 = vld [vmem:[%s338 + $0xe0] sm:$0xff]
      %v379 = vld [vmem:[%s338 + $0xe8] sm:$0xff]
      %v380 = vld [vmem:[%s338 + $0xf0] sm:$0xff]
      %v381 = vld [vmem:[%s338 + $0xf8] sm:$0xff]
      %v382 = vld [vmem:[%s338 + $0x100] sm:$0xff]
      %v383 = vld [vmem:[%s338 + $0x108] sm:$0xff]
      %v384 = vld [vmem:[%s338 + $0x110] sm:$0xff]
      %v385 = vld [vmem:[%s338 + $0x118] sm:$0xff]
      %v386 = vld [vmem:[%s338 + $0x120] sm:$0xff]
      %v387 = vld [vmem:[%s338 + $0x128] sm:$0xff]
      %v388 = vld [vmem:[%s338 + $0x130] sm:$0xff]
      %v389 = vld [vmem:[%s338 + $0x138] sm:$0xff]
      %v390 = vld [vmem:[%s338 + $0x140] sm:$0xff]
      %v391 = vld [vmem:[%s338 + $0x148] sm:$0xff]
      %v392 = vld [vmem:[%s338 + $0x150] sm:$0xff]
      %v393 = vld [vmem:[%s338 + $0x158] sm:$0xff]
      %v394 = vld [vmem:[%s338 + $0x160] sm:$0xff]
      %v395 = vld [vmem:[%s338 + $0x168] sm:$0xff]
      %v396 = vld [vmem:[%s338 + $0x170] sm:$0xff]
      %v397 = vld [vmem:[%s338 + $0x178] sm:$0xff]
      %v398 = vld [vmem:[%s338 + $0x180] sm:$0xff]
      %v399 = vld [vmem:[%s338 + $0x188] sm:$0xff]
      %v400 = vld [vmem:[%s338 + $0x190] sm:$0xff]
      %v401 = vld [vmem:[%s338 + $0x198] sm:$0xff]
      %v402 = vld [vmem:[%s338 + $0x1a0] sm:$0xff]
      %v403 = vld [vmem:[%s338 + $0x1a8] sm:$0xff]
      %v404 = vld [vmem:[%s338 + $0x1b0] sm:$0xff]
      %v405 = vld [vmem:[%s338 + $0x1b8] sm:$0xff]
      %v406 = vld [vmem:[%s338 + $0x1c0] sm:$0xff]
      %v407 = vld [vmem:[%s338 + $0x1c8] sm:$0xff]
      %v408 = vld [vmem:[%s338 + $0x1d0] sm:$0xff]
      %v409 = vld [vmem:[%s338 + $0x1d8] sm:$0xff]
      %v410 = vld [vmem:[%s338 + $0x1e0] sm:$0x3]
      %v411 = vld [vmem:[%s1] sm:$0x1]
      %v413 = vlaneseq
      %v414 = vshrl.u32 %v413, 7
      %v415 = vsub.s32 0, %v414
      %v416 = vrot.slane %v411, %v415
      %v418 = vmul.f32 %v350, %v416
      %v419 = vmul.f32 %v351, %v416
      %v420 = vmul.f32 %v352, %v416
      %v421 = vmul.f32 %v353, %v416
      %v422 = vmul.f32 %v354, %v416
      %v423 = vmul.f32 %v355, %v416
      %v424 = vmul.f32 %v356, %v416
      %v425 = vmul.f32 %v357, %v416
      %v426 = vmul.f32 %v358, %v416
      %v427 = vmul.f32 %v359, %v416
      %v428 = vmul.f32 %v360, %v416
      %v429 = vmul.f32 %v361, %v416
      %v430 = vmul.f32 %v362, %v416
      %v431 = vmul.f32 %v363, %v416
      %v432 = vmul.f32 %v364, %v416
      %v433 = vmul.f32 %v365, %v416
      %v434 = vmul.f32 %v366, %v416
      %v435 = vmul.f32 %v367, %v416
      %v436 = vmul.f32 %v368, %v416
      %v437 = vmul.f32 %v369, %v416
      %v438 = vmul.f32 %v370, %v416
      %v439 = vmul.f32 %v371, %v416
      %v440 = vmul.f32 %v372, %v416
      %v441 = vmul.f32 %v373, %v416
      %v442 = vmul.f32 %v374, %v416
      %v443 = vmul.f32 %v375, %v416
      %v444 = vmul.f32 %v376, %v416
      %v445 = vmul.f32 %v377, %v416
      %v446 = vmul.f32 %v378, %v416
      %v447 = vmul.f32 %v379, %v416
      %v448 = vmul.f32 %v380, %v416
      %v449 = vmul.f32 %v381, %v416
      %v450 = vmul.f32 %v382, %v416
      %v451 = vmul.f32 %v383, %v416
      %v452 = vmul.f32 %v384, %v416
      %v453 = vmul.f32 %v385, %v416
      %v454 = vmul.f32 %v386, %v416
      %v455 = vmul.f32 %v387, %v416
      %v456 = vmul.f32 %v388, %v416
      %v457 = vmul.f32 %v389, %v416
      %v458 = vmul.f32 %v390, %v416
      %v459 = vmul.f32 %v391, %v416
      %v460 = vmul.f32 %v392, %v416
      %v461 = vmul.f32 %v393, %v416
      %v462 = vmul.f32 %v394, %v416
      %v463 = vmul.f32 %v395, %v416
      %v464 = vmul.f32 %v396, %v416
      %v465 = vmul.f32 %v397, %v416
      %v466 = vmul.f32 %v398, %v416
      %v467 = vmul.f32 %v399, %v416
      %v468 = vmul.f32 %v400, %v416
      %v469 = vmul.f32 %v401, %v416
      %v470 = vmul.f32 %v402, %v416
      %v471 = vmul.f32 %v403, %v416
      %v472 = vmul.f32 %v404, %v416
      %v473 = vmul.f32 %v405, %v416
      %v474 = vmul.f32 %v406, %v416
      %v475 = vmul.f32 %v407, %v416
      %v476 = vmul.f32 %v408, %v416
      %v477 = vmul.f32 %v409, %v416
      %v478 = vmul.f32 %v410, %v416
      %v479 = vld [vmem:[%s2] sm:$0x1]
      %v481 = vlaneseq
      %v482 = vshrl.u32 %v481, 7
      %v483 = vsub.s32 0, %v482
      %v484 = vrot.slane %v479, %v483
      %v486 = vadd.f32 %v418, %v484
      %v487 = vadd.f32 %v419, %v484
      %v488 = vadd.f32 %v420, %v484
      %v489 = vadd.f32 %v421, %v484
      %v490 = vadd.f32 %v422, %v484
      %v491 = vadd.f32 %v423, %v484
      %v492 = vadd.f32 %v424, %v484
      %v493 = vadd.f32 %v425, %v484
      %v494 = vadd.f32 %v426, %v484
      %v495 = vadd.f32 %v427, %v484
      %v496 = vadd.f32 %v428, %v484
      %v497 = vadd.f32 %v429, %v484
      %v498 = vadd.f32 %v430, %v484
      %v499 = vadd.f32 %v431, %v484
      %v500 = vadd.f32 %v432, %v484
      %v501 = vadd.f32 %v433, %v484
      %v502 = vadd.f32 %v434, %v484
      %v503 = vadd.f32 %v435, %v484
      %v504 = vadd.f32 %v436, %v484
      %v505 = vadd.f32 %v437, %v484
      %v506 = vadd.f32 %v438, %v484
      %v507 = vadd.f32 %v439, %v484
      %v508 = vadd.f32 %v440, %v484
      %v509 = vadd.f32 %v441, %v484
      %v510 = vadd.f32 %v442, %v484
      %v511 = vadd.f32 %v443, %v484
      %v512 = vadd.f32 %v444, %v484
      %v513 = vadd.f32 %v445, %v484
      %v514 = vadd.f32 %v446, %v484
      %v515 = vadd.f32 %v447, %v484
      %v516 = vadd.f32 %v448, %v484
      %v517 = vadd.f32 %v449, %v484
      %v518 = vadd.f32 %v450, %v484
      %v519 = vadd.f32 %v451, %v484
      %v520 = vadd.f32 %v452, %v484
      %v521 = vadd.f32 %v453, %v484
      %v522 = vadd.f32 %v454, %v484
      %v523 = vadd.f32 %v455, %v484
      %v524 = vadd.f32 %v456, %v484
      %v525 = vadd.f32 %v457, %v484
      %v526 = vadd.f32 %v458, %v484
      %v527 = vadd.f32 %v459, %v484
      %v528 = vadd.f32 %v460, %v484
      %v529 = vadd.f32 %v461, %v484
      %v530 = vadd.f32 %v462, %v484
      %v531 = vadd.f32 %v463, %v484
      %v532 = vadd.f32 %v464, %v484
      %v533 = vadd.f32 %v465, %v484
      %v534 = vadd.f32 %v466, %v484
      %v535 = vadd.f32 %v467, %v484
      %v536 = vadd.f32 %v468, %v484
      %v537 = vadd.f32 %v469, %v484
      %v538 = vadd.f32 %v470, %v484
      %v539 = vadd.f32 %v471, %v484
      %v540 = vadd.f32 %v472, %v484
      %v541 = vadd.f32 %v473, %v484
      %v542 = vadd.f32 %v474, %v484
      %v543 = vadd.f32 %v475, %v484
      %v544 = vadd.f32 %v476, %v484
      %v545 = vadd.f32 %v477, %v484
      %v546 = vadd.f32 %v478, %v484
      %v547 = vmax.f32 %v486, 0.0
      %v548 = vmax.f32 %v487, 0.0
      %v549 = vmax.f32 %v488, 0.0
      %v550 = vmax.f32 %v489, 0.0
      %v551 = vmax.f32 %v490, 0.0
      %v552 = vmax.f32 %v491, 0.0
      %v553 = vmax.f32 %v492, 0.0
      %v554 = vmax.f32 %v493, 0.0
      %v555 = vmax.f32 %v494, 0.0
      %v556 = vmax.f32 %v495, 0.0
      %v557 = vmax.f32 %v496, 0.0
      %v558 = vmax.f32 %v497, 0.0
      %v559 = vmax.f32 %v498, 0.0
      %v560 = vmax.f32 %v499, 0.0
      %v561 = vmax.f32 %v500, 0.0
      %v562 = vmax.f32 %v501, 0.0
      %v563 = vmax.f32 %v502, 0.0
      %v564 = vmax.f32 %v503, 0.0
      %v565 = vmax.f32 %v504, 0.0
      %v566 = vmax.f32 %v505, 0.0
      %v567 = vmax.f32 %v506, 0.0
      %v568 = vmax.f32 %v507, 0.0
      %v569 = vmax.f32 %v508, 0.0
      %v570 = vmax.f32 %v509, 0.0
      %v571 = vmax.f32 %v510, 0.0
      %v572 = vmax.f32 %v511, 0.0
      %v573 = vmax.f32 %v512, 0.0
      %v574 = vmax.f32 %v513, 0.0
      %v575 = vmax.f32 %v514, 0.0
      %v576 = vmax.f32 %v515, 0.0
      %v577 = vmax.f32 %v516, 0.0
      %v578 = vmax.f32 %v517, 0.0
      %v579 = vmax.f32 %v518, 0.0
      %v580 = vmax.f32 %v519, 0.0
      %v581 = vmax.f32 %v520, 0.0
      %v582 = vmax.f32 %v521, 0.0
      %v583 = vmax.f32 %v522, 0.0
      %v584 = vmax.f32 %v523, 0.0
      %v585 = vmax.f32 %v524, 0.0
      %v586 = vmax.f32 %v525, 0.0
      %v587 = vmax.f32 %v526, 0.0
      %v588 = vmax.f32 %v527, 0.0
      %v589 = vmax.f32 %v528, 0.0
      %v590 = vmax.f32 %v529, 0.0
      %v591 = vmax.f32 %v530, 0.0
      %v592 = vmax.f32 %v531, 0.0
      %v593 = vmax.f32 %v532, 0.0
      %v594 = vmax.f32 %v533, 0.0
      %v595 = vmax.f32 %v534, 0.0
      %v596 = vmax.f32 %v535, 0.0
      %v597 = vmax.f32 %v536, 0.0
      %v598 = vmax.f32 %v537, 0.0
      %v599 = vmax.f32 %v538, 0.0
      %v600 = vmax.f32 %v539, 0.0
      %v601 = vmax.f32 %v540, 0.0
      %v602 = vmax.f32 %v541, 0.0
      %v603 = vmax.f32 %v542, 0.0
      %v604 = vmax.f32 %v543, 0.0
      %v605 = vmax.f32 %v544, 0.0
      %v606 = vmax.f32 %v545, 0.0
      %v607 = vmax.f32 %v546, 0.0
      %v608 = vld [vmem:[%s3] sm:$0xff]
      %v609 = vld [vmem:[%s3 + $0x8] sm:$0xff]
      %v610 = vld [vmem:[%s3 + $0x10] sm:$0xff]
      %v611 = vld [vmem:[%s3 + $0x18] sm:$0xff]
      %v612 = vld [vmem:[%s3 + $0x20] sm:$0xff]
      %v613 = vld [vmem:[%s3 + $0x28] sm:$0xff]
      %v614 = vld [vmem:[%s3 + $0x30] sm:$0xff]
      %v615 = vld [vmem:[%s3 + $0x38] sm:$0xff]
      %v616 = vld [vmem:[%s3 + $0x40] sm:$0xff]
      %v617 = vld [vmem:[%s3 + $0x48] sm:$0xff]
      %v618 = vld [vmem:[%s3 + $0x50] sm:$0xff]
      %v619 = vld [vmem:[%s3 + $0x58] sm:$0xff]
      %v620 = vld [vmem:[%s3 + $0x60] sm:$0xff]
      %v621 = vld [vmem:[%s3 + $0x68] sm:$0xff]
      %v622 = vld [vmem:[%s3 + $0x70] sm:$0xff]
      %v623 = vld [vmem:[%s3 + $0x78] sm:$0xff]
      %v624 = vld [vmem:[%s3 + $0x80] sm:$0xff]
      %v625 = vld [vmem:[%s3 + $0x88] sm:$0xff]
      %v626 = vld [vmem:[%s3 + $0x90] sm:$0xff]
      %v627 = vld [vmem:[%s3 + $0x98] sm:$0xff]
      %v628 = vld [vmem:[%s3 + $0xa0] sm:$0xff]
      %v629 = vld [vmem:[%s3 + $0xa8] sm:$0xff]
      %v630 = vld [vmem:[%s3 + $0xb0] sm:$0xff]
      %v631 = vld [vmem:[%s3 + $0xb8] sm:$0xff]
      %v632 = vld [vmem:[%s3 + $0xc0] sm:$0xff]
      %v633 = vld [vmem:[%s3 + $0xc8] sm:$0xff]
      %v634 = vld [vmem:[%s3 + $0xd0] sm:$0xff]
      %v635 = vld [vmem:[%s3 + $0xd8] sm:$0xff]
      %v636 = vld [vmem:[%s3 + $0xe0] sm:$0xff]
      %v637 = vld [vmem:[%s3 + $0xe8] sm:$0xff]
      %v638 = vld [vmem:[%s3 + $0xf0] sm:$0xff]
      %v639 = vld [vmem:[%s3 + $0xf8] sm:$0xff]
      %v640 = vld [vmem:[%s3 + $0x100] sm:$0xff]
      %v641 = vld [vmem:[%s3 + $0x108] sm:$0xff]
      %v642 = vld [vmem:[%s3 + $0x110] sm:$0xff]
      %v643 = vld [vmem:[%s3 + $0x118] sm:$0xff]
      %v644 = vld [vmem:[%s3 + $0x120] sm:$0xff]
      %v645 = vld [vmem:[%s3 + $0x128] sm:$0xff]
      %v646 = vld [vmem:[%s3 + $0x130] sm:$0xff]
      %v647 = vld [vmem:[%s3 + $0x138] sm:$0xff]
      %v648 = vld [vmem:[%s3 + $0x140] sm:$0xff]
      %v649 = vld [vmem:[%s3 + $0x148] sm:$0xff]
      %v650 = vld [vmem:[%s3 + $0x150] sm:$0xff]
      %v651 = vld [vmem:[%s3 + $0x158] sm:$0xff]
      %v652 = vld [vmem:[%s3 + $0x160] sm:$0xff]
      %v653 = vld [vmem:[%s3 + $0x168] sm:$0xff]
      %v654 = vld [vmem:[%s3 + $0x170] sm:$0xff]
      %v655 = vld [vmem:[%s3 + $0x178] sm:$0xff]
      %v656 = vld [vmem:[%s3 + $0x180] sm:$0xff]
      %v657 = vld [vmem:[%s3 + $0x188] sm:$0xff]
      %v658 = vld [vmem:[%s3 + $0x190] sm:$0xff]
      %v659 = vld [vmem:[%s3 + $0x198] sm:$0xff]
      %v660 = vld [vmem:[%s3 + $0x1a0] sm:$0xff]
      %v661 = vld [vmem:[%s3 + $0x1a8] sm:$0xff]
      %v662 = vld [vmem:[%s3 + $0x1b0] sm:$0xff]
      %v663 = vld [vmem:[%s3 + $0x1b8] sm:$0xff]
      %v664 = vld [vmem:[%s3 + $0x1c0] sm:$0xff]
      %v665 = vld [vmem:[%s3 + $0x1c8] sm:$0xff]
      %v666 = vld [vmem:[%s3 + $0x1d0] sm:$0xff]
      %v667 = vld [vmem:[%s3 + $0x1d8] sm:$0xff]
      %v668 = vld [vmem:[%s3 + $0x1e0] sm:$0x3]
      %670 = vset.pattern.permute.xlu0 0
      %671 = vperm.xlu0 %670, %v608
      %v672 = vpop.permute.xlu0 %671
      %675 = vset.pattern.permute.xlu0 0
      %676 = vperm.xlu0 %675, %v609
      %v677 = vpop.permute.xlu0 %676
      %680 = vset.pattern.permute.xlu0 0
      %681 = vperm.xlu0 %680, %v610
      %v682 = vpop.permute.xlu0 %681
      %685 = vset.pattern.permute.xlu0 0
      %686 = vperm.xlu0 %685, %v611
      %v687 = vpop.permute.xlu0 %686
      %690 = vset.pattern.permute.xlu0 0
      %691 = vperm.xlu0 %690, %v612
      %v692 = vpop.permute.xlu0 %691
      %695 = vset.pattern.permute.xlu0 0
      %696 = vperm.xlu0 %695, %v613
      %v697 = vpop.permute.xlu0 %696
      %700 = vset.pattern.permute.xlu0 0
      %701 = vperm.xlu0 %700, %v614
      %v702 = vpop.permute.xlu0 %701
      %705 = vset.pattern.permute.xlu0 0
      %706 = vperm.xlu0 %705, %v615
      %v707 = vpop.permute.xlu0 %706
      %710 = vset.pattern.permute.xlu0 0
      %711 = vperm.xlu0 %710, %v616
      %v712 = vpop.permute.xlu0 %711
      %715 = vset.pattern.permute.xlu0 0
      %716 = vperm.xlu0 %715, %v617
      %v717 = vpop.permute.xlu0 %716
      %720 = vset.pattern.permute.xlu0 0
      %721 = vperm.xlu0 %720, %v618
      %v722 = vpop.permute.xlu0 %721
      %725 = vset.pattern.permute.xlu0 0
      %726 = vperm.xlu0 %725, %v619
      %v727 = vpop.permute.xlu0 %726
      %730 = vset.pattern.permute.xlu0 0
      %731 = vperm.xlu0 %730, %v620
      %v732 = vpop.permute.xlu0 %731
      %735 = vset.pattern.permute.xlu0 0
      %736 = vperm.xlu0 %735, %v621
      %v737 = vpop.permute.xlu0 %736
      %740 = vset.pattern.permute.xlu0 0
      %741 = vperm.xlu0 %740, %v622
      %v742 = vpop.permute.xlu0 %741
      %745 = vset.pattern.permute.xlu0 0
      %746 = vperm.xlu0 %745, %v623
      %v747 = vpop.permute.xlu0 %746
      %750 = vset.pattern.permute.xlu0 0
      %751 = vperm.xlu0 %750, %v624
      %v752 = vpop.permute.xlu0 %751
      %755 = vset.pattern.permute.xlu0 0
      %756 = vperm.xlu0 %755, %v625
      %v757 = vpop.permute.xlu0 %756
      %760 = vset.pattern.permute.xlu0 0
      %761 = vperm.xlu0 %760, %v626
      %v762 = vpop.permute.xlu0 %761
      %765 = vset.pattern.permute.xlu0 0
      %766 = vperm.xlu0 %765, %v627
      %v767 = vpop.permute.xlu0 %766
      %770 = vset.pattern.permute.xlu0 0
      %771 = vperm.xlu0 %770, %v628
      %v772 = vpop.permute.xlu0 %771
      %775 = vset.pattern.permute.xlu0 0
      %776 = vperm.xlu0 %775, %v629
      %v777 = vpop.permute.xlu0 %776
      %780 = vset.pattern.permute.xlu0 0
      %781 = vperm.xlu0 %780, %v630
      %v782 = vpop.permute.xlu0 %781
      %785 = vset.pattern.permute.xlu0 0
      %786 = vperm.xlu0 %785, %v631
      %v787 = vpop.permute.xlu0 %786
      %790 = vset.pattern.permute.xlu0 0
      %791 = vperm.xlu0 %790, %v632
      %v792 = vpop.permute.xlu0 %791
      %795 = vset.pattern.permute.xlu0 0
      %796 = vperm.xlu0 %795, %v633
      %v797 = vpop.permute.xlu0 %796
      %800 = vset.pattern.permute.xlu0 0
      %801 = vperm.xlu0 %800, %v634
      %v802 = vpop.permute.xlu0 %801
      %805 = vset.pattern.permute.xlu0 0
      %806 = vperm.xlu0 %805, %v635
      %v807 = vpop.permute.xlu0 %806
      %810 = vset.pattern.permute.xlu0 0
      %811 = vperm.xlu0 %810, %v636
      %v812 = vpop.permute.xlu0 %811
      %815 = vset.pattern.permute.xlu0 0
      %816 = vperm.xlu0 %815, %v637
      %v817 = vpop.permute.xlu0 %816
      %820 = vset.pattern.permute.xlu0 0
      %821 = vperm.xlu0 %820, %v638
      %v822 = vpop.permute.xlu0 %821
      %825 = vset.pattern.permute.xlu0 0
      %826 = vperm.xlu0 %825, %v639
      %v827 = vpop.permute.xlu0 %826
      %830 = vset.pattern.permute.xlu0 0
      %831 = vperm.xlu0 %830, %v640
      %v832 = vpop.permute.xlu0 %831
      %835 = vset.pattern.permute.xlu0 0
      %836 = vperm.xlu0 %835, %v641
      %v837 = vpop.permute.xlu0 %836
      %840 = vset.pattern.permute.xlu0 0
      %841 = vperm.xlu0 %840, %v642
      %v842 = vpop.permute.xlu0 %841
      %845 = vset.pattern.permute.xlu0 0
      %846 = vperm.xlu0 %845, %v643
      %v847 = vpop.permute.xlu0 %846
      %850 = vset.pattern.permute.xlu0 0
      %851 = vperm.xlu0 %850, %v644
      %v852 = vpop.permute.xlu0 %851
      %855 = vset.pattern.permute.xlu0 0
      %856 = vperm.xlu0 %855, %v645
      %v857 = vpop.permute.xlu0 %856
      %860 = vset.pattern.permute.xlu0 0
      %861 = vperm.xlu0 %860, %v646
      %v862 = vpop.permute.xlu0 %861
      %865 = vset.pattern.permute.xlu0 0
      %866 = vperm.xlu0 %865, %v647
      %v867 = vpop.permute.xlu0 %866
      %870 = vset.pattern.permute.xlu0 0
      %871 = vperm.xlu0 %870, %v648
      %v872 = vpop.permute.xlu0 %871
      %875 = vset.pattern.permute.xlu0 0
      %876 = vperm.xlu0 %875, %v649
      %v877 = vpop.permute.xlu0 %876
      %880 = vset.pattern.permute.xlu0 0
      %881 = vperm.xlu0 %880, %v650
      %v882 = vpop.permute.xlu0 %881
      %885 = vset.pattern.permute.xlu0 0
      %886 = vperm.xlu0 %885, %v651
      %v887 = vpop.permute.xlu0 %886
      %890 = vset.pattern.permute.xlu0 0
      %891 = vperm.xlu0 %890, %v652
      %v892 = vpop.permute.xlu0 %891
      %895 = vset.pattern.permute.xlu0 0
      %896 = vperm.xlu0 %895, %v653
      %v897 = vpop.permute.xlu0 %896
      %900 = vset.pattern.permute.xlu0 0
      %901 = vperm.xlu0 %900, %v654
      %v902 = vpop.permute.xlu0 %901
      %905 = vset.pattern.permute.xlu0 0
      %906 = vperm.xlu0 %905, %v655
      %v907 = vpop.permute.xlu0 %906
      %910 = vset.pattern.permute.xlu0 0
      %911 = vperm.xlu0 %910, %v656
      %v912 = vpop.permute.xlu0 %911
      %915 = vset.pattern.permute.xlu0 0
      %916 = vperm.xlu0 %915, %v657
      %v917 = vpop.permute.xlu0 %916
      %920 = vset.pattern.permute.xlu0 0
      %921 = vperm.xlu0 %920, %v658
      %v922 = vpop.permute.xlu0 %921
      %925 = vset.pattern.permute.xlu0 0
      %926 = vperm.xlu0 %925, %v659
      %v927 = vpop.permute.xlu0 %926
      %930 = vset.pattern.permute.xlu0 0
      %931 = vperm.xlu0 %930, %v660
      %v932 = vpop.permute.xlu0 %931
      %935 = vset.pattern.permute.xlu0 0
      %936 = vperm.xlu0 %935, %v661
      %v937 = vpop.permute.xlu0 %936
      %940 = vset.pattern.permute.xlu0 0
      %941 = vperm.xlu0 %940, %v662
      %v942 = vpop.permute.xlu0 %941
      %945 = vset.pattern.permute.xlu0 0
      %946 = vperm.xlu0 %945, %v663
      %v947 = vpop.permute.xlu0 %946
      %950 = vset.pattern.permute.xlu0 0
      %951 = vperm.xlu0 %950, %v664
      %v952 = vpop.permute.xlu0 %951
      %955 = vset.pattern.permute.xlu0 0
      %956 = vperm.xlu0 %955, %v665
      %v957 = vpop.permute.xlu0 %956
      %960 = vset.pattern.permute.xlu0 0
      %961 = vperm.xlu0 %960, %v666
      %v962 = vpop.permute.xlu0 %961
      %965 = vset.pattern.permute.xlu0 0
      %966 = vperm.xlu0 %965, %v667
      %v967 = vpop.permute.xlu0 %966
      %970 = vset.pattern.permute.xlu0 0
      %971 = vperm.xlu0 %970, %v668
      %v972 = vpop.permute.xlu0 %971
      %v974 = vmul.f32 %v547, %v672
      %v975 = vmul.f32 %v548, %v677
      %v976 = vmul.f32 %v549, %v682
      %v977 = vmul.f32 %v550, %v687
      %v978 = vmul.f32 %v551, %v692
      %v979 = vmul.f32 %v552, %v697
      %v980 = vmul.f32 %v553, %v702
      %v981 = vmul.f32 %v554, %v707
      %v982 = vmul.f32 %v555, %v712
      %v983 = vmul.f32 %v556, %v717
      %v984 = vmul.f32 %v557, %v722
      %v985 = vmul.f32 %v558, %v727
      %v986 = vmul.f32 %v559, %v732
      %v987 = vmul.f32 %v560, %v737
      %v988 = vmul.f32 %v561, %v742
      %v989 = vmul.f32 %v562, %v747
      %v990 = vmul.f32 %v563, %v752
      %v991 = vmul.f32 %v564, %v757
      %v992 = vmul.f32 %v565, %v762
      %v993 = vmul.f32 %v566, %v767
      %v994 = vmul.f32 %v567, %v772
      %v995 = vmul.f32 %v568, %v777
      %v996 = vmul.f32 %v569, %v782
      %v997 = vmul.f32 %v570, %v787
      %v998 = vmul.f32 %v571, %v792
      %v999 = vmul.f32 %v572, %v797
      %v1000 = vmul.f32 %v573, %v802
      %v1001 = vmul.f32 %v574, %v807
      %v1002 = vmul.f32 %v575, %v812
      %v1003 = vmul.f32 %v576, %v817
      %v1004 = vmul.f32 %v577, %v822
      %v1005 = vmul.f32 %v578, %v827
      %v1006 = vmul.f32 %v579, %v832
      %v1007 = vmul.f32 %v580, %v837
      %v1008 = vmul.f32 %v581, %v842
      %v1009 = vmul.f32 %v582, %v847
      %v1010 = vmul.f32 %v583, %v852
      %v1011 = vmul.f32 %v584, %v857
      %v1012 = vmul.f32 %v585, %v862
      %v1013 = vmul.f32 %v586, %v867
      %v1014 = vmul.f32 %v587, %v872
      %v1015 = vmul.f32 %v588, %v877
      %v1016 = vmul.f32 %v589, %v882
      %v1017 = vmul.f32 %v590, %v887
      %v1018 = vmul.f32 %v591, %v892
      %v1019 = vmul.f32 %v592, %v897
      %v1020 = vmul.f32 %v593, %v902
      %v1021 = vmul.f32 %v594, %v907
      %v1022 = vmul.f32 %v595, %v912
      %v1023 = vmul.f32 %v596, %v917
      %v1024 = vmul.f32 %v597, %v922
      %v1025 = vmul.f32 %v598, %v927
      %v1026 = vmul.f32 %v599, %v932
      %v1027 = vmul.f32 %v600, %v937
      %v1028 = vmul.f32 %v601, %v942
      %v1029 = vmul.f32 %v602, %v947
      %v1030 = vmul.f32 %v603, %v952
      %v1031 = vmul.f32 %v604, %v957
      %v1032 = vmul.f32 %v605, %v962
      %v1033 = vmul.f32 %v606, %v967
      %v1034 = vmul.f32 %v607, %v972
      %vm1090 = vcmask 1046528
      %v1091 = vrot.slane %v974, 1
      %v1092 = vrot.slane %v975, 1
      %v1093 = vsel %vm1090, %v1091, %v1092
      %v1094 = vrot.slane %v976, 1
      %v1095 = vsel %vm1090, %v1092, %v1094
      %v1096 = vrot.slane %v977, 1
      %v1097 = vsel %vm1090, %v1094, %v1096
      %v1098 = vrot.slane %v978, 1
      %v1099 = vsel %vm1090, %v1096, %v1098
      %v1100 = vrot.slane %v979, 1
      %v1101 = vsel %vm1090, %v1098, %v1100
      %v1102 = vrot.slane %v980, 1
      %v1103 = vsel %vm1090, %v1100, %v1102
      %v1104 = vrot.slane %v981, 1
      %v1105 = vsel %vm1090, %v1102, %v1104
      %v1106 = vrot.slane %v982, 1
      %v1107 = vsel %vm1090, %v1104, %v1106
      %v1108 = vrot.slane %v983, 1
      %v1109 = vsel %vm1090, %v1106, %v1108
      %v1110 = vrot.slane %v984, 1
      %v1111 = vsel %vm1090, %v1108, %v1110
      %v1112 = vrot.slane %v985, 1
      %v1113 = vsel %vm1090, %v1110, %v1112
      %v1114 = vrot.slane %v986, 1
      %v1115 = vsel %vm1090, %v1112, %v1114
      %v1116 = vrot.slane %v987, 1
      %v1117 = vsel %vm1090, %v1114, %v1116
      %v1118 = vrot.slane %v988, 1
      %v1119 = vsel %vm1090, %v1116, %v1118
      %v1120 = vrot.slane %v989, 1
      %v1121 = vsel %vm1090, %v1118, %v1120
      %v1122 = vrot.slane %v990, 1
      %v1123 = vsel %vm1090, %v1120, %v1122
      %v1124 = vrot.slane %v991, 1
      %v1125 = vsel %vm1090, %v1122, %v1124
      %v1126 = vrot.slane %v992, 1
      %v1127 = vsel %vm1090, %v1124, %v1126
      %v1128 = vrot.slane %v993, 1
      %v1129 = vsel %vm1090, %v1126, %v1128
      %v1130 = vrot.slane %v994, 1
      %v1131 = vsel %vm1090, %v1128, %v1130
      %v1132 = vrot.slane %v995, 1
      %v1133 = vsel %vm1090, %v1130, %v1132
      %v1134 = vrot.slane %v996, 1
      %v1135 = vsel %vm1090, %v1132, %v1134
      %v1136 = vrot.slane %v997, 1
      %v1137 = vsel %vm1090, %v1134, %v1136
      %v1138 = vrot.slane %v998, 1
      %v1139 = vsel %vm1090, %v1136, %v1138
      %v1140 = vrot.slane %v999, 1
      %v1141 = vsel %vm1090, %v1138, %v1140
      %v1142 = vrot.slane %v1000, 1
      %v1143 = vsel %vm1090, %v1140, %v1142
      %v1144 = vrot.slane %v1001, 1
      %v1145 = vsel %vm1090, %v1142, %v1144
      %v1146 = vrot.slane %v1002, 1
      %v1147 = vsel %vm1090, %v1144, %v1146
      %v1148 = vrot.slane %v1003, 1
      %v1149 = vsel %vm1090, %v1146, %v1148
      %v1150 = vrot.slane %v1004, 1
      %v1151 = vsel %vm1090, %v1148, %v1150
      %v1152 = vrot.slane %v1005, 1
      %v1153 = vsel %vm1090, %v1150, %v1152
      %v1154 = vrot.slane %v1006, 1
      %v1155 = vsel %vm1090, %v1152, %v1154
      %v1156 = vrot.slane %v1007, 1
      %v1157 = vsel %vm1090, %v1154, %v1156
      %v1158 = vrot.slane %v1008, 1
      %v1159 = vsel %vm1090, %v1156, %v1158
      %v1160 = vrot.slane %v1009, 1
      %v1161 = vsel %vm1090, %v1158, %v1160
      %v1162 = vrot.slane %v1010, 1
      %v1163 = vsel %vm1090, %v1160, %v1162
      %v1164 = vrot.slane %v1011, 1
      %v1165 = vsel %vm1090, %v1162, %v1164
      %v1166 = vrot.slane %v1012, 1
      %v1167 = vsel %vm1090, %v1164, %v1166
      %v1168 = vrot.slane %v1013, 1
      %v1169 = vsel %vm1090, %v1166, %v1168
      %v1170 = vrot.slane %v1014, 1
      %v1171 = vsel %vm1090, %v1168, %v1170
      %v1172 = vrot.slane %v1015, 1
      %v1173 = vsel %vm1090, %v1170, %v1172
      %v1174 = vrot.slane %v1016, 1
      %v1175 = vsel %vm1090, %v1172, %v1174
      %v1176 = vrot.slane %v1017, 1
      %v1177 = vsel %vm1090, %v1174, %v1176
      %v1178 = vrot.slane %v1018, 1
      %v1179 = vsel %vm1090, %v1176, %v1178
      %v1180 = vrot.slane %v1019, 1
      %v1181 = vsel %vm1090, %v1178, %v1180
      %v1182 = vrot.slane %v1020, 1
      %v1183 = vsel %vm1090, %v1180, %v1182
      %v1184 = vrot.slane %v1021, 1
      %v1185 = vsel %vm1090, %v1182, %v1184
      %v1186 = vrot.slane %v1022, 1
      %v1187 = vsel %vm1090, %v1184, %v1186
      %v1188 = vrot.slane %v1023, 1
      %v1189 = vsel %vm1090, %v1186, %v1188
      %v1190 = vrot.slane %v1024, 1
      %v1191 = vsel %vm1090, %v1188, %v1190
      %v1192 = vrot.slane %v1025, 1
      %v1193 = vsel %vm1090, %v1190, %v1192
      %v1194 = vrot.slane %v1026, 1
      %v1195 = vsel %vm1090, %v1192, %v1194
      %v1196 = vrot.slane %v1027, 1
      %v1197 = vsel %vm1090, %v1194, %v1196
      %v1198 = vrot.slane %v1028, 1
      %v1199 = vsel %vm1090, %v1196, %v1198
      %1200 = vrot.lane.b32.xlu0 %v1093, 4
      %v1201 = vpop.permute.xlu0 %1200
      %1202 = vrot.lane.b32.xlu0 %v1095, 4
      %v1203 = vpop.permute.xlu0 %1202
      %1204 = vrot.lane.b32.xlu0 %v1097, 4
      %v1205 = vpop.permute.xlu0 %1204
      %1206 = vrot.lane.b32.xlu0 %v1099, 4
      %v1207 = vpop.permute.xlu0 %1206
      %1208 = vrot.lane.b32.xlu0 %v1101, 4
      %v1209 = vpop.permute.xlu0 %1208
      %1210 = vrot.lane.b32.xlu0 %v1103, 4
      %v1211 = vpop.permute.xlu0 %1210
      %1212 = vrot.lane.b32.xlu0 %v1105, 4
      %v1213 = vpop.permute.xlu0 %1212
      %1214 = vrot.lane.b32.xlu0 %v1107, 4
      %v1215 = vpop.permute.xlu0 %1214
      %1216 = vrot.lane.b32.xlu0 %v1109, 4
      %v1217 = vpop.permute.xlu0 %1216
      %1218 = vrot.lane.b32.xlu0 %v1111, 4
      %v1219 = vpop.permute.xlu0 %1218
      %1220 = vrot.lane.b32.xlu0 %v1113, 4
      %v1221 = vpop.permute.xlu0 %1220
      %1222 = vrot.lane.b32.xlu0 %v1115, 4
      %v1223 = vpop.permute.xlu0 %1222
      %1224 = vrot.lane.b32.xlu0 %v1117, 4
      %v1225 = vpop.permute.xlu0 %1224
      %1226 = vrot.lane.b32.xlu0 %v1119, 4
      %v1227 = vpop.permute.xlu0 %1226
      %1228 = vrot.lane.b32.xlu0 %v1121, 4
      %v1229 = vpop.permute.xlu0 %1228
      %1230 = vrot.lane.b32.xlu0 %v1123, 4
      %v1231 = vpop.permute.xlu0 %1230
      %1232 = vrot.lane.b32.xlu0 %v1125, 4
      %v1233 = vpop.permute.xlu0 %1232
      %1234 = vrot.lane.b32.xlu0 %v1127, 4
      %v1235 = vpop.permute.xlu0 %1234
      %1236 = vrot.lane.b32.xlu0 %v1129, 4
      %v1237 = vpop.permute.xlu0 %1236
      %1238 = vrot.lane.b32.xlu0 %v1131, 4
      %v1239 = vpop.permute.xlu0 %1238
      %1240 = vrot.lane.b32.xlu0 %v1133, 4
      %v1241 = vpop.permute.xlu0 %1240
      %1242 = vrot.lane.b32.xlu0 %v1135, 4
      %v1243 = vpop.permute.xlu0 %1242
      %1244 = vrot.lane.b32.xlu0 %v1137, 4
      %v1245 = vpop.permute.xlu0 %1244
      %1246 = vrot.lane.b32.xlu0 %v1139, 4
      %v1247 = vpop.permute.xlu0 %1246
      %1248 = vrot.lane.b32.xlu0 %v1141, 4
      %v1249 = vpop.permute.xlu0 %1248
      %1250 = vrot.lane.b32.xlu0 %v1143, 4
      %v1251 = vpop.permute.xlu0 %1250
      %1252 = vrot.lane.b32.xlu0 %v1145, 4
      %v1253 = vpop.permute.xlu0 %1252
      %1254 = vrot.lane.b32.xlu0 %v1147, 4
      %v1255 = vpop.permute.xlu0 %1254
      %1256 = vrot.lane.b32.xlu0 %v1149, 4
      %v1257 = vpop.permute.xlu0 %1256
      %1258 = vrot.lane.b32.xlu0 %v1151, 4
      %v1259 = vpop.permute.xlu0 %1258
      %1260 = vrot.lane.b32.xlu0 %v1153, 4
      %v1261 = vpop.permute.xlu0 %1260
      %1262 = vrot.lane.b32.xlu0 %v1155, 4
      %v1263 = vpop.permute.xlu0 %1262
      %1264 = vrot.lane.b32.xlu0 %v1157, 4
      %v1265 = vpop.permute.xlu0 %1264
      %1266 = vrot.lane.b32.xlu0 %v1159, 4
      %v1267 = vpop.permute.xlu0 %1266
      %1268 = vrot.lane.b32.xlu0 %v1161, 4
      %v1269 = vpop.permute.xlu0 %1268
      %1270 = vrot.lane.b32.xlu0 %v1163, 4
      %v1271 = vpop.permute.xlu0 %1270
      %1272 = vrot.lane.b32.xlu0 %v1165, 4
      %v1273 = vpop.permute.xlu0 %1272
      %1274 = vrot.lane.b32.xlu0 %v1167, 4
      %v1275 = vpop.permute.xlu0 %1274
      %1276 = vrot.lane.b32.xlu0 %v1169, 4
      %v1277 = vpop.permute.xlu0 %1276
      %1278 = vrot.lane.b32.xlu0 %v1171, 4
      %v1279 = vpop.permute.xlu0 %1278
      %1280 = vrot.lane.b32.xlu0 %v1173, 4
      %v1281 = vpop.permute.xlu0 %1280
      %1282 = vrot.lane.b32.xlu0 %v1175, 4
      %v1283 = vpop.permute.xlu0 %1282
      %1284 = vrot.lane.b32.xlu0 %v1177, 4
      %v1285 = vpop.permute.xlu0 %1284
      %1286 = vrot.lane.b32.xlu0 %v1179, 4
      %v1287 = vpop.permute.xlu0 %1286
      %1288 = vrot.lane.b32.xlu0 %v1181, 4
      %v1289 = vpop.permute.xlu0 %1288
      %1290 = vrot.lane.b32.xlu0 %v1183, 4
      %v1291 = vpop.permute.xlu0 %1290
      %1292 = vrot.lane.b32.xlu0 %v1185, 4
      %v1293 = vpop.permute.xlu0 %1292
      %1294 = vrot.lane.b32.xlu0 %v1187, 4
      %v1295 = vpop.permute.xlu0 %1294
      %1296 = vrot.lane.b32.xlu0 %v1189, 4
      %v1297 = vpop.permute.xlu0 %1296
      %1298 = vrot.lane.b32.xlu0 %v1191, 4
      %v1299 = vpop.permute.xlu0 %1298
      %1300 = vrot.lane.b32.xlu0 %v1193, 4
      %v1301 = vpop.permute.xlu0 %1300
      %1302 = vrot.lane.b32.xlu0 %v1195, 4
      %v1303 = vpop.permute.xlu0 %1302
      %1304 = vrot.lane.b32.xlu0 %v1197, 4
      %v1305 = vpop.permute.xlu0 %1304
      %1306 = vrot.lane.b32.xlu0 %v1199, 4
      %v1307 = vpop.permute.xlu0 %1306
      %vm1362 = vcmask 1045504
      %v1363 = vrot.slane %v974, 2
      %v1364 = vrot.slane %v975, 2
      %v1365 = vsel %vm1362, %v1363, %v1364
      %v1366 = vrot.slane %v976, 2
      %v1367 = vsel %vm1362, %v1364, %v1366
      %v1368 = vrot.slane %v977, 2
      %v1369 = vsel %vm1362, %v1366, %v1368
      %v1370 = vrot.slane %v978, 2
      %v1371 = vsel %vm1362, %v1368, %v1370
      %v1372 = vrot.slane %v979, 2
      %v1373 = vsel %vm1362, %v1370, %v1372
      %v1374 = vrot.slane %v980, 2
      %v1375 = vsel %vm1362, %v1372, %v1374
      %v1376 = vrot.slane %v981, 2
      %v1377 = vsel %vm1362, %v1374, %v1376
      %v1378 = vrot.slane %v982, 2
      %v1379 = vsel %vm1362, %v1376, %v1378
      %v1380 = vrot.slane %v983, 2
      %v1381 = vsel %vm1362, %v1378, %v1380
      %v1382 = vrot.slane %v984, 2
      %v1383 = vsel %vm1362, %v1380, %v1382
      %v1384 = vrot.slane %v985, 2
      %v1385 = vsel %vm1362, %v1382, %v1384
      %v1386 = vrot.slane %v986, 2
      %v1387 = vsel %vm1362, %v1384, %v1386
      %v1388 = vrot.slane %v987, 2
      %v1389 = vsel %vm1362, %v1386, %v1388
      %v1390 = vrot.slane %v988, 2
      %v1391 = vsel %vm1362, %v1388, %v1390
      %v1392 = vrot.slane %v989, 2
      %v1393 = vsel %vm1362, %v1390, %v1392
      %v1394 = vrot.slane %v990, 2
      %v1395 = vsel %vm1362, %v1392, %v1394
      %v1396 = vrot.slane %v991, 2
      %v1397 = vsel %vm1362, %v1394, %v1396
      %v1398 = vrot.slane %v992, 2
      %v1399 = vsel %vm1362, %v1396, %v1398
      %v1400 = vrot.slane %v993, 2
      %v1401 = vsel %vm1362, %v1398, %v1400
      %v1402 = vrot.slane %v994, 2
      %v1403 = vsel %vm1362, %v1400, %v1402
      %v1404 = vrot.slane %v995, 2
      %v1405 = vsel %vm1362, %v1402, %v1404
      %v1406 = vrot.slane %v996, 2
      %v1407 = vsel %vm1362, %v1404, %v1406
      %v1408 = vrot.slane %v997, 2
      %v1409 = vsel %vm1362, %v1406, %v1408
      %v1410 = vrot.slane %v998, 2
      %v1411 = vsel %vm1362, %v1408, %v1410
      %v1412 = vrot.slane %v999, 2
      %v1413 = vsel %vm1362, %v1410, %v1412
      %v1414 = vrot.slane %v1000, 2
      %v1415 = vsel %vm1362, %v1412, %v1414
      %v1416 = vrot.slane %v1001, 2
      %v1417 = vsel %vm1362, %v1414, %v1416
      %v1418 = vrot.slane %v1002, 2
      %v1419 = vsel %vm1362, %v1416, %v1418
      %v1420 = vrot.slane %v1003, 2
      %v1421 = vsel %vm1362, %v1418, %v1420
      %v1422 = vrot.slane %v1004, 2
      %v1423 = vsel %vm1362, %v1420, %v1422
      %v1424 = vrot.slane %v1005, 2
      %v1425 = vsel %vm1362, %v1422, %v1424
      %v1426 = vrot.slane %v1006, 2
      %v1427 = vsel %vm1362, %v1424, %v1426
      %v1428 = vrot.slane %v1007, 2
      %v1429 = vsel %vm1362, %v1426, %v1428
      %v1430 = vrot.slane %v1008, 2
      %v1431 = vsel %vm1362, %v1428, %v1430
      %v1432 = vrot.slane %v1009, 2
      %v1433 = vsel %vm1362, %v1430, %v1432
      %v1434 = vrot.slane %v1010, 2
      %v1435 = vsel %vm1362, %v1432, %v1434
      %v1436 = vrot.slane %v1011, 2
      %v1437 = vsel %vm1362, %v1434, %v1436
      %v1438 = vrot.slane %v1012, 2
      %v1439 = vsel %vm1362, %v1436, %v1438
      %v1440 = vrot.slane %v1013, 2
      %v1441 = vsel %vm1362, %v1438, %v1440
      %v1442 = vrot.slane %v1014, 2
      %v1443 = vsel %vm1362, %v1440, %v1442
      %v1444 = vrot.slane %v1015, 2
      %v1445 = vsel %vm1362, %v1442, %v1444
      %v1446 = vrot.slane %v1016, 2
      %v1447 = vsel %vm1362, %v1444, %v1446
      %v1448 = vrot.slane %v1017, 2
      %v1449 = vsel %vm1362, %v1446, %v1448
      %v1450 = vrot.slane %v1018, 2
      %v1451 = vsel %vm1362, %v1448, %v1450
      %v1452 = vrot.slane %v1019, 2
      %v1453 = vsel %vm1362, %v1450, %v1452
      %v1454 = vrot.slane %v1020, 2
      %v1455 = vsel %vm1362, %v1452, %v1454
      %v1456 = vrot.slane %v1021, 2
      %v1457 = vsel %vm1362, %v1454, %v1456
      %v1458 = vrot.slane %v1022, 2
      %v1459 = vsel %vm1362, %v1456, %v1458
      %v1460 = vrot.slane %v1023, 2
      %v1461 = vsel %vm1362, %v1458, %v1460
      %v1462 = vrot.slane %v1024, 2
      %v1463 = vsel %vm1362, %v1460, %v1462
      %v1464 = vrot.slane %v1025, 2
      %v1465 = vsel %vm1362, %v1462, %v1464
      %v1466 = vrot.slane %v1026, 2
      %v1467 = vsel %vm1362, %v1464, %v1466
      %v1468 = vrot.slane %v1027, 2
      %v1469 = vsel %vm1362, %v1466, %v1468
      %v1470 = vrot.slane %v1028, 2
      %v1471 = vsel %vm1362, %v1468, %v1470
      %1472 = vrot.lane.b32.xlu0 %v1365, 8
      %v1473 = vpop.permute.xlu0 %1472
      %1474 = vrot.lane.b32.xlu0 %v1367, 8
      %v1475 = vpop.permute.xlu0 %1474
      %1476 = vrot.lane.b32.xlu0 %v1369, 8
      %v1477 = vpop.permute.xlu0 %1476
      %1478 = vrot.lane.b32.xlu0 %v1371, 8
      %v1479 = vpop.permute.xlu0 %1478
      %1480 = vrot.lane.b32.xlu0 %v1373, 8
      %v1481 = vpop.permute.xlu0 %1480
      %1482 = vrot.lane.b32.xlu0 %v1375, 8
      %v1483 = vpop.permute.xlu0 %1482
      %1484 = vrot.lane.b32.xlu0 %v1377, 8
      %v1485 = vpop.permute.xlu0 %1484
      %1486 = vrot.lane.b32.xlu0 %v1379, 8
      %v1487 = vpop.permute.xlu0 %1486
      %1488 = vrot.lane.b32.xlu0 %v1381, 8
      %v1489 = vpop.permute.xlu0 %1488
      %1490 = vrot.lane.b32.xlu0 %v1383, 8
      %v1491 = vpop.permute.xlu0 %1490
      %1492 = vrot.lane.b32.xlu0 %v1385, 8
      %v1493 = vpop.permute.xlu0 %1492
      %1494 = vrot.lane.b32.xlu0 %v1387, 8
      %v1495 = vpop.permute.xlu0 %1494
      %1496 = vrot.lane.b32.xlu0 %v1389, 8
      %v1497 = vpop.permute.xlu0 %1496
      %1498 = vrot.lane.b32.xlu0 %v1391, 8
      %v1499 = vpop.permute.xlu0 %1498
      %1500 = vrot.lane.b32.xlu0 %v1393, 8
      %v1501 = vpop.permute.xlu0 %1500
      %1502 = vrot.lane.b32.xlu0 %v1395, 8
      %v1503 = vpop.permute.xlu0 %1502
      %1504 = vrot.lane.b32.xlu0 %v1397, 8
      %v1505 = vpop.permute.xlu0 %1504
      %1506 = vrot.lane.b32.xlu0 %v1399, 8
      %v1507 = vpop.permute.xlu0 %1506
      %1508 = vrot.lane.b32.xlu0 %v1401, 8
      %v1509 = vpop.permute.xlu0 %1508
      %1510 = vrot.lane.b32.xlu0 %v1403, 8
      %v1511 = vpop.permute.xlu0 %1510
      %1512 = vrot.lane.b32.xlu0 %v1405, 8
      %v1513 = vpop.permute.xlu0 %1512
      %1514 = vrot.lane.b32.xlu0 %v1407, 8
      %v1515 = vpop.permute.xlu0 %1514
      %1516 = vrot.lane.b32.xlu0 %v1409, 8
      %v1517 = vpop.permute.xlu0 %1516
      %1518 = vrot.lane.b32.xlu0 %v1411, 8
      %v1519 = vpop.permute.xlu0 %1518
      %1520 = vrot.lane.b32.xlu0 %v1413, 8
      %v1521 = vpop.permute.xlu0 %1520
      %1522 = vrot.lane.b32.xlu0 %v1415, 8
      %v1523 = vpop.permute.xlu0 %1522
      %1524 = vrot.lane.b32.xlu0 %v1417, 8
      %v1525 = vpop.permute.xlu0 %1524
      %1526 = vrot.lane.b32.xlu0 %v1419, 8
      %v1527 = vpop.permute.xlu0 %1526
      %1528 = vrot.lane.b32.xlu0 %v1421, 8
      %v1529 = vpop.permute.xlu0 %1528
      %1530 = vrot.lane.b32.xlu0 %v1423, 8
      %v1531 = vpop.permute.xlu0 %1530
      %1532 = vrot.lane.b32.xlu0 %v1425, 8
      %v1533 = vpop.permute.xlu0 %1532
      %1534 = vrot.lane.b32.xlu0 %v1427, 8
      %v1535 = vpop.permute.xlu0 %1534
      %1536 = vrot.lane.b32.xlu0 %v1429, 8
      %v1537 = vpop.permute.xlu0 %1536
      %1538 = vrot.lane.b32.xlu0 %v1431, 8
      %v1539 = vpop.permute.xlu0 %1538
      %1540 = vrot.lane.b32.xlu0 %v1433, 8
      %v1541 = vpop.permute.xlu0 %1540
      %1542 = vrot.lane.b32.xlu0 %v1435, 8
      %v1543 = vpop.permute.xlu0 %1542
      %1544 = vrot.lane.b32.xlu0 %v1437, 8
      %v1545 = vpop.permute.xlu0 %1544
      %1546 = vrot.lane.b32.xlu0 %v1439, 8
      %v1547 = vpop.permute.xlu0 %1546
      %1548 = vrot.lane.b32.xlu0 %v1441, 8
      %v1549 = vpop.permute.xlu0 %1548
      %1550 = vrot.lane.b32.xlu0 %v1443, 8
      %v1551 = vpop.permute.xlu0 %1550
      %1552 = vrot.lane.b32.xlu0 %v1445, 8
      %v1553 = vpop.permute.xlu0 %1552
      %1554 = vrot.lane.b32.xlu0 %v1447, 8
      %v1555 = vpop.permute.xlu0 %1554
      %1556 = vrot.lane.b32.xlu0 %v1449, 8
      %v1557 = vpop.permute.xlu0 %1556
      %1558 = vrot.lane.b32.xlu0 %v1451, 8
      %v1559 = vpop.permute.xlu0 %1558
      %1560 = vrot.lane.b32.xlu0 %v1453, 8
      %v1561 = vpop.permute.xlu0 %1560
      %1562 = vrot.lane.b32.xlu0 %v1455, 8
      %v1563 = vpop.permute.xlu0 %1562
      %1564 = vrot.lane.b32.xlu0 %v1457, 8
      %v1565 = vpop.permute.xlu0 %1564
      %1566 = vrot.lane.b32.xlu0 %v1459, 8
      %v1567 = vpop.permute.xlu0 %1566
      %1568 = vrot.lane.b32.xlu0 %v1461, 8
      %v1569 = vpop.permute.xlu0 %1568
      %1570 = vrot.lane.b32.xlu0 %v1463, 8
      %v1571 = vpop.permute.xlu0 %1570
      %1572 = vrot.lane.b32.xlu0 %v1465, 8
      %v1573 = vpop.permute.xlu0 %1572
      %1574 = vrot.lane.b32.xlu0 %v1467, 8
      %v1575 = vpop.permute.xlu0 %1574
      %1576 = vrot.lane.b32.xlu0 %v1469, 8
      %v1577 = vpop.permute.xlu0 %1576
      %1578 = vrot.lane.b32.xlu0 %v1471, 8
      %v1579 = vpop.permute.xlu0 %1578
      %1636 = vrot.lane.b32.xlu0 %v977, 12
      %v1637 = vpop.permute.xlu0 %1636
      %1638 = vrot.lane.b32.xlu0 %v978, 12
      %v1639 = vpop.permute.xlu0 %1638
      %1640 = vrot.lane.b32.xlu0 %v979, 12
      %v1641 = vpop.permute.xlu0 %1640
      %1642 = vrot.lane.b32.xlu0 %v980, 12
      %v1643 = vpop.permute.xlu0 %1642
      %1644 = vrot.lane.b32.xlu0 %v981, 12
      %v1645 = vpop.permute.xlu0 %1644
      %1646 = vrot.lane.b32.xlu0 %v982, 12
      %v1647 = vpop.permute.xlu0 %1646
      %1648 = vrot.lane.b32.xlu0 %v983, 12
      %v1649 = vpop.permute.xlu0 %1648
      %1650 = vrot.lane.b32.xlu0 %v984, 12
      %v1651 = vpop.permute.xlu0 %1650
      %1652 = vrot.lane.b32.xlu0 %v985, 12
      %v1653 = vpop.permute.xlu0 %1652
      %1654 = vrot.lane.b32.xlu0 %v986, 12
      %v1655 = vpop.permute.xlu0 %1654
      %1656 = vrot.lane.b32.xlu0 %v987, 12
      %v1657 = vpop.permute.xlu0 %1656
      %1658 = vrot.lane.b32.xlu0 %v988, 12
      %v1659 = vpop.permute.xlu0 %1658
      %1660 = vrot.lane.b32.xlu0 %v989, 12
      %v1661 = vpop.permute.xlu0 %1660
      %1662 = vrot.lane.b32.xlu0 %v990, 12
      %v1663 = vpop.permute.xlu0 %1662
      %1664 = vrot.lane.b32.xlu0 %v991, 12
      %v1665 = vpop.permute.xlu0 %1664
      %1666 = vrot.lane.b32.xlu0 %v992, 12
      %v1667 = vpop.permute.xlu0 %1666
      %1668 = vrot.lane.b32.xlu0 %v993, 12
      %v1669 = vpop.permute.xlu0 %1668
      %1670 = vrot.lane.b32.xlu0 %v994, 12
      %v1671 = vpop.permute.xlu0 %1670
      %1672 = vrot.lane.b32.xlu0 %v995, 12
      %v1673 = vpop.permute.xlu0 %1672
      %1674 = vrot.lane.b32.xlu0 %v996, 12
      %v1675 = vpop.permute.xlu0 %1674
      %1676 = vrot.lane.b32.xlu0 %v997, 12
      %v1677 = vpop.permute.xlu0 %1676
      %1678 = vrot.lane.b32.xlu0 %v998, 12
      %v1679 = vpop.permute.xlu0 %1678
      %1680 = vrot.lane.b32.xlu0 %v999, 12
      %v1681 = vpop.permute.xlu0 %1680
      %1682 = vrot.lane.b32.xlu0 %v1000, 12
      %v1683 = vpop.permute.xlu0 %1682
      %1684 = vrot.lane.b32.xlu0 %v1001, 12
      %v1685 = vpop.permute.xlu0 %1684
      %1686 = vrot.lane.b32.xlu0 %v1002, 12
      %v1687 = vpop.permute.xlu0 %1686
      %1688 = vrot.lane.b32.xlu0 %v1003, 12
      %v1689 = vpop.permute.xlu0 %1688
      %1690 = vrot.lane.b32.xlu0 %v1004, 12
      %v1691 = vpop.permute.xlu0 %1690
      %1692 = vrot.lane.b32.xlu0 %v1005, 12
      %v1693 = vpop.permute.xlu0 %1692
      %1694 = vrot.lane.b32.xlu0 %v1006, 12
      %v1695 = vpop.permute.xlu0 %1694
      %1696 = vrot.lane.b32.xlu0 %v1007, 12
      %v1697 = vpop.permute.xlu0 %1696
      %1698 = vrot.lane.b32.xlu0 %v1008, 12
      %v1699 = vpop.permute.xlu0 %1698
      %1700 = vrot.lane.b32.xlu0 %v1009, 12
      %v1701 = vpop.permute.xlu0 %1700
      %1702 = vrot.lane.b32.xlu0 %v1010, 12
      %v1703 = vpop.permute.xlu0 %1702
      %1704 = vrot.lane.b32.xlu0 %v1011, 12
      %v1705 = vpop.permute.xlu0 %1704
      %1706 = vrot.lane.b32.xlu0 %v1012, 12
      %v1707 = vpop.permute.xlu0 %1706
      %1708 = vrot.lane.b32.xlu0 %v1013, 12
      %v1709 = vpop.permute.xlu0 %1708
      %1710 = vrot.lane.b32.xlu0 %v1014, 12
      %v1711 = vpop.permute.xlu0 %1710
      %1712 = vrot.lane.b32.xlu0 %v1015, 12
      %v1713 = vpop.permute.xlu0 %1712
      %1714 = vrot.lane.b32.xlu0 %v1016, 12
      %v1715 = vpop.permute.xlu0 %1714
      %1716 = vrot.lane.b32.xlu0 %v1017, 12
      %v1717 = vpop.permute.xlu0 %1716
      %1718 = vrot.lane.b32.xlu0 %v1018, 12
      %v1719 = vpop.permute.xlu0 %1718
      %1720 = vrot.lane.b32.xlu0 %v1019, 12
      %v1721 = vpop.permute.xlu0 %1720
      %1722 = vrot.lane.b32.xlu0 %v1020, 12
      %v1723 = vpop.permute.xlu0 %1722
      %1724 = vrot.lane.b32.xlu0 %v1021, 12
      %v1725 = vpop.permute.xlu0 %1724
      %1726 = vrot.lane.b32.xlu0 %v1022, 12
      %v1727 = vpop.permute.xlu0 %1726
      %1728 = vrot.lane.b32.xlu0 %v1023, 12
      %v1729 = vpop.permute.xlu0 %1728
      %1730 = vrot.lane.b32.xlu0 %v1024, 12
      %v1731 = vpop.permute.xlu0 %1730
      %1732 = vrot.lane.b32.xlu0 %v1025, 12
      %v1733 = vpop.permute.xlu0 %1732
      %1734 = vrot.lane.b32.xlu0 %v1026, 12
      %v1735 = vpop.permute.xlu0 %1734
      %1736 = vrot.lane.b32.xlu0 %v1027, 12
      %v1737 = vpop.permute.xlu0 %1736
      %1738 = vrot.lane.b32.xlu0 %v1028, 12
      %v1739 = vpop.permute.xlu0 %1738
      %1740 = vrot.lane.b32.xlu0 %v1029, 12
      %v1741 = vpop.permute.xlu0 %1740
      %1742 = vrot.lane.b32.xlu0 %v1030, 12
      %v1743 = vpop.permute.xlu0 %1742
      %v1799 = vrot.slane %v1029, 1
      %v1800 = vsel %vm1090, %v1198, %v1799
      %v1801 = vrot.slane %v1030, 1
      %v1802 = vsel %vm1090, %v1799, %v1801
      %v1803 = vrot.slane %v1031, 1
      %v1804 = vsel %vm1090, %v1801, %v1803
      %1805 = vrot.lane.b32.xlu0 %v1099, 16
      %v1806 = vpop.permute.xlu0 %1805
      %1807 = vrot.lane.b32.xlu0 %v1101, 16
      %v1808 = vpop.permute.xlu0 %1807
      %1809 = vrot.lane.b32.xlu0 %v1103, 16
      %v1810 = vpop.permute.xlu0 %1809
      %1811 = vrot.lane.b32.xlu0 %v1105, 16
      %v1812 = vpop.permute.xlu0 %1811
      %1813 = vrot.lane.b32.xlu0 %v1107, 16
      %v1814 = vpop.permute.xlu0 %1813
      %1815 = vrot.lane.b32.xlu0 %v1109, 16
      %v1816 = vpop.permute.xlu0 %1815
      %1817 = vrot.lane.b32.xlu0 %v1111, 16
      %v1818 = vpop.permute.xlu0 %1817
      %1819 = vrot.lane.b32.xlu0 %v1113, 16
      %v1820 = vpop.permute.xlu0 %1819
      %1821 = vrot.lane.b32.xlu0 %v1115, 16
      %v1822 = vpop.permute.xlu0 %1821
      %1823 = vrot.lane.b32.xlu0 %v1117, 16
      %v1824 = vpop.permute.xlu0 %1823
      %1825 = vrot.lane.b32.xlu0 %v1119, 16
      %v1826 = vpop.permute.xlu0 %1825
      %1827 = vrot.lane.b32.xlu0 %v1121, 16
      %v1828 = vpop.permute.xlu0 %1827
      %1829 = vrot.lane.b32.xlu0 %v1123, 16
      %v1830 = vpop.permute.xlu0 %1829
      %1831 = vrot.lane.b32.xlu0 %v1125, 16
      %v1832 = vpop.permute.xlu0 %1831
      %1833 = vrot.lane.b32.xlu0 %v1127, 16
      %v1834 = vpop.permute.xlu0 %1833
      %1835 = vrot.lane.b32.xlu0 %v1129, 16
      %v1836 = vpop.permute.xlu0 %1835
      %1837 = vrot.lane.b32.xlu0 %v1131, 16
      %v1838 = vpop.permute.xlu0 %1837
      %1839 = vrot.lane.b32.xlu0 %v1133, 16
      %v1840 = vpop.permute.xlu0 %1839
      %1841 = vrot.lane.b32.xlu0 %v1135, 16
      %v1842 = vpop.permute.xlu0 %1841
      %1843 = vrot.lane.b32.xlu0 %v1137, 16
      %v1844 = vpop.permute.xlu0 %1843
      %1845 = vrot.lane.b32.xlu0 %v1139, 16
      %v1846 = vpop.permute.xlu0 %1845
      %1847 = vrot.lane.b32.xlu0 %v1141, 16
      %v1848 = vpop.permute.xlu0 %1847
      %1849 = vrot.lane.b32.xlu0 %v1143, 16
      %v1850 = vpop.permute.xlu0 %1849
      %1851 = vrot.lane.b32.xlu0 %v1145, 16
      %v1852 = vpop.permute.xlu0 %1851
      %1853 = vrot.lane.b32.xlu0 %v1147, 16
      %v1854 = vpop.permute.xlu0 %1853
      %1855 = vrot.lane.b32.xlu0 %v1149, 16
      %v1856 = vpop.permute.xlu0 %1855
      %1857 = vrot.lane.b32.xlu0 %v1151, 16
      %v1858 = vpop.permute.xlu0 %1857
      %1859 = vrot.lane.b32.xlu0 %v1153, 16
      %v1860 = vpop.permute.xlu0 %1859
      %1861 = vrot.lane.b32.xlu0 %v1155, 16
      %v1862 = vpop.permute.xlu0 %1861
      %1863 = vrot.lane.b32.xlu0 %v1157, 16
      %v1864 = vpop.permute.xlu0 %1863
      %1865 = vrot.lane.b32.xlu0 %v1159, 16
      %v1866 = vpop.permute.xlu0 %1865
      %1867 = vrot.lane.b32.xlu0 %v1161, 16
      %v1868 = vpop.permute.xlu0 %1867
      %1869 = vrot.lane.b32.xlu0 %v1163, 16
      %v1870 = vpop.permute.xlu0 %1869
      %1871 = vrot.lane.b32.xlu0 %v1165, 16
      %v1872 = vpop.permute.xlu0 %1871
      %1873 = vrot.lane.b32.xlu0 %v1167, 16
      %v1874 = vpop.permute.xlu0 %1873
      %1875 = vrot.lane.b32.xlu0 %v1169, 16
      %v1876 = vpop.permute.xlu0 %1875
      %1877 = vrot.lane.b32.xlu0 %v1171, 16
      %v1878 = vpop.permute.xlu0 %1877
      %1879 = vrot.lane.b32.xlu0 %v1173, 16
      %v1880 = vpop.permute.xlu0 %1879
      %1881 = vrot.lane.b32.xlu0 %v1175, 16
      %v1882 = vpop.permute.xlu0 %1881
      %1883 = vrot.lane.b32.xlu0 %v1177, 16
      %v1884 = vpop.permute.xlu0 %1883
      %1885 = vrot.lane.b32.xlu0 %v1179, 16
      %v1886 = vpop.permute.xlu0 %1885
      %1887 = vrot.lane.b32.xlu0 %v1181, 16
      %v1888 = vpop.permute.xlu0 %1887
      %1889 = vrot.lane.b32.xlu0 %v1183, 16
      %v1890 = vpop.permute.xlu0 %1889
      %1891 = vrot.lane.b32.xlu0 %v1185, 16
      %v1892 = vpop.permute.xlu0 %1891
      %1893 = vrot.lane.b32.xlu0 %v1187, 16
      %v1894 = vpop.permute.xlu0 %1893
      %1895 = vrot.lane.b32.xlu0 %v1189, 16
      %v1896 = vpop.permute.xlu0 %1895
      %1897 = vrot.lane.b32.xlu0 %v1191, 16
      %v1898 = vpop.permute.xlu0 %1897
      %1899 = vrot.lane.b32.xlu0 %v1193, 16
      %v1900 = vpop.permute.xlu0 %1899
      %1901 = vrot.lane.b32.xlu0 %v1195, 16
      %v1902 = vpop.permute.xlu0 %1901
      %1903 = vrot.lane.b32.xlu0 %v1197, 16
      %v1904 = vpop.permute.xlu0 %1903
      %1905 = vrot.lane.b32.xlu0 %v1199, 16
      %v1906 = vpop.permute.xlu0 %1905
      %1907 = vrot.lane.b32.xlu0 %v1800, 16
      %v1908 = vpop.permute.xlu0 %1907
      %1909 = vrot.lane.b32.xlu0 %v1802, 16
      %v1910 = vpop.permute.xlu0 %1909
      %1911 = vrot.lane.b32.xlu0 %v1804, 16
      %v1912 = vpop.permute.xlu0 %1911
      %v1967 = vrot.slane %v1029, 2
      %v1968 = vsel %vm1362, %v1470, %v1967
      %v1969 = vrot.slane %v1030, 2
      %v1970 = vsel %vm1362, %v1967, %v1969
      %v1971 = vrot.slane %v1031, 2
      %v1972 = vsel %vm1362, %v1969, %v1971
      %1973 = vrot.lane.b32.xlu0 %v1371, 20
      %v1974 = vpop.permute.xlu0 %1973
      %1975 = vrot.lane.b32.xlu0 %v1373, 20
      %v1976 = vpop.permute.xlu0 %1975
      %1977 = vrot.lane.b32.xlu0 %v1375, 20
      %v1978 = vpop.permute.xlu0 %1977
      %1979 = vrot.lane.b32.xlu0 %v1377, 20
      %v1980 = vpop.permute.xlu0 %1979
      %1981 = vrot.lane.b32.xlu0 %v1379, 20
      %v1982 = vpop.permute.xlu0 %1981
      %1983 = vrot.lane.b32.xlu0 %v1381, 20
      %v1984 = vpop.permute.xlu0 %1983
      %1985 = vrot.lane.b32.xlu0 %v1383, 20
      %v1986 = vpop.permute.xlu0 %1985
      %1987 = vrot.lane.b32.xlu0 %v1385, 20
      %v1988 = vpop.permute.xlu0 %1987
      %1989 = vrot.lane.b32.xlu0 %v1387, 20
      %v1990 = vpop.permute.xlu0 %1989
      %1991 = vrot.lane.b32.xlu0 %v1389, 20
      %v1992 = vpop.permute.xlu0 %1991
      %1993 = vrot.lane.b32.xlu0 %v1391, 20
      %v1994 = vpop.permute.xlu0 %1993
      %1995 = vrot.lane.b32.xlu0 %v1393, 20
      %v1996 = vpop.permute.xlu0 %1995
      %1997 = vrot.lane.b32.xlu0 %v1395, 20
      %v1998 = vpop.permute.xlu0 %1997
      %1999 = vrot.lane.b32.xlu0 %v1397, 20
      %v2000 = vpop.permute.xlu0 %1999
      %2001 = vrot.lane.b32.xlu0 %v1399, 20
      %v2002 = vpop.permute.xlu0 %2001
      %2003 = vrot.lane.b32.xlu0 %v1401, 20
      %v2004 = vpop.permute.xlu0 %2003
      %2005 = vrot.lane.b32.xlu0 %v1403, 20
      %v2006 = vpop.permute.xlu0 %2005
      %2007 = vrot.lane.b32.xlu0 %v1405, 20
      %v2008 = vpop.permute.xlu0 %2007
      %2009 = vrot.lane.b32.xlu0 %v1407, 20
      %v2010 = vpop.permute.xlu0 %2009
      %2011 = vrot.lane.b32.xlu0 %v1409, 20
      %v2012 = vpop.permute.xlu0 %2011
      %2013 = vrot.lane.b32.xlu0 %v1411, 20
      %v2014 = vpop.permute.xlu0 %2013
      %2015 = vrot.lane.b32.xlu0 %v1413, 20
      %v2016 = vpop.permute.xlu0 %2015
      %2017 = vrot.lane.b32.xlu0 %v1415, 20
      %v2018 = vpop.permute.xlu0 %2017
      %2019 = vrot.lane.b32.xlu0 %v1417, 20
      %v2020 = vpop.permute.xlu0 %2019
      %2021 = vrot.lane.b32.xlu0 %v1419, 20
      %v2022 = vpop.permute.xlu0 %2021
      %2023 = vrot.lane.b32.xlu0 %v1421, 20
      %v2024 = vpop.permute.xlu0 %2023
      %2025 = vrot.lane.b32.xlu0 %v1423, 20
      %v2026 = vpop.permute.xlu0 %2025
      %2027 = vrot.lane.b32.xlu0 %v1425, 20
      %v2028 = vpop.permute.xlu0 %2027
      %2029 = vrot.lane.b32.xlu0 %v1427, 20
      %v2030 = vpop.permute.xlu0 %2029
      %2031 = vrot.lane.b32.xlu0 %v1429, 20
      %v2032 = vpop.permute.xlu0 %2031
      %2033 = vrot.lane.b32.xlu0 %v1431, 20
      %v2034 = vpop.permute.xlu0 %2033
      %2035 = vrot.lane.b32.xlu0 %v1433, 20
      %v2036 = vpop.permute.xlu0 %2035
      %2037 = vrot.lane.b32.xlu0 %v1435, 20
      %v2038 = vpop.permute.xlu0 %2037
      %2039 = vrot.lane.b32.xlu0 %v1437, 20
      %v2040 = vpop.permute.xlu0 %2039
      %2041 = vrot.lane.b32.xlu0 %v1439, 20
      %v2042 = vpop.permute.xlu0 %2041
      %2043 = vrot.lane.b32.xlu0 %v1441, 20
      %v2044 = vpop.permute.xlu0 %2043
      %2045 = vrot.lane.b32.xlu0 %v1443, 20
      %v2046 = vpop.permute.xlu0 %2045
      %2047 = vrot.lane.b32.xlu0 %v1445, 20
      %v2048 = vpop.permute.xlu0 %2047
      %2049 = vrot.lane.b32.xlu0 %v1447, 20
      %v2050 = vpop.permute.xlu0 %2049
      %2051 = vrot.lane.b32.xlu0 %v1449, 20
      %v2052 = vpop.permute.xlu0 %2051
      %2053 = vrot.lane.b32.xlu0 %v1451, 20
      %v2054 = vpop.permute.xlu0 %2053
      %2055 = vrot.lane.b32.xlu0 %v1453, 20
      %v2056 = vpop.permute.xlu0 %2055
      %2057 = vrot.lane.b32.xlu0 %v1455, 20
      %v2058 = vpop.permute.xlu0 %2057
      %2059 = vrot.lane.b32.xlu0 %v1457, 20
      %v2060 = vpop.permute.xlu0 %2059
      %2061 = vrot.lane.b32.xlu0 %v1459, 20
      %v2062 = vpop.permute.xlu0 %2061
      %2063 = vrot.lane.b32.xlu0 %v1461, 20
      %v2064 = vpop.permute.xlu0 %2063
      %2065 = vrot.lane.b32.xlu0 %v1463, 20
      %v2066 = vpop.permute.xlu0 %2065
      %2067 = vrot.lane.b32.xlu0 %v1465, 20
      %v2068 = vpop.permute.xlu0 %2067
      %2069 = vrot.lane.b32.xlu0 %v1467, 20
      %v2070 = vpop.permute.xlu0 %2069
      %2071 = vrot.lane.b32.xlu0 %v1469, 20
      %v2072 = vpop.permute.xlu0 %2071
      %2073 = vrot.lane.b32.xlu0 %v1471, 20
      %v2074 = vpop.permute.xlu0 %2073
      %2075 = vrot.lane.b32.xlu0 %v1968, 20
      %v2076 = vpop.permute.xlu0 %2075
      %2077 = vrot.lane.b32.xlu0 %v1970, 20
      %v2078 = vpop.permute.xlu0 %2077
      %2079 = vrot.lane.b32.xlu0 %v1972, 20
      %v2080 = vpop.permute.xlu0 %2079
      %2137 = vrot.lane.b32.xlu0 %v980, 24
      %v2138 = vpop.permute.xlu0 %2137
      %2139 = vrot.lane.b32.xlu0 %v981, 24
      %v2140 = vpop.permute.xlu0 %2139
      %2141 = vrot.lane.b32.xlu0 %v982, 24
      %v2142 = vpop.permute.xlu0 %2141
      %2143 = vrot.lane.b32.xlu0 %v983, 24
      %v2144 = vpop.permute.xlu0 %2143
      %2145 = vrot.lane.b32.xlu0 %v984, 24
      %v2146 = vpop.permute.xlu0 %2145
      %2147 = vrot.lane.b32.xlu0 %v985, 24
      %v2148 = vpop.permute.xlu0 %2147
      %2149 = vrot.lane.b32.xlu0 %v986, 24
      %v2150 = vpop.permute.xlu0 %2149
      %2151 = vrot.lane.b32.xlu0 %v987, 24
      %v2152 = vpop.permute.xlu0 %2151
      %2153 = vrot.lane.b32.xlu0 %v988, 24
      %v2154 = vpop.permute.xlu0 %2153
      %2155 = vrot.lane.b32.xlu0 %v989, 24
      %v2156 = vpop.permute.xlu0 %2155
      %2157 = vrot.lane.b32.xlu0 %v990, 24
      %v2158 = vpop.permute.xlu0 %2157
      %2159 = vrot.lane.b32.xlu0 %v991, 24
      %v2160 = vpop.permute.xlu0 %2159
      %2161 = vrot.lane.b32.xlu0 %v992, 24
      %v2162 = vpop.permute.xlu0 %2161
      %2163 = vrot.lane.b32.xlu0 %v993, 24
      %v2164 = vpop.permute.xlu0 %2163
      %2165 = vrot.lane.b32.xlu0 %v994, 24
      %v2166 = vpop.permute.xlu0 %2165
      %2167 = vrot.lane.b32.xlu0 %v995, 24
      %v2168 = vpop.permute.xlu0 %2167
      %2169 = vrot.lane.b32.xlu0 %v996, 24
      %v2170 = vpop.permute.xlu0 %2169
      %2171 = vrot.lane.b32.xlu0 %v997, 24
      %v2172 = vpop.permute.xlu0 %2171
      %2173 = vrot.lane.b32.xlu0 %v998, 24
      %v2174 = vpop.permute.xlu0 %2173
      %2175 = vrot.lane.b32.xlu0 %v999, 24
      %v2176 = vpop.permute.xlu0 %2175
      %2177 = vrot.lane.b32.xlu0 %v1000, 24
      %v2178 = vpop.permute.xlu0 %2177
      %2179 = vrot.lane.b32.xlu0 %v1001, 24
      %v2180 = vpop.permute.xlu0 %2179
      %2181 = vrot.lane.b32.xlu0 %v1002, 24
      %v2182 = vpop.permute.xlu0 %2181
      %2183 = vrot.lane.b32.xlu0 %v1003, 24
      %v2184 = vpop.permute.xlu0 %2183
      %2185 = vrot.lane.b32.xlu0 %v1004, 24
      %v2186 = vpop.permute.xlu0 %2185
      %2187 = vrot.lane.b32.xlu0 %v1005, 24
      %v2188 = vpop.permute.xlu0 %2187
      %2189 = vrot.lane.b32.xlu0 %v1006, 24
      %v2190 = vpop.permute.xlu0 %2189
      %2191 = vrot.lane.b32.xlu0 %v1007, 24
      %v2192 = vpop.permute.xlu0 %2191
      %2193 = vrot.lane.b32.xlu0 %v1008, 24
      %v2194 = vpop.permute.xlu0 %2193
      %2195 = vrot.lane.b32.xlu0 %v1009, 24
      %v2196 = vpop.permute.xlu0 %2195
      %2197 = vrot.lane.b32.xlu0 %v1010, 24
      %v2198 = vpop.permute.xlu0 %2197
      %2199 = vrot.lane.b32.xlu0 %v1011, 24
      %v2200 = vpop.permute.xlu0 %2199
      %2201 = vrot.lane.b32.xlu0 %v1012, 24
      %v2202 = vpop.permute.xlu0 %2201
      %2203 = vrot.lane.b32.xlu0 %v1013, 24
      %v2204 = vpop.permute.xlu0 %2203
      %2205 = vrot.lane.b32.xlu0 %v1014, 24
      %v2206 = vpop.permute.xlu0 %2205
      %2207 = vrot.lane.b32.xlu0 %v1015, 24
      %v2208 = vpop.permute.xlu0 %2207
      %2209 = vrot.lane.b32.xlu0 %v1016, 24
      %v2210 = vpop.permute.xlu0 %2209
      %2211 = vrot.lane.b32.xlu0 %v1017, 24
      %v2212 = vpop.permute.xlu0 %2211
      %2213 = vrot.lane.b32.xlu0 %v1018, 24
      %v2214 = vpop.permute.xlu0 %2213
      %2215 = vrot.lane.b32.xlu0 %v1019, 24
      %v2216 = vpop.permute.xlu0 %2215
      %2217 = vrot.lane.b32.xlu0 %v1020, 24
      %v2218 = vpop.permute.xlu0 %2217
      %2219 = vrot.lane.b32.xlu0 %v1021, 24
      %v2220 = vpop.permute.xlu0 %2219
      %2221 = vrot.lane.b32.xlu0 %v1022, 24
      %v2222 = vpop.permute.xlu0 %2221
      %2223 = vrot.lane.b32.xlu0 %v1023, 24
      %v2224 = vpop.permute.xlu0 %2223
      %2225 = vrot.lane.b32.xlu0 %v1024, 24
      %v2226 = vpop.permute.xlu0 %2225
      %2227 = vrot.lane.b32.xlu0 %v1025, 24
      %v2228 = vpop.permute.xlu0 %2227
      %2229 = vrot.lane.b32.xlu0 %v1026, 24
      %v2230 = vpop.permute.xlu0 %2229
      %2231 = vrot.lane.b32.xlu0 %v1027, 24
      %v2232 = vpop.permute.xlu0 %2231
      %2233 = vrot.lane.b32.xlu0 %v1028, 24
      %v2234 = vpop.permute.xlu0 %2233
      %2235 = vrot.lane.b32.xlu0 %v1029, 24
      %v2236 = vpop.permute.xlu0 %2235
      %2237 = vrot.lane.b32.xlu0 %v1030, 24
      %v2238 = vpop.permute.xlu0 %2237
      %2239 = vrot.lane.b32.xlu0 %v1031, 24
      %v2240 = vpop.permute.xlu0 %2239
      %2241 = vrot.lane.b32.xlu0 %v1032, 24
      %v2242 = vpop.permute.xlu0 %2241
      %2243 = vrot.lane.b32.xlu0 %v1033, 24
      %v2244 = vpop.permute.xlu0 %2243
      %v2300 = vrot.slane %v1032, 1
      %v2301 = vsel %vm1090, %v1803, %v2300
      %v2302 = vrot.slane %v1033, 1
      %v2303 = vsel %vm1090, %v2300, %v2302
      %v2304 = vrot.slane %v1034, 1
      %v2305 = vsel %vm1090, %v2302, %v2304
      %2306 = vrot.lane.b32.xlu0 %v1105, 28
      %v2307 = vpop.permute.xlu0 %2306
      %2308 = vrot.lane.b32.xlu0 %v1107, 28
      %v2309 = vpop.permute.xlu0 %2308
      %2310 = vrot.lane.b32.xlu0 %v1109, 28
      %v2311 = vpop.permute.xlu0 %2310
      %2312 = vrot.lane.b32.xlu0 %v1111, 28
      %v2313 = vpop.permute.xlu0 %2312
      %2314 = vrot.lane.b32.xlu0 %v1113, 28
      %v2315 = vpop.permute.xlu0 %2314
      %2316 = vrot.lane.b32.xlu0 %v1115, 28
      %v2317 = vpop.permute.xlu0 %2316
      %2318 = vrot.lane.b32.xlu0 %v1117, 28
      %v2319 = vpop.permute.xlu0 %2318
      %2320 = vrot.lane.b32.xlu0 %v1119, 28
      %v2321 = vpop.permute.xlu0 %2320
      %2322 = vrot.lane.b32.xlu0 %v1121, 28
      %v2323 = vpop.permute.xlu0 %2322
      %2324 = vrot.lane.b32.xlu0 %v1123, 28
      %v2325 = vpop.permute.xlu0 %2324
      %2326 = vrot.lane.b32.xlu0 %v1125, 28
      %v2327 = vpop.permute.xlu0 %2326
      %2328 = vrot.lane.b32.xlu0 %v1127, 28
      %v2329 = vpop.permute.xlu0 %2328
      %2330 = vrot.lane.b32.xlu0 %v1129, 28
      %v2331 = vpop.permute.xlu0 %2330
      %2332 = vrot.lane.b32.xlu0 %v1131, 28
      %v2333 = vpop.permute.xlu0 %2332
      %2334 = vrot.lane.b32.xlu0 %v1133, 28
      %v2335 = vpop.permute.xlu0 %2334
      %2336 = vrot.lane.b32.xlu0 %v1135, 28
      %v2337 = vpop.permute.xlu0 %2336
      %2338 = vrot.lane.b32.xlu0 %v1137, 28
      %v2339 = vpop.permute.xlu0 %2338
      %2340 = vrot.lane.b32.xlu0 %v1139, 28
      %v2341 = vpop.permute.xlu0 %2340
      %2342 = vrot.lane.b32.xlu0 %v1141, 28
      %v2343 = vpop.permute.xlu0 %2342
      %2344 = vrot.lane.b32.xlu0 %v1143, 28
      %v2345 = vpop.permute.xlu0 %2344
      %2346 = vrot.lane.b32.xlu0 %v1145, 28
      %v2347 = vpop.permute.xlu0 %2346
      %2348 = vrot.lane.b32.xlu0 %v1147, 28
      %v2349 = vpop.permute.xlu0 %2348
      %2350 = vrot.lane.b32.xlu0 %v1149, 28
      %v2351 = vpop.permute.xlu0 %2350
      %2352 = vrot.lane.b32.xlu0 %v1151, 28
      %v2353 = vpop.permute.xlu0 %2352
      %2354 = vrot.lane.b32.xlu0 %v1153, 28
      %v2355 = vpop.permute.xlu0 %2354
      %2356 = vrot.lane.b32.xlu0 %v1155, 28
      %v2357 = vpop.permute.xlu0 %2356
      %2358 = vrot.lane.b32.xlu0 %v1157, 28
      %v2359 = vpop.permute.xlu0 %2358
      %2360 = vrot.lane.b32.xlu0 %v1159, 28
      %v2361 = vpop.permute.xlu0 %2360
      %2362 = vrot.lane.b32.xlu0 %v1161, 28
      %v2363 = vpop.permute.xlu0 %2362
      %2364 = vrot.lane.b32.xlu0 %v1163, 28
      %v2365 = vpop.permute.xlu0 %2364
      %2366 = vrot.lane.b32.xlu0 %v1165, 28
      %v2367 = vpop.permute.xlu0 %2366
      %2368 = vrot.lane.b32.xlu0 %v1167, 28
      %v2369 = vpop.permute.xlu0 %2368
      %2370 = vrot.lane.b32.xlu0 %v1169, 28
      %v2371 = vpop.permute.xlu0 %2370
      %2372 = vrot.lane.b32.xlu0 %v1171, 28
      %v2373 = vpop.permute.xlu0 %2372
      %2374 = vrot.lane.b32.xlu0 %v1173, 28
      %v2375 = vpop.permute.xlu0 %2374
      %2376 = vrot.lane.b32.xlu0 %v1175, 28
      %v2377 = vpop.permute.xlu0 %2376
      %2378 = vrot.lane.b32.xlu0 %v1177, 28
      %v2379 = vpop.permute.xlu0 %2378
      %2380 = vrot.lane.b32.xlu0 %v1179, 28
      %v2381 = vpop.permute.xlu0 %2380
      %2382 = vrot.lane.b32.xlu0 %v1181, 28
      %v2383 = vpop.permute.xlu0 %2382
      %2384 = vrot.lane.b32.xlu0 %v1183, 28
      %v2385 = vpop.permute.xlu0 %2384
      %2386 = vrot.lane.b32.xlu0 %v1185, 28
      %v2387 = vpop.permute.xlu0 %2386
      %2388 = vrot.lane.b32.xlu0 %v1187, 28
      %v2389 = vpop.permute.xlu0 %2388
      %2390 = vrot.lane.b32.xlu0 %v1189, 28
      %v2391 = vpop.permute.xlu0 %2390
      %2392 = vrot.lane.b32.xlu0 %v1191, 28
      %v2393 = vpop.permute.xlu0 %2392
      %2394 = vrot.lane.b32.xlu0 %v1193, 28
      %v2395 = vpop.permute.xlu0 %2394
      %2396 = vrot.lane.b32.xlu0 %v1195, 28
      %v2397 = vpop.permute.xlu0 %2396
      %2398 = vrot.lane.b32.xlu0 %v1197, 28
      %v2399 = vpop.permute.xlu0 %2398
      %2400 = vrot.lane.b32.xlu0 %v1199, 28
      %v2401 = vpop.permute.xlu0 %2400
      %2402 = vrot.lane.b32.xlu0 %v1800, 28
      %v2403 = vpop.permute.xlu0 %2402
      %2404 = vrot.lane.b32.xlu0 %v1802, 28
      %v2405 = vpop.permute.xlu0 %2404
      %2406 = vrot.lane.b32.xlu0 %v1804, 28
      %v2407 = vpop.permute.xlu0 %2406
      %2408 = vrot.lane.b32.xlu0 %v2301, 28
      %v2409 = vpop.permute.xlu0 %2408
      %2410 = vrot.lane.b32.xlu0 %v2303, 28
      %v2411 = vpop.permute.xlu0 %2410
      %2412 = vrot.lane.b32.xlu0 %v2305, 28
      %v2413 = vpop.permute.xlu0 %2412
      %v2468 = vrot.slane %v1032, 2
      %v2469 = vsel %vm1362, %v1971, %v2468
      %v2470 = vrot.slane %v1033, 2
      %v2471 = vsel %vm1362, %v2468, %v2470
      %v2472 = vrot.slane %v1034, 2
      %v2473 = vsel %vm1362, %v2470, %v2472
      %2474 = vrot.lane.b32.xlu0 %v1377, 32
      %v2475 = vpop.permute.xlu0 %2474
      %2476 = vrot.lane.b32.xlu0 %v1379, 32
      %v2477 = vpop.permute.xlu0 %2476
      %2478 = vrot.lane.b32.xlu0 %v1381, 32
      %v2479 = vpop.permute.xlu0 %2478
      %2480 = vrot.lane.b32.xlu0 %v1383, 32
      %v2481 = vpop.permute.xlu0 %2480
      %2482 = vrot.lane.b32.xlu0 %v1385, 32
      %v2483 = vpop.permute.xlu0 %2482
      %2484 = vrot.lane.b32.xlu0 %v1387, 32
      %v2485 = vpop.permute.xlu0 %2484
      %2486 = vrot.lane.b32.xlu0 %v1389, 32
      %v2487 = vpop.permute.xlu0 %2486
      %2488 = vrot.lane.b32.xlu0 %v1391, 32
      %v2489 = vpop.permute.xlu0 %2488
      %2490 = vrot.lane.b32.xlu0 %v1393, 32
      %v2491 = vpop.permute.xlu0 %2490
      %2492 = vrot.lane.b32.xlu0 %v1395, 32
      %v2493 = vpop.permute.xlu0 %2492
      %2494 = vrot.lane.b32.xlu0 %v1397, 32
      %v2495 = vpop.permute.xlu0 %2494
      %2496 = vrot.lane.b32.xlu0 %v1399, 32
      %v2497 = vpop.permute.xlu0 %2496
      %2498 = vrot.lane.b32.xlu0 %v1401, 32
      %v2499 = vpop.permute.xlu0 %2498
      %2500 = vrot.lane.b32.xlu0 %v1403, 32
      %v2501 = vpop.permute.xlu0 %2500
      %2502 = vrot.lane.b32.xlu0 %v1405, 32
      %v2503 = vpop.permute.xlu0 %2502
      %2504 = vrot.lane.b32.xlu0 %v1407, 32
      %v2505 = vpop.permute.xlu0 %2504
      %2506 = vrot.lane.b32.xlu0 %v1409, 32
      %v2507 = vpop.permute.xlu0 %2506
      %2508 = vrot.lane.b32.xlu0 %v1411, 32
      %v2509 = vpop.permute.xlu0 %2508
      %2510 = vrot.lane.b32.xlu0 %v1413, 32
      %v2511 = vpop.permute.xlu0 %2510
      %2512 = vrot.lane.b32.xlu0 %v1415, 32
      %v2513 = vpop.permute.xlu0 %2512
      %2514 = vrot.lane.b32.xlu0 %v1417, 32
      %v2515 = vpop.permute.xlu0 %2514
      %2516 = vrot.lane.b32.xlu0 %v1419, 32
      %v2517 = vpop.permute.xlu0 %2516
      %2518 = vrot.lane.b32.xlu0 %v1421, 32
      %v2519 = vpop.permute.xlu0 %2518
      %2520 = vrot.lane.b32.xlu0 %v1423, 32
      %v2521 = vpop.permute.xlu0 %2520
      %2522 = vrot.lane.b32.xlu0 %v1425, 32
      %v2523 = vpop.permute.xlu0 %2522
      %2524 = vrot.lane.b32.xlu0 %v1427, 32
      %v2525 = vpop.permute.xlu0 %2524
      %2526 = vrot.lane.b32.xlu0 %v1429, 32
      %v2527 = vpop.permute.xlu0 %2526
      %2528 = vrot.lane.b32.xlu0 %v1431, 32
      %v2529 = vpop.permute.xlu0 %2528
      %2530 = vrot.lane.b32.xlu0 %v1433, 32
      %v2531 = vpop.permute.xlu0 %2530
      %2532 = vrot.lane.b32.xlu0 %v1435, 32
      %v2533 = vpop.permute.xlu0 %2532
      %2534 = vrot.lane.b32.xlu0 %v1437, 32
      %v2535 = vpop.permute.xlu0 %2534
      %2536 = vrot.lane.b32.xlu0 %v1439, 32
      %v2537 = vpop.permute.xlu0 %2536
      %2538 = vrot.lane.b32.xlu0 %v1441, 32
      %v2539 = vpop.permute.xlu0 %2538
      %2540 = vrot.lane.b32.xlu0 %v1443, 32
      %v2541 = vpop.permute.xlu0 %2540
      %2542 = vrot.lane.b32.xlu0 %v1445, 32
      %v2543 = vpop.permute.xlu0 %2542
      %2544 = vrot.lane.b32.xlu0 %v1447, 32
      %v2545 = vpop.permute.xlu0 %2544
      %2546 = vrot.lane.b32.xlu0 %v1449, 32
      %v2547 = vpop.permute.xlu0 %2546
      %2548 = vrot.lane.b32.xlu0 %v1451, 32
      %v2549 = vpop.permute.xlu0 %2548
      %2550 = vrot.lane.b32.xlu0 %v1453, 32
      %v2551 = vpop.permute.xlu0 %2550
      %2552 = vrot.lane.b32.xlu0 %v1455, 32
      %v2553 = vpop.permute.xlu0 %2552
      %2554 = vrot.lane.b32.xlu0 %v1457, 32
      %v2555 = vpop.permute.xlu0 %2554
      %2556 = vrot.lane.b32.xlu0 %v1459, 32
      %v2557 = vpop.permute.xlu0 %2556
      %2558 = vrot.lane.b32.xlu0 %v1461, 32
      %v2559 = vpop.permute.xlu0 %2558
      %2560 = vrot.lane.b32.xlu0 %v1463, 32
      %v2561 = vpop.permute.xlu0 %2560
      %2562 = vrot.lane.b32.xlu0 %v1465, 32
      %v2563 = vpop.permute.xlu0 %2562
      %2564 = vrot.lane.b32.xlu0 %v1467, 32
      %v2565 = vpop.permute.xlu0 %2564
      %2566 = vrot.lane.b32.xlu0 %v1469, 32
      %v2567 = vpop.permute.xlu0 %2566
      %2568 = vrot.lane.b32.xlu0 %v1471, 32
      %v2569 = vpop.permute.xlu0 %2568
      %2570 = vrot.lane.b32.xlu0 %v1968, 32
      %v2571 = vpop.permute.xlu0 %2570
      %2572 = vrot.lane.b32.xlu0 %v1970, 32
      %v2573 = vpop.permute.xlu0 %2572
      %2574 = vrot.lane.b32.xlu0 %v1972, 32
      %v2575 = vpop.permute.xlu0 %2574
      %2576 = vrot.lane.b32.xlu0 %v2469, 32
      %v2577 = vpop.permute.xlu0 %2576
      %2578 = vrot.lane.b32.xlu0 %v2471, 32
      %v2579 = vpop.permute.xlu0 %2578
      %2580 = vrot.lane.b32.xlu0 %v2473, 32
      %v2581 = vpop.permute.xlu0 %2580
      %vm2636 = vcmask 31744
      %v2637 = vsel %vm2636, %v974, %v1201
      %v2638 = vsel %vm2636, %v975, %v1203
      %v2639 = vsel %vm2636, %v976, %v1205
      %v2640 = vsel %vm2636, %v977, %v1207
      %v2641 = vsel %vm2636, %v978, %v1209
      %v2642 = vsel %vm2636, %v979, %v1211
      %v2643 = vsel %vm2636, %v980, %v1213
      %v2644 = vsel %vm2636, %v981, %v1215
      %v2645 = vsel %vm2636, %v982, %v1217
      %v2646 = vsel %vm2636, %v983, %v1219
      %v2647 = vsel %vm2636, %v984, %v1221
      %v2648 = vsel %vm2636, %v985, %v1223
      %v2649 = vsel %vm2636, %v986, %v1225
      %v2650 = vsel %vm2636, %v987, %v1227
      %v2651 = vsel %vm2636, %v988, %v1229
      %v2652 = vsel %vm2636, %v989, %v1231
      %v2653 = vsel %vm2636, %v990, %v1233
      %v2654 = vsel %vm2636, %v991, %v1235
      %v2655 = vsel %vm2636, %v992, %v1237
      %v2656 = vsel %vm2636, %v993, %v1239
      %v2657 = vsel %vm2636, %v994, %v1241
      %v2658 = vsel %vm2636, %v995, %v1243
      %v2659 = vsel %vm2636, %v996, %v1245
      %v2660 = vsel %vm2636, %v997, %v1247
      %v2661 = vsel %vm2636, %v998, %v1249
      %v2662 = vsel %vm2636, %v999, %v1251
      %v2663 = vsel %vm2636, %v1000, %v1253
      %v2664 = vsel %vm2636, %v1001, %v1255
      %v2665 = vsel %vm2636, %v1002, %v1257
      %v2666 = vsel %vm2636, %v1003, %v1259
      %v2667 = vsel %vm2636, %v1004, %v1261
      %v2668 = vsel %vm2636, %v1005, %v1263
      %v2669 = vsel %vm2636, %v1006, %v1265
      %v2670 = vsel %vm2636, %v1007, %v1267
      %v2671 = vsel %vm2636, %v1008, %v1269
      %v2672 = vsel %vm2636, %v1009, %v1271
      %v2673 = vsel %vm2636, %v1010, %v1273
      %v2674 = vsel %vm2636, %v1011, %v1275
      %v2675 = vsel %vm2636, %v1012, %v1277
      %v2676 = vsel %vm2636, %v1013, %v1279
      %v2677 = vsel %vm2636, %v1014, %v1281
      %v2678 = vsel %vm2636, %v1015, %v1283
      %v2679 = vsel %vm2636, %v1016, %v1285
      %v2680 = vsel %vm2636, %v1017, %v1287
      %v2681 = vsel %vm2636, %v1018, %v1289
      %v2682 = vsel %vm2636, %v1019, %v1291
      %v2683 = vsel %vm2636, %v1020, %v1293
      %v2684 = vsel %vm2636, %v1021, %v1295
      %v2685 = vsel %vm2636, %v1022, %v1297
      %v2686 = vsel %vm2636, %v1023, %v1299
      %v2687 = vsel %vm2636, %v1024, %v1301
      %v2688 = vsel %vm2636, %v1025, %v1303
      %v2689 = vsel %vm2636, %v1026, %v1305
      %v2690 = vsel %vm2636, %v1027, %v1307
      %vm2691 = vcmask 64512
      %v2692 = vsel %vm2691, %v2637, %v1473
      %v2693 = vsel %vm2691, %v2638, %v1475
      %v2694 = vsel %vm2691, %v2639, %v1477
      %v2695 = vsel %vm2691, %v2640, %v1479
      %v2696 = vsel %vm2691, %v2641, %v1481
      %v2697 = vsel %vm2691, %v2642, %v1483
      %v2698 = vsel %vm2691, %v2643, %v1485
      %v2699 = vsel %vm2691, %v2644, %v1487
      %v2700 = vsel %vm2691, %v2645, %v1489
      %v2701 = vsel %vm2691, %v2646, %v1491
      %v2702 = vsel %vm2691, %v2647, %v1493
      %v2703 = vsel %vm2691, %v2648, %v1495
      %v2704 = vsel %vm2691, %v2649, %v1497
      %v2705 = vsel %vm2691, %v2650, %v1499
      %v2706 = vsel %vm2691, %v2651, %v1501
      %v2707 = vsel %vm2691, %v2652, %v1503
      %v2708 = vsel %vm2691, %v2653, %v1505
      %v2709 = vsel %vm2691, %v2654, %v1507
      %v2710 = vsel %vm2691, %v2655, %v1509
      %v2711 = vsel %vm2691, %v2656, %v1511
      %v2712 = vsel %vm2691, %v2657, %v1513
      %v2713 = vsel %vm2691, %v2658, %v1515
      %v2714 = vsel %vm2691, %v2659, %v1517
      %v2715 = vsel %vm2691, %v2660, %v1519
      %v2716 = vsel %vm2691, %v2661, %v1521
      %v2717 = vsel %vm2691, %v2662, %v1523
      %v2718 = vsel %vm2691, %v2663, %v1525
      %v2719 = vsel %vm2691, %v2664, %v1527
      %v2720 = vsel %vm2691, %v2665, %v1529
      %v2721 = vsel %vm2691, %v2666, %v1531
      %v2722 = vsel %vm2691, %v2667, %v1533
      %v2723 = vsel %vm2691, %v2668, %v1535
      %v2724 = vsel %vm2691, %v2669, %v1537
      %v2725 = vsel %vm2691, %v2670, %v1539
      %v2726 = vsel %vm2691, %v2671, %v1541
      %v2727 = vsel %vm2691, %v2672, %v1543
      %v2728 = vsel %vm2691, %v2673, %v1545
      %v2729 = vsel %vm2691, %v2674, %v1547
      %v2730 = vsel %vm2691, %v2675, %v1549
      %v2731 = vsel %vm2691, %v2676, %v1551
      %v2732 = vsel %vm2691, %v2677, %v1553
      %v2733 = vsel %vm2691, %v2678, %v1555
      %v2734 = vsel %vm2691, %v2679, %v1557
      %v2735 = vsel %vm2691, %v2680, %v1559
      %v2736 = vsel %vm2691, %v2681, %v1561
      %v2737 = vsel %vm2691, %v2682, %v1563
      %v2738 = vsel %vm2691, %v2683, %v1565
      %v2739 = vsel %vm2691, %v2684, %v1567
      %v2740 = vsel %vm2691, %v2685, %v1569
      %v2741 = vsel %vm2691, %v2686, %v1571
      %v2742 = vsel %vm2691, %v2687, %v1573
      %v2743 = vsel %vm2691, %v2688, %v1575
      %v2744 = vsel %vm2691, %v2689, %v1577
      %v2745 = vsel %vm2691, %v2690, %v1579
      %vm2746 = vcmask 97280
      %v2747 = vsel %vm2746, %v2692, %v1637
      %v2748 = vsel %vm2746, %v2693, %v1639
      %v2749 = vsel %vm2746, %v2694, %v1641
      %v2750 = vsel %vm2746, %v2695, %v1643
      %v2751 = vsel %vm2746, %v2696, %v1645
      %v2752 = vsel %vm2746, %v2697, %v1647
      %v2753 = vsel %vm2746, %v2698, %v1649
      %v2754 = vsel %vm2746, %v2699, %v1651
      %v2755 = vsel %vm2746, %v2700, %v1653
      %v2756 = vsel %vm2746, %v2701, %v1655
      %v2757 = vsel %vm2746, %v2702, %v1657
      %v2758 = vsel %vm2746, %v2703, %v1659
      %v2759 = vsel %vm2746, %v2704, %v1661
      %v2760 = vsel %vm2746, %v2705, %v1663
      %v2761 = vsel %vm2746, %v2706, %v1665
      %v2762 = vsel %vm2746, %v2707, %v1667
      %v2763 = vsel %vm2746, %v2708, %v1669
      %v2764 = vsel %vm2746, %v2709, %v1671
      %v2765 = vsel %vm2746, %v2710, %v1673
      %v2766 = vsel %vm2746, %v2711, %v1675
      %v2767 = vsel %vm2746, %v2712, %v1677
      %v2768 = vsel %vm2746, %v2713, %v1679
      %v2769 = vsel %vm2746, %v2714, %v1681
      %v2770 = vsel %vm2746, %v2715, %v1683
      %v2771 = vsel %vm2746, %v2716, %v1685
      %v2772 = vsel %vm2746, %v2717, %v1687
      %v2773 = vsel %vm2746, %v2718, %v1689
      %v2774 = vsel %vm2746, %v2719, %v1691
      %v2775 = vsel %vm2746, %v2720, %v1693
      %v2776 = vsel %vm2746, %v2721, %v1695
      %v2777 = vsel %vm2746, %v2722, %v1697
      %v2778 = vsel %vm2746, %v2723, %v1699
      %v2779 = vsel %vm2746, %v2724, %v1701
      %v2780 = vsel %vm2746, %v2725, %v1703
      %v2781 = vsel %vm2746, %v2726, %v1705
      %v2782 = vsel %vm2746, %v2727, %v1707
      %v2783 = vsel %vm2746, %v2728, %v1709
      %v2784 = vsel %vm2746, %v2729, %v1711
      %v2785 = vsel %vm2746, %v2730, %v1713
      %v2786 = vsel %vm2746, %v2731, %v1715
      %v2787 = vsel %vm2746, %v2732, %v1717
      %v2788 = vsel %vm2746, %v2733, %v1719
      %v2789 = vsel %vm2746, %v2734, %v1721
      %v2790 = vsel %vm2746, %v2735, %v1723
      %v2791 = vsel %vm2746, %v2736, %v1725
      %v2792 = vsel %vm2746, %v2737, %v1727
      %v2793 = vsel %vm2746, %v2738, %v1729
      %v2794 = vsel %vm2746, %v2739, %v1731
      %v2795 = vsel %vm2746, %v2740, %v1733
      %v2796 = vsel %vm2746, %v2741, %v1735
      %v2797 = vsel %vm2746, %v2742, %v1737
      %v2798 = vsel %vm2746, %v2743, %v1739
      %v2799 = vsel %vm2746, %v2744, %v1741
      %v2800 = vsel %vm2746, %v2745, %v1743
      %vm2801 = vcmask 130048
      %v2802 = vsel %vm2801, %v2747, %v1806
      %v2803 = vsel %vm2801, %v2748, %v1808
      %v2804 = vsel %vm2801, %v2749, %v1810
      %v2805 = vsel %vm2801, %v2750, %v1812
      %v2806 = vsel %vm2801, %v2751, %v1814
      %v2807 = vsel %vm2801, %v2752, %v1816
      %v2808 = vsel %vm2801, %v2753, %v1818
      %v2809 = vsel %vm2801, %v2754, %v1820
      %v2810 = vsel %vm2801, %v2755, %v1822
      %v2811 = vsel %vm2801, %v2756, %v1824
      %v2812 = vsel %vm2801, %v2757, %v1826
      %v2813 = vsel %vm2801, %v2758, %v1828
      %v2814 = vsel %vm2801, %v2759, %v1830
      %v2815 = vsel %vm2801, %v2760, %v1832
      %v2816 = vsel %vm2801, %v2761, %v1834
      %v2817 = vsel %vm2801, %v2762, %v1836
      %v2818 = vsel %vm2801, %v2763, %v1838
      %v2819 = vsel %vm2801, %v2764, %v1840
      %v2820 = vsel %vm2801, %v2765, %v1842
      %v2821 = vsel %vm2801, %v2766, %v1844
      %v2822 = vsel %vm2801, %v2767, %v1846
      %v2823 = vsel %vm2801, %v2768, %v1848
      %v2824 = vsel %vm2801, %v2769, %v1850
      %v2825 = vsel %vm2801, %v2770, %v1852
      %v2826 = vsel %vm2801, %v2771, %v1854
      %v2827 = vsel %vm2801, %v2772, %v1856
      %v2828 = vsel %vm2801, %v2773, %v1858
      %v2829 = vsel %vm2801, %v2774, %v1860
      %v2830 = vsel %vm2801, %v2775, %v1862
      %v2831 = vsel %vm2801, %v2776, %v1864
      %v2832 = vsel %vm2801, %v2777, %v1866
      %v2833 = vsel %vm2801, %v2778, %v1868
      %v2834 = vsel %vm2801, %v2779, %v1870
      %v2835 = vsel %vm2801, %v2780, %v1872
      %v2836 = vsel %vm2801, %v2781, %v1874
      %v2837 = vsel %vm2801, %v2782, %v1876
      %v2838 = vsel %vm2801, %v2783, %v1878
      %v2839 = vsel %vm2801, %v2784, %v1880
      %v2840 = vsel %vm2801, %v2785, %v1882
      %v2841 = vsel %vm2801, %v2786, %v1884
      %v2842 = vsel %vm2801, %v2787, %v1886
      %v2843 = vsel %vm2801, %v2788, %v1888
      %v2844 = vsel %vm2801, %v2789, %v1890
      %v2845 = vsel %vm2801, %v2790, %v1892
      %v2846 = vsel %vm2801, %v2791, %v1894
      %v2847 = vsel %vm2801, %v2792, %v1896
      %v2848 = vsel %vm2801, %v2793, %v1898
      %v2849 = vsel %vm2801, %v2794, %v1900
      %v2850 = vsel %vm2801, %v2795, %v1902
      %v2851 = vsel %vm2801, %v2796, %v1904
      %v2852 = vsel %vm2801, %v2797, %v1906
      %v2853 = vsel %vm2801, %v2798, %v1908
      %v2854 = vsel %vm2801, %v2799, %v1910
      %v2855 = vsel %vm2801, %v2800, %v1912
      %vm2856 = vcmask 162816
      %v2857 = vsel %vm2856, %v2802, %v1974
      %v2858 = vsel %vm2856, %v2803, %v1976
      %v2859 = vsel %vm2856, %v2804, %v1978
      %v2860 = vsel %vm2856, %v2805, %v1980
      %v2861 = vsel %vm2856, %v2806, %v1982
      %v2862 = vsel %vm2856, %v2807, %v1984
      %v2863 = vsel %vm2856, %v2808, %v1986
      %v2864 = vsel %vm2856, %v2809, %v1988
      %v2865 = vsel %vm2856, %v2810, %v1990
      %v2866 = vsel %vm2856, %v2811, %v1992
      %v2867 = vsel %vm2856, %v2812, %v1994
      %v2868 = vsel %vm2856, %v2813, %v1996
      %v2869 = vsel %vm2856, %v2814, %v1998
      %v2870 = vsel %vm2856, %v2815, %v2000
      %v2871 = vsel %vm2856, %v2816, %v2002
      %v2872 = vsel %vm2856, %v2817, %v2004
      %v2873 = vsel %vm2856, %v2818, %v2006
      %v2874 = vsel %vm2856, %v2819, %v2008
      %v2875 = vsel %vm2856, %v2820, %v2010
      %v2876 = vsel %vm2856, %v2821, %v2012
      %v2877 = vsel %vm2856, %v2822, %v2014
      %v2878 = vsel %vm2856, %v2823, %v2016
      %v2879 = vsel %vm2856, %v2824, %v2018
      %v2880 = vsel %vm2856, %v2825, %v2020
      %v2881 = vsel %vm2856, %v2826, %v2022
      %v2882 = vsel %vm2856, %v2827, %v2024
      %v2883 = vsel %vm2856, %v2828, %v2026
      %v2884 = vsel %vm2856, %v2829, %v2028
      %v2885 = vsel %vm2856, %v2830, %v2030
      %v2886 = vsel %vm2856, %v2831, %v2032
      %v2887 = vsel %vm2856, %v2832, %v2034
      %v2888 = vsel %vm2856, %v2833, %v2036
      %v2889 = vsel %vm2856, %v2834, %v2038
      %v2890 = vsel %vm2856, %v2835, %v2040
      %v2891 = vsel %vm2856, %v2836, %v2042
      %v2892 = vsel %vm2856, %v2837, %v2044
      %v2893 = vsel %vm2856, %v2838, %v2046
      %v2894 = vsel %vm2856, %v2839, %v2048
      %v2895 = vsel %vm2856, %v2840, %v2050
      %v2896 = vsel %vm2856, %v2841, %v2052
      %v2897 = vsel %vm2856, %v2842, %v2054
      %v2898 = vsel %vm2856, %v2843, %v2056
      %v2899 = vsel %vm2856, %v2844, %v2058
      %v2900 = vsel %vm2856, %v2845, %v2060
      %v2901 = vsel %vm2856, %v2846, %v2062
      %v2902 = vsel %vm2856, %v2847, %v2064
      %v2903 = vsel %vm2856, %v2848, %v2066
      %v2904 = vsel %vm2856, %v2849, %v2068
      %v2905 = vsel %vm2856, %v2850, %v2070
      %v2906 = vsel %vm2856, %v2851, %v2072
      %v2907 = vsel %vm2856, %v2852, %v2074
      %v2908 = vsel %vm2856, %v2853, %v2076
      %v2909 = vsel %vm2856, %v2854, %v2078
      %v2910 = vsel %vm2856, %v2855, %v2080
      %vm2911 = vcmask 195584
      %v2912 = vsel %vm2911, %v2857, %v2138
      %v2913 = vsel %vm2911, %v2858, %v2140
      %v2914 = vsel %vm2911, %v2859, %v2142
      %v2915 = vsel %vm2911, %v2860, %v2144
      %v2916 = vsel %vm2911, %v2861, %v2146
      %v2917 = vsel %vm2911, %v2862, %v2148
      %v2918 = vsel %vm2911, %v2863, %v2150
      %v2919 = vsel %vm2911, %v2864, %v2152
      %v2920 = vsel %vm2911, %v2865, %v2154
      %v2921 = vsel %vm2911, %v2866, %v2156
      %v2922 = vsel %vm2911, %v2867, %v2158
      %v2923 = vsel %vm2911, %v2868, %v2160
      %v2924 = vsel %vm2911, %v2869, %v2162
      %v2925 = vsel %vm2911, %v2870, %v2164
      %v2926 = vsel %vm2911, %v2871, %v2166
      %v2927 = vsel %vm2911, %v2872, %v2168
      %v2928 = vsel %vm2911, %v2873, %v2170
      %v2929 = vsel %vm2911, %v2874, %v2172
      %v2930 = vsel %vm2911, %v2875, %v2174
      %v2931 = vsel %vm2911, %v2876, %v2176
      %v2932 = vsel %vm2911, %v2877, %v2178
      %v2933 = vsel %vm2911, %v2878, %v2180
      %v2934 = vsel %vm2911, %v2879, %v2182
      %v2935 = vsel %vm2911, %v2880, %v2184
      %v2936 = vsel %vm2911, %v2881, %v2186
      %v2937 = vsel %vm2911, %v2882, %v2188
      %v2938 = vsel %vm2911, %v2883, %v2190
      %v2939 = vsel %vm2911, %v2884, %v2192
      %v2940 = vsel %vm2911, %v2885, %v2194
      %v2941 = vsel %vm2911, %v2886, %v2196
      %v2942 = vsel %vm2911, %v2887, %v2198
      %v2943 = vsel %vm2911, %v2888, %v2200
      %v2944 = vsel %vm2911, %v2889, %v2202
      %v2945 = vsel %vm2911, %v2890, %v2204
      %v2946 = vsel %vm2911, %v2891, %v2206
      %v2947 = vsel %vm2911, %v2892, %v2208
      %v2948 = vsel %vm2911, %v2893, %v2210
      %v2949 = vsel %vm2911, %v2894, %v2212
      %v2950 = vsel %vm2911, %v2895, %v2214
      %v2951 = vsel %vm2911, %v2896, %v2216
      %v2952 = vsel %vm2911, %v2897, %v2218
      %v2953 = vsel %vm2911, %v2898, %v2220
      %v2954 = vsel %vm2911, %v2899, %v2222
      %v2955 = vsel %vm2911, %v2900, %v2224
      %v2956 = vsel %vm2911, %v2901, %v2226
      %v2957 = vsel %vm2911, %v2902, %v2228
      %v2958 = vsel %vm2911, %v2903, %v2230
      %v2959 = vsel %vm2911, %v2904, %v2232
      %v2960 = vsel %vm2911, %v2905, %v2234
      %v2961 = vsel %vm2911, %v2906, %v2236
      %v2962 = vsel %vm2911, %v2907, %v2238
      %v2963 = vsel %vm2911, %v2908, %v2240
      %v2964 = vsel %vm2911, %v2909, %v2242
      %v2965 = vsel %vm2911, %v2910, %v2244
      %vm2966 = vcmask 228352
      %v2967 = vsel %vm2966, %v2912, %v2307
      %v2968 = vsel %vm2966, %v2913, %v2309
      %v2969 = vsel %vm2966, %v2914, %v2311
      %v2970 = vsel %vm2966, %v2915, %v2313
      %v2971 = vsel %vm2966, %v2916, %v2315
      %v2972 = vsel %vm2966, %v2917, %v2317
      %v2973 = vsel %vm2966, %v2918, %v2319
      %v2974 = vsel %vm2966, %v2919, %v2321
      %v2975 = vsel %vm2966, %v2920, %v2323
      %v2976 = vsel %vm2966, %v2921, %v2325
      %v2977 = vsel %vm2966, %v2922, %v2327
      %v2978 = vsel %vm2966, %v2923, %v2329
      %v2979 = vsel %vm2966, %v2924, %v2331
      %v2980 = vsel %vm2966, %v2925, %v2333
      %v2981 = vsel %vm2966, %v2926, %v2335
      %v2982 = vsel %vm2966, %v2927, %v2337
      %v2983 = vsel %vm2966, %v2928, %v2339
      %v2984 = vsel %vm2966, %v2929, %v2341
      %v2985 = vsel %vm2966, %v2930, %v2343
      %v2986 = vsel %vm2966, %v2931, %v2345
      %v2987 = vsel %vm2966, %v2932, %v2347
      %v2988 = vsel %vm2966, %v2933, %v2349
      %v2989 = vsel %vm2966, %v2934, %v2351
      %v2990 = vsel %vm2966, %v2935, %v2353
      %v2991 = vsel %vm2966, %v2936, %v2355
      %v2992 = vsel %vm2966, %v2937, %v2357
      %v2993 = vsel %vm2966, %v2938, %v2359
      %v2994 = vsel %vm2966, %v2939, %v2361
      %v2995 = vsel %vm2966, %v2940, %v2363
      %v2996 = vsel %vm2966, %v2941, %v2365
      %v2997 = vsel %vm2966, %v2942, %v2367
      %v2998 = vsel %vm2966, %v2943, %v2369
      %v2999 = vsel %vm2966, %v2944, %v2371
      %v3000 = vsel %vm2966, %v2945, %v2373
      %v3001 = vsel %vm2966, %v2946, %v2375
      %v3002 = vsel %vm2966, %v2947, %v2377
      %v3003 = vsel %vm2966, %v2948, %v2379
      %v3004 = vsel %vm2966, %v2949, %v2381
      %v3005 = vsel %vm2966, %v2950, %v2383
      %v3006 = vsel %vm2966, %v2951, %v2385
      %v3007 = vsel %vm2966, %v2952, %v2387
      %v3008 = vsel %vm2966, %v2953, %v2389
      %v3009 = vsel %vm2966, %v2954, %v2391
      %v3010 = vsel %vm2966, %v2955, %v2393
      %v3011 = vsel %vm2966, %v2956, %v2395
      %v3012 = vsel %vm2966, %v2957, %v2397
      %v3013 = vsel %vm2966, %v2958, %v2399
      %v3014 = vsel %vm2966, %v2959, %v2401
      %v3015 = vsel %vm2966, %v2960, %v2403
      %v3016 = vsel %vm2966, %v2961, %v2405
      %v3017 = vsel %vm2966, %v2962, %v2407
      %v3018 = vsel %vm2966, %v2963, %v2409
      %v3019 = vsel %vm2966, %v2964, %v2411
      %v3020 = vsel %vm2966, %v2965, %v2413
      %vm3021 = vcmask 261120
      %v3022 = vsel %vm3021, %v2967, %v2475
      %v3023 = vsel %vm3021, %v2968, %v2477
      %v3024 = vsel %vm3021, %v2969, %v2479
      %v3025 = vsel %vm3021, %v2970, %v2481
      %v3026 = vsel %vm3021, %v2971, %v2483
      %v3027 = vsel %vm3021, %v2972, %v2485
      %v3028 = vsel %vm3021, %v2973, %v2487
      %v3029 = vsel %vm3021, %v2974, %v2489
      %v3030 = vsel %vm3021, %v2975, %v2491
      %v3031 = vsel %vm3021, %v2976, %v2493
      %v3032 = vsel %vm3021, %v2977, %v2495
      %v3033 = vsel %vm3021, %v2978, %v2497
      %v3034 = vsel %vm3021, %v2979, %v2499
      %v3035 = vsel %vm3021, %v2980, %v2501
      %v3036 = vsel %vm3021, %v2981, %v2503
      %v3037 = vsel %vm3021, %v2982, %v2505
      %v3038 = vsel %vm3021, %v2983, %v2507
      %v3039 = vsel %vm3021, %v2984, %v2509
      %v3040 = vsel %vm3021, %v2985, %v2511
      %v3041 = vsel %vm3021, %v2986, %v2513
      %v3042 = vsel %vm3021, %v2987, %v2515
      %v3043 = vsel %vm3021, %v2988, %v2517
      %v3044 = vsel %vm3021, %v2989, %v2519
      %v3045 = vsel %vm3021, %v2990, %v2521
      %v3046 = vsel %vm3021, %v2991, %v2523
      %v3047 = vsel %vm3021, %v2992, %v2525
      %v3048 = vsel %vm3021, %v2993, %v2527
      %v3049 = vsel %vm3021, %v2994, %v2529
      %v3050 = vsel %vm3021, %v2995, %v2531
      %v3051 = vsel %vm3021, %v2996, %v2533
      %v3052 = vsel %vm3021, %v2997, %v2535
      %v3053 = vsel %vm3021, %v2998, %v2537
      %v3054 = vsel %vm3021, %v2999, %v2539
      %v3055 = vsel %vm3021, %v3000, %v2541
      %v3056 = vsel %vm3021, %v3001, %v2543
      %v3057 = vsel %vm3021, %v3002, %v2545
      %v3058 = vsel %vm3021, %v3003, %v2547
      %v3059 = vsel %vm3021, %v3004, %v2549
      %v3060 = vsel %vm3021, %v3005, %v2551
      %v3061 = vsel %vm3021, %v3006, %v2553
      %v3062 = vsel %vm3021, %v3007, %v2555
      %v3063 = vsel %vm3021, %v3008, %v2557
      %v3064 = vsel %vm3021, %v3009, %v2559
      %v3065 = vsel %vm3021, %v3010, %v2561
      %v3066 = vsel %vm3021, %v3011, %v2563
      %v3067 = vsel %vm3021, %v3012, %v2565
      %v3068 = vsel %vm3021, %v3013, %v2567
      %v3069 = vsel %vm3021, %v3014, %v2569
      %v3070 = vsel %vm3021, %v3015, %v2571
      %v3071 = vsel %vm3021, %v3016, %v2573
      %v3072 = vsel %vm3021, %v3017, %v2575
      %v3073 = vsel %vm3021, %v3018, %v2577
      %v3074 = vsel %vm3021, %v3019, %v2579
      %v3075 = vsel %vm3021, %v3020, %v2581
      %v3076 = vld [vmem:[%s4] sm:$0xff]
      %v3077 = vld [vmem:[%s4 + $0x8] sm:$0xff]
      %v3078 = vld [vmem:[%s4 + $0x10] sm:$0xff]
      %v3079 = vld [vmem:[%s4 + $0x18] sm:$0xff]
      %v3080 = vld [vmem:[%s4 + $0x20] sm:$0xf]
      %v3081 = vld [vmem:[%s5] sm:$0x1]
      %v3083 = vlaneseq
      %v3084 = vshrl.u32 %v3083, 7
      %v3085 = vsub.s32 0, %v3084
      %v3086 = vrot.slane %v3081, %v3085
      %vm3088 = vcmask 293888
      %v3090 = vsel %vm3088, %v3022, 0
      %v3093 = vsel %vm3088, %v3023, 0
      %v3096 = vsel %vm3088, %v3024, 0
      %v3099 = vsel %vm3088, %v3025, 0
      %v3102 = vsel %vm3088, %v3026, 0
      %v3105 = vsel %vm3088, %v3027, 0
      %v3108 = vsel %vm3088, %v3028, 0
      %v3111 = vsel %vm3088, %v3029, 0
      %v3114 = vsel %vm3088, %v3030, 0
      %v3117 = vsel %vm3088, %v3031, 0
      %v3120 = vsel %vm3088, %v3032, 0
      %v3123 = vsel %vm3088, %v3033, 0
      %v3126 = vsel %vm3088, %v3034, 0
      %v3129 = vsel %vm3088, %v3035, 0
      %v3132 = vsel %vm3088, %v3036, 0
      %v3135 = vsel %vm3088, %v3037, 0
      %v3138 = vsel %vm3088, %v3038, 0
      %v3141 = vsel %vm3088, %v3039, 0
      %v3144 = vsel %vm3088, %v3040, 0
      %v3147 = vsel %vm3088, %v3041, 0
      %v3150 = vsel %vm3088, %v3042, 0
      %v3153 = vsel %vm3088, %v3043, 0
      %v3156 = vsel %vm3088, %v3044, 0
      %v3159 = vsel %vm3088, %v3045, 0
      %v3162 = vsel %vm3088, %v3046, 0
      %v3165 = vsel %vm3088, %v3047, 0
      %v3168 = vsel %vm3088, %v3048, 0
      %v3171 = vsel %vm3088, %v3049, 0
      %v3174 = vsel %vm3088, %v3050, 0
      %v3177 = vsel %vm3088, %v3051, 0
      %v3180 = vsel %vm3088, %v3052, 0
      %v3183 = vsel %vm3088, %v3053, 0
      %v3186 = vsel %vm3088, %v3054, 0
      %v3189 = vsel %vm3088, %v3055, 0
      %v3192 = vsel %vm3088, %v3056, 0
      %v3195 = vsel %vm3088, %v3057, 0
      %v3198 = vsel %vm3088, %v3058, 0
      %v3201 = vsel %vm3088, %v3059, 0
      %v3204 = vsel %vm3088, %v3060, 0
      %v3207 = vsel %vm3088, %v3061, 0
      %v3210 = vsel %vm3088, %v3062, 0
      %v3213 = vsel %vm3088, %v3063, 0
      %v3216 = vsel %vm3088, %v3064, 0
      %v3219 = vsel %vm3088, %v3065, 0
      %v3222 = vsel %vm3088, %v3066, 0
      %v3225 = vsel %vm3088, %v3067, 0
      %v3228 = vsel %vm3088, %v3068, 0
      %v3231 = vsel %vm3088, %v3069, 0
      %v3234 = vsel %vm3088, %v3070, 0
      %v3237 = vsel %vm3088, %v3071, 0
      %v3240 = vsel %vm3088, %v3072, 0
      %v3243 = vsel %vm3088, %v3073, 0
      %v3246 = vsel %vm3088, %v3074, 0
      %v3249 = vsel %vm3088, %v3075, 0
      %vm3251 = vcmask 1043456
      %v3253 = vsel %vm3251, %v3080, 0
      %3255 = vmatprep.subr.mxu0 0.0
      %3256 = vmatpush1.msra.mxu0 %v3076
      %3257 = vmatprep.subr.mxu0 0.0
      %3258 = vmatpush1.msra.mxu0 %v3077
      %3259 = vmatprep.subr.mxu0 0.0
      %3260 = vmatpush1.msra.mxu0 %v3078
      %3261 = vmatprep.subr.mxu0 0.0
      %3262 = vmatpush1.msra.mxu0 %v3079
      %3263 = vmatprep.subr.mxu0 0.0
      %3264 = vmatpush1.msra.mxu0 %v3253
      %3265 = vmatprep.subr.mxu0 0.0
      %3266 = vmatpush1.msra.mxu0 0.0
      %3267 = vmatprep.subr.mxu0 0.0
      %3268 = vmatpush1.msra.mxu0 0.0
      %3269 = vmatprep.subr.mxu0 0.0
      %3270 = vmatpush1.msra.mxu0 0.0
      %3271 = vmatprep.subr.mxu0 0.0
      %3272 = vmatpush1.msra.mxu0 0.0
      %3273 = vmatprep.subr.mxu0 0.0
      %3274 = vmatpush1.msra.mxu0 0.0
      %3275 = vmatprep.subr.mxu0 0.0
      %3276 = vmatpush1.msra.mxu0 0.0
      %3277 = vmatprep.subr.mxu0 0.0
      %3278 = vmatpush1.msra.mxu0 0.0
      %3279 = vmatprep.subr.mxu0 0.0
      %3280 = vmatpush1.msra.mxu0 0.0
      %3281 = vmatprep.subr.mxu0 0.0
      %3282 = vmatpush1.msra.mxu0 0.0
      %3283 = vmatprep.subr.mxu0 0.0
      %3284 = vmatpush1.msra.mxu0 0.0
      %3285 = vmatprep.subr.mxu0 0.0
      %3286 = vmatpush1.msra.mxu0 0.0
      %3287 = vmatprep.subr.mxu0 0.0
      %3288 = vmatpush1.msra.mxu0 0.0
      %3289 = vmatprep.subr.mxu0 0.0
      %3290 = vmatpush1.msra.mxu0 0.0
      %3291 = vmatprep.subr.mxu0 0.0
      %3292 = vmatpush1.msra.mxu0 0.0
      %3293 = vmatprep.subr.mxu0 0.0
      %3294 = vmatpush1.msra.mxu0 0.0
      %3295 = vmatprep.subr.mxu0 0.0
      %3296 = vmatpush1.msra.mxu0 0.0
      %3297 = vmatprep.subr.mxu0 0.0
      %3298 = vmatpush1.msra.mxu0 0.0
      %3299 = vmatprep.subr.mxu0 0.0
      %3300 = vmatpush1.msra.mxu0 0.0
      %3301 = vmatprep.subr.mxu0 0.0
      %3302 = vmatpush1.msra.mxu0 0.0
      %3303 = vmatprep.subr.mxu0 0.0
      %3304 = vmatpush1.msra.mxu0 0.0
      %3305 = vmatprep.subr.mxu0 0.0
      %3306 = vmatpush1.msra.mxu0 0.0
      %3307 = vmatprep.subr.mxu0 0.0
      %3308 = vmatpush1.msra.mxu0 0.0
      %3309 = vmatprep.subr.mxu0 0.0
      %3310 = vmatpush1.msra.mxu0 0.0
      %3311 = vmatprep.subr.mxu0 0.0
      %3312 = vmatpush1.msra.mxu0 0.0
      %3313 = vmatprep.subr.mxu0 0.0
      %3314 = vmatpush1.msra.mxu0 0.0
      %3315 = vmatprep.subr.mxu0 0.0
      %3316 = vmatpush1.msra.mxu0 0.0
      %3317 = vmatprep.subr.mxu0 0.0
      %3318 = vmatpush1.msra.mxu0 0.0
      %3319 = vmatprep.mubr.f32.mxu0 0.0
      %3320 = vmatmul.mubr.f32.gmra.mrb[0].mxu0 %v3090
      %v3321 = vpop.f32.mrb[0].mxu0
      %v3322 = vadd.f32 %v3086, %v3321
      %v3323 = vpop.f32.mrb[0].mxu0
      %3324 = vmatprep.mubr.f32.mxu0 0.0
      %3325 = vmatmul.mubr.f32.gmra.mrb[0].mxu0 %v3093
      %v3326 = vpop.f32.mrb[0].mxu0
      %v3327 = vadd.f32 %v3086, %v3326
      %v3328 = vpop.f32.mrb[0].mxu0
      %3329 = vmatprep.mubr.f32.mxu0 0.0
      %3330 = vmatmul.mubr.f32.gmra.mrb[0].mxu0 %v3096
      %v3331 = vpop.f32.mrb[0].mxu0
      %v3332 = vadd.f32 %v3086, %v3331
      %v3333 = vpop.f32.mrb[0].mxu0
      %3334 = vmatprep.mubr.f32.mxu0 0.0
      %3335 = vmatmul.mubr.f32.gmra.mrb[0].mxu0 %v3099
      %v3336 = vpop.f32.mrb[0].mxu0
      %v3337 = vadd.f32 %v3086, %v3336
      %v3338 = vpop.f32.mrb[0].mxu0
      %3339 = vmatprep.mubr.f32.mxu0 0.0
      %3340 = vmatmul.mubr.f32.gmra.mrb[0].mxu0 %v3102
      %v3341 = vpop.f32.mrb[0].mxu0
      %v3342 = vadd.f32 %v3086, %v3341
      %v3343 = vpop.f32.mrb[0].mxu0
      %3344 = vmatprep.mubr.f32.mxu0 0.0
      %3345 = vmatmul.mubr.f32.gmra.mrb[0].mxu0 %v3105
      %v3346 = vpop.f32.mrb[0].mxu0
      %v3347 = vadd.f32 %v3086, %v3346
      %v3348 = vpop.f32.mrb[0].mxu0
      %3349 = vmatprep.mubr.f32.mxu0 0.0
      %3350 = vmatmul.mubr.f32.gmra.mrb[0].mxu0 %v3108
      %v3351 = vpop.f32.mrb[0].mxu0
      %v3352 = vadd.f32 %v3086, %v3351
      %v3353 = vpop.f32.mrb[0].mxu0
      %3354 = vmatprep.mubr.f32.mxu0 0.0
      %3355 = vmatmul.mubr.f32.gmra.mrb[0].mxu0 %v3111
      %v3356 = vpop.f32.mrb[0].mxu0
      %v3357 = vadd.f32 %v3086, %v3356
      %v3358 = vpop.f32.mrb[0].mxu0
      %3359 = vmatprep.mubr.f32.mxu0 0.0
      %3360 = vmatmul.mubr.f32.gmra.mrb[0].mxu0 %v3114
      %v3361 = vpop.f32.mrb[0].mxu0
      %v3362 = vadd.f32 %v3086, %v3361
      %v3363 = vpop.f32.mrb[0].mxu0
      %3364 = vmatprep.mubr.f32.mxu0 0.0
      %3365 = vmatmul.mubr.f32.gmra.mrb[0].mxu0 %v3117
      %v3366 = vpop.f32.mrb[0].mxu0
      %v3367 = vadd.f32 %v3086, %v3366
      %v3368 = vpop.f32.mrb[0].mxu0
      %3369 = vmatprep.mubr.f32.mxu0 0.0
      %3370 = vmatmul.mubr.f32.gmra.mrb[0].mxu0 %v3120
      %v3371 = vpop.f32.mrb[0].mxu0
      %v3372 = vadd.f32 %v3086, %v3371
      %v3373 = vpop.f32.mrb[0].mxu0
      %3374 = vmatprep.mubr.f32.mxu0 0.0
      %3375 = vmatmul.mubr.f32.gmra.mrb[0].mxu0 %v3123
      %v3376 = vpop.f32.mrb[0].mxu0
      %v3377 = vadd.f32 %v3086, %v3376
      %v3378 = vpop.f32.mrb[0].mxu0
      %3379 = vmatprep.mubr.f32.mxu0 0.0
      %3380 = vmatmul.mubr.f32.gmra.mrb[0].mxu0 %v3126
      %v3381 = vpop.f32.mrb[0].mxu0
      %v3382 = vadd.f32 %v3086, %v3381
      %v3383 = vpop.f32.mrb[0].mxu0
      %3384 = vmatprep.mubr.f32.mxu0 0.0
      %3385 = vmatmul.mubr.f32.gmra.mrb[0].mxu0 %v3129
      %v3386 = vpop.f32.mrb[0].mxu0
      %v3387 = vadd.f32 %v3086, %v3386
      %v3388 = vpop.f32.mrb[0].mxu0
      %3389 = vmatprep.mubr.f32.mxu0 0.0
      %3390 = vmatmul.mubr.f32.gmra.mrb[0].mxu0 %v3132
      %v3391 = vpop.f32.mrb[0].mxu0
      %v3392 = vadd.f32 %v3086, %v3391
      %v3393 = vpop.f32.mrb[0].mxu0
      %3394 = vmatprep.mubr.f32.mxu0 0.0
      %3395 = vmatmul.mubr.f32.gmra.mrb[0].mxu0 %v3135
      %v3396 = vpop.f32.mrb[0].mxu0
      %v3397 = vadd.f32 %v3086, %v3396
      %v3398 = vpop.f32.mrb[0].mxu0
      %3399 = vmatprep.mubr.f32.mxu0 0.0
      %3400 = vmatmul.mubr.f32.gmra.mrb[0].mxu0 %v3138
      %v3401 = vpop.f32.mrb[0].mxu0
      %v3402 = vadd.f32 %v3086, %v3401
      %v3403 = vpop.f32.mrb[0].mxu0
      %3404 = vmatprep.mubr.f32.mxu0 0.0
      %3405 = vmatmul.mubr.f32.gmra.mrb[0].mxu0 %v3141
      %v3406 = vpop.f32.mrb[0].mxu0
      %v3407 = vadd.f32 %v3086, %v3406
      %v3408 = vpop.f32.mrb[0].mxu0
      %3409 = vmatprep.mubr.f32.mxu0 0.0
      %3410 = vmatmul.mubr.f32.gmra.mrb[0].mxu0 %v3144
      %v3411 = vpop.f32.mrb[0].mxu0
      %v3412 = vadd.f32 %v3086, %v3411
      %v3413 = vpop.f32.mrb[0].mxu0
      %3414 = vmatprep.mubr.f32.mxu0 0.0
      %3415 = vmatmul.mubr.f32.gmra.mrb[0].mxu0 %v3147
      %v3416 = vpop.f32.mrb[0].mxu0
      %v3417 = vadd.f32 %v3086, %v3416
      %v3418 = vpop.f32.mrb[0].mxu0
      %3419 = vmatprep.mubr.f32.mxu0 0.0
      %3420 = vmatmul.mubr.f32.gmra.mrb[0].mxu0 %v3150
      %v3421 = vpop.f32.mrb[0].mxu0
      %v3422 = vadd.f32 %v3086, %v3421
      %v3423 = vpop.f32.mrb[0].mxu0
      %3424 = vmatprep.mubr.f32.mxu0 0.0
      %3425 = vmatmul.mubr.f32.gmra.mrb[0].mxu0 %v3153
      %v3426 = vpop.f32.mrb[0].mxu0
      %v3427 = vadd.f32 %v3086, %v3426
      %v3428 = vpop.f32.mrb[0].mxu0
      %3429 = vmatprep.mubr.f32.mxu0 0.0
      %3430 = vmatmul.mubr.f32.gmra.mrb[0].mxu0 %v3156
      %v3431 = vpop.f32.mrb[0].mxu0
      %v3432 = vadd.f32 %v3086, %v3431
      %v3433 = vpop.f32.mrb[0].mxu0
      %3434 = vmatprep.mubr.f32.mxu0 0.0
      %3435 = vmatmul.mubr.f32.gmra.mrb[0].mxu0 %v3159
      %v3436 = vpop.f32.mrb[0].mxu0
      %v3437 = vadd.f32 %v3086, %v3436
      %v3438 = vpop.f32.mrb[0].mxu0
      %3439 = vmatprep.mubr.f32.mxu0 0.0
      %3440 = vmatmul.mubr.f32.gmra.mrb[0].mxu0 %v3162
      %v3441 = vpop.f32.mrb[0].mxu0
      %v3442 = vadd.f32 %v3086, %v3441
      %v3443 = vpop.f32.mrb[0].mxu0
      %3444 = vmatprep.mubr.f32.mxu0 0.0
      %3445 = vmatmul.mubr.f32.gmra.mrb[0].mxu0 %v3165
      %v3446 = vpop.f32.mrb[0].mxu0
      %v3447 = vadd.f32 %v3086, %v3446
      %v3448 = vpop.f32.mrb[0].mxu0
      %3449 = vmatprep.mubr.f32.mxu0 0.0
      %3450 = vmatmul.mubr.f32.gmra.mrb[0].mxu0 %v3168
      %v3451 = vpop.f32.mrb[0].mxu0
      %v3452 = vadd.f32 %v3086, %v3451
      %v3453 = vpop.f32.mrb[0].mxu0
      %3454 = vmatprep.mubr.f32.mxu0 0.0
      %3455 = vmatmul.mubr.f32.gmra.mrb[0].mxu0 %v3171
      %v3456 = vpop.f32.mrb[0].mxu0
      %v3457 = vadd.f32 %v3086, %v3456
      %v3458 = vpop.f32.mrb[0].mxu0
      %3459 = vmatprep.mubr.f32.mxu0 0.0
      %3460 = vmatmul.mubr.f32.gmra.mrb[0].mxu0 %v3174
      %v3461 = vpop.f32.mrb[0].mxu0
      %v3462 = vadd.f32 %v3086, %v3461
      %v3463 = vpop.f32.mrb[0].mxu0
      %3464 = vmatprep.mubr.f32.mxu0 0.0
      %3465 = vmatmul.mubr.f32.gmra.mrb[0].mxu0 %v3177
      %v3466 = vpop.f32.mrb[0].mxu0
      %v3467 = vadd.f32 %v3086, %v3466
      %v3468 = vpop.f32.mrb[0].mxu0
      %3469 = vmatprep.mubr.f32.mxu0 0.0
      %3470 = vmatmul.mubr.f32.gmra.mrb[0].mxu0 %v3180
      %v3471 = vpop.f32.mrb[0].mxu0
      %v3472 = vadd.f32 %v3086, %v3471
      %v3473 = vpop.f32.mrb[0].mxu0
      %3474 = vmatprep.mubr.f32.mxu0 0.0
      %3475 = vmatmul.mubr.f32.gmra.mrb[0].mxu0 %v3183
      %v3476 = vpop.f32.mrb[0].mxu0
      %v3477 = vadd.f32 %v3086, %v3476
      %v3478 = vpop.f32.mrb[0].mxu0
      %3479 = vmatprep.mubr.f32.mxu0 0.0
      %3480 = vmatmul.mubr.f32.gmra.mrb[0].mxu0 %v3186
      %v3481 = vpop.f32.mrb[0].mxu0
      %v3482 = vadd.f32 %v3086, %v3481
      %v3483 = vpop.f32.mrb[0].mxu0
      %3484 = vmatprep.mubr.f32.mxu0 0.0
      %3485 = vmatmul.mubr.f32.gmra.mrb[0].mxu0 %v3189
      %v3486 = vpop.f32.mrb[0].mxu0
      %v3487 = vadd.f32 %v3086, %v3486
      %v3488 = vpop.f32.mrb[0].mxu0
      %3489 = vmatprep.mubr.f32.mxu0 0.0
      %3490 = vmatmul.mubr.f32.gmra.mrb[0].mxu0 %v3192
      %v3491 = vpop.f32.mrb[0].mxu0
      %v3492 = vadd.f32 %v3086, %v3491
      %v3493 = vpop.f32.mrb[0].mxu0
      %3494 = vmatprep.mubr.f32.mxu0 0.0
      %3495 = vmatmul.mubr.f32.gmra.mrb[0].mxu0 %v3195
      %v3496 = vpop.f32.mrb[0].mxu0
      %v3497 = vadd.f32 %v3086, %v3496
      %v3498 = vpop.f32.mrb[0].mxu0
      %3499 = vmatprep.mubr.f32.mxu0 0.0
      %3500 = vmatmul.mubr.f32.gmra.mrb[0].mxu0 %v3198
      %v3501 = vpop.f32.mrb[0].mxu0
      %v3502 = vadd.f32 %v3086, %v3501
      %v3503 = vpop.f32.mrb[0].mxu0
      %3504 = vmatprep.mubr.f32.mxu0 0.0
      %3505 = vmatmul.mubr.f32.gmra.mrb[0].mxu0 %v3201
      %v3506 = vpop.f32.mrb[0].mxu0
      %v3507 = vadd.f32 %v3086, %v3506
      %v3508 = vpop.f32.mrb[0].mxu0
      %3509 = vmatprep.mubr.f32.mxu0 0.0
      %3510 = vmatmul.mubr.f32.gmra.mrb[0].mxu0 %v3204
      %v3511 = vpop.f32.mrb[0].mxu0
      %v3512 = vadd.f32 %v3086, %v3511
      %v3513 = vpop.f32.mrb[0].mxu0
      %3514 = vmatprep.mubr.f32.mxu0 0.0
      %3515 = vmatmul.mubr.f32.gmra.mrb[0].mxu0 %v3207
      %v3516 = vpop.f32.mrb[0].mxu0
      %v3517 = vadd.f32 %v3086, %v3516
      %v3518 = vpop.f32.mrb[0].mxu0
      %3519 = vmatprep.mubr.f32.mxu0 0.0
      %3520 = vmatmul.mubr.f32.gmra.mrb[0].mxu0 %v3210
      %v3521 = vpop.f32.mrb[0].mxu0
      %v3522 = vadd.f32 %v3086, %v3521
      %v3523 = vpop.f32.mrb[0].mxu0
      %3524 = vmatprep.mubr.f32.mxu0 0.0
      %3525 = vmatmul.mubr.f32.gmra.mrb[0].mxu0 %v3213
      %v3526 = vpop.f32.mrb[0].mxu0
      %v3527 = vadd.f32 %v3086, %v3526
      %v3528 = vpop.f32.mrb[0].mxu0
      %3529 = vmatprep.mubr.f32.mxu0 0.0
      %3530 = vmatmul.mubr.f32.gmra.mrb[0].mxu0 %v3216
      %v3531 = vpop.f32.mrb[0].mxu0
      %v3532 = vadd.f32 %v3086, %v3531
      %v3533 = vpop.f32.mrb[0].mxu0
      %3534 = vmatprep.mubr.f32.mxu0 0.0
      %3535 = vmatmul.mubr.f32.gmra.mrb[0].mxu0 %v3219
      %v3536 = vpop.f32.mrb[0].mxu0
      %v3537 = vadd.f32 %v3086, %v3536
      %v3538 = vpop.f32.mrb[0].mxu0
      %3539 = vmatprep.mubr.f32.mxu0 0.0
      %3540 = vmatmul.mubr.f32.gmra.mrb[0].mxu0 %v3222
      %v3541 = vpop.f32.mrb[0].mxu0
      %v3542 = vadd.f32 %v3086, %v3541
      %v3543 = vpop.f32.mrb[0].mxu0
      %3544 = vmatprep.mubr.f32.mxu0 0.0
      %3545 = vmatmul.mubr.f32.gmra.mrb[0].mxu0 %v3225
      %v3546 = vpop.f32.mrb[0].mxu0
      %v3547 = vadd.f32 %v3086, %v3546
      %v3548 = vpop.f32.mrb[0].mxu0
      %3549 = vmatprep.mubr.f32.mxu0 0.0
      %3550 = vmatmul.mubr.f32.gmra.mrb[0].mxu0 %v3228
      %v3551 = vpop.f32.mrb[0].mxu0
      %v3552 = vadd.f32 %v3086, %v3551
      %v3553 = vpop.f32.mrb[0].mxu0
      %3554 = vmatprep.mubr.f32.mxu0 0.0
      %3555 = vmatmul.mubr.f32.gmra.mrb[0].mxu0 %v3231
      %v3556 = vpop.f32.mrb[0].mxu0
      %v3557 = vadd.f32 %v3086, %v3556
      %v3558 = vpop.f32.mrb[0].mxu0
      %3559 = vmatprep.mubr.f32.mxu0 0.0
      %3560 = vmatmul.mubr.f32.gmra.mrb[0].mxu0 %v3234
      %v3561 = vpop.f32.mrb[0].mxu0
      %v3562 = vadd.f32 %v3086, %v3561
      %v3563 = vpop.f32.mrb[0].mxu0
      %3564 = vmatprep.mubr.f32.mxu0 0.0
      %3565 = vmatmul.mubr.f32.gmra.mrb[0].mxu0 %v3237
      %v3566 = vpop.f32.mrb[0].mxu0
      %v3567 = vadd.f32 %v3086, %v3566
      %v3568 = vpop.f32.mrb[0].mxu0
      %3569 = vmatprep.mubr.f32.mxu0 0.0
      %3570 = vmatmul.mubr.f32.gmra.mrb[0].mxu0 %v3240
      %v3571 = vpop.f32.mrb[0].mxu0
      %v3572 = vadd.f32 %v3086, %v3571
      %v3573 = vpop.f32.mrb[0].mxu0
      %3574 = vmatprep.mubr.f32.mxu0 0.0
      %3575 = vmatmul.mubr.f32.gmra.mrb[0].mxu0 %v3243
      %v3576 = vpop.f32.mrb[0].mxu0
      %v3577 = vadd.f32 %v3086, %v3576
      %v3578 = vpop.f32.mrb[0].mxu0
      %3579 = vmatprep.mubr.f32.mxu0 0.0
      %3580 = vmatmul.mubr.f32.gmra.mrb[0].mxu0 %v3246
      %v3581 = vpop.f32.mrb[0].mxu0
      %v3582 = vadd.f32 %v3086, %v3581
      %v3583 = vpop.f32.mrb[0].mxu0
      %3584 = vmatprep.mubr.f32.mxu0 0.0
      %3585 = vmatmul.mubr.f32.gmra.mrb[0].mxu0 %v3249
      %v3586 = vpop.f32.mrb[0].mxu0
      %v3587 = vadd.f32 %v3086, %v3586
      %v3588 = vpop.f32.mrb[0].mxu0
      %3589 = vdwg.mxu0
      %3590 = vst.msk [vmem:[%s343] sm:$0xff] %vm2636, %v3322
      %3591 = vst.msk [vmem:[%s343 + $0x8] sm:$0xff] %vm2636, %v3327
      %3592 = vst.msk [vmem:[%s343 + $0x10] sm:$0xff] %vm2636, %v3332
      %3593 = vst.msk [vmem:[%s343 + $0x18] sm:$0xff] %vm2636, %v3337
      %3594 = vst.msk [vmem:[%s343 + $0x20] sm:$0xff] %vm2636, %v3342
      %3595 = vst.msk [vmem:[%s343 + $0x28] sm:$0xff] %vm2636, %v3347
      %3596 = vst.msk [vmem:[%s343 + $0x30] sm:$0xff] %vm2636, %v3352
      %3597 = vst.msk [vmem:[%s343 + $0x38] sm:$0xff] %vm2636, %v3357
      %3598 = vst.msk [vmem:[%s343 + $0x40] sm:$0xff] %vm2636, %v3362
      %3599 = vst.msk [vmem:[%s343 + $0x48] sm:$0xff] %vm2636, %v3367
      %3600 = vst.msk [vmem:[%s343 + $0x50] sm:$0xff] %vm2636, %v3372
      %3601 = vst.msk [vmem:[%s343 + $0x58] sm:$0xff] %vm2636, %v3377
      %3602 = vst.msk [vmem:[%s343 + $0x60] sm:$0xff] %vm2636, %v3382
      %3603 = vst.msk [vmem:[%s343 + $0x68] sm:$0xff] %vm2636, %v3387
      %3604 = vst.msk [vmem:[%s343 + $0x70] sm:$0xff] %vm2636, %v3392
      %3605 = vst.msk [vmem:[%s343 + $0x78] sm:$0xff] %vm2636, %v3397
      %3606 = vst.msk [vmem:[%s343 + $0x80] sm:$0xff] %vm2636, %v3402
      %3607 = vst.msk [vmem:[%s343 + $0x88] sm:$0xff] %vm2636, %v3407
      %3608 = vst.msk [vmem:[%s343 + $0x90] sm:$0xff] %vm2636, %v3412
      %3609 = vst.msk [vmem:[%s343 + $0x98] sm:$0xff] %vm2636, %v3417
      %3610 = vst.msk [vmem:[%s343 + $0xa0] sm:$0xff] %vm2636, %v3422
      %3611 = vst.msk [vmem:[%s343 + $0xa8] sm:$0xff] %vm2636, %v3427
      %3612 = vst.msk [vmem:[%s343 + $0xb0] sm:$0xff] %vm2636, %v3432
      %3613 = vst.msk [vmem:[%s343 + $0xb8] sm:$0xff] %vm2636, %v3437
      %3614 = vst.msk [vmem:[%s343 + $0xc0] sm:$0xff] %vm2636, %v3442
      %3615 = vst.msk [vmem:[%s343 + $0xc8] sm:$0xff] %vm2636, %v3447
      %3616 = vst.msk [vmem:[%s343 + $0xd0] sm:$0xff] %vm2636, %v3452
      %3617 = vst.msk [vmem:[%s343 + $0xd8] sm:$0xff] %vm2636, %v3457
      %3618 = vst.msk [vmem:[%s343 + $0xe0] sm:$0xff] %vm2636, %v3462
      %3619 = vst.msk [vmem:[%s343 + $0xe8] sm:$0xff] %vm2636, %v3467
      %3620 = vst.msk [vmem:[%s343 + $0xf0] sm:$0xff] %vm2636, %v3472
      %3621 = vst.msk [vmem:[%s343 + $0xf8] sm:$0xff] %vm2636, %v3477
      %3622 = vst.msk [vmem:[%s343 + $0x100] sm:$0xff] %vm2636, %v3482
      %3623 = vst.msk [vmem:[%s343 + $0x108] sm:$0xff] %vm2636, %v3487
      %3624 = vst.msk [vmem:[%s343 + $0x110] sm:$0xff] %vm2636, %v3492
      %3625 = vst.msk [vmem:[%s343 + $0x118] sm:$0xff] %vm2636, %v3497
      %3626 = vst.msk [vmem:[%s343 + $0x120] sm:$0xff] %vm2636, %v3502
      %3627 = vst.msk [vmem:[%s343 + $0x128] sm:$0xff] %vm2636, %v3507
      %3628 = vst.msk [vmem:[%s343 + $0x130] sm:$0xff] %vm2636, %v3512
      %3629 = vst.msk [vmem:[%s343 + $0x138] sm:$0xff] %vm2636, %v3517
      %3630 = vst.msk [vmem:[%s343 + $0x140] sm:$0xff] %vm2636, %v3522
      %3631 = vst.msk [vmem:[%s343 + $0x148] sm:$0xff] %vm2636, %v3527
      %3632 = vst.msk [vmem:[%s343 + $0x150] sm:$0xff] %vm2636, %v3532
      %3633 = vst.msk [vmem:[%s343 + $0x158] sm:$0xff] %vm2636, %v3537
      %3634 = vst.msk [vmem:[%s343 + $0x160] sm:$0xff] %vm2636, %v3542
      %3635 = vst.msk [vmem:[%s343 + $0x168] sm:$0xff] %vm2636, %v3547
      %3636 = vst.msk [vmem:[%s343 + $0x170] sm:$0xff] %vm2636, %v3552
      %3637 = vst.msk [vmem:[%s343 + $0x178] sm:$0xff] %vm2636, %v3557
      %3638 = vst.msk [vmem:[%s343 + $0x180] sm:$0xff] %vm2636, %v3562
      %3639 = vst.msk [vmem:[%s343 + $0x188] sm:$0xff] %vm2636, %v3567
      %3640 = vst.msk [vmem:[%s343 + $0x190] sm:$0xff] %vm2636, %v3572
      %3641 = vst.msk [vmem:[%s343 + $0x198] sm:$0xff] %vm2636, %v3577
      %3642 = vst.msk [vmem:[%s343 + $0x1a0] sm:$0xff] %vm2636, %v3582
      %3643 = vst.msk [vmem:[%s343 + $0x1a8] sm:$0xff] %vm2636, %v3587
      %v3644 = vld [vmem:[%s6] sm:$0xff]
      %v3645 = vld [vmem:[%s6 + $0x8] sm:$0xff]
      %v3646 = vld [vmem:[%s6 + $0x10] sm:$0xff]
      %v3647 = vld [vmem:[%s6 + $0x18] sm:$0xff]
      %v3648 = vld [vmem:[%s6 + $0x20] sm:$0xff]
      %v3649 = vld [vmem:[%s6 + $0x28] sm:$0xff]
      %v3650 = vld [vmem:[%s6 + $0x30] sm:$0xff]
      %v3651 = vld [vmem:[%s6 + $0x38] sm:$0xff]
      %v3652 = vld [vmem:[%s6 + $0x40] sm:$0xff]
      %v3653 = vld [vmem:[%s6 + $0x48] sm:$0xff]
      %v3654 = vld [vmem:[%s6 + $0x50] sm:$0xff]
      %v3655 = vld [vmem:[%s6 + $0x58] sm:$0xff]
      %v3656 = vld [vmem:[%s6 + $0x60] sm:$0xff]
      %v3657 = vld [vmem:[%s6 + $0x68] sm:$0xff]
      %v3658 = vld [vmem:[%s6 + $0x70] sm:$0xff]
      %v3659 = vld [vmem:[%s6 + $0x78] sm:$0xff]
      %v3660 = vld [vmem:[%s6 + $0x80] sm:$0xff]
      %v3661 = vld [vmem:[%s6 + $0x88] sm:$0xff]
      %v3662 = vld [vmem:[%s6 + $0x90] sm:$0xff]
      %v3663 = vld [vmem:[%s6 + $0x98] sm:$0xff]
      %v3664 = vld [vmem:[%s6 + $0xa0] sm:$0xff]
      %v3665 = vld [vmem:[%s6 + $0xa8] sm:$0xff]
      %v3666 = vld [vmem:[%s6 + $0xb0] sm:$0xff]
      %v3667 = vld [vmem:[%s6 + $0xb8] sm:$0xff]
      %v3668 = vld [vmem:[%s6 + $0xc0] sm:$0xff]
      %v3669 = vld [vmem:[%s6 + $0xc8] sm:$0xff]
      %v3670 = vld [vmem:[%s6 + $0xd0] sm:$0xff]
      %v3671 = vld [vmem:[%s6 + $0xd8] sm:$0xff]
      %v3672 = vld [vmem:[%s6 + $0xe0] sm:$0xff]
      %v3673 = vld [vmem:[%s6 + $0xe8] sm:$0xff]
      %v3674 = vld [vmem:[%s6 + $0xf0] sm:$0xff]
      %v3675 = vld [vmem:[%s6 + $0xf8] sm:$0xff]
      %v3676 = vld [vmem:[%s6 + $0x100] sm:$0xff]
      %v3677 = vld [vmem:[%s6 + $0x108] sm:$0xff]
      %v3678 = vld [vmem:[%s6 + $0x110] sm:$0xff]
      %v3679 = vld [vmem:[%s6 + $0x118] sm:$0xff]
      %v3680 = vld [vmem:[%s6 + $0x120] sm:$0xff]
      %v3681 = vld [vmem:[%s6 + $0x128] sm:$0xff]
      %v3682 = vld [vmem:[%s6 + $0x130] sm:$0xff]
      %v3683 = vld [vmem:[%s6 + $0x138] sm:$0xff]
      %v3684 = vld [vmem:[%s6 + $0x140] sm:$0xff]
      %v3685 = vld [vmem:[%s6 + $0x148] sm:$0xff]
      %v3686 = vld [vmem:[%s6 + $0x150] sm:$0xff]
      %v3687 = vld [vmem:[%s6 + $0x158] sm:$0xff]
      %v3688 = vld [vmem:[%s6 + $0x160] sm:$0xff]
      %v3689 = vld [vmem:[%s6 + $0x168] sm:$0xff]
      %v3690 = vld [vmem:[%s6 + $0x170] sm:$0xff]
      %v3691 = vld [vmem:[%s6 + $0x178] sm:$0xff]
      %v3692 = vld [vmem:[%s6 + $0x180] sm:$0xff]
      %v3693 = vld [vmem:[%s6 + $0x188] sm:$0xff]
      %v3694 = vld [vmem:[%s6 + $0x190] sm:$0xff]
      %v3695 = vld [vmem:[%s6 + $0x198] sm:$0xff]
      %v3696 = vld [vmem:[%s6 + $0x1a0] sm:$0xff]
      %v3697 = vld [vmem:[%s6 + $0x1a8] sm:$0xff]
      %3699 = vset.pattern.permute.xlu0 0
      %3700 = vperm.xlu0 %3699, %v3644
      %v3701 = vpop.permute.xlu0 %3700
      %3704 = vset.pattern.permute.xlu0 0
      %3705 = vperm.xlu0 %3704, %v3645
      %v3706 = vpop.permute.xlu0 %3705
      %3709 = vset.pattern.permute.xlu0 0
      %3710 = vperm.xlu0 %3709, %v3646
      %v3711 = vpop.permute.xlu0 %3710
      %3714 = vset.pattern.permute.xlu0 0
      %3715 = vperm.xlu0 %3714, %v3647
      %v3716 = vpop.permute.xlu0 %3715
      %3719 = vset.pattern.permute.xlu0 0
      %3720 = vperm.xlu0 %3719, %v3648
      %v3721 = vpop.permute.xlu0 %3720
      %3724 = vset.pattern.permute.xlu0 0
      %3725 = vperm.xlu0 %3724, %v3649
      %v3726 = vpop.permute.xlu0 %3725
      %3729 = vset.pattern.permute.xlu0 0
      %3730 = vperm.xlu0 %3729, %v3650
      %v3731 = vpop.permute.xlu0 %3730
      %3734 = vset.pattern.permute.xlu0 0
      %3735 = vperm.xlu0 %3734, %v3651
      %v3736 = vpop.permute.xlu0 %3735
      %3739 = vset.pattern.permute.xlu0 0
      %3740 = vperm.xlu0 %3739, %v3652
      %v3741 = vpop.permute.xlu0 %3740
      %3744 = vset.pattern.permute.xlu0 0
      %3745 = vperm.xlu0 %3744, %v3653
      %v3746 = vpop.permute.xlu0 %3745
      %3749 = vset.pattern.permute.xlu0 0
      %3750 = vperm.xlu0 %3749, %v3654
      %v3751 = vpop.permute.xlu0 %3750
      %3754 = vset.pattern.permute.xlu0 0
      %3755 = vperm.xlu0 %3754, %v3655
      %v3756 = vpop.permute.xlu0 %3755
      %3759 = vset.pattern.permute.xlu0 0
      %3760 = vperm.xlu0 %3759, %v3656
      %v3761 = vpop.permute.xlu0 %3760
      %3764 = vset.pattern.permute.xlu0 0
      %3765 = vperm.xlu0 %3764, %v3657
      %v3766 = vpop.permute.xlu0 %3765
      %3769 = vset.pattern.permute.xlu0 0
      %3770 = vperm.xlu0 %3769, %v3658
      %v3771 = vpop.permute.xlu0 %3770
      %3774 = vset.pattern.permute.xlu0 0
      %3775 = vperm.xlu0 %3774, %v3659
      %v3776 = vpop.permute.xlu0 %3775
      %3779 = vset.pattern.permute.xlu0 0
      %3780 = vperm.xlu0 %3779, %v3660
      %v3781 = vpop.permute.xlu0 %3780
      %3784 = vset.pattern.permute.xlu0 0
      %3785 = vperm.xlu0 %3784, %v3661
      %v3786 = vpop.permute.xlu0 %3785
      %3789 = vset.pattern.permute.xlu0 0
      %3790 = vperm.xlu0 %3789, %v3662
      %v3791 = vpop.permute.xlu0 %3790
      %3794 = vset.pattern.permute.xlu0 0
      %3795 = vperm.xlu0 %3794, %v3663
      %v3796 = vpop.permute.xlu0 %3795
      %3799 = vset.pattern.permute.xlu0 0
      %3800 = vperm.xlu0 %3799, %v3664
      %v3801 = vpop.permute.xlu0 %3800
      %3804 = vset.pattern.permute.xlu0 0
      %3805 = vperm.xlu0 %3804, %v3665
      %v3806 = vpop.permute.xlu0 %3805
      %3809 = vset.pattern.permute.xlu0 0
      %3810 = vperm.xlu0 %3809, %v3666
      %v3811 = vpop.permute.xlu0 %3810
      %3814 = vset.pattern.permute.xlu0 0
      %3815 = vperm.xlu0 %3814, %v3667
      %v3816 = vpop.permute.xlu0 %3815
      %3819 = vset.pattern.permute.xlu0 0
      %3820 = vperm.xlu0 %3819, %v3668
      %v3821 = vpop.permute.xlu0 %3820
      %3824 = vset.pattern.permute.xlu0 0
      %3825 = vperm.xlu0 %3824, %v3669
      %v3826 = vpop.permute.xlu0 %3825
      %3829 = vset.pattern.permute.xlu0 0
      %3830 = vperm.xlu0 %3829, %v3670
      %v3831 = vpop.permute.xlu0 %3830
      %3834 = vset.pattern.permute.xlu0 0
      %3835 = vperm.xlu0 %3834, %v3671
      %v3836 = vpop.permute.xlu0 %3835
      %3839 = vset.pattern.permute.xlu0 0
      %3840 = vperm.xlu0 %3839, %v3672
      %v3841 = vpop.permute.xlu0 %3840
      %3844 = vset.pattern.permute.xlu0 0
      %3845 = vperm.xlu0 %3844, %v3673
      %v3846 = vpop.permute.xlu0 %3845
      %3849 = vset.pattern.permute.xlu0 0
      %3850 = vperm.xlu0 %3849, %v3674
      %v3851 = vpop.permute.xlu0 %3850
      %3854 = vset.pattern.permute.xlu0 0
      %3855 = vperm.xlu0 %3854, %v3675
      %v3856 = vpop.permute.xlu0 %3855
      %3859 = vset.pattern.permute.xlu0 0
      %3860 = vperm.xlu0 %3859, %v3676
      %v3861 = vpop.permute.xlu0 %3860
      %3864 = vset.pattern.permute.xlu0 0
      %3865 = vperm.xlu0 %3864, %v3677
      %v3866 = vpop.permute.xlu0 %3865
      %3869 = vset.pattern.permute.xlu0 0
      %3870 = vperm.xlu0 %3869, %v3678
      %v3871 = vpop.permute.xlu0 %3870
      %3874 = vset.pattern.permute.xlu0 0
      %3875 = vperm.xlu0 %3874, %v3679
      %v3876 = vpop.permute.xlu0 %3875
      %3879 = vset.pattern.permute.xlu0 0
      %3880 = vperm.xlu0 %3879, %v3680
      %v3881 = vpop.permute.xlu0 %3880
      %3884 = vset.pattern.permute.xlu0 0
      %3885 = vperm.xlu0 %3884, %v3681
      %v3886 = vpop.permute.xlu0 %3885
      %3889 = vset.pattern.permute.xlu0 0
      %3890 = vperm.xlu0 %3889, %v3682
      %v3891 = vpop.permute.xlu0 %3890
      %3894 = vset.pattern.permute.xlu0 0
      %3895 = vperm.xlu0 %3894, %v3683
      %v3896 = vpop.permute.xlu0 %3895
      %3899 = vset.pattern.permute.xlu0 0
      %3900 = vperm.xlu0 %3899, %v3684
      %v3901 = vpop.permute.xlu0 %3900
      %3904 = vset.pattern.permute.xlu0 0
      %3905 = vperm.xlu0 %3904, %v3685
      %v3906 = vpop.permute.xlu0 %3905
      %3909 = vset.pattern.permute.xlu0 0
      %3910 = vperm.xlu0 %3909, %v3686
      %v3911 = vpop.permute.xlu0 %3910
      %3914 = vset.pattern.permute.xlu0 0
      %3915 = vperm.xlu0 %3914, %v3687
      %v3916 = vpop.permute.xlu0 %3915
      %3919 = vset.pattern.permute.xlu0 0
      %3920 = vperm.xlu0 %3919, %v3688
      %v3921 = vpop.permute.xlu0 %3920
      %3924 = vset.pattern.permute.xlu0 0
      %3925 = vperm.xlu0 %3924, %v3689
      %v3926 = vpop.permute.xlu0 %3925
      %3929 = vset.pattern.permute.xlu0 0
      %3930 = vperm.xlu0 %3929, %v3690
      %v3931 = vpop.permute.xlu0 %3930
      %3934 = vset.pattern.permute.xlu0 0
      %3935 = vperm.xlu0 %3934, %v3691
      %v3936 = vpop.permute.xlu0 %3935
      %3939 = vset.pattern.permute.xlu0 0
      %3940 = vperm.xlu0 %3939, %v3692
      %v3941 = vpop.permute.xlu0 %3940
      %3944 = vset.pattern.permute.xlu0 0
      %3945 = vperm.xlu0 %3944, %v3693
      %v3946 = vpop.permute.xlu0 %3945
      %3949 = vset.pattern.permute.xlu0 0
      %3950 = vperm.xlu0 %3949, %v3694
      %v3951 = vpop.permute.xlu0 %3950
      %3954 = vset.pattern.permute.xlu0 0
      %3955 = vperm.xlu0 %3954, %v3695
      %v3956 = vpop.permute.xlu0 %3955
      %3959 = vset.pattern.permute.xlu0 0
      %3960 = vperm.xlu0 %3959, %v3696
      %v3961 = vpop.permute.xlu0 %3960
      %3964 = vset.pattern.permute.xlu0 0
      %3965 = vperm.xlu0 %3964, %v3697
      %v3966 = vpop.permute.xlu0 %3965
      %v3968 = vmul.f32 %v3322, %v3701
      %v3969 = vmul.f32 %v3327, %v3706
      %v3970 = vmul.f32 %v3332, %v3711
      %v3971 = vmul.f32 %v3337, %v3716
      %v3972 = vmul.f32 %v3342, %v3721
      %v3973 = vmul.f32 %v3347, %v3726
      %v3974 = vmul.f32 %v3352, %v3731
      %v3975 = vmul.f32 %v3357, %v3736
      %v3976 = vmul.f32 %v3362, %v3741
      %v3977 = vmul.f32 %v3367, %v3746
      %v3978 = vmul.f32 %v3372, %v3751
      %v3979 = vmul.f32 %v3377, %v3756
      %v3980 = vmul.f32 %v3382, %v3761
      %v3981 = vmul.f32 %v3387, %v3766
      %v3982 = vmul.f32 %v3392, %v3771
      %v3983 = vmul.f32 %v3397, %v3776
      %v3984 = vmul.f32 %v3402, %v3781
      %v3985 = vmul.f32 %v3407, %v3786
      %v3986 = vmul.f32 %v3412, %v3791
      %v3987 = vmul.f32 %v3417, %v3796
      %v3988 = vmul.f32 %v3422, %v3801
      %v3989 = vmul.f32 %v3427, %v3806
      %v3990 = vmul.f32 %v3432, %v3811
      %v3991 = vmul.f32 %v3437, %v3816
      %v3992 = vmul.f32 %v3442, %v3821
      %v3993 = vmul.f32 %v3447, %v3826
      %v3994 = vmul.f32 %v3452, %v3831
      %v3995 = vmul.f32 %v3457, %v3836
      %v3996 = vmul.f32 %v3462, %v3841
      %v3997 = vmul.f32 %v3467, %v3846
      %v3998 = vmul.f32 %v3472, %v3851
      %v3999 = vmul.f32 %v3477, %v3856
      %v4000 = vmul.f32 %v3482, %v3861
      %v4001 = vmul.f32 %v3487, %v3866
      %v4002 = vmul.f32 %v3492, %v3871
      %v4003 = vmul.f32 %v3497, %v3876
      %v4004 = vmul.f32 %v3502, %v3881
      %v4005 = vmul.f32 %v3507, %v3886
      %v4006 = vmul.f32 %v3512, %v3891
      %v4007 = vmul.f32 %v3517, %v3896
      %v4008 = vmul.f32 %v3522, %v3901
      %v4009 = vmul.f32 %v3527, %v3906
      %v4010 = vmul.f32 %v3532, %v3911
      %v4011 = vmul.f32 %v3537, %v3916
      %v4012 = vmul.f32 %v3542, %v3921
      %v4013 = vmul.f32 %v3547, %v3926
      %v4014 = vmul.f32 %v3552, %v3931
      %v4015 = vmul.f32 %v3557, %v3936
      %v4016 = vmul.f32 %v3562, %v3941
      %v4017 = vmul.f32 %v3567, %v3946
      %v4018 = vmul.f32 %v3572, %v3951
      %v4019 = vmul.f32 %v3577, %v3956
      %v4020 = vmul.f32 %v3582, %v3961
      %v4021 = vmul.f32 %v3587, %v3966
      %v4022 = vsel %vm2636, %v3968, 0.0
      %v4023 = vsel %vm2636, %v3969, 0.0
      %v4024 = vadd.f32 %v4022, %v4023
      %v4025 = vsel %vm2636, %v3970, 0.0
      %v4026 = vadd.f32 %v4024, %v4025
      %v4027 = vsel %vm2636, %v3971, 0.0
      %v4028 = vadd.f32 %v4026, %v4027
      %v4029 = vsel %vm2636, %v3972, 0.0
      %v4030 = vadd.f32 %v4028, %v4029
      %v4031 = vsel %vm2636, %v3973, 0.0
      %v4032 = vadd.f32 %v4030, %v4031
      %v4033 = vsel %vm2636, %v3974, 0.0
      %v4034 = vadd.f32 %v4032, %v4033
      %v4035 = vsel %vm2636, %v3975, 0.0
      %v4036 = vadd.f32 %v4034, %v4035
      %v4037 = vsel %vm2636, %v3976, 0.0
      %v4038 = vadd.f32 %v4036, %v4037
      %v4039 = vsel %vm2636, %v3977, 0.0
      %v4040 = vadd.f32 %v4038, %v4039
      %v4041 = vsel %vm2636, %v3978, 0.0
      %v4042 = vadd.f32 %v4040, %v4041
      %v4043 = vsel %vm2636, %v3979, 0.0
      %v4044 = vadd.f32 %v4042, %v4043
      %v4045 = vsel %vm2636, %v3980, 0.0
      %v4046 = vadd.f32 %v4044, %v4045
      %v4047 = vsel %vm2636, %v3981, 0.0
      %v4048 = vadd.f32 %v4046, %v4047
      %v4049 = vsel %vm2636, %v3982, 0.0
      %v4050 = vadd.f32 %v4048, %v4049
      %v4051 = vsel %vm2636, %v3983, 0.0
      %v4052 = vadd.f32 %v4050, %v4051
      %v4053 = vsel %vm2636, %v3984, 0.0
      %v4054 = vadd.f32 %v4052, %v4053
      %v4055 = vsel %vm2636, %v3985, 0.0
      %v4056 = vadd.f32 %v4054, %v4055
      %v4057 = vsel %vm2636, %v3986, 0.0
      %v4058 = vadd.f32 %v4056, %v4057
      %v4059 = vsel %vm2636, %v3987, 0.0
      %v4060 = vadd.f32 %v4058, %v4059
      %v4061 = vsel %vm2636, %v3988, 0.0
      %v4062 = vadd.f32 %v4060, %v4061
      %v4063 = vsel %vm2636, %v3989, 0.0
      %v4064 = vadd.f32 %v4062, %v4063
      %v4065 = vsel %vm2636, %v3990, 0.0
      %v4066 = vadd.f32 %v4064, %v4065
      %v4067 = vsel %vm2636, %v3991, 0.0
      %v4068 = vadd.f32 %v4066, %v4067
      %v4069 = vsel %vm2636, %v3992, 0.0
      %v4070 = vadd.f32 %v4068, %v4069
      %v4071 = vsel %vm2636, %v3993, 0.0
      %v4072 = vadd.f32 %v4070, %v4071
      %v4073 = vsel %vm2636, %v3994, 0.0
      %v4074 = vadd.f32 %v4072, %v4073
      %v4075 = vsel %vm2636, %v3995, 0.0
      %v4076 = vadd.f32 %v4074, %v4075
      %v4077 = vsel %vm2636, %v3996, 0.0
      %v4078 = vadd.f32 %v4076, %v4077
      %v4079 = vsel %vm2636, %v3997, 0.0
      %v4080 = vadd.f32 %v4078, %v4079
      %v4081 = vsel %vm2636, %v3998, 0.0
      %v4082 = vadd.f32 %v4080, %v4081
      %v4083 = vsel %vm2636, %v3999, 0.0
      %v4084 = vadd.f32 %v4082, %v4083
      %v4085 = vsel %vm2636, %v4000, 0.0
      %v4086 = vadd.f32 %v4084, %v4085
      %v4087 = vsel %vm2636, %v4001, 0.0
      %v4088 = vadd.f32 %v4086, %v4087
      %v4089 = vsel %vm2636, %v4002, 0.0
      %v4090 = vadd.f32 %v4088, %v4089
      %v4091 = vsel %vm2636, %v4003, 0.0
      %v4092 = vadd.f32 %v4090, %v4091
      %v4093 = vsel %vm2636, %v4004, 0.0
      %v4094 = vadd.f32 %v4092, %v4093
      %v4095 = vsel %vm2636, %v4005, 0.0
      %v4096 = vadd.f32 %v4094, %v4095
      %v4097 = vsel %vm2636, %v4006, 0.0
      %v4098 = vadd.f32 %v4096, %v4097
      %v4099 = vsel %vm2636, %v4007, 0.0
      %v4100 = vadd.f32 %v4098, %v4099
      %v4101 = vsel %vm2636, %v4008, 0.0
      %v4102 = vadd.f32 %v4100, %v4101
      %v4103 = vsel %vm2636, %v4009, 0.0
      %v4104 = vadd.f32 %v4102, %v4103
      %v4105 = vsel %vm2636, %v4010, 0.0
      %v4106 = vadd.f32 %v4104, %v4105
      %v4107 = vsel %vm2636, %v4011, 0.0
      %v4108 = vadd.f32 %v4106, %v4107
      %v4109 = vsel %vm2636, %v4012, 0.0
      %v4110 = vadd.f32 %v4108, %v4109
      %v4111 = vsel %vm2636, %v4013, 0.0
      %v4112 = vadd.f32 %v4110, %v4111
      %v4113 = vsel %vm2636, %v4014, 0.0
      %v4114 = vadd.f32 %v4112, %v4113
      %v4115 = vsel %vm2636, %v4015, 0.0
      %v4116 = vadd.f32 %v4114, %v4115
      %v4117 = vsel %vm2636, %v4016, 0.0
      %v4118 = vadd.f32 %v4116, %v4117
      %v4119 = vsel %vm2636, %v4017, 0.0
      %v4120 = vadd.f32 %v4118, %v4119
      %v4121 = vsel %vm2636, %v4018, 0.0
      %v4122 = vadd.f32 %v4120, %v4121
      %v4123 = vsel %vm2636, %v4019, 0.0
      %v4124 = vadd.f32 %v4122, %v4123
      %v4125 = vsel %vm2636, %v4020, 0.0
      %v4126 = vadd.f32 %v4124, %v4125
      %v4127 = vsel %vm2636, %v4021, 0.0
      %v4128 = vadd.f32 %v4126, %v4127
      %v4129 = vrot.slane %v4128, 4
      %v4130 = vadd.f32 %v4128, %v4129
      %v4131 = vrot.slane %v4130, 2
      %v4132 = vadd.f32 %v4130, %v4131
      %v4133 = vrot.slane %v4132, 1
      %v4134 = vadd.f32 %v4132, %v4133
      %vm4135 = vcmask 24576
      %4136 = vst.msk [vmem:[%s346] sm:$0x1] %vm4135, %v4134
      %v4137 = vmul.f32 %v3322, %v3968
      %v4138 = vmul.f32 %v3327, %v3969
      %v4139 = vmul.f32 %v3332, %v3970
      %v4140 = vmul.f32 %v3337, %v3971
      %v4141 = vmul.f32 %v3342, %v3972
      %v4142 = vmul.f32 %v3347, %v3973
      %v4143 = vmul.f32 %v3352, %v3974
      %v4144 = vmul.f32 %v3357, %v3975
      %v4145 = vmul.f32 %v3362, %v3976
      %v4146 = vmul.f32 %v3367, %v3977
      %v4147 = vmul.f32 %v3372, %v3978
      %v4148 = vmul.f32 %v3377, %v3979
      %v4149 = vmul.f32 %v3382, %v3980
      %v4150 = vmul.f32 %v3387, %v3981
      %v4151 = vmul.f32 %v3392, %v3982
      %v4152 = vmul.f32 %v3397, %v3983
      %v4153 = vmul.f32 %v3402, %v3984
      %v4154 = vmul.f32 %v3407, %v3985
      %v4155 = vmul.f32 %v3412, %v3986
      %v4156 = vmul.f32 %v3417, %v3987
      %v4157 = vmul.f32 %v3422, %v3988
      %v4158 = vmul.f32 %v3427, %v3989
      %v4159 = vmul.f32 %v3432, %v3990
      %v4160 = vmul.f32 %v3437, %v3991
      %v4161 = vmul.f32 %v3442, %v3992
      %v4162 = vmul.f32 %v3447, %v3993
      %v4163 = vmul.f32 %v3452, %v3994
      %v4164 = vmul.f32 %v3457, %v3995
      %v4165 = vmul.f32 %v3462, %v3996
      %v4166 = vmul.f32 %v3467, %v3997
      %v4167 = vmul.f32 %v3472, %v3998
      %v4168 = vmul.f32 %v3477, %v3999
      %v4169 = vmul.f32 %v3482, %v4000
      %v4170 = vmul.f32 %v3487, %v4001
      %v4171 = vmul.f32 %v3492, %v4002
      %v4172 = vmul.f32 %v3497, %v4003
      %v4173 = vmul.f32 %v3502, %v4004
      %v4174 = vmul.f32 %v3507, %v4005
      %v4175 = vmul.f32 %v3512, %v4006
      %v4176 = vmul.f32 %v3517, %v4007
      %v4177 = vmul.f32 %v3522, %v4008
      %v4178 = vmul.f32 %v3527, %v4009
      %v4179 = vmul.f32 %v3532, %v4010
      %v4180 = vmul.f32 %v3537, %v4011
      %v4181 = vmul.f32 %v3542, %v4012
      %v4182 = vmul.f32 %v3547, %v4013
      %v4183 = vmul.f32 %v3552, %v4014
      %v4184 = vmul.f32 %v3557, %v4015
      %v4185 = vmul.f32 %v3562, %v4016
      %v4186 = vmul.f32 %v3567, %v4017
      %v4187 = vmul.f32 %v3572, %v4018
      %v4188 = vmul.f32 %v3577, %v4019
      %v4189 = vmul.f32 %v3582, %v4020
      %v4190 = vmul.f32 %v3587, %v4021
      %v4191 = vsel %vm2636, %v4137, 0.0
      %v4192 = vsel %vm2636, %v4138, 0.0
      %v4193 = vadd.f32 %v4191, %v4192
      %v4194 = vsel %vm2636, %v4139, 0.0
      %v4195 = vadd.f32 %v4193, %v4194
      %v4196 = vsel %vm2636, %v4140, 0.0
      %v4197 = vadd.f32 %v4195, %v4196
      %v4198 = vsel %vm2636, %v4141, 0.0
      %v4199 = vadd.f32 %v4197, %v4198
      %v4200 = vsel %vm2636, %v4142, 0.0
      %v4201 = vadd.f32 %v4199, %v4200
      %v4202 = vsel %vm2636, %v4143, 0.0
      %v4203 = vadd.f32 %v4201, %v4202
      %v4204 = vsel %vm2636, %v4144, 0.0
      %v4205 = vadd.f32 %v4203, %v4204
      %v4206 = vsel %vm2636, %v4145, 0.0
      %v4207 = vadd.f32 %v4205, %v4206
      %v4208 = vsel %vm2636, %v4146, 0.0
      %v4209 = vadd.f32 %v4207, %v4208
      %v4210 = vsel %vm2636, %v4147, 0.0
      %v4211 = vadd.f32 %v4209, %v4210
      %v4212 = vsel %vm2636, %v4148, 0.0
      %v4213 = vadd.f32 %v4211, %v4212
      %v4214 = vsel %vm2636, %v4149, 0.0
      %v4215 = vadd.f32 %v4213, %v4214
      %v4216 = vsel %vm2636, %v4150, 0.0
      %v4217 = vadd.f32 %v4215, %v4216
      %v4218 = vsel %vm2636, %v4151, 0.0
      %v4219 = vadd.f32 %v4217, %v4218
      %v4220 = vsel %vm2636, %v4152, 0.0
      %v4221 = vadd.f32 %v4219, %v4220
      %v4222 = vsel %vm2636, %v4153, 0.0
      %v4223 = vadd.f32 %v4221, %v4222
      %v4224 = vsel %vm2636, %v4154, 0.0
      %v4225 = vadd.f32 %v4223, %v4224
      %v4226 = vsel %vm2636, %v4155, 0.0
      %v4227 = vadd.f32 %v4225, %v4226
      %v4228 = vsel %vm2636, %v4156, 0.0
      %v4229 = vadd.f32 %v4227, %v4228
      %v4230 = vsel %vm2636, %v4157, 0.0
      %v4231 = vadd.f32 %v4229, %v4230
      %v4232 = vsel %vm2636, %v4158, 0.0
      %v4233 = vadd.f32 %v4231, %v4232
      %v4234 = vsel %vm2636, %v4159, 0.0
      %v4235 = vadd.f32 %v4233, %v4234
      %v4236 = vsel %vm2636, %v4160, 0.0
      %v4237 = vadd.f32 %v4235, %v4236
      %v4238 = vsel %vm2636, %v4161, 0.0
      %v4239 = vadd.f32 %v4237, %v4238
      %v4240 = vsel %vm2636, %v4162, 0.0
      %v4241 = vadd.f32 %v4239, %v4240
      %v4242 = vsel %vm2636, %v4163, 0.0
      %v4243 = vadd.f32 %v4241, %v4242
      %v4244 = vsel %vm2636, %v4164, 0.0
      %v4245 = vadd.f32 %v4243, %v4244
      %v4246 = vsel %vm2636, %v4165, 0.0
      %v4247 = vadd.f32 %v4245, %v4246
      %v4248 = vsel %vm2636, %v4166, 0.0
      %v4249 = vadd.f32 %v4247, %v4248
      %v4250 = vsel %vm2636, %v4167, 0.0
      %v4251 = vadd.f32 %v4249, %v4250
      %v4252 = vsel %vm2636, %v4168, 0.0
      %v4253 = vadd.f32 %v4251, %v4252
      %v4254 = vsel %vm2636, %v4169, 0.0
      %v4255 = vadd.f32 %v4253, %v4254
      %v4256 = vsel %vm2636, %v4170, 0.0
      %v4257 = vadd.f32 %v4255, %v4256
      %v4258 = vsel %vm2636, %v4171, 0.0
      %v4259 = vadd.f32 %v4257, %v4258
      %v4260 = vsel %vm2636, %v4172, 0.0
      %v4261 = vadd.f32 %v4259, %v4260
      %v4262 = vsel %vm2636, %v4173, 0.0
      %v4263 = vadd.f32 %v4261, %v4262
      %v4264 = vsel %vm2636, %v4174, 0.0
      %v4265 = vadd.f32 %v4263, %v4264
      %v4266 = vsel %vm2636, %v4175, 0.0
      %v4267 = vadd.f32 %v4265, %v4266
      %v4268 = vsel %vm2636, %v4176, 0.0
      %v4269 = vadd.f32 %v4267, %v4268
      %v4270 = vsel %vm2636, %v4177, 0.0
      %v4271 = vadd.f32 %v4269, %v4270
      %v4272 = vsel %vm2636, %v4178, 0.0
      %v4273 = vadd.f32 %v4271, %v4272
      %v4274 = vsel %vm2636, %v4179, 0.0
      %v4275 = vadd.f32 %v4273, %v4274
      %v4276 = vsel %vm2636, %v4180, 0.0
      %v4277 = vadd.f32 %v4275, %v4276
      %v4278 = vsel %vm2636, %v4181, 0.0
      %v4279 = vadd.f32 %v4277, %v4278
      %v4280 = vsel %vm2636, %v4182, 0.0
      %v4281 = vadd.f32 %v4279, %v4280
      %v4282 = vsel %vm2636, %v4183, 0.0
      %v4283 = vadd.f32 %v4281, %v4282
      %v4284 = vsel %vm2636, %v4184, 0.0
      %v4285 = vadd.f32 %v4283, %v4284
      %v4286 = vsel %vm2636, %v4185, 0.0
      %v4287 = vadd.f32 %v4285, %v4286
      %v4288 = vsel %vm2636, %v4186, 0.0
      %v4289 = vadd.f32 %v4287, %v4288
      %v4290 = vsel %vm2636, %v4187, 0.0
      %v4291 = vadd.f32 %v4289, %v4290
      %v4292 = vsel %vm2636, %v4188, 0.0
      %v4293 = vadd.f32 %v4291, %v4292
      %v4294 = vsel %vm2636, %v4189, 0.0
      %v4295 = vadd.f32 %v4293, %v4294
      %v4296 = vsel %vm2636, %v4190, 0.0
      %v4297 = vadd.f32 %v4295, %v4296
      %v4298 = vrot.slane %v4297, 4
      %v4299 = vadd.f32 %v4297, %v4298
      %v4300 = vrot.slane %v4299, 2
      %v4301 = vadd.f32 %v4299, %v4300
      %v4302 = vrot.slane %v4301, 1
      %v4303 = vadd.f32 %v4301, %v4302
      %4304 = vst.msk [vmem:[%s349] sm:$0x1] %vm4135, %v4303
      %p4305 = scmp.lt.s32.totalorder %s21, 1
      %s4306 = scalar_select %p4305, %s21, 1
      %s4307 = smul.addr %s4306, 54
      %s4308 = smul.addr %s4307, 8
      %s4309 = scalar_lea.vmem %s7, %s4308
      %p4310 = scmp.lt.s32.totalorder %s21, 1
      %s4311 = scalar_select %p4310, %s21, 1
      %s4312 = scalar_lea.vmem %s8, %s4311
      %p4313 = scmp.lt.s32.totalorder %s21, 1
      %s4314 = scalar_select %p4313, %s21, 1
      %s4315 = scalar_lea.vmem %s9, %s4314
      // Predicated region
      $region49: #{up_forward.3} parent=47 // pred_check
        %p4316 = pneg %p191
      $region50: #{up_forward.3} parent=47 // pred_check_branch
        %4318 = sbr.rel (%p4316) target = $region52
      $region51: #{up_forward.3} parent=47 // pred_region
        _
      $region52: #{up_forward.3} parent=47 // pred_fallthru
        _
      // Predicated region
      $region53: #{up_forward.3} parent=47 // pred_check
        %p4319 = pneg %p217
      $region54: #{up_forward.3} parent=47 // pred_check_branch
        %4321 = sbr.rel (%p4319) target = $region56
      $region55: #{up_forward.3} parent=47 // pred_region
        _
      $region56: #{up_forward.3} parent=47 // pred_fallthru
        _
      // Predicated region
      $region57: #{up_forward.3} parent=47 // pred_check
        %p4322 = pneg %p243
      $region58: #{up_forward.3} parent=47 // pred_check_branch
        %4324 = sbr.rel (%p4322) target = $region60
      $region59: #{up_forward.3} parent=47 // pred_region
        _
      $region60: #{up_forward.3} parent=47 // pred_fallthru
        _
    $region48: #{up_forward.3} parent=5 // pred_fallthru
      _
    %p4325 = scmp.le.s32.totalorder 2, %s16
    // Predicated region
    $region61: #{up_forward.3} parent=5 // pred_check
      %p4326 = pneg %p4325
    $region62: #{up_forward.3} parent=5 // pred_check_branch
      %4328 = sbr.rel (%p4326) target = $region64
    $region63: #{up_forward.3} parent=5 // pred_region
      %s4329 = ssub.s32 %s16, 2
      // Predicated region
      $region65: #{up_forward.3} parent=63 // pred_check
        %p4330 = pneg %p197
      $region66: #{up_forward.3} parent=63 // pred_check_branch
        %4332 = sbr.rel (%p4330) target = $region68
      $region67: #{up_forward.3} parent=63 // pred_region
        %p4333 = scmp.lt.s32.totalorder %s22, 1
        %s4334 = scalar_select %p4333, %s22, 1
        %s4335 = smul.addr %s4334, 54
        %s4336 = smul.addr %s4335, 8
        %s4337 = scalar_lea.vmem %s7, %s4336
      $region68: #{up_forward.3} parent=63 // pred_fallthru
        _
      // Predicated region
      $region69: #{up_forward.3} parent=63 // pred_check
        %p4338 = pneg %p223
      $region70: #{up_forward.3} parent=63 // pred_check_branch
        %4340 = sbr.rel (%p4338) target = $region72
      $region71: #{up_forward.3} parent=63 // pred_region
        %p4341 = scmp.lt.s32.totalorder %s22, 1
        %s4342 = scalar_select %p4341, %s22, 1
        %s4343 = scalar_lea.vmem %s8, %s4342
      $region72: #{up_forward.3} parent=63 // pred_fallthru
        _
      // Predicated region
      $region73: #{up_forward.3} parent=63 // pred_check
        %p4344 = pneg %p249
      $region74: #{up_forward.3} parent=63 // pred_check_branch
        %4346 = sbr.rel (%p4344) target = $region76
      $region75: #{up_forward.3} parent=63 // pred_region
        %p4347 = scmp.lt.s32.totalorder %s22, 1
        %s4348 = scalar_select %p4347, %s22, 1
        %s4349 = scalar_lea.vmem %s9, %s4348
      $region76: #{up_forward.3} parent=63 // pred_fallthru
        _
    $region64: #{up_forward.3} parent=5 // pred_fallthru
      _
  $region6: #{up_forward.3} parent=0 // loop_footer
    %s20 = sadd.s32 1, %s16
  $region7: #{up_forward.3} parent=0 // loop_footer_branch
    %15 = sbr.rel target = $region3
  $region8: #{up_forward.3} parent=0 // loop_exit
    _

</llo_original>
